<compile_context>
chip_gen: v7x
topology: tpu7x:2x2x1
jax: 0.10.0
libtpu: 0.0.40
codegen_flags: <defaults>
</compile_context>

<pallas_src>
import math

import numpy as np
import jax
import jax.numpy as jnp
from jax.experimental import pallas as pl
from jax.experimental.pallas import tpu as pltpu

# ----------------------------- config --------------------------------------
B = 2                 # batch
IN_CH = 3             # RGB input
H0 = W0 = 16          # original image size
IMG_SIZE = 32         # image_encoder.img_size (small synthetic value)
PATCH = 8             # patch embed kernel = stride
HP = WP = IMG_SIZE // PATCH          # 4 x 4 token grid
TOK = HP * WP                        # 16 tokens per image
EMBED = 64            # ViT embed dim
HEADS = 2
HD = EMBED // HEADS
DEPTH = 3
MLP = 4 * EMBED
OUT_CH = 256          # neck out channels == 2 * PositionEmbeddingRandom(128)
NUM_MASKS = 3
LANE = 128            # lane-dense slab width for the tiny mask / iou heads

REDUCED = 256         # hard-coded 256x256 gray image in the reference forward
GKSIZE = 31           # Gabor kernel size
GHALF = GKSIZE // 2
NUM_GABOR = 12        # 3 scales x 4 orientations
KWIN = GKSIZE * GKSIZE               # 961
KWIN_PAD = 1024                      # Gabor contraction dim, zero-padded (lane aligned)
TEX_K = 9 * NUM_GABOR                # 108
TEX_K_PAD = LANE                     # 128 (zero-padded contraction dim)

_SQRT1_2 = 0.7071067811865476


# ----------------------------- in-kernel helpers ----------------------------
def _gelu(x):
    # exact (erf) GELU, matching torch.nn.GELU()
    return 0.5 * x * (1.0 + jax.lax.erf(x * _SQRT1_2))


def _mxu(a, b):
    # bf16 MXU operands, f32 accumulation.  Weights are already bf16 at init,
    # so the astype on them is a trace-time no-op (no VPU cast emitted).
    return jnp.dot(a.astype(jnp.bfloat16), b.astype(jnp.bfloat16),
                   preferred_element_type=jnp.float32)


def _ln(x, g, b, eps):
    mu = jnp.mean(x, axis=-1, keepdims=True)
    xc = x - mu
    var = jnp.mean(xc * xc, axis=-1, keepdims=True)
    return xc * jax.lax.rsqrt(var + eps) * g + b


# ----------------------------- fused Pallas kernel ---------------------------
def _fused_kernel(
    xp_ref, pos_ref, pw_ref, pb_ref,
    ln1g_ref, ln1b_ref, qkvw_ref, qkvb_ref, projw_ref, projb_ref,
    ln2g_ref, ln2b_ref, w1_ref, b1_ref, w2_ref, b2_ref,
    nw1_ref, ng1_ref, nb1_ref, sel_ref, nw2_ref, ng2_ref, nb2_ref,
    win_ref, gw_ref, selp_ref, wtex_ref, pe_ref,
    dw1_ref, db1_ref, dw2_ref, db2_ref,
    wm_ref, bm_ref, wi_ref, bi_ref,
    mask_ref, iou_ref,
):
    """One grid step == one image: ViT encoder + neck + Gabor branch + decoder."""
    scale = HD ** -0.5

    # ---- patch embed (+ learned positional embedding) ----
    x = _mxu(xp_ref[...], pw_ref[...]) + pb_ref[...] + pos_ref[...]     # (TOK, EMBED) f32

    # ---- DEPTH transformer blocks (unrolled) ----
    for d in range(DEPTH):
        h = _ln(x, ln1g_ref[d], ln1b_ref[d], 1e-5)
        qkv = _mxu(h, qkvw_ref[d]) + qkvb_ref[d]                        # (TOK, 3*EMBED)
        heads = []
        for hh in range(HEADS):                                          # per-head, no batch loop
            base = hh * 3 * HD
            q = qkv[:, base:base + HD].astype(jnp.bfloat16)
            k = qkv[:, base + HD:base + 2 * HD].astype(jnp.bfloat16)
            v = qkv[:, base + 2 * HD:base + 3 * HD].astype(jnp.bfloat16)
            s = jax.lax.dot_general(q, k, (((1,), (1,)), ((), ())),
                                    preferred_element_type=jnp.float32) * scale
            s = s - jnp.max(s, axis=-1, keepdims=True)
            p = jnp.exp(s)
            p = p * pl.reciprocal(jnp.sum(p, axis=-1, keepdims=True), approx=True)
            heads.append(_mxu(p, v))                                     # (TOK, HD)
        attn = jnp.concatenate(heads, axis=1)                            # (TOK, EMBED)
        x = x + _mxu(attn, projw_ref[d]) + projb_ref[d]
        h2 = _ln(x, ln2g_ref[d], ln2b_ref[d], 1e-5)
        m = _gelu(_mxu(h2, w1_ref[d]) + b1_ref[d])
        x = x + _mxu(m, w2_ref[d]) + b2_ref[d]

    # ---- SAM-style neck: 1x1 conv -> LN -> 3x3 conv -> LN ----
    # 3x3 conv = one stacked token-shift matmul + ONE big K=9*OUT_CH matmul.
    h = _ln(_mxu(x, nw1_ref[...]), ng1_ref[...], nb1_ref[...], 1e-6)     # (TOK, OUT_CH)
    shifted = _mxu(sel_ref[...], h)                                      # (9*TOK, OUT_CH)
    h9 = jnp.concatenate([shifted[t * TOK:(t + 1) * TOK, :] for t in range(9)],
                         axis=1)                                         # (TOK, 9*OUT_CH)
    img_emb = _ln(_mxu(h9, nw2_ref[...]), ng2_ref[...], nb2_ref[...], 1e-6)

    # ---- Gabor texture branch: filter bank + bilinear pool + 3x3 tex_conv ----
    tex = _mxu(win_ref[...], gw_ref[...])                                # (4*TOK, NUM_GABOR)
    ps = _mxu(selp_ref[...], tex)                                        # (9*TOK, NUM_GABOR)
    blocks = [ps[t * TOK:(t + 1) * TOK, :] for t in range(9)]
    blocks.append(jnp.zeros((TOK, TEX_K_PAD - TEX_K), jnp.float32))      # pad K 108 -> 128
    tex9 = jnp.concatenate(blocks, axis=1)                               # (TOK, 128)
    fused = img_emb + _gelu(_mxu(tex9, wtex_ref[...]))                   # img_emb + tex_emb

    # ---- mask decoder ----
    z = fused + pe_ref[...]
    h1 = _gelu(_mxu(z, dw1_ref[...]) + db1_ref[...])
    h2d = _gelu(_mxu(h1, dw2_ref[...]) + db2_ref[...])
    mask_ref[...] = _mxu(h2d, wm_ref[...]) + bm_ref[...]                 # lane-dense slab
    pool = jnp.full((1, TOK), 1.0 / TOK, jnp.float32)                    # per-image mean pool
    iou = _mxu(_mxu(pool, h2d), wi_ref[...]) + bi_ref[...]               # (1, LANE)
    iou_ref[...] = jnp.broadcast_to(iou, (8, LANE))


def _whole_spec(a):
    """Grid-invariant whole-array block (fetched once, shared across grid steps)."""
    if a.ndim == 2:
        return pl.BlockSpec(a.shape, lambda b: (0, 0))
    elif a.ndim == 3:
        return pl.BlockSpec(a.shape, lambda b: (0, 0, 0))
    raise ValueError(f"unsupported ndim {a.ndim}")


def run_fused(xp, windows, p, batch):
    args = [
        xp, p["pos_embed"], p["patch_w"], p["patch_b"],
        p["ln1_g"], p["ln1_b"], p["qkv_w"], p["qkv_b"], p["proj_w"], p["proj_b"],
        p["ln2_g"], p["ln2_b"], p["mlp_w1"], p["mlp_b1"], p["mlp_w2"], p["mlp_b2"],
        p["neck_w1"], p["neck_ln1_g"], p["neck_ln1_b"], p["sel_stack"], p["neck_w2"],
        p["neck_ln2_g"], p["neck_ln2_b"],
        windows, p["gabor_w"], p["selpool_stack"], p["tex_w"], p["pe_tok"],
        p["dec_w1"], p["dec_b1"], p["dec_w2"], p["dec_b2"],
        p["mask_w"], p["mask_b"], p["iou_w"], p["iou_b"],
    ]
    in_specs = []
    for a in args:
        if a is xp:
            in_specs.append(pl.BlockSpec((TOK, a.shape[1]), lambda b: (b, 0)))
        elif a is windows:
            in_specs.append(pl.BlockSpec((4 * TOK, a.shape[1]), lambda b: (b, 0)))
        else:
            in_specs.append(_whole_spec(a))
    out_shape = (jax.ShapeDtypeStruct((batch * TOK, LANE), jnp.float32),
                 jax.ShapeDtypeStruct((batch * 8, LANE), jnp.float32))
    out_specs = (pl.BlockSpec((TOK, LANE), lambda b: (b, 0)),
                 pl.BlockSpec((8, LANE), lambda b: (b, 0)))
    return pl.pallas_call(
        _fused_kernel,
        out_shape=out_shape,
        grid=(batch,),
        in_specs=in_specs,
        out_specs=out_specs,
        compiler_params=pltpu.CompilerParams(dimension_semantics=("parallel",)),
    )(*args)


# ----------------------------- constant builders (trace-time, numpy) --------
def make_gabor_bank(ksize, sigmas, thetas, lambd, gamma=0.5, psi=0.0):
    half = ksize // 2
    xs = np.linspace(-half, half, ksize)
    ys = xs
    y, x = np.meshgrid(ys, xs)
    kernels = []
    for sigma in sigmas:
        for theta in thetas:
            x_t = x * np.cos(theta) + y * np.sin(theta)
            y_t = -x * np.sin(theta) + y * np.cos(theta)
            gb = np.exp(-(x_t ** 2 + (gamma * y_t) ** 2) / (2 * sigma ** 2)) \
                * np.cos(2 * np.pi * x_t / lambd + psi)
            gb -= gb.mean()
            gb /= np.linalg.norm(gb)
            kernels.append(gb)
    bank = np.stack(kernels, axis=0)[:, None, :, :]
    return bank.astype(np.float32)                       # (12, 1, K, K)


def _bilinear_taps(in_size, out_size):
    """F.interpolate(align_corners=False) source taps & weights (no antialias)."""
    pos, wts = [], []
    for i in range(out_size):
        src = (i + 0.5) * in_size / out_size - 0.5
        i0 = int(math.floor(src))
        f = src - i0
        p0 = min(max(i0, 0), in_size - 1)
        p1 = min(max(i0 + 1, 0), in_size - 1)
        pos.extend([p0, p1])
        wts.extend([1.0 - f, f])
    return pos, wts


_YPOS, _YW = _bilinear_taps(REDUCED, HP)
_XPOS, _XW = _bilinear_taps(REDUCED, WP)

# Static index arrays for the ONE gather that extracts all 31x31 windows the
# (Gabor conv + bilinear downsample) actually reads (both ops are linear, so
# this is exact).  Shape (2HP*2WP, K*K) into the zero-padded gray image.
_koff = np.arange(GKSIZE, dtype=np.int32)
_WIN_Y_IDX = np.broadcast_to(
    np.asarray(_YPOS, np.int32)[:, None, None, None] + _koff[None, None, :, None],
    (2 * HP, 2 * WP, GKSIZE, GKSIZE)).reshape(4 * TOK, KWIN).astype(np.int32)
_WIN_X_IDX = np.broadcast_to(
    np.asarray(_XPOS, np.int32)[None, :, None, None] + _koff[None, None, None, :],
    (2 * HP, 2 * WP, GKSIZE, GKSIZE)).reshape(4 * TOK, KWIN).astype(np.int32)


def _build_constants():
    # per-image 0/1 token-shift matrices for a 3x3 (padding=1) conv on (HP, WP),
    # taps stacked on the row axis so a single matmul produces all 9 shifts.
    sel = np.zeros((9, TOK, TOK), np.float32)
    taps = [(dy, dx) for dy in (-1, 0, 1) for dx in (-1, 0, 1)]
    for t, (dy, dx) in enumerate(taps):
        for yy in range(HP):
            for xx in range(WP):
                ys, xs_ = yy + dy, xx + dx
                if 0 <= ys < HP and 0 <= xs_ < WP:
                    sel[t, yy * WP + xx, ys * WP + xs_] = 1.0
    # bilinear downsample matrix: Gabor-sample grid (2HP x 2WP) -> token grid
    P = np.zeros((TOK, 4 * TOK), np.float32)
    for oy in range(HP):
        for ox in range(WP):
            r = oy * WP + ox
            for a in range(2):
                for c in range(2):
                    col = (2 * oy + a) * (2 * WP) + (2 * ox + c)
                    P[r, col] += _YW[2 * oy + a] * _XW[2 * ox + c]
    sel_pool = np.einsum("tij,jk->tik", sel, P)                  # (9, TOK, 4*TOK)
    bank = make_gabor_bank(GKSIZE, [0.56 * s for s in (8, 16, 32)],
                           [0.0, np.pi / 4, np.pi / 2, 3 * np.pi / 4], 6.0)
    gw = bank.reshape(NUM_GABOR, KWIN).T                          # (961, 12)
    gw = np.pad(gw, ((0, KWIN_PAD - KWIN), (0, 0)))               # (1024, 12)
    return dict(
        sel_stack=jnp.asarray(sel.reshape(9 * TOK, TOK), dtype=jnp.bfloat16),
        selpool_stack=jnp.asarray(sel_pool.reshape(9 * TOK, 4 * TOK), dtype=jnp.bfloat16),
        gabor_w=jnp.asarray(gw, dtype=jnp.bfloat16),
    )


def _position_embedding_tokens(gauss, h, w):
    """PositionEmbeddingRandom(128) evaluated on the (h, w) grid, token-major."""
    y_embed = (jnp.arange(h, dtype=jnp.float32) + 0.5) / h
    x_embed = (jnp.arange(w, dtype=jnp.float32) + 0.5) / w
    yy = jnp.broadcast_to(y_embed[:, None], (h, w))
    xx = jnp.broadcast_to(x_embed[None, :], (h, w))
    coords = jnp.stack([xx, yy], axis=-1)
    coords = 2.0 * coords - 1.0
    coords = coords @ gauss
    coords = 2.0 * jnp.pi * coords
    pe = jnp.concatenate([jnp.sin(coords), jnp.cos(coords)], axis=-1)    # (h, w, 256)
    return pe.reshape(h * w, -1).astype(jnp.float32)


# ----------------------------- JAX glue -------------------------------------
def forward(params, x):
    """AutoSamSegGabor.forward"""
    Bs = x.shape[0]
    original_size = x.shape[-1]
    # TODO(synk): F.interpolate(bilinear, align_corners=False) approximated with
    # jax.image.resize for the input up-samples and the final mask up-sample (glue).
    x_up = jax.image.resize(x, (Bs, IN_CH, IMG_SIZE, IMG_SIZE), method="bilinear")
    x_red = jax.image.resize(x_up, (Bs, IN_CH, REDUCED, REDUCED), method="bilinear")

    # patch tokens (bf16, token-major) for the fused kernel
    xp = x_up.reshape(Bs, IN_CH, HP, PATCH, WP, PATCH).transpose(0, 2, 4, 1, 3, 5)
    xp = xp.reshape(Bs * TOK, IN_CH * PATCH * PATCH).astype(jnp.bfloat16)

    # Gabor branch: gray image -> ONE static gather of the 31x31 windows at the
    # bilinear sample points, K zero-padded to 1024, pre-cast to bf16.
    gray = 0.2989 * x_red[:, 0] + 0.587 * x_red[:, 1] + 0.114 * x_red[:, 2]
    gpad = jnp.pad(gray, ((0, 0), (GHALF, GHALF), (GHALF, GHALF)))
    wins = gpad[:, _WIN_Y_IDX, _WIN_X_IDX]                       # (B, 4*TOK, 961)
    windows = wins.reshape(Bs * 4 * TOK, KWIN)
    windows = jnp.pad(windows, ((0, 0), (0, KWIN_PAD - KWIN))).astype(jnp.bfloat16)

    mask_slab, iou_slab = run_fused(xp, windows, params, Bs)
    masks = mask_slab[:, :NUM_MASKS].reshape(Bs, HP, WP, NUM_MASKS).transpose(0, 3, 1, 2)
    iou = iou_slab.reshape(Bs, 8, LANE)[:, 0, :NUM_MASKS]

    if masks.shape[-1] != original_size:
        masks = jax.image.resize(masks, (Bs, NUM_MASKS, original_size, original_size),
                                 method="bilinear")
    return masks, iou


# ----------------------------- params ---------------------------------------
def init_params(key):
    keys = iter(jax.random.split(key, 32))

    def nrm(shape, std=0.02):
        return (std * jax.random.normal(next(keys), shape)).astype(jnp.float32)

    def nrm_bf(shape, std=0.02):
        return nrm(shape, std).astype(jnp.bfloat16)     # weights shipped as bf16

    p = {}
    # patch embed + positional embedding (pos stays f32, added post-matmul)
    p["patch_w"] = nrm_bf((IN_CH * PATCH * PATCH, EMBED))
    p["patch_b"] = jnp.zeros((1, EMBED), jnp.float32)
    p["pos_embed"] = nrm((TOK, EMBED))
    # stacked ViT block weights (leading DEPTH axis, unrolled inside the kernel)
    p["ln1_g"] = jnp.ones((DEPTH, 1, EMBED), jnp.float32)
    p["ln1_b"] = jnp.zeros((DEPTH, 1, EMBED), jnp.float32)
    p["qkv_w"] = nrm_bf((DEPTH, EMBED, 3 * EMBED))
    p["qkv_b"] = jnp.zeros((DEPTH, 1, 3 * EMBED), jnp.float32)
    p["proj_w"] = nrm_bf((DEPTH, EMBED, EMBED))
    p["proj_b"] = jnp.zeros((DEPTH, 1, EMBED), jnp.float32)
    p["ln2_g"] = jnp.ones((DEPTH, 1, EMBED), jnp.float32)
    p["ln2_b"] = jnp.zeros((DEPTH, 1, EMBED), jnp.float32)
    p["mlp_w1"] = nrm_bf((DEPTH, EMBED, MLP))
    p["mlp_b1"] = jnp.zeros((DEPTH, 1, MLP), jnp.float32)
    p["mlp_w2"] = nrm_bf((DEPTH, MLP, EMBED))
    p["mlp_b2"] = jnp.zeros((DEPTH, 1, EMBED), jnp.float32)
    # SAM neck (bias-free convs); 3x3 conv taps stacked on the K axis
    p["neck_w1"] = nrm_bf((EMBED, OUT_CH))
    p["neck_ln1_g"] = jnp.ones((1, OUT_CH), jnp.float32)
    p["neck_ln1_b"] = jnp.zeros((1, OUT_CH), jnp.float32)
    p["neck_w2"] = nrm_bf((9 * OUT_CH, OUT_CH))
    p["neck_ln2_g"] = jnp.ones((1, OUT_CH), jnp.float32)
    p["neck_ln2_b"] = jnp.zeros((1, OUT_CH), jnp.float32)
    # tex_conv: Conv2d(12, OUT_CH, 3, padding=1, bias=False); taps stacked on K,
    # K zero-padded 108 -> 128 (lane-dense contraction)
    tex_w = nrm((TEX_K, OUT_CH))
    p["tex_w"] = jnp.pad(tex_w, ((0, TEX_K_PAD - TEX_K), (0, 0))).astype(jnp.bfloat16)
    # PositionEmbeddingRandom(128): scale * randn(2, 128); PE precomputed (constant per size)
    gauss = jax.random.normal(next(keys), (2, OUT_CH // 2), dtype=jnp.float32)
    p["pe_gauss"] = gauss
    p["pe_tok"] = _position_embedding_tokens(gauss, HP, WP)
    # synthetic mask decoder
    p["dec_w1"] = nrm_bf((OUT_CH, OUT_CH)); p["dec_b1"] = jnp.zeros((1, OUT_CH), jnp.float32)
    p["dec_w2"] = nrm_bf((OUT_CH, OUT_CH)); p["dec_b2"] = jnp.zeros((1, OUT_CH), jnp.float32)
    # lane-dense (padded to 128) mask / IoU heads, padded once at init
    p["mask_w"] = jnp.pad(nrm((OUT_CH, NUM_MASKS)),
                          ((0, 0), (0, LANE - NUM_MASKS))).astype(jnp.bfloat16)
    p["mask_b"] = jnp.zeros((1, LANE), jnp.float32)
    p["iou_w"] = jnp.pad(nrm((OUT_CH, NUM_MASKS)),
                         ((0, 0), (0, LANE - NUM_MASKS))).astype(jnp.bfloat16)
    p["iou_b"] = jnp.zeros((1, LANE), jnp.float32)
    # fixed buffers (Gabor bank, token-shift / pooling matrices), bf16
    p.update(_build_constants())
    return p


# ----------------------------- main ------------------------------------------
if __name__ == "__main__":
    key = jax.random.PRNGKey(0)
    pkey, xkey = jax.random.split(key)
    params = init_params(pkey)
    x = jax.random.normal(xkey, (B, IN_CH, H0, W0), dtype=jnp.float32)
    masks, iou = jax.jit(forward)(params, x)
    jax.block_until_ready((masks, iou))
    assert masks.shape == (B, NUM_MASKS, W0, W0), masks.shape
    assert iou.shape == (B, NUM_MASKS), iou.shape
    assert bool(jnp.all(jnp.isfinite(masks))) and bool(jnp.all(jnp.isfinite(iou)))
    print("KERNEL_OK")
</pallas_src>

<mosaic_0001>
module attributes {stable_mosaic.version = 11 : i64} {
  func.func @_fused_kernel(%arg0: i32, %arg1: memref<16x192xbf16, #tpu.memory_space<vmem>>, %arg2: memref<16x64xf32, #tpu.memory_space<vmem>>, %arg3: memref<192x64xbf16, #tpu.memory_space<vmem>>, %arg4: memref<1x64xf32, #tpu.memory_space<vmem>>, %arg5: memref<3x1x64xf32, #tpu.memory_space<vmem>>, %arg6: memref<3x1x64xf32, #tpu.memory_space<vmem>>, %arg7: memref<3x64x192xbf16, #tpu.memory_space<vmem>>, %arg8: memref<3x1x192xf32, #tpu.memory_space<vmem>>, %arg9: memref<3x64x64xbf16, #tpu.memory_space<vmem>>, %arg10: memref<3x1x64xf32, #tpu.memory_space<vmem>>, %arg11: memref<3x1x64xf32, #tpu.memory_space<vmem>>, %arg12: memref<3x1x64xf32, #tpu.memory_space<vmem>>, %arg13: memref<3x64x256xbf16, #tpu.memory_space<vmem>>, %arg14: memref<3x1x256xf32, #tpu.memory_space<vmem>>, %arg15: memref<3x256x64xbf16, #tpu.memory_space<vmem>>, %arg16: memref<3x1x64xf32, #tpu.memory_space<vmem>>, %arg17: memref<64x256xbf16, #tpu.memory_space<vmem>>, %arg18: memref<1x256xf32, #tpu.memory_space<vmem>>, %arg19: memref<1x256xf32, #tpu.memory_space<vmem>>, %arg20: memref<144x16xbf16, #tpu.memory_space<vmem>>, %arg21: memref<2304x256xbf16, #tpu.memory_space<vmem>>, %arg22: memref<1x256xf32, #tpu.memory_space<vmem>>, %arg23: memref<1x256xf32, #tpu.memory_space<vmem>>, %arg24: memref<64x1024xbf16, #tpu.memory_space<vmem>>, %arg25: memref<1024x12xbf16, #tpu.memory_space<vmem>>, %arg26: memref<144x64xbf16, #tpu.memory_space<vmem>>, %arg27: memref<128x256xbf16, #tpu.memory_space<vmem>>, %arg28: memref<16x256xf32, #tpu.memory_space<vmem>>, %arg29: memref<256x256xbf16, #tpu.memory_space<vmem>>, %arg30: memref<1x256xf32, #tpu.memory_space<vmem>>, %arg31: memref<256x256xbf16, #tpu.memory_space<vmem>>, %arg32: memref<1x256xf32, #tpu.memory_space<vmem>>, %arg33: memref<256x128xbf16, #tpu.memory_space<vmem>>, %arg34: memref<1x128xf32, #tpu.memory_space<vmem>>, %arg35: memref<256x128xbf16, #tpu.memory_space<vmem>>, %arg36: memref<1x128xf32, #tpu.memory_space<vmem>>, %arg37: memref<16x128xf32, #tpu.memory_space<vmem>>, %arg38: memref<8x128xf32, #tpu.memory_space<vmem>>) attributes {dimension_semantics = [#tpu.dimension_semantics<parallel>], iteration_bounds = array<i64: 2>, scalar_prefetch = 0 : i64, scratch_operands = 0 : i64, tpu.core_type = #tpu.core_type<tc>, window_params = [{transform_indices = @transform_0, window_bounds = array<i64: 16, 192>}, {pipeline_mode = #tpu.pipeline_mode<synchronous>, transform_indices = @transform_1, window_bounds = array<i64: 16, 64>}, {pipeline_mode = #tpu.pipeline_mode<synchronous>, transform_indices = @transform_2, window_bounds = array<i64: 192, 64>}, {pipeline_mode = #tpu.pipeline_mode<synchronous>, transform_indices = @transform_3, window_bounds = array<i64: 1, 64>}, {pipeline_mode = #tpu.pipeline_mode<synchronous>, transform_indices = @transform_4, window_bounds = array<i64: 3, 1, 64>}, {pipeline_mode = #tpu.pipeline_mode<synchronous>, transform_indices = @transform_5, window_bounds = array<i64: 3, 1, 64>}, {pipeline_mode = #tpu.pipeline_mode<synchronous>, transform_indices = @transform_6, window_bounds = array<i64: 3, 64, 192>}, {pipeline_mode = #tpu.pipeline_mode<synchronous>, transform_indices = @transform_7, window_bounds = array<i64: 3, 1, 192>}, {pipeline_mode = #tpu.pipeline_mode<synchronous>, transform_indices = @transform_8, window_bounds = array<i64: 3, 64, 64>}, {pipeline_mode = #tpu.pipeline_mode<synchronous>, transform_indices = @transform_9, window_bounds = array<i64: 3, 1, 64>}, {pipeline_mode = #tpu.pipeline_mode<synchronous>, transform_indices = @transform_10, window_bounds = array<i64: 3, 1, 64>}, {pipeline_mode = #tpu.pipeline_mode<synchronous>, transform_indices = @transform_11, window_bounds = array<i64: 3, 1, 64>}, {pipeline_mode = #tpu.pipeline_mode<synchronous>, transform_indices = @transform_12, window_bounds = array<i64: 3, 64, 256>}, {pipeline_mode = #tpu.pipeline_mode<synchronous>, transform_indices = @transform_13, window_bounds = array<i64: 3, 1, 256>}, {pipeline_mode = #tpu.pipeline_mode<synchronous>, transform_indices = @transform_14, window_bounds = array<i64: 3, 256, 64>}, {pipeline_mode = #tpu.pipeline_mode<synchronous>, transform_indices = @transform_15, window_bounds = array<i64: 3, 1, 64>}, {pipeline_mode = #tpu.pipeline_mode<synchronous>, transform_indices = @transform_16, window_bounds = array<i64: 64, 256>}, {pipeline_mode = #tpu.pipeline_mode<synchronous>, transform_indices = @transform_17, window_bounds = array<i64: 1, 256>}, {pipeline_mode = #tpu.pipeline_mode<synchronous>, transform_indices = @transform_18, window_bounds = array<i64: 1, 256>}, {pipeline_mode = #tpu.pipeline_mode<synchronous>, transform_indices = @transform_19, window_bounds = array<i64: 144, 16>}, {pipeline_mode = #tpu.pipeline_mode<synchronous>, transform_indices = @transform_20, window_bounds = array<i64: 2304, 256>}, {pipeline_mode = #tpu.pipeline_mode<synchronous>, transform_indices = @transform_21, window_bounds = array<i64: 1, 256>}, {pipeline_mode = #tpu.pipeline_mode<synchronous>, transform_indices = @transform_22, window_bounds = array<i64: 1, 256>}, {transform_indices = @transform_23, window_bounds = array<i64: 64, 1024>}, {pipeline_mode = #tpu.pipeline_mode<synchronous>, transform_indices = @transform_24, window_bounds = array<i64: 1024, 12>}, {pipeline_mode = #tpu.pipeline_mode<synchronous>, transform_indices = @transform_25, window_bounds = array<i64: 144, 64>}, {pipeline_mode = #tpu.pipeline_mode<synchronous>, transform_indices = @transform_26, window_bounds = array<i64: 128, 256>}, {pipeline_mode = #tpu.pipeline_mode<synchronous>, transform_indices = @transform_27, window_bounds = array<i64: 16, 256>}, {pipeline_mode = #tpu.pipeline_mode<synchronous>, transform_indices = @transform_28, window_bounds = array<i64: 256, 256>}, {pipeline_mode = #tpu.pipeline_mode<synchronous>, transform_indices = @transform_29, window_bounds = array<i64: 1, 256>}, {pipeline_mode = #tpu.pipeline_mode<synchronous>, transform_indices = @transform_30, window_bounds = array<i64: 256, 256>}, {pipeline_mode = #tpu.pipeline_mode<synchronous>, transform_indices = @transform_31, window_bounds = array<i64: 1, 256>}, {pipeline_mode = #tpu.pipeline_mode<synchronous>, transform_indices = @transform_32, window_bounds = array<i64: 256, 128>}, {pipeline_mode = #tpu.pipeline_mode<synchronous>, transform_indices = @transform_33, window_bounds = array<i64: 1, 128>}, {pipeline_mode = #tpu.pipeline_mode<synchronous>, transform_indices = @transform_34, window_bounds = array<i64: 256, 128>}, {pipeline_mode = #tpu.pipeline_mode<synchronous>, transform_indices = @transform_35, window_bounds = array<i64: 1, 128>}, {transform_indices = @transform_36, window_bounds = array<i64: 16, 128>}, {transform_indices = @transform_37, window_bounds = array<i64: 8, 128>}]} {
    %c0 = arith.constant 0 : index
    %c0_0 = arith.constant 0 : index
    %0 = vector.load %arg1[%c0, %c0_0] : memref<16x192xbf16, #tpu.memory_space<vmem>>, vector<16x192xbf16>
    %c0_1 = arith.constant 0 : index
    %c0_2 = arith.constant 0 : index
    %1 = vector.load %arg3[%c0_1, %c0_2] : memref<192x64xbf16, #tpu.memory_space<vmem>>, vector<192x64xbf16>
    %cst = arith.constant dense<0.000000e+00> : vector<16x64xf32>
    %2 = tpu.matmul %0, %1, %cst {dimension_numbers = #tpu.dot_dimension_numbers<[1], [0], [0], [1], [0, 0, 1, 1], [], []>} : vector<16x192xbf16>, vector<192x64xbf16>, vector<16x64xf32> -> vector<16x64xf32>
    %c0_3 = arith.constant 0 : index
    %c0_4 = arith.constant 0 : index
    %3 = vector.load %arg4[%c0_3, %c0_4] : memref<1x64xf32, #tpu.memory_space<vmem>>, vector<1x64xf32>
    %4 = vector.broadcast %3 : vector<1x64xf32> to vector<16x64xf32>
    %5 = arith.addf %2, %4 : vector<16x64xf32>
    %c0_5 = arith.constant 0 : index
    %c0_6 = arith.constant 0 : index
    %6 = vector.load %arg2[%c0_5, %c0_6] : memref<16x64xf32, #tpu.memory_space<vmem>>, vector<16x64xf32>
    %7 = arith.addf %5, %6 : vector<16x64xf32>
    %c0_7 = arith.constant 0 : index
    %c0_8 = arith.constant 0 : index
    %c0_9 = arith.constant 0 : index
    %8 = vector.load %arg5[%c0_7, %c0_8, %c0_9] : memref<3x1x64xf32, #tpu.memory_space<vmem>>, vector<1x1x64xf32>
    %9 = vector.shape_cast %8 : vector<1x1x64xf32> to vector<1x64xf32>
    %c0_10 = arith.constant 0 : index
    %c0_11 = arith.constant 0 : index
    %c0_12 = arith.constant 0 : index
    %10 = vector.load %arg6[%c0_10, %c0_11, %c0_12] : memref<3x1x64xf32, #tpu.memory_space<vmem>>, vector<1x1x64xf32>
    %11 = vector.shape_cast %10 : vector<1x1x64xf32> to vector<1x64xf32>
    %cst_13 = arith.constant dense<0.000000e+00> : vector<16xf32>
    %12 = vector.multi_reduction <add>, %7, %cst_13 [1] : vector<16x64xf32> to vector<16xf32>
    %13 = vector.shape_cast %12 : vector<16xf32> to vector<16x1xf32>
    %cst_14 = arith.constant 6.400000e+01 : f32
    %14 = vector.broadcast %cst_14 : f32 to vector<16x1xf32>
    %15 = arith.divf %13, %14 : vector<16x1xf32>
    %16 = vector.broadcast %15 : vector<16x1xf32> to vector<16x64xf32>
    %17 = arith.subf %7, %16 : vector<16x64xf32>
    %18 = arith.mulf %17, %17 : vector<16x64xf32>
    %cst_15 = arith.constant dense<0.000000e+00> : vector<16xf32>
    %19 = vector.multi_reduction <add>, %18, %cst_15 [1] : vector<16x64xf32> to vector<16xf32>
    %20 = vector.shape_cast %19 : vector<16xf32> to vector<16x1xf32>
    %cst_16 = arith.constant 6.400000e+01 : f32
    %21 = vector.broadcast %cst_16 : f32 to vector<16x1xf32>
    %22 = arith.divf %20, %21 : vector<16x1xf32>
    %cst_17 = arith.constant 9.99999974E-6 : f32
    %23 = vector.broadcast %cst_17 : f32 to vector<16x1xf32>
    %24 = arith.addf %22, %23 : vector<16x1xf32>
    %25 = math.rsqrt %24 : vector<16x1xf32>
    %26 = vector.broadcast %25 : vector<16x1xf32> to vector<16x64xf32>
    %27 = arith.mulf %17, %26 : vector<16x64xf32>
    %28 = vector.broadcast %9 : vector<1x64xf32> to vector<16x64xf32>
    %29 = arith.mulf %27, %28 : vector<16x64xf32>
    %30 = vector.broadcast %11 : vector<1x64xf32> to vector<16x64xf32>
    %31 = arith.addf %29, %30 : vector<16x64xf32>
    %c0_18 = arith.constant 0 : index
    %c0_19 = arith.constant 0 : index
    %c0_20 = arith.constant 0 : index
    %32 = vector.load %arg7[%c0_18, %c0_19, %c0_20] : memref<3x64x192xbf16, #tpu.memory_space<vmem>>, vector<1x64x192xbf16>
    %33 = vector.shape_cast %32 : vector<1x64x192xbf16> to vector<64x192xbf16>
    %34 = arith.truncf %31 : vector<16x64xf32> to vector<16x64xbf16>
    %cst_21 = arith.constant dense<0.000000e+00> : vector<16x192xf32>
    %35 = tpu.matmul %34, %33, %cst_21 {dimension_numbers = #tpu.dot_dimension_numbers<[1], [0], [0], [1], [0, 0, 1, 1], [], []>} : vector<16x64xbf16>, vector<64x192xbf16>, vector<16x192xf32> -> vector<16x192xf32>
    %c0_22 = arith.constant 0 : index
    %c0_23 = arith.constant 0 : index
    %c0_24 = arith.constant 0 : index
    %36 = vector.load %arg8[%c0_22, %c0_23, %c0_24] : memref<3x1x192xf32, #tpu.memory_space<vmem>>, vector<1x1x192xf32>
    %37 = vector.shape_cast %36 : vector<1x1x192xf32> to vector<1x192xf32>
    %38 = vector.broadcast %37 : vector<1x192xf32> to vector<16x192xf32>
    %39 = arith.addf %35, %38 : vector<16x192xf32>
    %40 = vector.extract_strided_slice %39 {offsets = [0, 0], sizes = [16, 32], strides = [1, 1]} : vector<16x192xf32> to vector<16x32xf32>
    %41 = arith.truncf %40 : vector<16x32xf32> to vector<16x32xbf16>
    %42 = vector.extract_strided_slice %39 {offsets = [0, 32], sizes = [16, 32], strides = [1, 1]} : vector<16x192xf32> to vector<16x32xf32>
    %43 = arith.truncf %42 : vector<16x32xf32> to vector<16x32xbf16>
    %44 = vector.extract_strided_slice %39 {offsets = [0, 64], sizes = [16, 32], strides = [1, 1]} : vector<16x192xf32> to vector<16x32xf32>
    %45 = arith.truncf %44 : vector<16x32xf32> to vector<16x32xbf16>
    %cst_25 = arith.constant dense<0.000000e+00> : vector<16x16xf32>
    %46 = tpu.matmul %41, %43, %cst_25 {dimension_numbers = #tpu.dot_dimension_numbers<[1], [1], [0], [0], [0, 0, 1, 0], [], []>} : vector<16x32xbf16>, vector<16x32xbf16>, vector<16x16xf32> -> vector<16x16xf32>
    %cst_26 = arith.constant 0.176776692 : f32
    %47 = vector.broadcast %cst_26 : f32 to vector<16x16xf32>
    %48 = arith.mulf %46, %47 : vector<16x16xf32>
    %cst_27 = arith.constant dense<0xFF800000> : vector<16xf32>
    %49 = vector.multi_reduction <maximumf>, %48, %cst_27 [1] : vector<16x16xf32> to vector<16xf32>
    %50 = vector.shape_cast %49 : vector<16xf32> to vector<16x1xf32>
    %51 = vector.broadcast %50 : vector<16x1xf32> to vector<16x16xf32>
    %52 = arith.subf %48, %51 : vector<16x16xf32>
    %53 = math.exp %52 : vector<16x16xf32>
    %cst_28 = arith.constant dense<0.000000e+00> : vector<16xf32>
    %54 = vector.multi_reduction <add>, %53, %cst_28 [1] : vector<16x16xf32> to vector<16xf32>
    %55 = vector.shape_cast %54 : vector<16xf32> to vector<16x1xf32>
    %56 = tpu.reciprocal %55 {approx = true} : vector<16x1xf32> -> vector<16x1xf32>
    %57 = vector.broadcast %56 : vector<16x1xf32> to vector<16x16xf32>
    %58 = arith.mulf %53, %57 : vector<16x16xf32>
    %59 = arith.truncf %58 : vector<16x16xf32> to vector<16x16xbf16>
    %cst_29 = arith.constant dense<0.000000e+00> : vector<16x32xf32>
    %60 = tpu.matmul %59, %45, %cst_29 {dimension_numbers = #tpu.dot_dimension_numbers<[1], [0], [0], [1], [0, 0, 1, 1], [], []>} : vector<16x16xbf16>, vector<16x32xbf16>, vector<16x32xf32> -> vector<16x32xf32>
    %61 = vector.extract_strided_slice %39 {offsets = [0, 96], sizes = [16, 32], strides = [1, 1]} : vector<16x192xf32> to vector<16x32xf32>
    %62 = arith.truncf %61 : vector<16x32xf32> to vector<16x32xbf16>
    %63 = vector.extract_strided_slice %39 {offsets = [0, 128], sizes = [16, 32], strides = [1, 1]} : vector<16x192xf32> to vector<16x32xf32>
    %64 = arith.truncf %63 : vector<16x32xf32> to vector<16x32xbf16>
    %65 = vector.extract_strided_slice %39 {offsets = [0, 160], sizes = [16, 32], strides = [1, 1]} : vector<16x192xf32> to vector<16x32xf32>
    %66 = arith.truncf %65 : vector<16x32xf32> to vector<16x32xbf16>
    %cst_30 = arith.constant dense<0.000000e+00> : vector<16x16xf32>
    %67 = tpu.matmul %62, %64, %cst_30 {dimension_numbers = #tpu.dot_dimension_numbers<[1], [1], [0], [0], [0, 0, 1, 0], [], []>} : vector<16x32xbf16>, vector<16x32xbf16>, vector<16x16xf32> -> vector<16x16xf32>
    %cst_31 = arith.constant 0.176776692 : f32
    %68 = vector.broadcast %cst_31 : f32 to vector<16x16xf32>
    %69 = arith.mulf %67, %68 : vector<16x16xf32>
    %cst_32 = arith.constant dense<0xFF800000> : vector<16xf32>
    %70 = vector.multi_reduction <maximumf>, %69, %cst_32 [1] : vector<16x16xf32> to vector<16xf32>
    %71 = vector.shape_cast %70 : vector<16xf32> to vector<16x1xf32>
    %72 = vector.broadcast %71 : vector<16x1xf32> to vector<16x16xf32>
    %73 = arith.subf %69, %72 : vector<16x16xf32>
    %74 = math.exp %73 : vector<16x16xf32>
    %cst_33 = arith.constant dense<0.000000e+00> : vector<16xf32>
    %75 = vector.multi_reduction <add>, %74, %cst_33 [1] : vector<16x16xf32> to vector<16xf32>
    %76 = vector.shape_cast %75 : vector<16xf32> to vector<16x1xf32>
    %77 = tpu.reciprocal %76 {approx = true} : vector<16x1xf32> -> vector<16x1xf32>
    %78 = vector.broadcast %77 : vector<16x1xf32> to vector<16x16xf32>
    %79 = arith.mulf %74, %78 : vector<16x16xf32>
    %80 = arith.truncf %79 : vector<16x16xf32> to vector<16x16xbf16>
    %cst_34 = arith.constant dense<0.000000e+00> : vector<16x32xf32>
    %81 = tpu.matmul %80, %66, %cst_34 {dimension_numbers = #tpu.dot_dimension_numbers<[1], [0], [0], [1], [0, 0, 1, 1], [], []>} : vector<16x16xbf16>, vector<16x32xbf16>, vector<16x32xf32> -> vector<16x32xf32>
    %82 = tpu.concatenate %60, %81 in 1 : vector<16x32xf32>, vector<16x32xf32> -> vector<16x64xf32>
    %c0_35 = arith.constant 0 : index
    %c0_36 = arith.constant 0 : index
    %c0_37 = arith.constant 0 : index
    %83 = vector.load %arg9[%c0_35, %c0_36, %c0_37] : memref<3x64x64xbf16, #tpu.memory_space<vmem>>, vector<1x64x64xbf16>
    %84 = vector.shape_cast %83 : vector<1x64x64xbf16> to vector<64x64xbf16>
    %85 = arith.truncf %82 : vector<16x64xf32> to vector<16x64xbf16>
    %cst_38 = arith.constant dense<0.000000e+00> : vector<16x64xf32>
    %86 = tpu.matmul %85, %84, %cst_38 {dimension_numbers = #tpu.dot_dimension_numbers<[1], [0], [0], [1], [0, 0, 1, 1], [], []>} : vector<16x64xbf16>, vector<64x64xbf16>, vector<16x64xf32> -> vector<16x64xf32>
    %87 = arith.addf %7, %86 : vector<16x64xf32>
    %c0_39 = arith.constant 0 : index
    %c0_40 = arith.constant 0 : index
    %c0_41 = arith.constant 0 : index
    %88 = vector.load %arg10[%c0_39, %c0_40, %c0_41] : memref<3x1x64xf32, #tpu.memory_space<vmem>>, vector<1x1x64xf32>
    %89 = vector.shape_cast %88 : vector<1x1x64xf32> to vector<1x64xf32>
    %90 = vector.broadcast %89 : vector<1x64xf32> to vector<16x64xf32>
    %91 = arith.addf %87, %90 : vector<16x64xf32>
    %c0_42 = arith.constant 0 : index
    %c0_43 = arith.constant 0 : index
    %c0_44 = arith.constant 0 : index
    %92 = vector.load %arg11[%c0_42, %c0_43, %c0_44] : memref<3x1x64xf32, #tpu.memory_space<vmem>>, vector<1x1x64xf32>
    %93 = vector.shape_cast %92 : vector<1x1x64xf32> to vector<1x64xf32>
    %c0_45 = arith.constant 0 : index
    %c0_46 = arith.constant 0 : index
    %c0_47 = arith.constant 0 : index
    %94 = vector.load %arg12[%c0_45, %c0_46, %c0_47] : memref<3x1x64xf32, #tpu.memory_space<vmem>>, vector<1x1x64xf32>
    %95 = vector.shape_cast %94 : vector<1x1x64xf32> to vector<1x64xf32>
    %cst_48 = arith.constant dense<0.000000e+00> : vector<16xf32>
    %96 = vector.multi_reduction <add>, %91, %cst_48 [1] : vector<16x64xf32> to vector<16xf32>
    %97 = vector.shape_cast %96 : vector<16xf32> to vector<16x1xf32>
    %cst_49 = arith.constant 6.400000e+01 : f32
    %98 = vector.broadcast %cst_49 : f32 to vector<16x1xf32>
    %99 = arith.divf %97, %98 : vector<16x1xf32>
    %100 = vector.broadcast %99 : vector<16x1xf32> to vector<16x64xf32>
    %101 = arith.subf %91, %100 : vector<16x64xf32>
    %102 = arith.mulf %101, %101 : vector<16x64xf32>
    %cst_50 = arith.constant dense<0.000000e+00> : vector<16xf32>
    %103 = vector.multi_reduction <add>, %102, %cst_50 [1] : vector<16x64xf32> to vector<16xf32>
    %104 = vector.shape_cast %103 : vector<16xf32> to vector<16x1xf32>
    %cst_51 = arith.constant 6.400000e+01 : f32
    %105 = vector.broadcast %cst_51 : f32 to vector<16x1xf32>
    %106 = arith.divf %104, %105 : vector<16x1xf32>
    %cst_52 = arith.constant 9.99999974E-6 : f32
    %107 = vector.broadcast %cst_52 : f32 to vector<16x1xf32>
    %108 = arith.addf %106, %107 : vector<16x1xf32>
    %109 = math.rsqrt %108 : vector<16x1xf32>
    %110 = vector.broadcast %109 : vector<16x1xf32> to vector<16x64xf32>
    %111 = arith.mulf %101, %110 : vector<16x64xf32>
    %112 = vector.broadcast %93 : vector<1x64xf32> to vector<16x64xf32>
    %113 = arith.mulf %111, %112 : vector<16x64xf32>
    %114 = vector.broadcast %95 : vector<1x64xf32> to vector<16x64xf32>
    %115 = arith.addf %113, %114 : vector<16x64xf32>
    %c0_53 = arith.constant 0 : index
    %c0_54 = arith.constant 0 : index
    %c0_55 = arith.constant 0 : index
    %116 = vector.load %arg13[%c0_53, %c0_54, %c0_55] : memref<3x64x256xbf16, #tpu.memory_space<vmem>>, vector<1x64x256xbf16>
    %117 = vector.shape_cast %116 : vector<1x64x256xbf16> to vector<64x256xbf16>
    %118 = arith.truncf %115 : vector<16x64xf32> to vector<16x64xbf16>
    %cst_56 = arith.constant dense<0.000000e+00> : vector<16x256xf32>
    %119 = tpu.matmul %118, %117, %cst_56 {dimension_numbers = #tpu.dot_dimension_numbers<[1], [0], [0], [1], [0, 0, 1, 1], [], []>} : vector<16x64xbf16>, vector<64x256xbf16>, vector<16x256xf32> -> vector<16x256xf32>
    %c0_57 = arith.constant 0 : index
    %c0_58 = arith.constant 0 : index
    %c0_59 = arith.constant 0 : index
    %120 = vector.load %arg14[%c0_57, %c0_58, %c0_59] : memref<3x1x256xf32, #tpu.memory_space<vmem>>, vector<1x1x256xf32>
    %121 = vector.shape_cast %120 : vector<1x1x256xf32> to vector<1x256xf32>
    %122 = vector.broadcast %121 : vector<1x256xf32> to vector<16x256xf32>
    %123 = arith.addf %119, %122 : vector<16x256xf32>
    %cst_60 = arith.constant 5.000000e-01 : f32
    %124 = vector.broadcast %cst_60 : f32 to vector<16x256xf32>
    %125 = arith.mulf %124, %123 : vector<16x256xf32>
    %cst_61 = arith.constant 0.707106769 : f32
    %126 = vector.broadcast %cst_61 : f32 to vector<16x256xf32>
    %127 = arith.mulf %123, %126 : vector<16x256xf32>
    %128 = math.erf %127 : vector<16x256xf32>
    %cst_62 = arith.constant 1.000000e+00 : f32
    %129 = vector.broadcast %cst_62 : f32 to vector<16x256xf32>
    %130 = arith.addf %129, %128 : vector<16x256xf32>
    %131 = arith.mulf %125, %130 : vector<16x256xf32>
    %c0_63 = arith.constant 0 : index
    %c0_64 = arith.constant 0 : index
    %c0_65 = arith.constant 0 : index
    %132 = vector.load %arg15[%c0_63, %c0_64, %c0_65] : memref<3x256x64xbf16, #tpu.memory_space<vmem>>, vector<1x256x64xbf16>
    %133 = vector.shape_cast %132 : vector<1x256x64xbf16> to vector<256x64xbf16>
    %134 = arith.truncf %131 : vector<16x256xf32> to vector<16x256xbf16>
    %cst_66 = arith.constant dense<0.000000e+00> : vector<16x64xf32>
    %135 = tpu.matmul %134, %133, %cst_66 {dimension_numbers = #tpu.dot_dimension_numbers<[1], [0], [0], [1], [0, 0, 1, 1], [], []>} : vector<16x256xbf16>, vector<256x64xbf16>, vector<16x64xf32> -> vector<16x64xf32>
    %136 = arith.addf %91, %135 : vector<16x64xf32>
    %c0_67 = arith.constant 0 : index
    %c0_68 = arith.constant 0 : index
    %c0_69 = arith.constant 0 : index
    %137 = vector.load %arg16[%c0_67, %c0_68, %c0_69] : memref<3x1x64xf32, #tpu.memory_space<vmem>>, vector<1x1x64xf32>
    %138 = vector.shape_cast %137 : vector<1x1x64xf32> to vector<1x64xf32>
    %139 = vector.broadcast %138 : vector<1x64xf32> to vector<16x64xf32>
    %140 = arith.addf %136, %139 : vector<16x64xf32>
    %c1 = arith.constant 1 : index
    %c0_70 = arith.constant 0 : index
    %c0_71 = arith.constant 0 : index
    %141 = vector.load %arg5[%c1, %c0_70, %c0_71] : memref<3x1x64xf32, #tpu.memory_space<vmem>>, vector<1x1x64xf32>
    %142 = vector.shape_cast %141 : vector<1x1x64xf32> to vector<1x64xf32>
    %c1_72 = arith.constant 1 : index
    %c0_73 = arith.constant 0 : index
    %c0_74 = arith.constant 0 : index
    %143 = vector.load %arg6[%c1_72, %c0_73, %c0_74] : memref<3x1x64xf32, #tpu.memory_space<vmem>>, vector<1x1x64xf32>
    %144 = vector.shape_cast %143 : vector<1x1x64xf32> to vector<1x64xf32>
    %cst_75 = arith.constant dense<0.000000e+00> : vector<16xf32>
    %145 = vector.multi_reduction <add>, %140, %cst_75 [1] : vector<16x64xf32> to vector<16xf32>
    %146 = vector.shape_cast %145 : vector<16xf32> to vector<16x1xf32>
    %cst_76 = arith.constant 6.400000e+01 : f32
    %147 = vector.broadcast %cst_76 : f32 to vector<16x1xf32>
    %148 = arith.divf %146, %147 : vector<16x1xf32>
    %149 = vector.broadcast %148 : vector<16x1xf32> to vector<16x64xf32>
    %150 = arith.subf %140, %149 : vector<16x64xf32>
    %151 = arith.mulf %150, %150 : vector<16x64xf32>
    %cst_77 = arith.constant dense<0.000000e+00> : vector<16xf32>
    %152 = vector.multi_reduction <add>, %151, %cst_77 [1] : vector<16x64xf32> to vector<16xf32>
    %153 = vector.shape_cast %152 : vector<16xf32> to vector<16x1xf32>
    %cst_78 = arith.constant 6.400000e+01 : f32
    %154 = vector.broadcast %cst_78 : f32 to vector<16x1xf32>
    %155 = arith.divf %153, %154 : vector<16x1xf32>
    %cst_79 = arith.constant 9.99999974E-6 : f32
    %156 = vector.broadcast %cst_79 : f32 to vector<16x1xf32>
    %157 = arith.addf %155, %156 : vector<16x1xf32>
    %158 = math.rsqrt %157 : vector<16x1xf32>
    %159 = vector.broadcast %158 : vector<16x1xf32> to vector<16x64xf32>
    %160 = arith.mulf %150, %159 : vector<16x64xf32>
    %161 = vector.broadcast %142 : vector<1x64xf32> to vector<16x64xf32>
    %162 = arith.mulf %160, %161 : vector<16x64xf32>
    %163 = vector.broadcast %144 : vector<1x64xf32> to vector<16x64xf32>
    %164 = arith.addf %162, %163 : vector<16x64xf32>
    %c1_80 = arith.constant 1 : index
    %c0_81 = arith.constant 0 : index
    %c0_82 = arith.constant 0 : index
    %165 = vector.load %arg7[%c1_80, %c0_81, %c0_82] : memref<3x64x192xbf16, #tpu.memory_space<vmem>>, vector<1x64x192xbf16>
    %166 = vector.shape_cast %165 : vector<1x64x192xbf16> to vector<64x192xbf16>
    %167 = arith.truncf %164 : vector<16x64xf32> to vector<16x64xbf16>
    %cst_83 = arith.constant dense<0.000000e+00> : vector<16x192xf32>
    %168 = tpu.matmul %167, %166, %cst_83 {dimension_numbers = #tpu.dot_dimension_numbers<[1], [0], [0], [1], [0, 0, 1, 1], [], []>} : vector<16x64xbf16>, vector<64x192xbf16>, vector<16x192xf32> -> vector<16x192xf32>
    %c1_84 = arith.constant 1 : index
    %c0_85 = arith.constant 0 : index
    %c0_86 = arith.constant 0 : index
    %169 = vector.load %arg8[%c1_84, %c0_85, %c0_86] : memref<3x1x192xf32, #tpu.memory_space<vmem>>, vector<1x1x192xf32>
    %170 = vector.shape_cast %169 : vector<1x1x192xf32> to vector<1x192xf32>
    %171 = vector.broadcast %170 : vector<1x192xf32> to vector<16x192xf32>
    %172 = arith.addf %168, %171 : vector<16x192xf32>
    %173 = vector.extract_strided_slice %172 {offsets = [0, 0], sizes = [16, 32], strides = [1, 1]} : vector<16x192xf32> to vector<16x32xf32>
    %174 = arith.truncf %173 : vector<16x32xf32> to vector<16x32xbf16>
    %175 = vector.extract_strided_slice %172 {offsets = [0, 32], sizes = [16, 32], strides = [1, 1]} : vector<16x192xf32> to vector<16x32xf32>
    %176 = arith.truncf %175 : vector<16x32xf32> to vector<16x32xbf16>
    %177 = vector.extract_strided_slice %172 {offsets = [0, 64], sizes = [16, 32], strides = [1, 1]} : vector<16x192xf32> to vector<16x32xf32>
    %178 = arith.truncf %177 : vector<16x32xf32> to vector<16x32xbf16>
    %cst_87 = arith.constant dense<0.000000e+00> : vector<16x16xf32>
    %179 = tpu.matmul %174, %176, %cst_87 {dimension_numbers = #tpu.dot_dimension_numbers<[1], [1], [0], [0], [0, 0, 1, 0], [], []>} : vector<16x32xbf16>, vector<16x32xbf16>, vector<16x16xf32> -> vector<16x16xf32>
    %cst_88 = arith.constant 0.176776692 : f32
    %180 = vector.broadcast %cst_88 : f32 to vector<16x16xf32>
    %181 = arith.mulf %179, %180 : vector<16x16xf32>
    %cst_89 = arith.constant dense<0xFF800000> : vector<16xf32>
    %182 = vector.multi_reduction <maximumf>, %181, %cst_89 [1] : vector<16x16xf32> to vector<16xf32>
    %183 = vector.shape_cast %182 : vector<16xf32> to vector<16x1xf32>
    %184 = vector.broadcast %183 : vector<16x1xf32> to vector<16x16xf32>
    %185 = arith.subf %181, %184 : vector<16x16xf32>
    %186 = math.exp %185 : vector<16x16xf32>
    %cst_90 = arith.constant dense<0.000000e+00> : vector<16xf32>
    %187 = vector.multi_reduction <add>, %186, %cst_90 [1] : vector<16x16xf32> to vector<16xf32>
    %188 = vector.shape_cast %187 : vector<16xf32> to vector<16x1xf32>
    %189 = tpu.reciprocal %188 {approx = true} : vector<16x1xf32> -> vector<16x1xf32>
    %190 = vector.broadcast %189 : vector<16x1xf32> to vector<16x16xf32>
    %191 = arith.mulf %186, %190 : vector<16x16xf32>
    %192 = arith.truncf %191 : vector<16x16xf32> to vector<16x16xbf16>
    %cst_91 = arith.constant dense<0.000000e+00> : vector<16x32xf32>
    %193 = tpu.matmul %192, %178, %cst_91 {dimension_numbers = #tpu.dot_dimension_numbers<[1], [0], [0], [1], [0, 0, 1, 1], [], []>} : vector<16x16xbf16>, vector<16x32xbf16>, vector<16x32xf32> -> vector<16x32xf32>
    %194 = vector.extract_strided_slice %172 {offsets = [0, 96], sizes = [16, 32], strides = [1, 1]} : vector<16x192xf32> to vector<16x32xf32>
    %195 = arith.truncf %194 : vector<16x32xf32> to vector<16x32xbf16>
    %196 = vector.extract_strided_slice %172 {offsets = [0, 128], sizes = [16, 32], strides = [1, 1]} : vector<16x192xf32> to vector<16x32xf32>
    %197 = arith.truncf %196 : vector<16x32xf32> to vector<16x32xbf16>
    %198 = vector.extract_strided_slice %172 {offsets = [0, 160], sizes = [16, 32], strides = [1, 1]} : vector<16x192xf32> to vector<16x32xf32>
    %199 = arith.truncf %198 : vector<16x32xf32> to vector<16x32xbf16>
    %cst_92 = arith.constant dense<0.000000e+00> : vector<16x16xf32>
    %200 = tpu.matmul %195, %197, %cst_92 {dimension_numbers = #tpu.dot_dimension_numbers<[1], [1], [0], [0], [0, 0, 1, 0], [], []>} : vector<16x32xbf16>, vector<16x32xbf16>, vector<16x16xf32> -> vector<16x16xf32>
    %cst_93 = arith.constant 0.176776692 : f32
    %201 = vector.broadcast %cst_93 : f32 to vector<16x16xf32>
    %202 = arith.mulf %200, %201 : vector<16x16xf32>
    %cst_94 = arith.constant dense<0xFF800000> : vector<16xf32>
    %203 = vector.multi_reduction <maximumf>, %202, %cst_94 [1] : vector<16x16xf32> to vector<16xf32>
    %204 = vector.shape_cast %203 : vector<16xf32> to vector<16x1xf32>
    %205 = vector.broadcast %204 : vector<16x1xf32> to vector<16x16xf32>
    %206 = arith.subf %202, %205 : vector<16x16xf32>
    %207 = math.exp %206 : vector<16x16xf32>
    %cst_95 = arith.constant dense<0.000000e+00> : vector<16xf32>
    %208 = vector.multi_reduction <add>, %207, %cst_95 [1] : vector<16x16xf32> to vector<16xf32>
    %209 = vector.shape_cast %208 : vector<16xf32> to vector<16x1xf32>
    %210 = tpu.reciprocal %209 {approx = true} : vector<16x1xf32> -> vector<16x1xf32>
    %211 = vector.broadcast %210 : vector<16x1xf32> to vector<16x16xf32>
    %212 = arith.mulf %207, %211 : vector<16x16xf32>
    %213 = arith.truncf %212 : vector<16x16xf32> to vector<16x16xbf16>
    %cst_96 = arith.constant dense<0.000000e+00> : vector<16x32xf32>
    %214 = tpu.matmul %213, %199, %cst_96 {dimension_numbers = #tpu.dot_dimension_numbers<[1], [0], [0], [1], [0, 0, 1, 1], [], []>} : vector<16x16xbf16>, vector<16x32xbf16>, vector<16x32xf32> -> vector<16x32xf32>
    %215 = tpu.concatenate %193, %214 in 1 : vector<16x32xf32>, vector<16x32xf32> -> vector<16x64xf32>
    %c1_97 = arith.constant 1 : index
    %c0_98 = arith.constant 0 : index
    %c0_99 = arith.constant 0 : index
    %216 = vector.load %arg9[%c1_97, %c0_98, %c0_99] : memref<3x64x64xbf16, #tpu.memory_space<vmem>>, vector<1x64x64xbf16>
    %217 = vector.shape_cast %216 : vector<1x64x64xbf16> to vector<64x64xbf16>
    %218 = arith.truncf %215 : vector<16x64xf32> to vector<16x64xbf16>
    %cst_100 = arith.constant dense<0.000000e+00> : vector<16x64xf32>
    %219 = tpu.matmul %218, %217, %cst_100 {dimension_numbers = #tpu.dot_dimension_numbers<[1], [0], [0], [1], [0, 0, 1, 1], [], []>} : vector<16x64xbf16>, vector<64x64xbf16>, vector<16x64xf32> -> vector<16x64xf32>
    %220 = arith.addf %140, %219 : vector<16x64xf32>
    %c1_101 = arith.constant 1 : index
    %c0_102 = arith.constant 0 : index
    %c0_103 = arith.constant 0 : index
    %221 = vector.load %arg10[%c1_101, %c0_102, %c0_103] : memref<3x1x64xf32, #tpu.memory_space<vmem>>, vector<1x1x64xf32>
    %222 = vector.shape_cast %221 : vector<1x1x64xf32> to vector<1x64xf32>
    %223 = vector.broadcast %222 : vector<1x64xf32> to vector<16x64xf32>
    %224 = arith.addf %220, %223 : vector<16x64xf32>
    %c1_104 = arith.constant 1 : index
    %c0_105 = arith.constant 0 : index
    %c0_106 = arith.constant 0 : index
    %225 = vector.load %arg11[%c1_104, %c0_105, %c0_106] : memref<3x1x64xf32, #tpu.memory_space<vmem>>, vector<1x1x64xf32>
    %226 = vector.shape_cast %225 : vector<1x1x64xf32> to vector<1x64xf32>
    %c1_107 = arith.constant 1 : index
    %c0_108 = arith.constant 0 : index
    %c0_109 = arith.constant 0 : index
    %227 = vector.load %arg12[%c1_107, %c0_108, %c0_109] : memref<3x1x64xf32, #tpu.memory_space<vmem>>, vector<1x1x64xf32>
    %228 = vector.shape_cast %227 : vector<1x1x64xf32> to vector<1x64xf32>
    %cst_110 = arith.constant dense<0.000000e+00> : vector<16xf32>
    %229 = vector.multi_reduction <add>, %224, %cst_110 [1] : vector<16x64xf32> to vector<16xf32>
    %230 = vector.shape_cast %229 : vector<16xf32> to vector<16x1xf32>
    %cst_111 = arith.constant 6.400000e+01 : f32
    %231 = vector.broadcast %cst_111 : f32 to vector<16x1xf32>
    %232 = arith.divf %230, %231 : vector<16x1xf32>
    %233 = vector.broadcast %232 : vector<16x1xf32> to vector<16x64xf32>
    %234 = arith.subf %224, %233 : vector<16x64xf32>
    %235 = arith.mulf %234, %234 : vector<16x64xf32>
    %cst_112 = arith.constant dense<0.000000e+00> : vector<16xf32>
    %236 = vector.multi_reduction <add>, %235, %cst_112 [1] : vector<16x64xf32> to vector<16xf32>
    %237 = vector.shape_cast %236 : vector<16xf32> to vector<16x1xf32>
    %cst_113 = arith.constant 6.400000e+01 : f32
    %238 = vector.broadcast %cst_113 : f32 to vector<16x1xf32>
    %239 = arith.divf %237, %238 : vector<16x1xf32>
    %cst_114 = arith.constant 9.99999974E-6 : f32
    %240 = vector.broadcast %cst_114 : f32 to vector<16x1xf32>
    %241 = arith.addf %239, %240 : vector<16x1xf32>
    %242 = math.rsqrt %241 : vector<16x1xf32>
    %243 = vector.broadcast %242 : vector<16x1xf32> to vector<16x64xf32>
    %244 = arith.mulf %234, %243 : vector<16x64xf32>
    %245 = vector.broadcast %226 : vector<1x64xf32> to vector<16x64xf32>
    %246 = arith.mulf %244, %245 : vector<16x64xf32>
    %247 = vector.broadcast %228 : vector<1x64xf32> to vector<16x64xf32>
    %248 = arith.addf %246, %247 : vector<16x64xf32>
    %c1_115 = arith.constant 1 : index
    %c0_116 = arith.constant 0 : index
    %c0_117 = arith.constant 0 : index
    %249 = vector.load %arg13[%c1_115, %c0_116, %c0_117] : memref<3x64x256xbf16, #tpu.memory_space<vmem>>, vector<1x64x256xbf16>
    %250 = vector.shape_cast %249 : vector<1x64x256xbf16> to vector<64x256xbf16>
    %251 = arith.truncf %248 : vector<16x64xf32> to vector<16x64xbf16>
    %cst_118 = arith.constant dense<0.000000e+00> : vector<16x256xf32>
    %252 = tpu.matmul %251, %250, %cst_118 {dimension_numbers = #tpu.dot_dimension_numbers<[1], [0], [0], [1], [0, 0, 1, 1], [], []>} : vector<16x64xbf16>, vector<64x256xbf16>, vector<16x256xf32> -> vector<16x256xf32>
    %c1_119 = arith.constant 1 : index
    %c0_120 = arith.constant 0 : index
    %c0_121 = arith.constant 0 : index
    %253 = vector.load %arg14[%c1_119, %c0_120, %c0_121] : memref<3x1x256xf32, #tpu.memory_space<vmem>>, vector<1x1x256xf32>
    %254 = vector.shape_cast %253 : vector<1x1x256xf32> to vector<1x256xf32>
    %255 = vector.broadcast %254 : vector<1x256xf32> to vector<16x256xf32>
    %256 = arith.addf %252, %255 : vector<16x256xf32>
    %cst_122 = arith.constant 5.000000e-01 : f32
    %257 = vector.broadcast %cst_122 : f32 to vector<16x256xf32>
    %258 = arith.mulf %257, %256 : vector<16x256xf32>
    %cst_123 = arith.constant 0.707106769 : f32
    %259 = vector.broadcast %cst_123 : f32 to vector<16x256xf32>
    %260 = arith.mulf %256, %259 : vector<16x256xf32>
    %261 = math.erf %260 : vector<16x256xf32>
    %cst_124 = arith.constant 1.000000e+00 : f32
    %262 = vector.broadcast %cst_124 : f32 to vector<16x256xf32>
    %263 = arith.addf %262, %261 : vector<16x256xf32>
    %264 = arith.mulf %258, %263 : vector<16x256xf32>
    %c1_125 = arith.constant 1 : index
    %c0_126 = arith.constant 0 : index
    %c0_127 = arith.constant 0 : index
    %265 = vector.load %arg15[%c1_125, %c0_126, %c0_127] : memref<3x256x64xbf16, #tpu.memory_space<vmem>>, vector<1x256x64xbf16>
    %266 = vector.shape_cast %265 : vector<1x256x64xbf16> to vector<256x64xbf16>
    %267 = arith.truncf %264 : vector<16x256xf32> to vector<16x256xbf16>
    %cst_128 = arith.constant dense<0.000000e+00> : vector<16x64xf32>
    %268 = tpu.matmul %267, %266, %cst_128 {dimension_numbers = #tpu.dot_dimension_numbers<[1], [0], [0], [1], [0, 0, 1, 1], [], []>} : vector<16x256xbf16>, vector<256x64xbf16>, vector<16x64xf32> -> vector<16x64xf32>
    %269 = arith.addf %224, %268 : vector<16x64xf32>
    %c1_129 = arith.constant 1 : index
    %c0_130 = arith.constant 0 : index
    %c0_131 = arith.constant 0 : index
    %270 = vector.load %arg16[%c1_129, %c0_130, %c0_131] : memref<3x1x64xf32, #tpu.memory_space<vmem>>, vector<1x1x64xf32>
    %271 = vector.shape_cast %270 : vector<1x1x64xf32> to vector<1x64xf32>
    %272 = vector.broadcast %271 : vector<1x64xf32> to vector<16x64xf32>
    %273 = arith.addf %269, %272 : vector<16x64xf32>
    %c2 = arith.constant 2 : index
    %c0_132 = arith.constant 0 : index
    %c0_133 = arith.constant 0 : index
    %274 = vector.load %arg5[%c2, %c0_132, %c0_133] : memref<3x1x64xf32, #tpu.memory_space<vmem>>, vector<1x1x64xf32>
    %275 = vector.shape_cast %274 : vector<1x1x64xf32> to vector<1x64xf32>
    %c2_134 = arith.constant 2 : index
    %c0_135 = arith.constant 0 : index
    %c0_136 = arith.constant 0 : index
    %276 = vector.load %arg6[%c2_134, %c0_135, %c0_136] : memref<3x1x64xf32, #tpu.memory_space<vmem>>, vector<1x1x64xf32>
    %277 = vector.shape_cast %276 : vector<1x1x64xf32> to vector<1x64xf32>
    %cst_137 = arith.constant dense<0.000000e+00> : vector<16xf32>
    %278 = vector.multi_reduction <add>, %273, %cst_137 [1] : vector<16x64xf32> to vector<16xf32>
    %279 = vector.shape_cast %278 : vector<16xf32> to vector<16x1xf32>
    %cst_138 = arith.constant 6.400000e+01 : f32
    %280 = vector.broadcast %cst_138 : f32 to vector<16x1xf32>
    %281 = arith.divf %279, %280 : vector<16x1xf32>
    %282 = vector.broadcast %281 : vector<16x1xf32> to vector<16x64xf32>
    %283 = arith.subf %273, %282 : vector<16x64xf32>
    %284 = arith.mulf %283, %283 : vector<16x64xf32>
    %cst_139 = arith.constant dense<0.000000e+00> : vector<16xf32>
    %285 = vector.multi_reduction <add>, %284, %cst_139 [1] : vector<16x64xf32> to vector<16xf32>
    %286 = vector.shape_cast %285 : vector<16xf32> to vector<16x1xf32>
    %cst_140 = arith.constant 6.400000e+01 : f32
    %287 = vector.broadcast %cst_140 : f32 to vector<16x1xf32>
    %288 = arith.divf %286, %287 : vector<16x1xf32>
    %cst_141 = arith.constant 9.99999974E-6 : f32
    %289 = vector.broadcast %cst_141 : f32 to vector<16x1xf32>
    %290 = arith.addf %288, %289 : vector<16x1xf32>
    %291 = math.rsqrt %290 : vector<16x1xf32>
    %292 = vector.broadcast %291 : vector<16x1xf32> to vector<16x64xf32>
    %293 = arith.mulf %283, %292 : vector<16x64xf32>
    %294 = vector.broadcast %275 : vector<1x64xf32> to vector<16x64xf32>
    %295 = arith.mulf %293, %294 : vector<16x64xf32>
    %296 = vector.broadcast %277 : vector<1x64xf32> to vector<16x64xf32>
    %297 = arith.addf %295, %296 : vector<16x64xf32>
    %c2_142 = arith.constant 2 : index
    %c0_143 = arith.constant 0 : index
    %c0_144 = arith.constant 0 : index
    %298 = vector.load %arg7[%c2_142, %c0_143, %c0_144] : memref<3x64x192xbf16, #tpu.memory_space<vmem>>, vector<1x64x192xbf16>
    %299 = vector.shape_cast %298 : vector<1x64x192xbf16> to vector<64x192xbf16>
    %300 = arith.truncf %297 : vector<16x64xf32> to vector<16x64xbf16>
    %cst_145 = arith.constant dense<0.000000e+00> : vector<16x192xf32>
    %301 = tpu.matmul %300, %299, %cst_145 {dimension_numbers = #tpu.dot_dimension_numbers<[1], [0], [0], [1], [0, 0, 1, 1], [], []>} : vector<16x64xbf16>, vector<64x192xbf16>, vector<16x192xf32> -> vector<16x192xf32>
    %c2_146 = arith.constant 2 : index
    %c0_147 = arith.constant 0 : index
    %c0_148 = arith.constant 0 : index
    %302 = vector.load %arg8[%c2_146, %c0_147, %c0_148] : memref<3x1x192xf32, #tpu.memory_space<vmem>>, vector<1x1x192xf32>
    %303 = vector.shape_cast %302 : vector<1x1x192xf32> to vector<1x192xf32>
    %304 = vector.broadcast %303 : vector<1x192xf32> to vector<16x192xf32>
    %305 = arith.addf %301, %304 : vector<16x192xf32>
    %306 = vector.extract_strided_slice %305 {offsets = [0, 0], sizes = [16, 32], strides = [1, 1]} : vector<16x192xf32> to vector<16x32xf32>
    %307 = arith.truncf %306 : vector<16x32xf32> to vector<16x32xbf16>
    %308 = vector.extract_strided_slice %305 {offsets = [0, 32], sizes = [16, 32], strides = [1, 1]} : vector<16x192xf32> to vector<16x32xf32>
    %309 = arith.truncf %308 : vector<16x32xf32> to vector<16x32xbf16>
    %310 = vector.extract_strided_slice %305 {offsets = [0, 64], sizes = [16, 32], strides = [1, 1]} : vector<16x192xf32> to vector<16x32xf32>
    %311 = arith.truncf %310 : vector<16x32xf32> to vector<16x32xbf16>
    %cst_149 = arith.constant dense<0.000000e+00> : vector<16x16xf32>
    %312 = tpu.matmul %307, %309, %cst_149 {dimension_numbers = #tpu.dot_dimension_numbers<[1], [1], [0], [0], [0, 0, 1, 0], [], []>} : vector<16x32xbf16>, vector<16x32xbf16>, vector<16x16xf32> -> vector<16x16xf32>
    %cst_150 = arith.constant 0.176776692 : f32
    %313 = vector.broadcast %cst_150 : f32 to vector<16x16xf32>
    %314 = arith.mulf %312, %313 : vector<16x16xf32>
    %cst_151 = arith.constant dense<0xFF800000> : vector<16xf32>
    %315 = vector.multi_reduction <maximumf>, %314, %cst_151 [1] : vector<16x16xf32> to vector<16xf32>
    %316 = vector.shape_cast %315 : vector<16xf32> to vector<16x1xf32>
    %317 = vector.broadcast %316 : vector<16x1xf32> to vector<16x16xf32>
    %318 = arith.subf %314, %317 : vector<16x16xf32>
    %319 = math.exp %318 : vector<16x16xf32>
    %cst_152 = arith.constant dense<0.000000e+00> : vector<16xf32>
    %320 = vector.multi_reduction <add>, %319, %cst_152 [1] : vector<16x16xf32> to vector<16xf32>
    %321 = vector.shape_cast %320 : vector<16xf32> to vector<16x1xf32>
    %322 = tpu.reciprocal %321 {approx = true} : vector<16x1xf32> -> vector<16x1xf32>
    %323 = vector.broadcast %322 : vector<16x1xf32> to vector<16x16xf32>
    %324 = arith.mulf %319, %323 : vector<16x16xf32>
    %325 = arith.truncf %324 : vector<16x16xf32> to vector<16x16xbf16>
    %cst_153 = arith.constant dense<0.000000e+00> : vector<16x32xf32>
    %326 = tpu.matmul %325, %311, %cst_153 {dimension_numbers = #tpu.dot_dimension_numbers<[1], [0], [0], [1], [0, 0, 1, 1], [], []>} : vector<16x16xbf16>, vector<16x32xbf16>, vector<16x32xf32> -> vector<16x32xf32>
    %327 = vector.extract_strided_slice %305 {offsets = [0, 96], sizes = [16, 32], strides = [1, 1]} : vector<16x192xf32> to vector<16x32xf32>
    %328 = arith.truncf %327 : vector<16x32xf32> to vector<16x32xbf16>
    %329 = vector.extract_strided_slice %305 {offsets = [0, 128], sizes = [16, 32], strides = [1, 1]} : vector<16x192xf32> to vector<16x32xf32>
    %330 = arith.truncf %329 : vector<16x32xf32> to vector<16x32xbf16>
    %331 = vector.extract_strided_slice %305 {offsets = [0, 160], sizes = [16, 32], strides = [1, 1]} : vector<16x192xf32> to vector<16x32xf32>
    %332 = arith.truncf %331 : vector<16x32xf32> to vector<16x32xbf16>
    %cst_154 = arith.constant dense<0.000000e+00> : vector<16x16xf32>
    %333 = tpu.matmul %328, %330, %cst_154 {dimension_numbers = #tpu.dot_dimension_numbers<[1], [1], [0], [0], [0, 0, 1, 0], [], []>} : vector<16x32xbf16>, vector<16x32xbf16>, vector<16x16xf32> -> vector<16x16xf32>
    %cst_155 = arith.constant 0.176776692 : f32
    %334 = vector.broadcast %cst_155 : f32 to vector<16x16xf32>
    %335 = arith.mulf %333, %334 : vector<16x16xf32>
    %cst_156 = arith.constant dense<0xFF800000> : vector<16xf32>
    %336 = vector.multi_reduction <maximumf>, %335, %cst_156 [1] : vector<16x16xf32> to vector<16xf32>
    %337 = vector.shape_cast %336 : vector<16xf32> to vector<16x1xf32>
    %338 = vector.broadcast %337 : vector<16x1xf32> to vector<16x16xf32>
    %339 = arith.subf %335, %338 : vector<16x16xf32>
    %340 = math.exp %339 : vector<16x16xf32>
    %cst_157 = arith.constant dense<0.000000e+00> : vector<16xf32>
    %341 = vector.multi_reduction <add>, %340, %cst_157 [1] : vector<16x16xf32> to vector<16xf32>
    %342 = vector.shape_cast %341 : vector<16xf32> to vector<16x1xf32>
    %343 = tpu.reciprocal %342 {approx = true} : vector<16x1xf32> -> vector<16x1xf32>
    %344 = vector.broadcast %343 : vector<16x1xf32> to vector<16x16xf32>
    %345 = arith.mulf %340, %344 : vector<16x16xf32>
    %346 = arith.truncf %345 : vector<16x16xf32> to vector<16x16xbf16>
    %cst_158 = arith.constant dense<0.000000e+00> : vector<16x32xf32>
    %347 = tpu.matmul %346, %332, %cst_158 {dimension_numbers = #tpu.dot_dimension_numbers<[1], [0], [0], [1], [0, 0, 1, 1], [], []>} : vector<16x16xbf16>, vector<16x32xbf16>, vector<16x32xf32> -> vector<16x32xf32>
    %348 = tpu.concatenate %326, %347 in 1 : vector<16x32xf32>, vector<16x32xf32> -> vector<16x64xf32>
    %c2_159 = arith.constant 2 : index
    %c0_160 = arith.constant 0 : index
    %c0_161 = arith.constant 0 : index
    %349 = vector.load %arg9[%c2_159, %c0_160, %c0_161] : memref<3x64x64xbf16, #tpu.memory_space<vmem>>, vector<1x64x64xbf16>
    %350 = vector.shape_cast %349 : vector<1x64x64xbf16> to vector<64x64xbf16>
    %351 = arith.truncf %348 : vector<16x64xf32> to vector<16x64xbf16>
    %cst_162 = arith.constant dense<0.000000e+00> : vector<16x64xf32>
    %352 = tpu.matmul %351, %350, %cst_162 {dimension_numbers = #tpu.dot_dimension_numbers<[1], [0], [0], [1], [0, 0, 1, 1], [], []>} : vector<16x64xbf16>, vector<64x64xbf16>, vector<16x64xf32> -> vector<16x64xf32>
    %353 = arith.addf %273, %352 : vector<16x64xf32>
    %c2_163 = arith.constant 2 : index
    %c0_164 = arith.constant 0 : index
    %c0_165 = arith.constant 0 : index
    %354 = vector.load %arg10[%c2_163, %c0_164, %c0_165] : memref<3x1x64xf32, #tpu.memory_space<vmem>>, vector<1x1x64xf32>
    %355 = vector.shape_cast %354 : vector<1x1x64xf32> to vector<1x64xf32>
    %356 = vector.broadcast %355 : vector<1x64xf32> to vector<16x64xf32>
    %357 = arith.addf %353, %356 : vector<16x64xf32>
    %c2_166 = arith.constant 2 : index
    %c0_167 = arith.constant 0 : index
    %c0_168 = arith.constant 0 : index
    %358 = vector.load %arg11[%c2_166, %c0_167, %c0_168] : memref<3x1x64xf32, #tpu.memory_space<vmem>>, vector<1x1x64xf32>
    %359 = vector.shape_cast %358 : vector<1x1x64xf32> to vector<1x64xf32>
    %c2_169 = arith.constant 2 : index
    %c0_170 = arith.constant 0 : index
    %c0_171 = arith.constant 0 : index
    %360 = vector.load %arg12[%c2_169, %c0_170, %c0_171] : memref<3x1x64xf32, #tpu.memory_space<vmem>>, vector<1x1x64xf32>
    %361 = vector.shape_cast %360 : vector<1x1x64xf32> to vector<1x64xf32>
    %cst_172 = arith.constant dense<0.000000e+00> : vector<16xf32>
    %362 = vector.multi_reduction <add>, %357, %cst_172 [1] : vector<16x64xf32> to vector<16xf32>
    %363 = vector.shape_cast %362 : vector<16xf32> to vector<16x1xf32>
    %cst_173 = arith.constant 6.400000e+01 : f32
    %364 = vector.broadcast %cst_173 : f32 to vector<16x1xf32>
    %365 = arith.divf %363, %364 : vector<16x1xf32>
    %366 = vector.broadcast %365 : vector<16x1xf32> to vector<16x64xf32>
    %367 = arith.subf %357, %366 : vector<16x64xf32>
    %368 = arith.mulf %367, %367 : vector<16x64xf32>
    %cst_174 = arith.constant dense<0.000000e+00> : vector<16xf32>
    %369 = vector.multi_reduction <add>, %368, %cst_174 [1] : vector<16x64xf32> to vector<16xf32>
    %370 = vector.shape_cast %369 : vector<16xf32> to vector<16x1xf32>
    %cst_175 = arith.constant 6.400000e+01 : f32
    %371 = vector.broadcast %cst_175 : f32 to vector<16x1xf32>
    %372 = arith.divf %370, %371 : vector<16x1xf32>
    %cst_176 = arith.constant 9.99999974E-6 : f32
    %373 = vector.broadcast %cst_176 : f32 to vector<16x1xf32>
    %374 = arith.addf %372, %373 : vector<16x1xf32>
    %375 = math.rsqrt %374 : vector<16x1xf32>
    %376 = vector.broadcast %375 : vector<16x1xf32> to vector<16x64xf32>
    %377 = arith.mulf %367, %376 : vector<16x64xf32>
    %378 = vector.broadcast %359 : vector<1x64xf32> to vector<16x64xf32>
    %379 = arith.mulf %377, %378 : vector<16x64xf32>
    %380 = vector.broadcast %361 : vector<1x64xf32> to vector<16x64xf32>
    %381 = arith.addf %379, %380 : vector<16x64xf32>
    %c2_177 = arith.constant 2 : index
    %c0_178 = arith.constant 0 : index
    %c0_179 = arith.constant 0 : index
    %382 = vector.load %arg13[%c2_177, %c0_178, %c0_179] : memref<3x64x256xbf16, #tpu.memory_space<vmem>>, vector<1x64x256xbf16>
    %383 = vector.shape_cast %382 : vector<1x64x256xbf16> to vector<64x256xbf16>
    %384 = arith.truncf %381 : vector<16x64xf32> to vector<16x64xbf16>
    %cst_180 = arith.constant dense<0.000000e+00> : vector<16x256xf32>
    %385 = tpu.matmul %384, %383, %cst_180 {dimension_numbers = #tpu.dot_dimension_numbers<[1], [0], [0], [1], [0, 0, 1, 1], [], []>} : vector<16x64xbf16>, vector<64x256xbf16>, vector<16x256xf32> -> vector<16x256xf32>
    %c2_181 = arith.constant 2 : index
    %c0_182 = arith.constant 0 : index
    %c0_183 = arith.constant 0 : index
    %386 = vector.load %arg14[%c2_181, %c0_182, %c0_183] : memref<3x1x256xf32, #tpu.memory_space<vmem>>, vector<1x1x256xf32>
    %387 = vector.shape_cast %386 : vector<1x1x256xf32> to vector<1x256xf32>
    %388 = vector.broadcast %387 : vector<1x256xf32> to vector<16x256xf32>
    %389 = arith.addf %385, %388 : vector<16x256xf32>
    %cst_184 = arith.constant 5.000000e-01 : f32
    %390 = vector.broadcast %cst_184 : f32 to vector<16x256xf32>
    %391 = arith.mulf %390, %389 : vector<16x256xf32>
    %cst_185 = arith.constant 0.707106769 : f32
    %392 = vector.broadcast %cst_185 : f32 to vector<16x256xf32>
    %393 = arith.mulf %389, %392 : vector<16x256xf32>
    %394 = math.erf %393 : vector<16x256xf32>
    %cst_186 = arith.constant 1.000000e+00 : f32
    %395 = vector.broadcast %cst_186 : f32 to vector<16x256xf32>
    %396 = arith.addf %395, %394 : vector<16x256xf32>
    %397 = arith.mulf %391, %396 : vector<16x256xf32>
    %c2_187 = arith.constant 2 : index
    %c0_188 = arith.constant 0 : index
    %c0_189 = arith.constant 0 : index
    %398 = vector.load %arg15[%c2_187, %c0_188, %c0_189] : memref<3x256x64xbf16, #tpu.memory_space<vmem>>, vector<1x256x64xbf16>
    %399 = vector.shape_cast %398 : vector<1x256x64xbf16> to vector<256x64xbf16>
    %400 = arith.truncf %397 : vector<16x256xf32> to vector<16x256xbf16>
    %cst_190 = arith.constant dense<0.000000e+00> : vector<16x64xf32>
    %401 = tpu.matmul %400, %399, %cst_190 {dimension_numbers = #tpu.dot_dimension_numbers<[1], [0], [0], [1], [0, 0, 1, 1], [], []>} : vector<16x256xbf16>, vector<256x64xbf16>, vector<16x64xf32> -> vector<16x64xf32>
    %402 = arith.addf %357, %401 : vector<16x64xf32>
    %c2_191 = arith.constant 2 : index
    %c0_192 = arith.constant 0 : index
    %c0_193 = arith.constant 0 : index
    %403 = vector.load %arg16[%c2_191, %c0_192, %c0_193] : memref<3x1x64xf32, #tpu.memory_space<vmem>>, vector<1x1x64xf32>
    %404 = vector.shape_cast %403 : vector<1x1x64xf32> to vector<1x64xf32>
    %405 = vector.broadcast %404 : vector<1x64xf32> to vector<16x64xf32>
    %406 = arith.addf %402, %405 : vector<16x64xf32>
    %c0_194 = arith.constant 0 : index
    %c0_195 = arith.constant 0 : index
    %407 = vector.load %arg17[%c0_194, %c0_195] : memref<64x256xbf16, #tpu.memory_space<vmem>>, vector<64x256xbf16>
    %408 = arith.truncf %406 : vector<16x64xf32> to vector<16x64xbf16>
    %cst_196 = arith.constant dense<0.000000e+00> : vector<16x256xf32>
    %409 = tpu.matmul %408, %407, %cst_196 {dimension_numbers = #tpu.dot_dimension_numbers<[1], [0], [0], [1], [0, 0, 1, 1], [], []>} : vector<16x64xbf16>, vector<64x256xbf16>, vector<16x256xf32> -> vector<16x256xf32>
    %c0_197 = arith.constant 0 : index
    %c0_198 = arith.constant 0 : index
    %410 = vector.load %arg18[%c0_197, %c0_198] : memref<1x256xf32, #tpu.memory_space<vmem>>, vector<1x256xf32>
    %c0_199 = arith.constant 0 : index
    %c0_200 = arith.constant 0 : index
    %411 = vector.load %arg19[%c0_199, %c0_200] : memref<1x256xf32, #tpu.memory_space<vmem>>, vector<1x256xf32>
    %cst_201 = arith.constant dense<0.000000e+00> : vector<16xf32>
    %412 = vector.multi_reduction <add>, %409, %cst_201 [1] : vector<16x256xf32> to vector<16xf32>
    %413 = vector.shape_cast %412 : vector<16xf32> to vector<16x1xf32>
    %cst_202 = arith.constant 2.560000e+02 : f32
    %414 = vector.broadcast %cst_202 : f32 to vector<16x1xf32>
    %415 = arith.divf %413, %414 : vector<16x1xf32>
    %416 = vector.broadcast %415 : vector<16x1xf32> to vector<16x256xf32>
    %417 = arith.subf %409, %416 : vector<16x256xf32>
    %418 = arith.mulf %417, %417 : vector<16x256xf32>
    %cst_203 = arith.constant dense<0.000000e+00> : vector<16xf32>
    %419 = vector.multi_reduction <add>, %418, %cst_203 [1] : vector<16x256xf32> to vector<16xf32>
    %420 = vector.shape_cast %419 : vector<16xf32> to vector<16x1xf32>
    %cst_204 = arith.constant 2.560000e+02 : f32
    %421 = vector.broadcast %cst_204 : f32 to vector<16x1xf32>
    %422 = arith.divf %420, %421 : vector<16x1xf32>
    %cst_205 = arith.constant 9.99999997E-7 : f32
    %423 = vector.broadcast %cst_205 : f32 to vector<16x1xf32>
    %424 = arith.addf %422, %423 : vector<16x1xf32>
    %425 = math.rsqrt %424 : vector<16x1xf32>
    %426 = vector.broadcast %425 : vector<16x1xf32> to vector<16x256xf32>
    %427 = arith.mulf %417, %426 : vector<16x256xf32>
    %428 = vector.broadcast %410 : vector<1x256xf32> to vector<16x256xf32>
    %429 = arith.mulf %427, %428 : vector<16x256xf32>
    %430 = vector.broadcast %411 : vector<1x256xf32> to vector<16x256xf32>
    %431 = arith.addf %429, %430 : vector<16x256xf32>
    %c0_206 = arith.constant 0 : index
    %c0_207 = arith.constant 0 : index
    %432 = vector.load %arg20[%c0_206, %c0_207] : memref<144x16xbf16, #tpu.memory_space<vmem>>, vector<144x16xbf16>
    %433 = arith.truncf %431 : vector<16x256xf32> to vector<16x256xbf16>
    %cst_208 = arith.constant dense<0.000000e+00> : vector<144x256xf32>
    %434 = tpu.matmul %432, %433, %cst_208 {dimension_numbers = #tpu.dot_dimension_numbers<[1], [0], [0], [1], [0, 0, 1, 1], [], []>} : vector<144x16xbf16>, vector<16x256xbf16>, vector<144x256xf32> -> vector<144x256xf32>
    %435 = vector.extract_strided_slice %434 {offsets = [0, 0], sizes = [16, 256], strides = [1, 1]} : vector<144x256xf32> to vector<16x256xf32>
    %436 = vector.extract_strided_slice %434 {offsets = [16, 0], sizes = [16, 256], strides = [1, 1]} : vector<144x256xf32> to vector<16x256xf32>
    %437 = vector.extract_strided_slice %434 {offsets = [32, 0], sizes = [16, 256], strides = [1, 1]} : vector<144x256xf32> to vector<16x256xf32>
    %438 = vector.extract_strided_slice %434 {offsets = [48, 0], sizes = [16, 256], strides = [1, 1]} : vector<144x256xf32> to vector<16x256xf32>
    %439 = vector.extract_strided_slice %434 {offsets = [64, 0], sizes = [16, 256], strides = [1, 1]} : vector<144x256xf32> to vector<16x256xf32>
    %440 = vector.extract_strided_slice %434 {offsets = [80, 0], sizes = [16, 256], strides = [1, 1]} : vector<144x256xf32> to vector<16x256xf32>
    %441 = vector.extract_strided_slice %434 {offsets = [96, 0], sizes = [16, 256], strides = [1, 1]} : vector<144x256xf32> to vector<16x256xf32>
    %442 = vector.extract_strided_slice %434 {offsets = [112, 0], sizes = [16, 256], strides = [1, 1]} : vector<144x256xf32> to vector<16x256xf32>
    %443 = vector.extract_strided_slice %434 {offsets = [128, 0], sizes = [16, 256], strides = [1, 1]} : vector<144x256xf32> to vector<16x256xf32>
    %444 = tpu.concatenate %435, %436, %437, %438, %439, %440, %441, %442, %443 in 1 : vector<16x256xf32>, vector<16x256xf32>, vector<16x256xf32>, vector<16x256xf32>, vector<16x256xf32>, vector<16x256xf32>, vector<16x256xf32>, vector<16x256xf32>, vector<16x256xf32> -> vector<16x2304xf32>
    %c0_209 = arith.constant 0 : index
    %c0_210 = arith.constant 0 : index
    %445 = vector.load %arg21[%c0_209, %c0_210] : memref<2304x256xbf16, #tpu.memory_space<vmem>>, vector<2304x256xbf16>
    %446 = arith.truncf %444 : vector<16x2304xf32> to vector<16x2304xbf16>
    %cst_211 = arith.constant dense<0.000000e+00> : vector<16x256xf32>
    %447 = tpu.matmul %446, %445, %cst_211 {dimension_numbers = #tpu.dot_dimension_numbers<[1], [0], [0], [1], [0, 0, 1, 1], [], []>} : vector<16x2304xbf16>, vector<2304x256xbf16>, vector<16x256xf32> -> vector<16x256xf32>
    %c0_212 = arith.constant 0 : index
    %c0_213 = arith.constant 0 : index
    %448 = vector.load %arg22[%c0_212, %c0_213] : memref<1x256xf32, #tpu.memory_space<vmem>>, vector<1x256xf32>
    %c0_214 = arith.constant 0 : index
    %c0_215 = arith.constant 0 : index
    %449 = vector.load %arg23[%c0_214, %c0_215] : memref<1x256xf32, #tpu.memory_space<vmem>>, vector<1x256xf32>
    %cst_216 = arith.constant dense<0.000000e+00> : vector<16xf32>
    %450 = vector.multi_reduction <add>, %447, %cst_216 [1] : vector<16x256xf32> to vector<16xf32>
    %451 = vector.shape_cast %450 : vector<16xf32> to vector<16x1xf32>
    %cst_217 = arith.constant 2.560000e+02 : f32
    %452 = vector.broadcast %cst_217 : f32 to vector<16x1xf32>
    %453 = arith.divf %451, %452 : vector<16x1xf32>
    %454 = vector.broadcast %453 : vector<16x1xf32> to vector<16x256xf32>
    %455 = arith.subf %447, %454 : vector<16x256xf32>
    %456 = arith.mulf %455, %455 : vector<16x256xf32>
    %cst_218 = arith.constant dense<0.000000e+00> : vector<16xf32>
    %457 = vector.multi_reduction <add>, %456, %cst_218 [1] : vector<16x256xf32> to vector<16xf32>
    %458 = vector.shape_cast %457 : vector<16xf32> to vector<16x1xf32>
    %cst_219 = arith.constant 2.560000e+02 : f32
    %459 = vector.broadcast %cst_219 : f32 to vector<16x1xf32>
    %460 = arith.divf %458, %459 : vector<16x1xf32>
    %cst_220 = arith.constant 9.99999997E-7 : f32
    %461 = vector.broadcast %cst_220 : f32 to vector<16x1xf32>
    %462 = arith.addf %460, %461 : vector<16x1xf32>
    %463 = math.rsqrt %462 : vector<16x1xf32>
    %464 = vector.broadcast %463 : vector<16x1xf32> to vector<16x256xf32>
    %465 = arith.mulf %455, %464 : vector<16x256xf32>
    %466 = vector.broadcast %448 : vector<1x256xf32> to vector<16x256xf32>
    %467 = arith.mulf %465, %466 : vector<16x256xf32>
    %468 = vector.broadcast %449 : vector<1x256xf32> to vector<16x256xf32>
    %469 = arith.addf %467, %468 : vector<16x256xf32>
    %c0_221 = arith.constant 0 : index
    %c0_222 = arith.constant 0 : index
    %470 = vector.load %arg24[%c0_221, %c0_222] : memref<64x1024xbf16, #tpu.memory_space<vmem>>, vector<64x1024xbf16>
    %c0_223 = arith.constant 0 : index
    %c0_224 = arith.constant 0 : index
    %471 = vector.load %arg25[%c0_223, %c0_224] : memref<1024x12xbf16, #tpu.memory_space<vmem>>, vector<1024x12xbf16>
    %cst_225 = arith.constant dense<0.000000e+00> : vector<64x12xf32>
    %472 = tpu.matmul %470, %471, %cst_225 {dimension_numbers = #tpu.dot_dimension_numbers<[1], [0], [0], [1], [0, 0, 1, 1], [], []>} : vector<64x1024xbf16>, vector<1024x12xbf16>, vector<64x12xf32> -> vector<64x12xf32>
    %c0_226 = arith.constant 0 : index
    %c0_227 = arith.constant 0 : index
    %473 = vector.load %arg26[%c0_226, %c0_227] : memref<144x64xbf16, #tpu.memory_space<vmem>>, vector<144x64xbf16>
    %474 = arith.truncf %472 : vector<64x12xf32> to vector<64x12xbf16>
    %cst_228 = arith.constant dense<0.000000e+00> : vector<144x12xf32>
    %475 = tpu.matmul %473, %474, %cst_228 {dimension_numbers = #tpu.dot_dimension_numbers<[1], [0], [0], [1], [0, 0, 1, 1], [], []>} : vector<144x64xbf16>, vector<64x12xbf16>, vector<144x12xf32> -> vector<144x12xf32>
    %476 = vector.extract_strided_slice %475 {offsets = [0, 0], sizes = [16, 12], strides = [1, 1]} : vector<144x12xf32> to vector<16x12xf32>
    %477 = vector.extract_strided_slice %475 {offsets = [16, 0], sizes = [16, 12], strides = [1, 1]} : vector<144x12xf32> to vector<16x12xf32>
    %478 = vector.extract_strided_slice %475 {offsets = [32, 0], sizes = [16, 12], strides = [1, 1]} : vector<144x12xf32> to vector<16x12xf32>
    %479 = vector.extract_strided_slice %475 {offsets = [48, 0], sizes = [16, 12], strides = [1, 1]} : vector<144x12xf32> to vector<16x12xf32>
    %480 = vector.extract_strided_slice %475 {offsets = [64, 0], sizes = [16, 12], strides = [1, 1]} : vector<144x12xf32> to vector<16x12xf32>
    %481 = vector.extract_strided_slice %475 {offsets = [80, 0], sizes = [16, 12], strides = [1, 1]} : vector<144x12xf32> to vector<16x12xf32>
    %482 = vector.extract_strided_slice %475 {offsets = [96, 0], sizes = [16, 12], strides = [1, 1]} : vector<144x12xf32> to vector<16x12xf32>
    %483 = vector.extract_strided_slice %475 {offsets = [112, 0], sizes = [16, 12], strides = [1, 1]} : vector<144x12xf32> to vector<16x12xf32>
    %484 = vector.extract_strided_slice %475 {offsets = [128, 0], sizes = [16, 12], strides = [1, 1]} : vector<144x12xf32> to vector<16x12xf32>
    %cst_229 = arith.constant 0.000000e+00 : f32
    %485 = vector.broadcast %cst_229 : f32 to vector<16x20xf32>
    %486 = tpu.concatenate %476, %477, %478, %479, %480, %481, %482, %483, %484, %485 in 1 : vector<16x12xf32>, vector<16x12xf32>, vector<16x12xf32>, vector<16x12xf32>, vector<16x12xf32>, vector<16x12xf32>, vector<16x12xf32>, vector<16x12xf32>, vector<16x12xf32>, vector<16x20xf32> -> vector<16x128xf32>
    %c0_230 = arith.constant 0 : index
    %c0_231 = arith.constant 0 : index
    %487 = vector.load %arg27[%c0_230, %c0_231] : memref<128x256xbf16, #tpu.memory_space<vmem>>, vector<128x256xbf16>
    %488 = arith.truncf %486 : vector<16x128xf32> to vector<16x128xbf16>
    %cst_232 = arith.constant dense<0.000000e+00> : vector<16x256xf32>
    %489 = tpu.matmul %488, %487, %cst_232 {dimension_numbers = #tpu.dot_dimension_numbers<[1], [0], [0], [1], [0, 0, 1, 1], [], []>} : vector<16x128xbf16>, vector<128x256xbf16>, vector<16x256xf32> -> vector<16x256xf32>
    %cst_233 = arith.constant 5.000000e-01 : f32
    %490 = vector.broadcast %cst_233 : f32 to vector<16x256xf32>
    %491 = arith.mulf %490, %489 : vector<16x256xf32>
    %cst_234 = arith.constant 0.707106769 : f32
    %492 = vector.broadcast %cst_234 : f32 to vector<16x256xf32>
    %493 = arith.mulf %489, %492 : vector<16x256xf32>
    %494 = math.erf %493 : vector<16x256xf32>
    %cst_235 = arith.constant 1.000000e+00 : f32
    %495 = vector.broadcast %cst_235 : f32 to vector<16x256xf32>
    %496 = arith.addf %495, %494 : vector<16x256xf32>
    %497 = arith.mulf %491, %496 : vector<16x256xf32>
    %498 = arith.addf %469, %497 : vector<16x256xf32>
    %c0_236 = arith.constant 0 : index
    %c0_237 = arith.constant 0 : index
    %499 = vector.load %arg28[%c0_236, %c0_237] : memref<16x256xf32, #tpu.memory_space<vmem>>, vector<16x256xf32>
    %500 = arith.addf %498, %499 : vector<16x256xf32>
    %c0_238 = arith.constant 0 : index
    %c0_239 = arith.constant 0 : index
    %501 = vector.load %arg29[%c0_238, %c0_239] : memref<256x256xbf16, #tpu.memory_space<vmem>>, vector<256x256xbf16>
    %502 = arith.truncf %500 : vector<16x256xf32> to vector<16x256xbf16>
    %cst_240 = arith.constant dense<0.000000e+00> : vector<16x256xf32>
    %503 = tpu.matmul %502, %501, %cst_240 {dimension_numbers = #tpu.dot_dimension_numbers<[1], [0], [0], [1], [0, 0, 1, 1], [], []>} : vector<16x256xbf16>, vector<256x256xbf16>, vector<16x256xf32> -> vector<16x256xf32>
    %c0_241 = arith.constant 0 : index
    %c0_242 = arith.constant 0 : index
    %504 = vector.load %arg30[%c0_241, %c0_242] : memref<1x256xf32, #tpu.memory_space<vmem>>, vector<1x256xf32>
    %505 = vector.broadcast %504 : vector<1x256xf32> to vector<16x256xf32>
    %506 = arith.addf %503, %505 : vector<16x256xf32>
    %cst_243 = arith.constant 5.000000e-01 : f32
    %507 = vector.broadcast %cst_243 : f32 to vector<16x256xf32>
    %508 = arith.mulf %507, %506 : vector<16x256xf32>
    %cst_244 = arith.constant 0.707106769 : f32
    %509 = vector.broadcast %cst_244 : f32 to vector<16x256xf32>
    %510 = arith.mulf %506, %509 : vector<16x256xf32>
    %511 = math.erf %510 : vector<16x256xf32>
    %cst_245 = arith.constant 1.000000e+00 : f32
    %512 = vector.broadcast %cst_245 : f32 to vector<16x256xf32>
    %513 = arith.addf %512, %511 : vector<16x256xf32>
    %514 = arith.mulf %508, %513 : vector<16x256xf32>
    %c0_246 = arith.constant 0 : index
    %c0_247 = arith.constant 0 : index
    %515 = vector.load %arg31[%c0_246, %c0_247] : memref<256x256xbf16, #tpu.memory_space<vmem>>, vector<256x256xbf16>
    %516 = arith.truncf %514 : vector<16x256xf32> to vector<16x256xbf16>
    %cst_248 = arith.constant dense<0.000000e+00> : vector<16x256xf32>
    %517 = tpu.matmul %516, %515, %cst_248 {dimension_numbers = #tpu.dot_dimension_numbers<[1], [0], [0], [1], [0, 0, 1, 1], [], []>} : vector<16x256xbf16>, vector<256x256xbf16>, vector<16x256xf32> -> vector<16x256xf32>
    %c0_249 = arith.constant 0 : index
    %c0_250 = arith.constant 0 : index
    %518 = vector.load %arg32[%c0_249, %c0_250] : memref<1x256xf32, #tpu.memory_space<vmem>>, vector<1x256xf32>
    %519 = vector.broadcast %518 : vector<1x256xf32> to vector<16x256xf32>
    %520 = arith.addf %517, %519 : vector<16x256xf32>
    %cst_251 = arith.constant 5.000000e-01 : f32
    %521 = vector.broadcast %cst_251 : f32 to vector<16x256xf32>
    %522 = arith.mulf %521, %520 : vector<16x256xf32>
    %cst_252 = arith.constant 0.707106769 : f32
    %523 = vector.broadcast %cst_252 : f32 to vector<16x256xf32>
    %524 = arith.mulf %520, %523 : vector<16x256xf32>
    %525 = math.erf %524 : vector<16x256xf32>
    %cst_253 = arith.constant 1.000000e+00 : f32
    %526 = vector.broadcast %cst_253 : f32 to vector<16x256xf32>
    %527 = arith.addf %526, %525 : vector<16x256xf32>
    %528 = arith.mulf %522, %527 : vector<16x256xf32>
    %c0_254 = arith.constant 0 : index
    %c0_255 = arith.constant 0 : index
    %529 = vector.load %arg33[%c0_254, %c0_255] : memref<256x128xbf16, #tpu.memory_space<vmem>>, vector<256x128xbf16>
    %530 = arith.truncf %528 : vector<16x256xf32> to vector<16x256xbf16>
    %cst_256 = arith.constant dense<0.000000e+00> : vector<16x128xf32>
    %531 = tpu.matmul %530, %529, %cst_256 {dimension_numbers = #tpu.dot_dimension_numbers<[1], [0], [0], [1], [0, 0, 1, 1], [], []>} : vector<16x256xbf16>, vector<256x128xbf16>, vector<16x128xf32> -> vector<16x128xf32>
    %c0_257 = arith.constant 0 : index
    %c0_258 = arith.constant 0 : index
    %532 = vector.load %arg34[%c0_257, %c0_258] : memref<1x128xf32, #tpu.memory_space<vmem>>, vector<1x128xf32>
    %533 = vector.broadcast %532 : vector<1x128xf32> to vector<16x128xf32>
    %534 = arith.addf %531, %533 : vector<16x128xf32>
    %c0_259 = arith.constant 0 : index
    %c0_260 = arith.constant 0 : index
    %535 = vector.load %arg37[%c0_259, %c0_260] : memref<16x128xf32, #tpu.memory_space<vmem>>, vector<16x128xf32>
    tpu.vector_store %arg37[%c0_259, %c0_260], %534 {strides = array<i32>} : memref<16x128xf32, #tpu.memory_space<vmem>>, vector<16x128xf32>,
    %cst_261 = arith.constant 6.250000e-02 : f32
    %536 = vector.broadcast %cst_261 : f32 to vector<1x16xf32>
    %537 = arith.truncf %536 : vector<1x16xf32> to vector<1x16xbf16>
    %538 = arith.truncf %528 : vector<16x256xf32> to vector<16x256xbf16>
    %cst_262 = arith.constant dense<0.000000e+00> : vector<1x256xf32>
    %539 = tpu.matmul %537, %538, %cst_262 {dimension_numbers = #tpu.dot_dimension_numbers<[1], [0], [0], [1], [0, 0, 1, 1], [], []>} : vector<1x16xbf16>, vector<16x256xbf16>, vector<1x256xf32> -> vector<1x256xf32>
    %c0_263 = arith.constant 0 : index
    %c0_264 = arith.constant 0 : index
    %540 = vector.load %arg35[%c0_263, %c0_264] : memref<256x128xbf16, #tpu.memory_space<vmem>>, vector<256x128xbf16>
    %541 = arith.truncf %539 : vector<1x256xf32> to vector<1x256xbf16>
    %cst_265 = arith.constant dense<0.000000e+00> : vector<1x128xf32>
    %542 = tpu.matmul %541, %540, %cst_265 {dimension_numbers = #tpu.dot_dimension_numbers<[1], [0], [0], [1], [0, 0, 1, 1], [], []>} : vector<1x256xbf16>, vector<256x128xbf16>, vector<1x128xf32> -> vector<1x128xf32>
    %c0_266 = arith.constant 0 : index
    %c0_267 = arith.constant 0 : index
    %543 = vector.load %arg36[%c0_266, %c0_267] : memref<1x128xf32, #tpu.memory_space<vmem>>, vector<1x128xf32>
    %544 = arith.addf %542, %543 : vector<1x128xf32>
    %545 = vector.shape_cast %544 : vector<1x128xf32> to vector<1x128xf32>
    %546 = vector.broadcast %545 : vector<1x128xf32> to vector<8x128xf32>
    %c0_268 = arith.constant 0 : index
    %c0_269 = arith.constant 0 : index
    %547 = vector.load %arg38[%c0_268, %c0_269] : memref<8x128xf32, #tpu.memory_space<vmem>>, vector<8x128xf32>
    tpu.vector_store %arg38[%c0_268, %c0_269], %546 {strides = array<i32>} : memref<8x128xf32, #tpu.memory_space<vmem>>, vector<8x128xf32>,
    return
  }
  func.func @transform_0(%arg0: i32) -> (i32, i32) {
    %c0_i32 = arith.constant 0 : i32
    %c0_i32_0 = arith.constant 0 : i32
    return %arg0, %c0_i32 : i32, i32
  }
  func.func @transform_1(%arg0: i32) -> (i32, i32) {
    %c0_i32 = arith.constant 0 : i32
    %c0_i32_0 = arith.constant 0 : i32
    %c0_i32_1 = arith.constant 0 : i32
    return %c0_i32, %c0_i32_0 : i32, i32
  }
  func.func @transform_2(%arg0: i32) -> (i32, i32) {
    %c0_i32 = arith.constant 0 : i32
    %c0_i32_0 = arith.constant 0 : i32
    %c0_i32_1 = arith.constant 0 : i32
    return %c0_i32, %c0_i32_0 : i32, i32
  }
  func.func @transform_3(%arg0: i32) -> (i32, i32) {
    %c0_i32 = arith.constant 0 : i32
    %c0_i32_0 = arith.constant 0 : i32
    %c0_i32_1 = arith.constant 0 : i32
    return %c0_i32, %c0_i32_0 : i32, i32
  }
  func.func @transform_4(%arg0: i32) -> (i32, i32, i32) {
    %c0_i32 = arith.constant 0 : i32
    %c0_i32_0 = arith.constant 0 : i32
    %c0_i32_1 = arith.constant 0 : i32
    %c0_i32_2 = arith.constant 0 : i32
    return %c0_i32, %c0_i32_0, %c0_i32_1 : i32, i32, i32
  }
  func.func @transform_5(%arg0: i32) -> (i32, i32, i32) {
    %c0_i32 = arith.constant 0 : i32
    %c0_i32_0 = arith.constant 0 : i32
    %c0_i32_1 = arith.constant 0 : i32
    %c0_i32_2 = arith.constant 0 : i32
    return %c0_i32, %c0_i32_0, %c0_i32_1 : i32, i32, i32
  }
  func.func @transform_6(%arg0: i32) -> (i32, i32, i32) {
    %c0_i32 = arith.constant 0 : i32
    %c0_i32_0 = arith.constant 0 : i32
    %c0_i32_1 = arith.constant 0 : i32
    %c0_i32_2 = arith.constant 0 : i32
    return %c0_i32, %c0_i32_0, %c0_i32_1 : i32, i32, i32
  }
  func.func @transform_7(%arg0: i32) -> (i32, i32, i32) {
    %c0_i32 = arith.constant 0 : i32
    %c0_i32_0 = arith.constant 0 : i32
    %c0_i32_1 = arith.constant 0 : i32
    %c0_i32_2 = arith.constant 0 : i32
    return %c0_i32, %c0_i32_0, %c0_i32_1 : i32, i32, i32
  }
  func.func @transform_8(%arg0: i32) -> (i32, i32, i32) {
    %c0_i32 = arith.constant 0 : i32
    %c0_i32_0 = arith.constant 0 : i32
    %c0_i32_1 = arith.constant 0 : i32
    %c0_i32_2 = arith.constant 0 : i32
    return %c0_i32, %c0_i32_0, %c0_i32_1 : i32, i32, i32
  }
  func.func @transform_9(%arg0: i32) -> (i32, i32, i32) {
    %c0_i32 = arith.constant 0 : i32
    %c0_i32_0 = arith.constant 0 : i32
    %c0_i32_1 = arith.constant 0 : i32
    %c0_i32_2 = arith.constant 0 : i32
    return %c0_i32, %c0_i32_0, %c0_i32_1 : i32, i32, i32
  }
  func.func @transform_10(%arg0: i32) -> (i32, i32, i32) {
    %c0_i32 = arith.constant 0 : i32
    %c0_i32_0 = arith.constant 0 : i32
    %c0_i32_1 = arith.constant 0 : i32
    %c0_i32_2 = arith.constant 0 : i32
    return %c0_i32, %c0_i32_0, %c0_i32_1 : i32, i32, i32
  }
  func.func @transform_11(%arg0: i32) -> (i32, i32, i32) {
    %c0_i32 = arith.constant 0 : i32
    %c0_i32_0 = arith.constant 0 : i32
    %c0_i32_1 = arith.constant 0 : i32
    %c0_i32_2 = arith.constant 0 : i32
    return %c0_i32, %c0_i32_0, %c0_i32_1 : i32, i32, i32
  }
  func.func @transform_12(%arg0: i32) -> (i32, i32, i32) {
    %c0_i32 = arith.constant 0 : i32
    %c0_i32_0 = arith.constant 0 : i32
    %c0_i32_1 = arith.constant 0 : i32
    %c0_i32_2 = arith.constant 0 : i32
    return %c0_i32, %c0_i32_0, %c0_i32_1 : i32, i32, i32
  }
  func.func @transform_13(%arg0: i32) -> (i32, i32, i32) {
    %c0_i32 = arith.constant 0 : i32
    %c0_i32_0 = arith.constant 0 : i32
    %c0_i32_1 = arith.constant 0 : i32
    %c0_i32_2 = arith.constant 0 : i32
    return %c0_i32, %c0_i32_0, %c0_i32_1 : i32, i32, i32
  }
  func.func @transform_14(%arg0: i32) -> (i32, i32, i32) {
    %c0_i32 = arith.constant 0 : i32
    %c0_i32_0 = arith.constant 0 : i32
    %c0_i32_1 = arith.constant 0 : i32
    %c0_i32_2 = arith.constant 0 : i32
    return %c0_i32, %c0_i32_0, %c0_i32_1 : i32, i32, i32
  }
  func.func @transform_15(%arg0: i32) -> (i32, i32, i32) {
    %c0_i32 = arith.constant 0 : i32
    %c0_i32_0 = arith.constant 0 : i32
    %c0_i32_1 = arith.constant 0 : i32
    %c0_i32_2 = arith.constant 0 : i32
    return %c0_i32, %c0_i32_0, %c0_i32_1 : i32, i32, i32
  }
  func.func @transform_16(%arg0: i32) -> (i32, i32) {
    %c0_i32 = arith.constant 0 : i32
    %c0_i32_0 = arith.constant 0 : i32
    %c0_i32_1 = arith.constant 0 : i32
    return %c0_i32, %c0_i32_0 : i32, i32
  }
  func.func @transform_17(%arg0: i32) -> (i32, i32) {
    %c0_i32 = arith.constant 0 : i32
    %c0_i32_0 = arith.constant 0 : i32
    %c0_i32_1 = arith.constant 0 : i32
    return %c0_i32, %c0_i32_0 : i32, i32
  }
  func.func @transform_18(%arg0: i32) -> (i32, i32) {
    %c0_i32 = arith.constant 0 : i32
    %c0_i32_0 = arith.constant 0 : i32
    %c0_i32_1 = arith.constant 0 : i32
    return %c0_i32, %c0_i32_0 : i32, i32
  }
  func.func @transform_19(%arg0: i32) -> (i32, i32) {
    %c0_i32 = arith.constant 0 : i32
    %c0_i32_0 = arith.constant 0 : i32
    %c0_i32_1 = arith.constant 0 : i32
    return %c0_i32, %c0_i32_0 : i32, i32
  }
  func.func @transform_20(%arg0: i32) -> (i32, i32) {
    %c0_i32 = arith.constant 0 : i32
    %c0_i32_0 = arith.constant 0 : i32
    %c0_i32_1 = arith.constant 0 : i32
    return %c0_i32, %c0_i32_0 : i32, i32
  }
  func.func @transform_21(%arg0: i32) -> (i32, i32) {
    %c0_i32 = arith.constant 0 : i32
    %c0_i32_0 = arith.constant 0 : i32
    %c0_i32_1 = arith.constant 0 : i32
    return %c0_i32, %c0_i32_0 : i32, i32
  }
  func.func @transform_22(%arg0: i32) -> (i32, i32) {
    %c0_i32 = arith.constant 0 : i32
    %c0_i32_0 = arith.constant 0 : i32
    %c0_i32_1 = arith.constant 0 : i32
    return %c0_i32, %c0_i32_0 : i32, i32
  }
  func.func @transform_23(%arg0: i32) -> (i32, i32) {
    %c0_i32 = arith.constant 0 : i32
    %c0_i32_0 = arith.constant 0 : i32
    return %arg0, %c0_i32 : i32, i32
  }
  func.func @transform_24(%arg0: i32) -> (i32, i32) {
    %c0_i32 = arith.constant 0 : i32
    %c0_i32_0 = arith.constant 0 : i32
    %c0_i32_1 = arith.constant 0 : i32
    return %c0_i32, %c0_i32_0 : i32, i32
  }
  func.func @transform_25(%arg0: i32) -> (i32, i32) {
    %c0_i32 = arith.constant 0 : i32
    %c0_i32_0 = arith.constant 0 : i32
    %c0_i32_1 = arith.constant 0 : i32
    return %c0_i32, %c0_i32_0 : i32, i32
  }
  func.func @transform_26(%arg0: i32) -> (i32, i32) {
    %c0_i32 = arith.constant 0 : i32
    %c0_i32_0 = arith.constant 0 : i32
    %c0_i32_1 = arith.constant 0 : i32
    return %c0_i32, %c0_i32_0 : i32, i32
  }
  func.func @transform_27(%arg0: i32) -> (i32, i32) {
    %c0_i32 = arith.constant 0 : i32
    %c0_i32_0 = arith.constant 0 : i32
    %c0_i32_1 = arith.constant 0 : i32
    return %c0_i32, %c0_i32_0 : i32, i32
  }
  func.func @transform_28(%arg0: i32) -> (i32, i32) {
    %c0_i32 = arith.constant 0 : i32
    %c0_i32_0 = arith.constant 0 : i32
    %c0_i32_1 = arith.constant 0 : i32
    return %c0_i32, %c0_i32_0 : i32, i32
  }
  func.func @transform_29(%arg0: i32) -> (i32, i32) {
    %c0_i32 = arith.constant 0 : i32
    %c0_i32_0 = arith.constant 0 : i32
    %c0_i32_1 = arith.constant 0 : i32
    return %c0_i32, %c0_i32_0 : i32, i32
  }
  func.func @transform_30(%arg0: i32) -> (i32, i32) {
    %c0_i32 = arith.constant 0 : i32
    %c0_i32_0 = arith.constant 0 : i32
    %c0_i32_1 = arith.constant 0 : i32
    return %c0_i32, %c0_i32_0 : i32, i32
  }
  func.func @transform_31(%arg0: i32) -> (i32, i32) {
    %c0_i32 = arith.constant 0 : i32
    %c0_i32_0 = arith.constant 0 : i32
    %c0_i32_1 = arith.constant 0 : i32
    return %c0_i32, %c0_i32_0 : i32, i32
  }
  func.func @transform_32(%arg0: i32) -> (i32, i32) {
    %c0_i32 = arith.constant 0 : i32
    %c0_i32_0 = arith.constant 0 : i32
    %c0_i32_1 = arith.constant 0 : i32
    return %c0_i32, %c0_i32_0 : i32, i32
  }
  func.func @transform_33(%arg0: i32) -> (i32, i32) {
    %c0_i32 = arith.constant 0 : i32
    %c0_i32_0 = arith.constant 0 : i32
    %c0_i32_1 = arith.constant 0 : i32
    return %c0_i32, %c0_i32_0 : i32, i32
  }
  func.func @transform_34(%arg0: i32) -> (i32, i32) {
    %c0_i32 = arith.constant 0 : i32
    %c0_i32_0 = arith.constant 0 : i32
    %c0_i32_1 = arith.constant 0 : i32
    return %c0_i32, %c0_i32_0 : i32, i32
  }
  func.func @transform_35(%arg0: i32) -> (i32, i32) {
    %c0_i32 = arith.constant 0 : i32
    %c0_i32_0 = arith.constant 0 : i32
    %c0_i32_1 = arith.constant 0 : i32
    return %c0_i32, %c0_i32_0 : i32, i32
  }
  func.func @transform_36(%arg0: i32) -> (i32, i32) {
    %c0_i32 = arith.constant 0 : i32
    %c0_i32_0 = arith.constant 0 : i32
    return %arg0, %c0_i32 : i32, i32
  }
  func.func @transform_37(%arg0: i32) -> (i32, i32) {
    %c0_i32 = arith.constant 0 : i32
    %c0_i32_0 = arith.constant 0 : i32
    return %arg0, %c0_i32 : i32, i32
  }
}

</mosaic_0001>

<llo_original>
// kernel: forward.1
$region0: #{forward.1}
  #allocation0 [shape = 'u32[]', space=smem, size = 0x4, offset = 0x4, fixed_abs, tag = 'smem constant byte address 0x4 - core index']
  #allocation1 [shape = 'u32[144,128]{1,0:T(1,128)}', space=vmem, size = 0x12000, scoped, tag = 'internal scratch']
  %s0 = inlined_call_operand.smem [shape: u32[38], index: -1, kind: input, shape index: {}]
  %s1 = sld [smem:[%s0]]
  %s2 = scalar_lea.smem %s0, 1
  %s3 = sld [smem:[%s2]]
  %s4 = scalar_lea.smem %s0, 2
  %s5 = sld [smem:[%s4]]
  %s6 = scalar_lea.smem %s0, 3
  %s7 = sld [smem:[%s6]]
  %s8 = scalar_lea.smem %s0, 4
  %s9 = sld [smem:[%s8]]
  %s10 = scalar_lea.smem %s0, 5
  %s11 = sld [smem:[%s10]]
  %s12 = scalar_lea.smem %s0, 6
  %s13 = sld [smem:[%s12]]
  %s14 = scalar_lea.smem %s0, 7
  %s15 = sld [smem:[%s14]]
  %s16 = scalar_lea.smem %s0, 8
  %s17 = sld [smem:[%s16]]
  %s18 = scalar_lea.smem %s0, 9
  %s19 = sld [smem:[%s18]]
  %s20 = scalar_lea.smem %s0, 10
  %s21 = sld [smem:[%s20]]
  %s22 = scalar_lea.smem %s0, 11
  %s23 = sld [smem:[%s22]]
  %s24 = scalar_lea.smem %s0, 12
  %s25 = sld [smem:[%s24]]
  %s26 = scalar_lea.smem %s0, 13
  %s27 = sld [smem:[%s26]]
  %s28 = scalar_lea.smem %s0, 14
  %s29 = sld [smem:[%s28]]
  %s30 = scalar_lea.smem %s0, 15
  %s31 = sld [smem:[%s30]]
  %s32 = scalar_lea.smem %s0, 16
  %s33 = sld [smem:[%s32]]
  %s34 = scalar_lea.smem %s0, 17
  %s35 = sld [smem:[%s34]]
  %s36 = scalar_lea.smem %s0, 18
  %s37 = sld [smem:[%s36]]
  %s38 = scalar_lea.smem %s0, 19
  %s39 = sld [smem:[%s38]]
  %s40 = scalar_lea.smem %s0, 20
  %s41 = sld [smem:[%s40]]
  %s42 = scalar_lea.smem %s0, 21
  %s43 = sld [smem:[%s42]]
  %s44 = scalar_lea.smem %s0, 22
  %s45 = sld [smem:[%s44]]
  %s46 = scalar_lea.smem %s0, 23
  %s47 = sld [smem:[%s46]]
  %s48 = scalar_lea.smem %s0, 24
  %s49 = sld [smem:[%s48]]
  %s50 = scalar_lea.smem %s0, 25
  %s51 = sld [smem:[%s50]]
  %s52 = scalar_lea.smem %s0, 26
  %s53 = sld [smem:[%s52]]
  %s54 = scalar_lea.smem %s0, 27
  %s55 = sld [smem:[%s54]]
  %s56 = scalar_lea.smem %s0, 28
  %s57 = sld [smem:[%s56]]
  %s58 = scalar_lea.smem %s0, 29
  %s59 = sld [smem:[%s58]]
  %s60 = scalar_lea.smem %s0, 30
  %s61 = sld [smem:[%s60]]
  %s62 = scalar_lea.smem %s0, 31
  %s63 = sld [smem:[%s62]]
  %s64 = scalar_lea.smem %s0, 32
  %s65 = sld [smem:[%s64]]
  %s66 = scalar_lea.smem %s0, 33
  %s67 = sld [smem:[%s66]]
  %s68 = scalar_lea.smem %s0, 34
  %s69 = sld [smem:[%s68]]
  %s70 = scalar_lea.smem %s0, 35
  %s71 = sld [smem:[%s70]]
  %s72 = scalar_lea.smem %s0, 36
  %s73 = sld [smem:[%s72]]
  %s74 = scalar_lea.smem %s0, 37
  %s75 = sld [smem:[%s74]]
  %76 = xla_tuple %s73, %s75
  %s77 = sld [smem:[#allocation0]]
  $region185: #{forward.1} parent=0
    _
  %s79 = ssub.s32 1, %s77
  %s80 = scalar_select 0, %s79, %s77
  loop: start=0, step=1, limit=4
  $region2: #{forward.1} parent=0 // loop_pre_header
    _
  $region3: #{forward.1} parent=0 // loop_header
    %s82 = sphi 0, %s86
    %p83 = scmp.ge.s32.totalorder %s82, 4
    %s92 = sphi 0, %s94
    %s95 = sphi 0, %s92
    %s96 = sphi 0, %s95
    %s112 = sphi 0, %s96
    %s116 = sphi 0, %s116
    %s118 = sphi 0, %s116
    %s119 = sphi 0, %s118
    %s133 = sphi 0, %s119
    %s137 = sphi 0, %s137
    %s139 = sphi 0, %s137
    %s140 = sphi 0, %s139
    %s154 = sphi 0, %s140
    %s158 = sphi 0, %s158
    %s160 = sphi 0, %s158
    %s161 = sphi 0, %s160
    %s175 = sphi 0, %s161
    %s179 = sphi 0, %s179
    %s181 = sphi 0, %s179
    %s182 = sphi 0, %s181
    %s196 = sphi 0, %s182
    %s200 = sphi 0, %s200
    %s202 = sphi 0, %s200
    %s203 = sphi 0, %s202
    %s217 = sphi 0, %s203
    %s221 = sphi 0, %s221
    %s223 = sphi 0, %s221
    %s224 = sphi 0, %s223
    %s238 = sphi 0, %s224
    %s242 = sphi 0, %s242
    %s244 = sphi 0, %s242
    %s245 = sphi 0, %s244
    %s259 = sphi 0, %s245
    %s263 = sphi 0, %s263
    %s265 = sphi 0, %s263
    %s266 = sphi 0, %s265
    %s280 = sphi 0, %s266
    %s284 = sphi 0, %s284
    %s286 = sphi 0, %s284
    %s287 = sphi 0, %s286
    %s301 = sphi 0, %s287
    %s305 = sphi 0, %s305
    %s307 = sphi 0, %s305
    %s308 = sphi 0, %s307
    %s322 = sphi 0, %s308
    %s326 = sphi 0, %s326
    %s328 = sphi 0, %s326
    %s329 = sphi 0, %s328
    %s343 = sphi 0, %s329
    %s347 = sphi 0, %s347
    %s349 = sphi 0, %s347
    %s350 = sphi 0, %s349
    %s364 = sphi 0, %s350
    %s368 = sphi 0, %s368
    %s370 = sphi 0, %s368
    %s371 = sphi 0, %s370
    %s385 = sphi 0, %s371
    %s389 = sphi 0, %s389
    %s391 = sphi 0, %s389
    %s392 = sphi 0, %s391
    %s406 = sphi 0, %s392
    %s410 = sphi 0, %s410
    %s412 = sphi 0, %s410
    %s413 = sphi 0, %s412
    %s427 = sphi 0, %s413
    %s431 = sphi 0, %s431
    %s433 = sphi 0, %s431
    %s434 = sphi 0, %s433
    %s448 = sphi 0, %s434
    %s452 = sphi 0, %s452
    %s454 = sphi 0, %s452
    %s455 = sphi 0, %s454
    %s469 = sphi 0, %s455
    %s473 = sphi 0, %s473
    %s475 = sphi 0, %s473
    %s476 = sphi 0, %s475
    %s490 = sphi 0, %s476
    %s494 = sphi 0, %s494
    %s496 = sphi 0, %s494
    %s497 = sphi 0, %s496
    %s511 = sphi 0, %s497
    %s515 = sphi 0, %s515
    %s517 = sphi 0, %s515
    %s518 = sphi 0, %s517
    %s532 = sphi 0, %s518
    %s536 = sphi 0, %s536
    %s538 = sphi 0, %s536
    %s539 = sphi 0, %s538
    %s553 = sphi 0, %s539
    %s557 = sphi 0, %s557
    %s559 = sphi 0, %s557
    %s560 = sphi 0, %s559
    %s574 = sphi 0, %s560
    %s580 = sphi 0, %s582
    %s583 = sphi 0, %s580
    %s584 = sphi 0, %s583
    %s600 = sphi 0, %s584
    %s604 = sphi 0, %s604
    %s606 = sphi 0, %s604
    %s607 = sphi 0, %s606
    %s621 = sphi 0, %s607
    %s625 = sphi 0, %s625
    %s627 = sphi 0, %s625
    %s628 = sphi 0, %s627
    %s642 = sphi 0, %s628
    %s646 = sphi 0, %s646
    %s648 = sphi 0, %s646
    %s649 = sphi 0, %s648
    %s663 = sphi 0, %s649
    %s667 = sphi 0, %s667
    %s669 = sphi 0, %s667
    %s670 = sphi 0, %s669
    %s684 = sphi 0, %s670
    %s688 = sphi 0, %s688
    %s690 = sphi 0, %s688
    %s691 = sphi 0, %s690
    %s705 = sphi 0, %s691
    %s709 = sphi 0, %s709
    %s711 = sphi 0, %s709
    %s712 = sphi 0, %s711
    %s726 = sphi 0, %s712
    %s730 = sphi 0, %s730
    %s732 = sphi 0, %s730
    %s733 = sphi 0, %s732
    %s747 = sphi 0, %s733
    %s751 = sphi 0, %s751
    %s753 = sphi 0, %s751
    %s754 = sphi 0, %s753
    %s768 = sphi 0, %s754
    %s772 = sphi 0, %s772
    %s774 = sphi 0, %s772
    %s775 = sphi 0, %s774
    %s789 = sphi 0, %s775
    %s793 = sphi 0, %s793
    %s795 = sphi 0, %s793
    %s796 = sphi 0, %s795
    %s810 = sphi 0, %s796
    %s814 = sphi 0, %s814
    %s816 = sphi 0, %s814
    %s817 = sphi 0, %s816
    %s831 = sphi 0, %s817
    %s835 = sphi 0, %s835
    %s837 = sphi 0, %s835
    %s838 = sphi 0, %s837
    %s852 = sphi 0, %s838
    %s858 = sphi 0, %s860
    %s861 = sphi 0, %s858
    %s862 = sphi 0, %s861
    %s878 = sphi 0, %s862
    %s884 = sphi 0, %s886
    %s887 = sphi 0, %s884
    %s888 = sphi 0, %s887
    %s904 = sphi 0, %s888
  $region4: #{forward.1} parent=0 // loop_header_branch
    %85 = sbr.rel (%p83) target = $region8
  $region5: #{forward.1} parent=0 // loop_body
    %s87 = ssub.s32 %s82, 1
    %s88 = ssub.s32 %s82, 2
    %s89 = sadd.s32 %s82, 1
    %s90 = ssub.s32 %s82, %s89
    %p91 = scmp.eq.s32.totalorder %s90, 0
    %s93 = sadd.s32 %s92, 1
    %s94 = scalar_select %p91, %s92, %s93
    %p97 = pneg %p91
    %p98 = scmp.eq.s32.totalorder %s82, 1
    %p99 = por %p97, %p98
    %p100 = scmp.ne.s32.totalorder %s92, %s95
    %p101 = scmp.eq.s32.totalorder %s82, 0
    %p102 = por %p100, %p101
    %p103 = scmp.ne.s32.totalorder %s92, %s95
    %p104 = scmp.eq.s32.totalorder %s87, 1
    %p105 = por %p103, %p104
    %p106 = scmp.ne.s32.totalorder %s95, %s96
    %p107 = scmp.eq.s32.totalorder %s87, 0
    %p108 = por %p106, %p107
    %p109 = scmp.ne.s32.totalorder %s95, %s96
    %p110 = scmp.eq.s32.totalorder %s88, 1
    %p111 = por %p109, %p110
    %p113 = scmp.ne.s32.totalorder %s96, %s112
    %p114 = scmp.eq.s32.totalorder %s88, 0
    %p115 = por %p113, %p114
    %s117 = sadd.s32 %s116, 1
    %p120 = scmp.eq.s32.totalorder %s82, 1
    %p121 = scmp.ne.s32.totalorder %s116, %s118
    %p122 = scmp.eq.s32.totalorder %s82, 0
    %p123 = por %p121, %p122
    %p124 = scmp.ne.s32.totalorder %s116, %s118
    %p125 = scmp.eq.s32.totalorder %s87, 1
    %p126 = por %p124, %p125
    %p127 = scmp.ne.s32.totalorder %s118, %s119
    %p128 = scmp.eq.s32.totalorder %s87, 0
    %p129 = por %p127, %p128
    %p130 = scmp.ne.s32.totalorder %s118, %s119
    %p131 = scmp.eq.s32.totalorder %s88, 1
    %p132 = por %p130, %p131
    %p134 = scmp.ne.s32.totalorder %s119, %s133
    %p135 = scmp.eq.s32.totalorder %s88, 0
    %p136 = por %p134, %p135
    %s138 = sadd.s32 %s137, 1
    %p141 = scmp.eq.s32.totalorder %s82, 1
    %p142 = scmp.ne.s32.totalorder %s137, %s139
    %p143 = scmp.eq.s32.totalorder %s82, 0
    %p144 = por %p142, %p143
    %p145 = scmp.ne.s32.totalorder %s137, %s139
    %p146 = scmp.eq.s32.totalorder %s87, 1
    %p147 = por %p145, %p146
    %p148 = scmp.ne.s32.totalorder %s139, %s140
    %p149 = scmp.eq.s32.totalorder %s87, 0
    %p150 = por %p148, %p149
    %p151 = scmp.ne.s32.totalorder %s139, %s140
    %p152 = scmp.eq.s32.totalorder %s88, 1
    %p153 = por %p151, %p152
    %p155 = scmp.ne.s32.totalorder %s140, %s154
    %p156 = scmp.eq.s32.totalorder %s88, 0
    %p157 = por %p155, %p156
    %s159 = sadd.s32 %s158, 1
    %p162 = scmp.eq.s32.totalorder %s82, 1
    %p163 = scmp.ne.s32.totalorder %s158, %s160
    %p164 = scmp.eq.s32.totalorder %s82, 0
    %p165 = por %p163, %p164
    %p166 = scmp.ne.s32.totalorder %s158, %s160
    %p167 = scmp.eq.s32.totalorder %s87, 1
    %p168 = por %p166, %p167
    %p169 = scmp.ne.s32.totalorder %s160, %s161
    %p170 = scmp.eq.s32.totalorder %s87, 0
    %p171 = por %p169, %p170
    %p172 = scmp.ne.s32.totalorder %s160, %s161
    %p173 = scmp.eq.s32.totalorder %s88, 1
    %p174 = por %p172, %p173
    %p176 = scmp.ne.s32.totalorder %s161, %s175
    %p177 = scmp.eq.s32.totalorder %s88, 0
    %p178 = por %p176, %p177
    %s180 = sadd.s32 %s179, 1
    %p183 = scmp.eq.s32.totalorder %s82, 1
    %p184 = scmp.ne.s32.totalorder %s179, %s181
    %p185 = scmp.eq.s32.totalorder %s82, 0
    %p186 = por %p184, %p185
    %p187 = scmp.ne.s32.totalorder %s179, %s181
    %p188 = scmp.eq.s32.totalorder %s87, 1
    %p189 = por %p187, %p188
    %p190 = scmp.ne.s32.totalorder %s181, %s182
    %p191 = scmp.eq.s32.totalorder %s87, 0
    %p192 = por %p190, %p191
    %p193 = scmp.ne.s32.totalorder %s181, %s182
    %p194 = scmp.eq.s32.totalorder %s88, 1
    %p195 = por %p193, %p194
    %p197 = scmp.ne.s32.totalorder %s182, %s196
    %p198 = scmp.eq.s32.totalorder %s88, 0
    %p199 = por %p197, %p198
    %s201 = sadd.s32 %s200, 1
    %p204 = scmp.eq.s32.totalorder %s82, 1
    %p205 = scmp.ne.s32.totalorder %s200, %s202
    %p206 = scmp.eq.s32.totalorder %s82, 0
    %p207 = por %p205, %p206
    %p208 = scmp.ne.s32.totalorder %s200, %s202
    %p209 = scmp.eq.s32.totalorder %s87, 1
    %p210 = por %p208, %p209
    %p211 = scmp.ne.s32.totalorder %s202, %s203
    %p212 = scmp.eq.s32.totalorder %s87, 0
    %p213 = por %p211, %p212
    %p214 = scmp.ne.s32.totalorder %s202, %s203
    %p215 = scmp.eq.s32.totalorder %s88, 1
    %p216 = por %p214, %p215
    %p218 = scmp.ne.s32.totalorder %s203, %s217
    %p219 = scmp.eq.s32.totalorder %s88, 0
    %p220 = por %p218, %p219
    %s222 = sadd.s32 %s221, 1
    %p225 = scmp.eq.s32.totalorder %s82, 1
    %p226 = scmp.ne.s32.totalorder %s221, %s223
    %p227 = scmp.eq.s32.totalorder %s82, 0
    %p228 = por %p226, %p227
    %p229 = scmp.ne.s32.totalorder %s221, %s223
    %p230 = scmp.eq.s32.totalorder %s87, 1
    %p231 = por %p229, %p230
    %p232 = scmp.ne.s32.totalorder %s223, %s224
    %p233 = scmp.eq.s32.totalorder %s87, 0
    %p234 = por %p232, %p233
    %p235 = scmp.ne.s32.totalorder %s223, %s224
    %p236 = scmp.eq.s32.totalorder %s88, 1
    %p237 = por %p235, %p236
    %p239 = scmp.ne.s32.totalorder %s224, %s238
    %p240 = scmp.eq.s32.totalorder %s88, 0
    %p241 = por %p239, %p240
    %s243 = sadd.s32 %s242, 1
    %p246 = scmp.eq.s32.totalorder %s82, 1
    %p247 = scmp.ne.s32.totalorder %s242, %s244
    %p248 = scmp.eq.s32.totalorder %s82, 0
    %p249 = por %p247, %p248
    %p250 = scmp.ne.s32.totalorder %s242, %s244
    %p251 = scmp.eq.s32.totalorder %s87, 1
    %p252 = por %p250, %p251
    %p253 = scmp.ne.s32.totalorder %s244, %s245
    %p254 = scmp.eq.s32.totalorder %s87, 0
    %p255 = por %p253, %p254
    %p256 = scmp.ne.s32.totalorder %s244, %s245
    %p257 = scmp.eq.s32.totalorder %s88, 1
    %p258 = por %p256, %p257
    %p260 = scmp.ne.s32.totalorder %s245, %s259
    %p261 = scmp.eq.s32.totalorder %s88, 0
    %p262 = por %p260, %p261
    %s264 = sadd.s32 %s263, 1
    %p267 = scmp.eq.s32.totalorder %s82, 1
    %p268 = scmp.ne.s32.totalorder %s263, %s265
    %p269 = scmp.eq.s32.totalorder %s82, 0
    %p270 = por %p268, %p269
    %p271 = scmp.ne.s32.totalorder %s263, %s265
    %p272 = scmp.eq.s32.totalorder %s87, 1
    %p273 = por %p271, %p272
    %p274 = scmp.ne.s32.totalorder %s265, %s266
    %p275 = scmp.eq.s32.totalorder %s87, 0
    %p276 = por %p274, %p275
    %p277 = scmp.ne.s32.totalorder %s265, %s266
    %p278 = scmp.eq.s32.totalorder %s88, 1
    %p279 = por %p277, %p278
    %p281 = scmp.ne.s32.totalorder %s266, %s280
    %p282 = scmp.eq.s32.totalorder %s88, 0
    %p283 = por %p281, %p282
    %s285 = sadd.s32 %s284, 1
    %p288 = scmp.eq.s32.totalorder %s82, 1
    %p289 = scmp.ne.s32.totalorder %s284, %s286
    %p290 = scmp.eq.s32.totalorder %s82, 0
    %p291 = por %p289, %p290
    %p292 = scmp.ne.s32.totalorder %s284, %s286
    %p293 = scmp.eq.s32.totalorder %s87, 1
    %p294 = por %p292, %p293
    %p295 = scmp.ne.s32.totalorder %s286, %s287
    %p296 = scmp.eq.s32.totalorder %s87, 0
    %p297 = por %p295, %p296
    %p298 = scmp.ne.s32.totalorder %s286, %s287
    %p299 = scmp.eq.s32.totalorder %s88, 1
    %p300 = por %p298, %p299
    %p302 = scmp.ne.s32.totalorder %s287, %s301
    %p303 = scmp.eq.s32.totalorder %s88, 0
    %p304 = por %p302, %p303
    %s306 = sadd.s32 %s305, 1
    %p309 = scmp.eq.s32.totalorder %s82, 1
    %p310 = scmp.ne.s32.totalorder %s305, %s307
    %p311 = scmp.eq.s32.totalorder %s82, 0
    %p312 = por %p310, %p311
    %p313 = scmp.ne.s32.totalorder %s305, %s307
    %p314 = scmp.eq.s32.totalorder %s87, 1
    %p315 = por %p313, %p314
    %p316 = scmp.ne.s32.totalorder %s307, %s308
    %p317 = scmp.eq.s32.totalorder %s87, 0
    %p318 = por %p316, %p317
    %p319 = scmp.ne.s32.totalorder %s307, %s308
    %p320 = scmp.eq.s32.totalorder %s88, 1
    %p321 = por %p319, %p320
    %p323 = scmp.ne.s32.totalorder %s308, %s322
    %p324 = scmp.eq.s32.totalorder %s88, 0
    %p325 = por %p323, %p324
    %s327 = sadd.s32 %s326, 1
    %p330 = scmp.eq.s32.totalorder %s82, 1
    %p331 = scmp.ne.s32.totalorder %s326, %s328
    %p332 = scmp.eq.s32.totalorder %s82, 0
    %p333 = por %p331, %p332
    %p334 = scmp.ne.s32.totalorder %s326, %s328
    %p335 = scmp.eq.s32.totalorder %s87, 1
    %p336 = por %p334, %p335
    %p337 = scmp.ne.s32.totalorder %s328, %s329
    %p338 = scmp.eq.s32.totalorder %s87, 0
    %p339 = por %p337, %p338
    %p340 = scmp.ne.s32.totalorder %s328, %s329
    %p341 = scmp.eq.s32.totalorder %s88, 1
    %p342 = por %p340, %p341
    %p344 = scmp.ne.s32.totalorder %s329, %s343
    %p345 = scmp.eq.s32.totalorder %s88, 0
    %p346 = por %p344, %p345
    %s348 = sadd.s32 %s347, 1
    %p351 = scmp.eq.s32.totalorder %s82, 1
    %p352 = scmp.ne.s32.totalorder %s347, %s349
    %p353 = scmp.eq.s32.totalorder %s82, 0
    %p354 = por %p352, %p353
    %p355 = scmp.ne.s32.totalorder %s347, %s349
    %p356 = scmp.eq.s32.totalorder %s87, 1
    %p357 = por %p355, %p356
    %p358 = scmp.ne.s32.totalorder %s349, %s350
    %p359 = scmp.eq.s32.totalorder %s87, 0
    %p360 = por %p358, %p359
    %p361 = scmp.ne.s32.totalorder %s349, %s350
    %p362 = scmp.eq.s32.totalorder %s88, 1
    %p363 = por %p361, %p362
    %p365 = scmp.ne.s32.totalorder %s350, %s364
    %p366 = scmp.eq.s32.totalorder %s88, 0
    %p367 = por %p365, %p366
    %s369 = sadd.s32 %s368, 1
    %p372 = scmp.eq.s32.totalorder %s82, 1
    %p373 = scmp.ne.s32.totalorder %s368, %s370
    %p374 = scmp.eq.s32.totalorder %s82, 0
    %p375 = por %p373, %p374
    %p376 = scmp.ne.s32.totalorder %s368, %s370
    %p377 = scmp.eq.s32.totalorder %s87, 1
    %p378 = por %p376, %p377
    %p379 = scmp.ne.s32.totalorder %s370, %s371
    %p380 = scmp.eq.s32.totalorder %s87, 0
    %p381 = por %p379, %p380
    %p382 = scmp.ne.s32.totalorder %s370, %s371
    %p383 = scmp.eq.s32.totalorder %s88, 1
    %p384 = por %p382, %p383
    %p386 = scmp.ne.s32.totalorder %s371, %s385
    %p387 = scmp.eq.s32.totalorder %s88, 0
    %p388 = por %p386, %p387
    %s390 = sadd.s32 %s389, 1
    %p393 = scmp.eq.s32.totalorder %s82, 1
    %p394 = scmp.ne.s32.totalorder %s389, %s391
    %p395 = scmp.eq.s32.totalorder %s82, 0
    %p396 = por %p394, %p395
    %p397 = scmp.ne.s32.totalorder %s389, %s391
    %p398 = scmp.eq.s32.totalorder %s87, 1
    %p399 = por %p397, %p398
    %p400 = scmp.ne.s32.totalorder %s391, %s392
    %p401 = scmp.eq.s32.totalorder %s87, 0
    %p402 = por %p400, %p401
    %p403 = scmp.ne.s32.totalorder %s391, %s392
    %p404 = scmp.eq.s32.totalorder %s88, 1
    %p405 = por %p403, %p404
    %p407 = scmp.ne.s32.totalorder %s392, %s406
    %p408 = scmp.eq.s32.totalorder %s88, 0
    %p409 = por %p407, %p408
    %s411 = sadd.s32 %s410, 1
    %p414 = scmp.eq.s32.totalorder %s82, 1
    %p415 = scmp.ne.s32.totalorder %s410, %s412
    %p416 = scmp.eq.s32.totalorder %s82, 0
    %p417 = por %p415, %p416
    %p418 = scmp.ne.s32.totalorder %s410, %s412
    %p419 = scmp.eq.s32.totalorder %s87, 1
    %p420 = por %p418, %p419
    %p421 = scmp.ne.s32.totalorder %s412, %s413
    %p422 = scmp.eq.s32.totalorder %s87, 0
    %p423 = por %p421, %p422
    %p424 = scmp.ne.s32.totalorder %s412, %s413
    %p425 = scmp.eq.s32.totalorder %s88, 1
    %p426 = por %p424, %p425
    %p428 = scmp.ne.s32.totalorder %s413, %s427
    %p429 = scmp.eq.s32.totalorder %s88, 0
    %p430 = por %p428, %p429
    %s432 = sadd.s32 %s431, 1
    %p435 = scmp.eq.s32.totalorder %s82, 1
    %p436 = scmp.ne.s32.totalorder %s431, %s433
    %p437 = scmp.eq.s32.totalorder %s82, 0
    %p438 = por %p436, %p437
    %p439 = scmp.ne.s32.totalorder %s431, %s433
    %p440 = scmp.eq.s32.totalorder %s87, 1
    %p441 = por %p439, %p440
    %p442 = scmp.ne.s32.totalorder %s433, %s434
    %p443 = scmp.eq.s32.totalorder %s87, 0
    %p444 = por %p442, %p443
    %p445 = scmp.ne.s32.totalorder %s433, %s434
    %p446 = scmp.eq.s32.totalorder %s88, 1
    %p447 = por %p445, %p446
    %p449 = scmp.ne.s32.totalorder %s434, %s448
    %p450 = scmp.eq.s32.totalorder %s88, 0
    %p451 = por %p449, %p450
    %s453 = sadd.s32 %s452, 1
    %p456 = scmp.eq.s32.totalorder %s82, 1
    %p457 = scmp.ne.s32.totalorder %s452, %s454
    %p458 = scmp.eq.s32.totalorder %s82, 0
    %p459 = por %p457, %p458
    %p460 = scmp.ne.s32.totalorder %s452, %s454
    %p461 = scmp.eq.s32.totalorder %s87, 1
    %p462 = por %p460, %p461
    %p463 = scmp.ne.s32.totalorder %s454, %s455
    %p464 = scmp.eq.s32.totalorder %s87, 0
    %p465 = por %p463, %p464
    %p466 = scmp.ne.s32.totalorder %s454, %s455
    %p467 = scmp.eq.s32.totalorder %s88, 1
    %p468 = por %p466, %p467
    %p470 = scmp.ne.s32.totalorder %s455, %s469
    %p471 = scmp.eq.s32.totalorder %s88, 0
    %p472 = por %p470, %p471
    %s474 = sadd.s32 %s473, 1
    %p477 = scmp.eq.s32.totalorder %s82, 1
    %p478 = scmp.ne.s32.totalorder %s473, %s475
    %p479 = scmp.eq.s32.totalorder %s82, 0
    %p480 = por %p478, %p479
    %p481 = scmp.ne.s32.totalorder %s473, %s475
    %p482 = scmp.eq.s32.totalorder %s87, 1
    %p483 = por %p481, %p482
    %p484 = scmp.ne.s32.totalorder %s475, %s476
    %p485 = scmp.eq.s32.totalorder %s87, 0
    %p486 = por %p484, %p485
    %p487 = scmp.ne.s32.totalorder %s475, %s476
    %p488 = scmp.eq.s32.totalorder %s88, 1
    %p489 = por %p487, %p488
    %p491 = scmp.ne.s32.totalorder %s476, %s490
    %p492 = scmp.eq.s32.totalorder %s88, 0
    %p493 = por %p491, %p492
    %s495 = sadd.s32 %s494, 1
    %p498 = scmp.eq.s32.totalorder %s82, 1
    %p499 = scmp.ne.s32.totalorder %s494, %s496
    %p500 = scmp.eq.s32.totalorder %s82, 0
    %p501 = por %p499, %p500
    %p502 = scmp.ne.s32.totalorder %s494, %s496
    %p503 = scmp.eq.s32.totalorder %s87, 1
    %p504 = por %p502, %p503
    %p505 = scmp.ne.s32.totalorder %s496, %s497
    %p506 = scmp.eq.s32.totalorder %s87, 0
    %p507 = por %p505, %p506
    %p508 = scmp.ne.s32.totalorder %s496, %s497
    %p509 = scmp.eq.s32.totalorder %s88, 1
    %p510 = por %p508, %p509
    %p512 = scmp.ne.s32.totalorder %s497, %s511
    %p513 = scmp.eq.s32.totalorder %s88, 0
    %p514 = por %p512, %p513
    %s516 = sadd.s32 %s515, 1
    %p519 = scmp.eq.s32.totalorder %s82, 1
    %p520 = scmp.ne.s32.totalorder %s515, %s517
    %p521 = scmp.eq.s32.totalorder %s82, 0
    %p522 = por %p520, %p521
    %p523 = scmp.ne.s32.totalorder %s515, %s517
    %p524 = scmp.eq.s32.totalorder %s87, 1
    %p525 = por %p523, %p524
    %p526 = scmp.ne.s32.totalorder %s517, %s518
    %p527 = scmp.eq.s32.totalorder %s87, 0
    %p528 = por %p526, %p527
    %p529 = scmp.ne.s32.totalorder %s517, %s518
    %p530 = scmp.eq.s32.totalorder %s88, 1
    %p531 = por %p529, %p530
    %p533 = scmp.ne.s32.totalorder %s518, %s532
    %p534 = scmp.eq.s32.totalorder %s88, 0
    %p535 = por %p533, %p534
    %s537 = sadd.s32 %s536, 1
    %p540 = scmp.eq.s32.totalorder %s82, 1
    %p541 = scmp.ne.s32.totalorder %s536, %s538
    %p542 = scmp.eq.s32.totalorder %s82, 0
    %p543 = por %p541, %p542
    %p544 = scmp.ne.s32.totalorder %s536, %s538
    %p545 = scmp.eq.s32.totalorder %s87, 1
    %p546 = por %p544, %p545
    %p547 = scmp.ne.s32.totalorder %s538, %s539
    %p548 = scmp.eq.s32.totalorder %s87, 0
    %p549 = por %p547, %p548
    %p550 = scmp.ne.s32.totalorder %s538, %s539
    %p551 = scmp.eq.s32.totalorder %s88, 1
    %p552 = por %p550, %p551
    %p554 = scmp.ne.s32.totalorder %s539, %s553
    %p555 = scmp.eq.s32.totalorder %s88, 0
    %p556 = por %p554, %p555
    %s558 = sadd.s32 %s557, 1
    %p561 = scmp.eq.s32.totalorder %s82, 1
    %p562 = scmp.ne.s32.totalorder %s557, %s559
    %p563 = scmp.eq.s32.totalorder %s82, 0
    %p564 = por %p562, %p563
    %p565 = scmp.ne.s32.totalorder %s557, %s559
    %p566 = scmp.eq.s32.totalorder %s87, 1
    %p567 = por %p565, %p566
    %p568 = scmp.ne.s32.totalorder %s559, %s560
    %p569 = scmp.eq.s32.totalorder %s87, 0
    %p570 = por %p568, %p569
    %p571 = scmp.ne.s32.totalorder %s559, %s560
    %p572 = scmp.eq.s32.totalorder %s88, 1
    %p573 = por %p571, %p572
    %p575 = scmp.ne.s32.totalorder %s560, %s574
    %p576 = scmp.eq.s32.totalorder %s88, 0
    %p577 = por %p575, %p576
    %s578 = ssub.s32 %s82, %s89
    %p579 = scmp.eq.s32.totalorder %s578, 0
    %s581 = sadd.s32 %s580, 1
    %s582 = scalar_select %p579, %s580, %s581
    %p585 = pneg %p579
    %p586 = scmp.eq.s32.totalorder %s82, 1
    %p587 = por %p585, %p586
    %p588 = scmp.ne.s32.totalorder %s580, %s583
    %p589 = scmp.eq.s32.totalorder %s82, 0
    %p590 = por %p588, %p589
    %p591 = scmp.ne.s32.totalorder %s580, %s583
    %p592 = scmp.eq.s32.totalorder %s87, 1
    %p593 = por %p591, %p592
    %p594 = scmp.ne.s32.totalorder %s583, %s584
    %p595 = scmp.eq.s32.totalorder %s87, 0
    %p596 = por %p594, %p595
    %p597 = scmp.ne.s32.totalorder %s583, %s584
    %p598 = scmp.eq.s32.totalorder %s88, 1
    %p599 = por %p597, %p598
    %p601 = scmp.ne.s32.totalorder %s584, %s600
    %p602 = scmp.eq.s32.totalorder %s88, 0
    %p603 = por %p601, %p602
    %s605 = sadd.s32 %s604, 1
    %p608 = scmp.eq.s32.totalorder %s82, 1
    %p609 = scmp.ne.s32.totalorder %s604, %s606
    %p610 = scmp.eq.s32.totalorder %s82, 0
    %p611 = por %p609, %p610
    %p612 = scmp.ne.s32.totalorder %s604, %s606
    %p613 = scmp.eq.s32.totalorder %s87, 1
    %p614 = por %p612, %p613
    %p615 = scmp.ne.s32.totalorder %s606, %s607
    %p616 = scmp.eq.s32.totalorder %s87, 0
    %p617 = por %p615, %p616
    %p618 = scmp.ne.s32.totalorder %s606, %s607
    %p619 = scmp.eq.s32.totalorder %s88, 1
    %p620 = por %p618, %p619
    %p622 = scmp.ne.s32.totalorder %s607, %s621
    %p623 = scmp.eq.s32.totalorder %s88, 0
    %p624 = por %p622, %p623
    %s626 = sadd.s32 %s625, 1
    %p629 = scmp.eq.s32.totalorder %s82, 1
    %p630 = scmp.ne.s32.totalorder %s625, %s627
    %p631 = scmp.eq.s32.totalorder %s82, 0
    %p632 = por %p630, %p631
    %p633 = scmp.ne.s32.totalorder %s625, %s627
    %p634 = scmp.eq.s32.totalorder %s87, 1
    %p635 = por %p633, %p634
    %p636 = scmp.ne.s32.totalorder %s627, %s628
    %p637 = scmp.eq.s32.totalorder %s87, 0
    %p638 = por %p636, %p637
    %p639 = scmp.ne.s32.totalorder %s627, %s628
    %p640 = scmp.eq.s32.totalorder %s88, 1
    %p641 = por %p639, %p640
    %p643 = scmp.ne.s32.totalorder %s628, %s642
    %p644 = scmp.eq.s32.totalorder %s88, 0
    %p645 = por %p643, %p644
    %s647 = sadd.s32 %s646, 1
    %p650 = scmp.eq.s32.totalorder %s82, 1
    %p651 = scmp.ne.s32.totalorder %s646, %s648
    %p652 = scmp.eq.s32.totalorder %s82, 0
    %p653 = por %p651, %p652
    %p654 = scmp.ne.s32.totalorder %s646, %s648
    %p655 = scmp.eq.s32.totalorder %s87, 1
    %p656 = por %p654, %p655
    %p657 = scmp.ne.s32.totalorder %s648, %s649
    %p658 = scmp.eq.s32.totalorder %s87, 0
    %p659 = por %p657, %p658
    %p660 = scmp.ne.s32.totalorder %s648, %s649
    %p661 = scmp.eq.s32.totalorder %s88, 1
    %p662 = por %p660, %p661
    %p664 = scmp.ne.s32.totalorder %s649, %s663
    %p665 = scmp.eq.s32.totalorder %s88, 0
    %p666 = por %p664, %p665
    %s668 = sadd.s32 %s667, 1
    %p671 = scmp.eq.s32.totalorder %s82, 1
    %p672 = scmp.ne.s32.totalorder %s667, %s669
    %p673 = scmp.eq.s32.totalorder %s82, 0
    %p674 = por %p672, %p673
    %p675 = scmp.ne.s32.totalorder %s667, %s669
    %p676 = scmp.eq.s32.totalorder %s87, 1
    %p677 = por %p675, %p676
    %p678 = scmp.ne.s32.totalorder %s669, %s670
    %p679 = scmp.eq.s32.totalorder %s87, 0
    %p680 = por %p678, %p679
    %p681 = scmp.ne.s32.totalorder %s669, %s670
    %p682 = scmp.eq.s32.totalorder %s88, 1
    %p683 = por %p681, %p682
    %p685 = scmp.ne.s32.totalorder %s670, %s684
    %p686 = scmp.eq.s32.totalorder %s88, 0
    %p687 = por %p685, %p686
    %s689 = sadd.s32 %s688, 1
    %p692 = scmp.eq.s32.totalorder %s82, 1
    %p693 = scmp.ne.s32.totalorder %s688, %s690
    %p694 = scmp.eq.s32.totalorder %s82, 0
    %p695 = por %p693, %p694
    %p696 = scmp.ne.s32.totalorder %s688, %s690
    %p697 = scmp.eq.s32.totalorder %s87, 1
    %p698 = por %p696, %p697
    %p699 = scmp.ne.s32.totalorder %s690, %s691
    %p700 = scmp.eq.s32.totalorder %s87, 0
    %p701 = por %p699, %p700
    %p702 = scmp.ne.s32.totalorder %s690, %s691
    %p703 = scmp.eq.s32.totalorder %s88, 1
    %p704 = por %p702, %p703
    %p706 = scmp.ne.s32.totalorder %s691, %s705
    %p707 = scmp.eq.s32.totalorder %s88, 0
    %p708 = por %p706, %p707
    %s710 = sadd.s32 %s709, 1
    %p713 = scmp.eq.s32.totalorder %s82, 1
    %p714 = scmp.ne.s32.totalorder %s709, %s711
    %p715 = scmp.eq.s32.totalorder %s82, 0
    %p716 = por %p714, %p715
    %p717 = scmp.ne.s32.totalorder %s709, %s711
    %p718 = scmp.eq.s32.totalorder %s87, 1
    %p719 = por %p717, %p718
    %p720 = scmp.ne.s32.totalorder %s711, %s712
    %p721 = scmp.eq.s32.totalorder %s87, 0
    %p722 = por %p720, %p721
    %p723 = scmp.ne.s32.totalorder %s711, %s712
    %p724 = scmp.eq.s32.totalorder %s88, 1
    %p725 = por %p723, %p724
    %p727 = scmp.ne.s32.totalorder %s712, %s726
    %p728 = scmp.eq.s32.totalorder %s88, 0
    %p729 = por %p727, %p728
    %s731 = sadd.s32 %s730, 1
    %p734 = scmp.eq.s32.totalorder %s82, 1
    %p735 = scmp.ne.s32.totalorder %s730, %s732
    %p736 = scmp.eq.s32.totalorder %s82, 0
    %p737 = por %p735, %p736
    %p738 = scmp.ne.s32.totalorder %s730, %s732
    %p739 = scmp.eq.s32.totalorder %s87, 1
    %p740 = por %p738, %p739
    %p741 = scmp.ne.s32.totalorder %s732, %s733
    %p742 = scmp.eq.s32.totalorder %s87, 0
    %p743 = por %p741, %p742
    %p744 = scmp.ne.s32.totalorder %s732, %s733
    %p745 = scmp.eq.s32.totalorder %s88, 1
    %p746 = por %p744, %p745
    %p748 = scmp.ne.s32.totalorder %s733, %s747
    %p749 = scmp.eq.s32.totalorder %s88, 0
    %p750 = por %p748, %p749
    %s752 = sadd.s32 %s751, 1
    %p755 = scmp.eq.s32.totalorder %s82, 1
    %p756 = scmp.ne.s32.totalorder %s751, %s753
    %p757 = scmp.eq.s32.totalorder %s82, 0
    %p758 = por %p756, %p757
    %p759 = scmp.ne.s32.totalorder %s751, %s753
    %p760 = scmp.eq.s32.totalorder %s87, 1
    %p761 = por %p759, %p760
    %p762 = scmp.ne.s32.totalorder %s753, %s754
    %p763 = scmp.eq.s32.totalorder %s87, 0
    %p764 = por %p762, %p763
    %p765 = scmp.ne.s32.totalorder %s753, %s754
    %p766 = scmp.eq.s32.totalorder %s88, 1
    %p767 = por %p765, %p766
    %p769 = scmp.ne.s32.totalorder %s754, %s768
    %p770 = scmp.eq.s32.totalorder %s88, 0
    %p771 = por %p769, %p770
    %s773 = sadd.s32 %s772, 1
    %p776 = scmp.eq.s32.totalorder %s82, 1
    %p777 = scmp.ne.s32.totalorder %s772, %s774
    %p778 = scmp.eq.s32.totalorder %s82, 0
    %p779 = por %p777, %p778
    %p780 = scmp.ne.s32.totalorder %s772, %s774
    %p781 = scmp.eq.s32.totalorder %s87, 1
    %p782 = por %p780, %p781
    %p783 = scmp.ne.s32.totalorder %s774, %s775
    %p784 = scmp.eq.s32.totalorder %s87, 0
    %p785 = por %p783, %p784
    %p786 = scmp.ne.s32.totalorder %s774, %s775
    %p787 = scmp.eq.s32.totalorder %s88, 1
    %p788 = por %p786, %p787
    %p790 = scmp.ne.s32.totalorder %s775, %s789
    %p791 = scmp.eq.s32.totalorder %s88, 0
    %p792 = por %p790, %p791
    %s794 = sadd.s32 %s793, 1
    %p797 = scmp.eq.s32.totalorder %s82, 1
    %p798 = scmp.ne.s32.totalorder %s793, %s795
    %p799 = scmp.eq.s32.totalorder %s82, 0
    %p800 = por %p798, %p799
    %p801 = scmp.ne.s32.totalorder %s793, %s795
    %p802 = scmp.eq.s32.totalorder %s87, 1
    %p803 = por %p801, %p802
    %p804 = scmp.ne.s32.totalorder %s795, %s796
    %p805 = scmp.eq.s32.totalorder %s87, 0
    %p806 = por %p804, %p805
    %p807 = scmp.ne.s32.totalorder %s795, %s796
    %p808 = scmp.eq.s32.totalorder %s88, 1
    %p809 = por %p807, %p808
    %p811 = scmp.ne.s32.totalorder %s796, %s810
    %p812 = scmp.eq.s32.totalorder %s88, 0
    %p813 = por %p811, %p812
    %s815 = sadd.s32 %s814, 1
    %p818 = scmp.eq.s32.totalorder %s82, 1
    %p819 = scmp.ne.s32.totalorder %s814, %s816
    %p820 = scmp.eq.s32.totalorder %s82, 0
    %p821 = por %p819, %p820
    %p822 = scmp.ne.s32.totalorder %s814, %s816
    %p823 = scmp.eq.s32.totalorder %s87, 1
    %p824 = por %p822, %p823
    %p825 = scmp.ne.s32.totalorder %s816, %s817
    %p826 = scmp.eq.s32.totalorder %s87, 0
    %p827 = por %p825, %p826
    %p828 = scmp.ne.s32.totalorder %s816, %s817
    %p829 = scmp.eq.s32.totalorder %s88, 1
    %p830 = por %p828, %p829
    %p832 = scmp.ne.s32.totalorder %s817, %s831
    %p833 = scmp.eq.s32.totalorder %s88, 0
    %p834 = por %p832, %p833
    %s836 = sadd.s32 %s835, 1
    %p839 = scmp.eq.s32.totalorder %s82, 1
    %p840 = scmp.ne.s32.totalorder %s835, %s837
    %p841 = scmp.eq.s32.totalorder %s82, 0
    %p842 = por %p840, %p841
    %p843 = scmp.ne.s32.totalorder %s835, %s837
    %p844 = scmp.eq.s32.totalorder %s87, 1
    %p845 = por %p843, %p844
    %p846 = scmp.ne.s32.totalorder %s837, %s838
    %p847 = scmp.eq.s32.totalorder %s87, 0
    %p848 = por %p846, %p847
    %p849 = scmp.ne.s32.totalorder %s837, %s838
    %p850 = scmp.eq.s32.totalorder %s88, 1
    %p851 = por %p849, %p850
    %p853 = scmp.ne.s32.totalorder %s838, %s852
    %p854 = scmp.eq.s32.totalorder %s88, 0
    %p855 = por %p853, %p854
    %s856 = ssub.s32 %s82, %s89
    %p857 = scmp.eq.s32.totalorder %s856, 0
    %s859 = sadd.s32 %s858, 1
    %s860 = scalar_select %p857, %s858, %s859
    %p863 = pneg %p857
    %p864 = scmp.eq.s32.totalorder %s82, 1
    %p865 = por %p863, %p864
    %p866 = scmp.ne.s32.totalorder %s858, %s861
    %p867 = scmp.eq.s32.totalorder %s82, 0
    %p868 = por %p866, %p867
    %p869 = scmp.ne.s32.totalorder %s858, %s861
    %p870 = scmp.eq.s32.totalorder %s87, 1
    %p871 = por %p869, %p870
    %p872 = scmp.ne.s32.totalorder %s861, %s862
    %p873 = scmp.eq.s32.totalorder %s87, 0
    %p874 = por %p872, %p873
    %p875 = scmp.ne.s32.totalorder %s861, %s862
    %p876 = scmp.eq.s32.totalorder %s88, 1
    %p877 = por %p875, %p876
    %p879 = scmp.ne.s32.totalorder %s862, %s878
    %p880 = scmp.eq.s32.totalorder %s88, 0
    %p881 = por %p879, %p880
    %s882 = ssub.s32 %s82, %s89
    %p883 = scmp.eq.s32.totalorder %s882, 0
    %s885 = sadd.s32 %s884, 1
    %s886 = scalar_select %p883, %s884, %s885
    %p889 = pneg %p883
    %p890 = scmp.eq.s32.totalorder %s82, 1
    %p891 = por %p889, %p890
    %p892 = scmp.ne.s32.totalorder %s884, %s887
    %p893 = scmp.eq.s32.totalorder %s82, 0
    %p894 = por %p892, %p893
    %p895 = scmp.ne.s32.totalorder %s884, %s887
    %p896 = scmp.eq.s32.totalorder %s87, 1
    %p897 = por %p895, %p896
    %p898 = scmp.ne.s32.totalorder %s887, %s888
    %p899 = scmp.eq.s32.totalorder %s87, 0
    %p900 = por %p898, %p899
    %p901 = scmp.ne.s32.totalorder %s887, %s888
    %p902 = scmp.eq.s32.totalorder %s88, 1
    %p903 = por %p901, %p902
    %p905 = scmp.ne.s32.totalorder %s888, %s904
    %p906 = scmp.eq.s32.totalorder %s88, 0
    %p907 = por %p905, %p906
    %p908 = scmp.le.s32.totalorder 1, %s82
    %p909 = scmp.lt.s32.totalorder %s82, 3
    %p910 = pnand %p908, %p909
    %p911 = pneg %p910
    // Predicated region
    $region9: #{forward.1} parent=5 // pred_check
      _
    $region10: #{forward.1} parent=5 // pred_check_branch
      %913 = sbr.rel (%p910) target = $region12
    $region11: #{forward.1} parent=5 // pred_region
      %s914 = ssub.s32 %s82, 1
      // Predicated region
      $region13: #{forward.1} parent=11 // pred_check
        %p915 = pneg %p129
      $region14: #{forward.1} parent=11 // pred_check_branch
        %917 = sbr.rel (%p915) target = $region16
      $region15: #{forward.1} parent=11 // pred_region
        _
      $region16: #{forward.1} parent=11 // pred_fallthru
        _
      // Predicated region
      $region17: #{forward.1} parent=11 // pred_check
        %p918 = pneg %p150
      $region18: #{forward.1} parent=11 // pred_check_branch
        %920 = sbr.rel (%p918) target = $region20
      $region19: #{forward.1} parent=11 // pred_region
        _
      $region20: #{forward.1} parent=11 // pred_fallthru
        _
      // Predicated region
      $region21: #{forward.1} parent=11 // pred_check
        %p921 = pneg %p171
      $region22: #{forward.1} parent=11 // pred_check_branch
        %923 = sbr.rel (%p921) target = $region24
      $region23: #{forward.1} parent=11 // pred_region
        _
      $region24: #{forward.1} parent=11 // pred_fallthru
        _
      // Predicated region
      $region25: #{forward.1} parent=11 // pred_check
        %p924 = pneg %p192
      $region26: #{forward.1} parent=11 // pred_check_branch
        %926 = sbr.rel (%p924) target = $region28
      $region27: #{forward.1} parent=11 // pred_region
        _
      $region28: #{forward.1} parent=11 // pred_fallthru
        _
      // Predicated region
      $region29: #{forward.1} parent=11 // pred_check
        %p927 = pneg %p213
      $region30: #{forward.1} parent=11 // pred_check_branch
        %929 = sbr.rel (%p927) target = $region32
      $region31: #{forward.1} parent=11 // pred_region
        _
      $region32: #{forward.1} parent=11 // pred_fallthru
        _
      // Predicated region
      $region33: #{forward.1} parent=11 // pred_check
        %p930 = pneg %p234
      $region34: #{forward.1} parent=11 // pred_check_branch
        %932 = sbr.rel (%p930) target = $region36
      $region35: #{forward.1} parent=11 // pred_region
        _
      $region36: #{forward.1} parent=11 // pred_fallthru
        _
      // Predicated region
      $region37: #{forward.1} parent=11 // pred_check
        %p933 = pneg %p255
      $region38: #{forward.1} parent=11 // pred_check_branch
        %935 = sbr.rel (%p933) target = $region40
      $region39: #{forward.1} parent=11 // pred_region
        _
      $region40: #{forward.1} parent=11 // pred_fallthru
        _
      // Predicated region
      $region41: #{forward.1} parent=11 // pred_check
        %p936 = pneg %p276
      $region42: #{forward.1} parent=11 // pred_check_branch
        %938 = sbr.rel (%p936) target = $region44
      $region43: #{forward.1} parent=11 // pred_region
        _
      $region44: #{forward.1} parent=11 // pred_fallthru
        _
      // Predicated region
      $region45: #{forward.1} parent=11 // pred_check
        %p939 = pneg %p297
      $region46: #{forward.1} parent=11 // pred_check_branch
        %941 = sbr.rel (%p939) target = $region48
      $region47: #{forward.1} parent=11 // pred_region
        _
      $region48: #{forward.1} parent=11 // pred_fallthru
        _
      // Predicated region
      $region49: #{forward.1} parent=11 // pred_check
        %p942 = pneg %p318
      $region50: #{forward.1} parent=11 // pred_check_branch
        %944 = sbr.rel (%p942) target = $region52
      $region51: #{forward.1} parent=11 // pred_region
        _
      $region52: #{forward.1} parent=11 // pred_fallthru
        _
      // Predicated region
      $region53: #{forward.1} parent=11 // pred_check
        %p945 = pneg %p339
      $region54: #{forward.1} parent=11 // pred_check_branch
        %947 = sbr.rel (%p945) target = $region56
      $region55: #{forward.1} parent=11 // pred_region
        _
      $region56: #{forward.1} parent=11 // pred_fallthru
        _
      // Predicated region
      $region57: #{forward.1} parent=11 // pred_check
        %p948 = pneg %p360
      $region58: #{forward.1} parent=11 // pred_check_branch
        %950 = sbr.rel (%p948) target = $region60
      $region59: #{forward.1} parent=11 // pred_region
        _
      $region60: #{forward.1} parent=11 // pred_fallthru
        _
      // Predicated region
      $region61: #{forward.1} parent=11 // pred_check
        %p951 = pneg %p381
      $region62: #{forward.1} parent=11 // pred_check_branch
        %953 = sbr.rel (%p951) target = $region64
      $region63: #{forward.1} parent=11 // pred_region
        _
      $region64: #{forward.1} parent=11 // pred_fallthru
        _
      // Predicated region
      $region65: #{forward.1} parent=11 // pred_check
        %p954 = pneg %p402
      $region66: #{forward.1} parent=11 // pred_check_branch
        %956 = sbr.rel (%p954) target = $region68
      $region67: #{forward.1} parent=11 // pred_region
        _
      $region68: #{forward.1} parent=11 // pred_fallthru
        _
      // Predicated region
      $region69: #{forward.1} parent=11 // pred_check
        %p957 = pneg %p423
      $region70: #{forward.1} parent=11 // pred_check_branch
        %959 = sbr.rel (%p957) target = $region72
      $region71: #{forward.1} parent=11 // pred_region
        _
      $region72: #{forward.1} parent=11 // pred_fallthru
        _
      // Predicated region
      $region73: #{forward.1} parent=11 // pred_check
        %p960 = pneg %p444
      $region74: #{forward.1} parent=11 // pred_check_branch
        %962 = sbr.rel (%p960) target = $region76
      $region75: #{forward.1} parent=11 // pred_region
        _
      $region76: #{forward.1} parent=11 // pred_fallthru
        _
      // Predicated region
      $region77: #{forward.1} parent=11 // pred_check
        %p963 = pneg %p465
      $region78: #{forward.1} parent=11 // pred_check_branch
        %965 = sbr.rel (%p963) target = $region80
      $region79: #{forward.1} parent=11 // pred_region
        _
      $region80: #{forward.1} parent=11 // pred_fallthru
        _
      // Predicated region
      $region81: #{forward.1} parent=11 // pred_check
        %p966 = pneg %p486
      $region82: #{forward.1} parent=11 // pred_check_branch
        %968 = sbr.rel (%p966) target = $region84
      $region83: #{forward.1} parent=11 // pred_region
        _
      $region84: #{forward.1} parent=11 // pred_fallthru
        _
      // Predicated region
      $region85: #{forward.1} parent=11 // pred_check
        %p969 = pneg %p507
      $region86: #{forward.1} parent=11 // pred_check_branch
        %971 = sbr.rel (%p969) target = $region88
      $region87: #{forward.1} parent=11 // pred_region
        _
      $region88: #{forward.1} parent=11 // pred_fallthru
        _
      // Predicated region
      $region89: #{forward.1} parent=11 // pred_check
        %p972 = pneg %p528
      $region90: #{forward.1} parent=11 // pred_check_branch
        %974 = sbr.rel (%p972) target = $region92
      $region91: #{forward.1} parent=11 // pred_region
        _
      $region92: #{forward.1} parent=11 // pred_fallthru
        _
      // Predicated region
      $region93: #{forward.1} parent=11 // pred_check
        %p975 = pneg %p549
      $region94: #{forward.1} parent=11 // pred_check_branch
        %977 = sbr.rel (%p975) target = $region96
      $region95: #{forward.1} parent=11 // pred_region
        _
      $region96: #{forward.1} parent=11 // pred_fallthru
        _
      // Predicated region
      $region97: #{forward.1} parent=11 // pred_check
        %p978 = pneg %p570
      $region98: #{forward.1} parent=11 // pred_check_branch
        %980 = sbr.rel (%p978) target = $region100
      $region99: #{forward.1} parent=11 // pred_region
        _
      $region100: #{forward.1} parent=11 // pred_fallthru
        _
      // Predicated region
      $region101: #{forward.1} parent=11 // pred_check
        %p981 = pneg %p617
      $region102: #{forward.1} parent=11 // pred_check_branch
        %983 = sbr.rel (%p981) target = $region104
      $region103: #{forward.1} parent=11 // pred_region
        _
      $region104: #{forward.1} parent=11 // pred_fallthru
        _
      // Predicated region
      $region105: #{forward.1} parent=11 // pred_check
        %p984 = pneg %p638
      $region106: #{forward.1} parent=11 // pred_check_branch
        %986 = sbr.rel (%p984) target = $region108
      $region107: #{forward.1} parent=11 // pred_region
        _
      $region108: #{forward.1} parent=11 // pred_fallthru
        _
      // Predicated region
      $region109: #{forward.1} parent=11 // pred_check
        %p987 = pneg %p659
      $region110: #{forward.1} parent=11 // pred_check_branch
        %989 = sbr.rel (%p987) target = $region112
      $region111: #{forward.1} parent=11 // pred_region
        _
      $region112: #{forward.1} parent=11 // pred_fallthru
        _
      // Predicated region
      $region113: #{forward.1} parent=11 // pred_check
        %p990 = pneg %p680
      $region114: #{forward.1} parent=11 // pred_check_branch
        %992 = sbr.rel (%p990) target = $region116
      $region115: #{forward.1} parent=11 // pred_region
        _
      $region116: #{forward.1} parent=11 // pred_fallthru
        _
      // Predicated region
      $region117: #{forward.1} parent=11 // pred_check
        %p993 = pneg %p701
      $region118: #{forward.1} parent=11 // pred_check_branch
        %995 = sbr.rel (%p993) target = $region120
      $region119: #{forward.1} parent=11 // pred_region
        _
      $region120: #{forward.1} parent=11 // pred_fallthru
        _
      // Predicated region
      $region121: #{forward.1} parent=11 // pred_check
        %p996 = pneg %p722
      $region122: #{forward.1} parent=11 // pred_check_branch
        %998 = sbr.rel (%p996) target = $region124
      $region123: #{forward.1} parent=11 // pred_region
        _
      $region124: #{forward.1} parent=11 // pred_fallthru
        _
      // Predicated region
      $region125: #{forward.1} parent=11 // pred_check
        %p999 = pneg %p743
      $region126: #{forward.1} parent=11 // pred_check_branch
        %1001 = sbr.rel (%p999) target = $region128
      $region127: #{forward.1} parent=11 // pred_region
        _
      $region128: #{forward.1} parent=11 // pred_fallthru
        _
      // Predicated region
      $region129: #{forward.1} parent=11 // pred_check
        %p1002 = pneg %p764
      $region130: #{forward.1} parent=11 // pred_check_branch
        %1004 = sbr.rel (%p1002) target = $region132
      $region131: #{forward.1} parent=11 // pred_region
        _
      $region132: #{forward.1} parent=11 // pred_fallthru
        _
      // Predicated region
      $region133: #{forward.1} parent=11 // pred_check
        %p1005 = pneg %p785
      $region134: #{forward.1} parent=11 // pred_check_branch
        %1007 = sbr.rel (%p1005) target = $region136
      $region135: #{forward.1} parent=11 // pred_region
        _
      $region136: #{forward.1} parent=11 // pred_fallthru
        _
      // Predicated region
      $region137: #{forward.1} parent=11 // pred_check
        %p1008 = pneg %p806
      $region138: #{forward.1} parent=11 // pred_check_branch
        %1010 = sbr.rel (%p1008) target = $region140
      $region139: #{forward.1} parent=11 // pred_region
        _
      $region140: #{forward.1} parent=11 // pred_fallthru
        _
      // Predicated region
      $region141: #{forward.1} parent=11 // pred_check
        %p1011 = pneg %p827
      $region142: #{forward.1} parent=11 // pred_check_branch
        %1013 = sbr.rel (%p1011) target = $region144
      $region143: #{forward.1} parent=11 // pred_region
        _
      $region144: #{forward.1} parent=11 // pred_fallthru
        _
      // Predicated region
      $region145: #{forward.1} parent=11 // pred_check
        %p1014 = pneg %p848
      $region146: #{forward.1} parent=11 // pred_check_branch
        %1016 = sbr.rel (%p1014) target = $region148
      $region147: #{forward.1} parent=11 // pred_region
        _
      $region148: #{forward.1} parent=11 // pred_fallthru
        _
    $region12: #{forward.1} parent=5 // pred_fallthru
      _
    %p1017 = scmp.lt.s32.totalorder %s82, 2
    // Predicated region
    $region149: #{forward.1} parent=5 // pred_check
      %p1018 = pneg %p1017
    $region150: #{forward.1} parent=5 // pred_check_branch
      %1020 = sbr.rel (%p1018) target = $region152
    $region151: #{forward.1} parent=5 // pred_region
      // Predicated region
      $region153: #{forward.1} parent=151 // pred_check
        %p1021 = pneg %p102
      $region154: #{forward.1} parent=151 // pred_check_branch
        %1023 = sbr.rel (%p1021) target = $region156
      $region155: #{forward.1} parent=151 // pred_region
        %s1024 = smul.u32 2, %s82
        %p1025 = scmp.lt.s32.totalorder %s1024, 3
        %s1026 = scalar_select %p1025, %s1024, 3
        %s1027 = smul.addr %s1026, 2
        %s1028 = smul.addr %s1027, 4
        %s1029 = scalar_lea.vmem %s1, %s1028
        %s1030 = smul.u32 2, %s82
      $region156: #{forward.1} parent=151 // pred_fallthru
        _
      // Predicated region
      $region157: #{forward.1} parent=151 // pred_check
        %p1031 = pneg %p590
      $region158: #{forward.1} parent=151 // pred_check_branch
        %1033 = sbr.rel (%p1031) target = $region160
      $region159: #{forward.1} parent=151 // pred_region
        %s1034 = smul.u32 8, %s82
        %p1035 = scmp.lt.s32.totalorder %s1034, 15
        %s1036 = scalar_select %p1035, %s1034, 15
        %s1037 = smul.addr %s1036, 8
        %s1038 = smul.addr %s1037, 4
        %s1039 = scalar_lea.vmem %s47, %s1038
        %s1040 = smul.u32 8, %s82
      $region160: #{forward.1} parent=151 // pred_fallthru
        _
    $region152: #{forward.1} parent=5 // pred_fallthru
      _
    %p1041 = scmp.le.s32.totalorder 1, %s82
    %p1042 = scmp.lt.s32.totalorder %s82, 3
    %p1043 = pnand %p1041, %p1042
    %p1044 = pneg %p1043
    // Predicated region
    $region161: #{forward.1} parent=5 // pred_check
      _
    $region162: #{forward.1} parent=5 // pred_check_branch
      %1046 = sbr.rel (%p1043) target = $region164
    $region163: #{forward.1} parent=5 // pred_region
      %s1047 = ssub.s32 %s82, 1
      %s1048 = smul.u32 2, %s87
      %p1049 = scmp.lt.s32.totalorder %s1048, 3
      %s1050 = scalar_select %p1049, %s1048, 3
      %s1051 = smul.addr %s1050, 2
      %s1052 = smul.addr %s1051, 4
      %s1053 = scalar_lea.vmem %s1, %s1052
      %p1054 = pneg %p108
      %p1055 = pneg %p105
      %p1056 = pneg %p129
      %p1057 = pneg %p126
      %p1058 = pneg %p150
      %p1059 = pneg %p147
      %p1060 = pneg %p171
      %p1061 = pneg %p168
      %p1062 = pneg %p192
      %p1063 = pneg %p189
      %p1064 = pneg %p213
      %p1065 = pneg %p210
      %p1066 = pneg %p234
      %p1067 = pneg %p231
      %p1068 = pneg %p255
      %p1069 = pneg %p252
      %p1070 = pneg %p276
      %p1071 = pneg %p273
      %p1072 = pneg %p297
      %p1073 = pneg %p294
      %p1074 = pneg %p318
      %p1075 = pneg %p315
      %p1076 = pneg %p339
      %p1077 = pneg %p336
      %p1078 = pneg %p360
      %p1079 = pneg %p357
      %p1080 = pneg %p381
      %p1081 = pneg %p378
      %p1082 = pneg %p402
      %p1083 = pneg %p399
      %p1084 = pneg %p423
      %p1085 = pneg %p420
      %p1086 = pneg %p444
      %p1087 = pneg %p441
      %p1088 = pneg %p465
      %p1089 = pneg %p462
      %p1090 = pneg %p486
      %p1091 = pneg %p483
      %p1092 = pneg %p507
      %p1093 = pneg %p504
      %p1094 = pneg %p528
      %p1095 = pneg %p525
      %p1096 = pneg %p549
      %p1097 = pneg %p546
      %p1098 = pneg %p570
      %p1099 = pneg %p567
      %s1100 = smul.u32 8, %s87
      %p1101 = scmp.lt.s32.totalorder %s1100, 15
      %s1102 = scalar_select %p1101, %s1100, 15
      %s1103 = smul.addr %s1102, 8
      %s1104 = smul.addr %s1103, 4
      %s1105 = scalar_lea.vmem %s47, %s1104
      %p1106 = pneg %p596
      %p1107 = pneg %p593
      %p1108 = pneg %p617
      %p1109 = pneg %p614
      %p1110 = pneg %p638
      %p1111 = pneg %p635
      %p1112 = pneg %p659
      %p1113 = pneg %p656
      %p1114 = pneg %p680
      %p1115 = pneg %p677
      %p1116 = pneg %p701
      %p1117 = pneg %p698
      %p1118 = pneg %p722
      %p1119 = pneg %p719
      %p1120 = pneg %p743
      %p1121 = pneg %p740
      %p1122 = pneg %p764
      %p1123 = pneg %p761
      %p1124 = pneg %p785
      %p1125 = pneg %p782
      %p1126 = pneg %p806
      %p1127 = pneg %p803
      %p1128 = pneg %p827
      %p1129 = pneg %p824
      %p1130 = pneg %p848
      %p1131 = pneg %p845
      %p1132 = pneg %p874
      %p1133 = pneg %p871
      %s1134 = smul.u32 2, %s87
      %p1135 = scmp.lt.s32.totalorder %s1134, 3
      %s1136 = scalar_select %p1135, %s1134, 3
      %s1137 = smul.addr %s1136, 8
      %s1138 = scalar_lea.vmem %s73, %s1137
      %p1139 = pneg %p900
      %p1140 = pneg %p897
      %p1141 = scmp.lt.s32.totalorder %s87, 1
      %s1142 = scalar_select %p1141, %s87, 1
      %s1143 = smul.addr %s1142, 8
      %s1144 = scalar_lea.vmem %s75, %s1143
      %s1145 = smul.u32 2, %s87
      %p1146 = scmp.lt.s32.totalorder %s1145, 3
      %s1147 = scalar_select %p1146, %s1145, 3
      %s1148 = smul.addr %s1147, 2
      %s1149 = smul.addr %s1148, 4
      %s1150 = scalar_lea.vmem %s1, %s1149
      %s1151 = smul.u32 2, %s87
      %s1152 = smul.u32 8, %s87
      %p1153 = scmp.lt.s32.totalorder %s1152, 15
      %s1154 = scalar_select %p1153, %s1152, 15
      %s1155 = smul.addr %s1154, 8
      %s1156 = smul.addr %s1155, 4
      %s1157 = scalar_lea.vmem %s47, %s1156
      %s1158 = smul.u32 8, %s87
      %s1159 = smul.u32 2, %s87
      %p1160 = scmp.lt.s32.totalorder %s1159, 3
      %s1161 = scalar_select %p1160, %s1159, 3
      %s1162 = smul.addr %s1161, 8
      %s1163 = scalar_lea.vmem %s73, %s1162
      %s1164 = smul.u32 2, %s87
      %p1165 = scmp.lt.s32.totalorder %s87, 1
      %s1166 = scalar_select %p1165, %s87, 1
      %s1167 = smul.addr %s1166, 8
      %s1168 = scalar_lea.vmem %s75, %s1167
      %v1171 = vld [vmem:[%s1150] sm:$0xff]
      %v1172 = vld [vmem:[%s1150 + $0x8] sm:$0xff]
      %v1173 = vld [vmem:[%s5] sm:$0xf]
      %v1174 = vld [vmem:[%s5 + $0x4] sm:$0xf]
      %v1175 = vld [vmem:[%s5 + $0x8] sm:$0xf]
      %v1176 = vld [vmem:[%s5 + $0xc] sm:$0xf]
      %v1177 = vld [vmem:[%s5 + $0x10] sm:$0xf]
      %v1178 = vld [vmem:[%s5 + $0x14] sm:$0xf]
      %v1179 = vld [vmem:[%s5 + $0x18] sm:$0xf]
      %v1180 = vld [vmem:[%s5 + $0x1c] sm:$0xf]
      %v1181 = vld [vmem:[%s5 + $0x20] sm:$0xf]
      %v1182 = vld [vmem:[%s5 + $0x24] sm:$0xf]
      %v1183 = vld [vmem:[%s5 + $0x28] sm:$0xf]
      %v1184 = vld [vmem:[%s5 + $0x2c] sm:$0xf]
      %v1185 = vld [vmem:[%s5 + $0x30] sm:$0xf]
      %v1186 = vld [vmem:[%s5 + $0x34] sm:$0xf]
      %v1187 = vld [vmem:[%s5 + $0x38] sm:$0xf]
      %v1188 = vld [vmem:[%s5 + $0x3c] sm:$0xf]
      %v1189 = vld [vmem:[%s5 + $0x40] sm:$0xf]
      %v1190 = vld [vmem:[%s5 + $0x44] sm:$0xf]
      %v1191 = vld [vmem:[%s5 + $0x48] sm:$0xf]
      %v1192 = vld [vmem:[%s5 + $0x4c] sm:$0xf]
      %v1193 = vld [vmem:[%s5 + $0x50] sm:$0xf]
      %v1194 = vld [vmem:[%s5 + $0x54] sm:$0xf]
      %v1195 = vld [vmem:[%s5 + $0x58] sm:$0xf]
      %v1196 = vld [vmem:[%s5 + $0x5c] sm:$0xf]
      %v1197 = vld [vmem:[%s7] sm:$0x1]
      %v1199 = vlaneseq
      %v1200 = vshrl.u32 %v1199, 7
      %v1201 = vsub.s32 0, %v1200
      %v1202 = vrot.slane %v1197, %v1201
      %v1206 = vunpack.c.l.b16 %v1171
      %v1207 = vunpack.c.h.b16 %v1171
      %v1208 = vunpack.c.l.b16 %v1172
      %v1209 = vunpack.c.h.b16 %v1172
      %v1210 = vpack.c.b16 %v1208, %v1206
      %v1211 = vpack.c.b16 %v1209, %v1207
      %v1237 = vunpack.c.l.b16 %v1173
      %v1238 = vunpack.c.l.b16 %v1174
      %v1239 = vunpack.c.l.b16 %v1175
      %v1240 = vunpack.c.l.b16 %v1176
      %v1241 = vunpack.c.l.b16 %v1177
      %v1242 = vunpack.c.l.b16 %v1178
      %v1243 = vunpack.c.l.b16 %v1179
      %v1244 = vunpack.c.l.b16 %v1180
      %v1245 = vunpack.c.l.b16 %v1181
      %v1246 = vunpack.c.l.b16 %v1182
      %v1247 = vunpack.c.l.b16 %v1183
      %v1248 = vunpack.c.l.b16 %v1184
      %v1249 = vunpack.c.l.b16 %v1185
      %v1250 = vunpack.c.l.b16 %v1186
      %v1251 = vunpack.c.l.b16 %v1187
      %v1252 = vunpack.c.l.b16 %v1188
      %v1253 = vunpack.c.l.b16 %v1189
      %v1254 = vunpack.c.l.b16 %v1190
      %v1255 = vunpack.c.l.b16 %v1191
      %v1256 = vunpack.c.l.b16 %v1192
      %v1257 = vunpack.c.l.b16 %v1193
      %v1258 = vunpack.c.l.b16 %v1194
      %v1259 = vunpack.c.l.b16 %v1195
      %v1260 = vunpack.c.l.b16 %v1196
      %v1261 = vpack.c.b16 %v1238, %v1237
      %v1262 = vpack.c.b16 %v1240, %v1239
      %v1263 = vpack.c.b16 %v1242, %v1241
      %v1264 = vpack.c.b16 %v1244, %v1243
      %v1265 = vpack.c.b16 %v1246, %v1245
      %v1266 = vpack.c.b16 %v1248, %v1247
      %v1267 = vpack.c.b16 %v1250, %v1249
      %v1268 = vpack.c.b16 %v1252, %v1251
      %v1269 = vpack.c.b16 %v1254, %v1253
      %v1270 = vpack.c.b16 %v1256, %v1255
      %v1271 = vpack.c.b16 %v1258, %v1257
      %v1272 = vpack.c.b16 %v1260, %v1259
      %vm1285 = vcmask 523264
      %v1287 = vsel %vm1285, %v1211, 0
      %1289 = vmatprep.subr.bf16.mxu0 0
      %1290 = vmatpush1.bf16.msra.mxu0 %v1261
      %1291 = vmatprep.subr.bf16.mxu0 0
      %1292 = vmatpush1.bf16.msra.mxu0 %v1262
      %1293 = vmatprep.subr.bf16.mxu0 0
      %1294 = vmatpush1.bf16.msra.mxu0 %v1263
      %1295 = vmatprep.subr.bf16.mxu0 0
      %1296 = vmatpush1.bf16.msra.mxu0 %v1264
      %1297 = vmatprep.subr.bf16.mxu0 0
      %1298 = vmatpush1.bf16.msra.mxu0 %v1265
      %1299 = vmatprep.subr.bf16.mxu0 0
      %1300 = vmatpush1.bf16.msra.mxu0 %v1266
      %1301 = vmatprep.subr.bf16.mxu0 0
      %1302 = vmatpush1.bf16.msra.mxu0 %v1267
      %1303 = vmatprep.subr.bf16.mxu0 0
      %1304 = vmatpush1.bf16.msra.mxu0 %v1268
      %1305 = vmatprep.subr.bf16.mxu0 0
      %1306 = vmatpush1.bf16.msra.mxu0 %v1269
      %1307 = vmatprep.subr.bf16.mxu0 0
      %1308 = vmatpush1.bf16.msra.mxu0 %v1270
      %1309 = vmatprep.subr.bf16.mxu0 0
      %1310 = vmatpush1.bf16.msra.mxu0 %v1271
      %1311 = vmatprep.subr.bf16.mxu0 0
      %1312 = vmatpush1.bf16.msra.mxu0 %v1272
      %1313 = vmatprep.subr.bf16.mxu0 0
      %1314 = vmatpush1.bf16.msra.mxu0 0
      %1315 = vmatprep.subr.bf16.mxu0 0
      %1316 = vmatpush1.bf16.msra.mxu0 0
      %1317 = vmatprep.subr.bf16.mxu0 0
      %1318 = vmatpush1.bf16.msra.mxu0 0
      %1319 = vmatprep.subr.bf16.mxu0 0
      %1320 = vmatpush1.bf16.msra.mxu0 0
      %1321 = vmatprep.mubr.bf16.mxu0 %v1287
      %1322 = vmatmul.mubr.bf16.gmra.mrb[0].mxu0 %v1210
      %v1323 = vpop.f32.mrb[0].mxu0
      %v1324 = vadd.f32 %v1202, %v1323
      %v1325 = vpop.f32.mrb[0].mxu0
      %v1326 = vpop.f32.mrb[0].mxu0
      %v1327 = vadd.f32 %v1202, %v1326
      %v1328 = vpop.f32.mrb[0].mxu0
      %1329 = vdwg.mxu0
      %v1330 = vld [vmem:[%s3] sm:$0xff]
      %v1331 = vld [vmem:[%s3 + $0x8] sm:$0xff]
      %v1332 = vadd.f32 %v1324, %v1330
      %v1333 = vadd.f32 %v1327, %v1331
      %v1334 = vld [vmem:[%s9] sm:$0x1]
      %v1335 = vld [vmem:[%s11] sm:$0x1]
      %v1336 = vsel %vm1285, %v1332, 0.0
      %1337 = vadd.xlane.f32.xlu0 %v1336
      %v1338 = vpop.xlane.xlu0 %1337
      %v1339 = vsel %vm1285, %v1333, 0.0
      %1340 = vadd.xlane.f32.xlu0 %v1339
      %v1341 = vpop.xlane.xlu0 %1340
      %v1342 = vrcp.pop 64.0
      %v1343 = vmul.f32 %v1338, %v1342
      %v1344 = vmul.f32 %v1341, %v1342
      %v1345 = vsub.f32 %v1332, %v1343
      %v1346 = vsub.f32 %v1333, %v1344
      %v1347 = vmul.f32 %v1345, %v1345
      %v1348 = vmul.f32 %v1346, %v1346
      %v1349 = vsel %vm1285, %v1347, 0.0
      %1350 = vadd.xlane.f32.xlu0 %v1349
      %v1351 = vpop.xlane.xlu0 %1350
      %v1352 = vsel %vm1285, %v1348, 0.0
      %1353 = vadd.xlane.f32.xlu0 %v1352
      %v1354 = vpop.xlane.xlu0 %1353
      %v1355 = vmul.f32 %v1351, %v1342
      %v1356 = vmul.f32 %v1354, %v1342
      %v1357 = vadd.f32 %v1355, 1e-05
      %v1358 = vadd.f32 %v1356, 1e-05
      %v1359 = vrsqrt.pop %v1357
      %v1360 = vrsqrt.pop %v1358
      %v1361 = vmul.f32 %v1345, %v1359
      %v1362 = vmul.f32 %v1346, %v1360
      %v1364 = vlaneseq
      %v1365 = vshrl.u32 %v1364, 7
      %v1366 = vsub.s32 0, %v1365
      %v1367 = vrot.slane %v1334, %v1366
      %v1369 = vmul.f32 %v1361, %v1367
      %v1370 = vmul.f32 %v1362, %v1367
      %v1372 = vlaneseq
      %v1373 = vshrl.u32 %v1372, 7
      %v1374 = vsub.s32 0, %v1373
      %v1375 = vrot.slane %v1335, %v1374
      %v1377 = vadd.f32 %v1369, %v1375
      %v1378 = vadd.f32 %v1370, %v1375
      %v1379 = vld [vmem:[%s13] sm:$0xff]
      %v1380 = vld [vmem:[%s13 + $0x8] sm:$0xff]
      %v1381 = vld [vmem:[%s13 + $0x10] sm:$0xff]
      %v1382 = vld [vmem:[%s13 + $0x18] sm:$0xff]
      %v1383 = vld [vmem:[%s13 + $0x20] sm:$0xff]
      %v1384 = vld [vmem:[%s13 + $0x28] sm:$0xff]
      %v1385 = vld [vmem:[%s13 + $0x30] sm:$0xff]
      %v1386 = vld [vmem:[%s13 + $0x38] sm:$0xff]
      %v1387 = vpack.c.bf16 %v1378, %v1377
      %v1388 = vld [vmem:[%s15] sm:$0x3]
      %v1390 = vlaneseq
      %v1391 = vshrl.u32 %v1390, 7
      %v1392 = vsub.s32 0, %v1391
      %v1393 = vrot.slane %v1388, %v1392
      %v1394 = vlaneseq
      %v1395 = vshrl.u32 %v1394, 7
      %v1396 = vsub.s32 1, %v1395
      %v1397 = vrot.slane %v1388, %v1396
      %v1408 = vunpack.c.l.b16 %v1379
      %v1409 = vunpack.c.h.b16 %v1379
      %v1410 = vunpack.c.l.b16 %v1380
      %v1411 = vunpack.c.h.b16 %v1380
      %v1412 = vunpack.c.l.b16 %v1381
      %v1413 = vunpack.c.h.b16 %v1381
      %v1414 = vunpack.c.l.b16 %v1382
      %v1415 = vunpack.c.h.b16 %v1382
      %v1416 = vunpack.c.l.b16 %v1383
      %v1417 = vunpack.c.h.b16 %v1383
      %v1418 = vunpack.c.l.b16 %v1384
      %v1419 = vunpack.c.h.b16 %v1384
      %v1420 = vunpack.c.l.b16 %v1385
      %v1421 = vunpack.c.h.b16 %v1385
      %v1422 = vunpack.c.l.b16 %v1386
      %v1423 = vunpack.c.h.b16 %v1386
      %v1424 = vpack.c.b16 %v1410, %v1408
      %v1425 = vpack.c.b16 %v1411, %v1409
      %v1426 = vpack.c.b16 %v1414, %v1412
      %v1427 = vpack.c.b16 %v1415, %v1413
      %v1428 = vpack.c.b16 %v1418, %v1416
      %v1429 = vpack.c.b16 %v1419, %v1417
      %v1430 = vpack.c.b16 %v1422, %v1420
      %v1431 = vpack.c.b16 %v1423, %v1421
      %v1441 = vsel %vm1285, %v1387, 0
      %1443 = vmatprep.subr.bf16.mxu0 %v1425
      %1444 = vmatpush1.bf16.msra.mxu0 %v1424
      %1445 = vmatprep.subr.bf16.mxu0 %v1427
      %1446 = vmatpush1.bf16.msra.mxu0 %v1426
      %1447 = vmatprep.subr.bf16.mxu0 %v1429
      %1448 = vmatpush1.bf16.msra.mxu0 %v1428
      %1449 = vmatprep.subr.bf16.mxu0 %v1431
      %1450 = vmatpush1.bf16.msra.mxu0 %v1430
      %1451 = vmatprep.subr.bf16.mxu0 0
      %1452 = vmatpush1.bf16.msra.mxu0 0
      %1453 = vmatprep.subr.bf16.mxu0 0
      %1454 = vmatpush1.bf16.msra.mxu0 0
      %1455 = vmatprep.subr.bf16.mxu0 0
      %1456 = vmatpush1.bf16.msra.mxu0 0
      %1457 = vmatprep.subr.bf16.mxu0 0
      %1458 = vmatpush1.bf16.msra.mxu0 0
      %1459 = vmatprep.subr.bf16.mxu0 0
      %1460 = vmatpush1.bf16.msra.mxu0 0
      %1461 = vmatprep.subr.bf16.mxu0 0
      %1462 = vmatpush1.bf16.msra.mxu0 0
      %1463 = vmatprep.subr.bf16.mxu0 0
      %1464 = vmatpush1.bf16.msra.mxu0 0
      %1465 = vmatprep.subr.bf16.mxu0 0
      %1466 = vmatpush1.bf16.msra.mxu0 0
      %1467 = vmatprep.subr.bf16.mxu0 0
      %1468 = vmatpush1.bf16.msra.mxu0 0
      %1469 = vmatprep.subr.bf16.mxu0 0
      %1470 = vmatpush1.bf16.msra.mxu0 0
      %1471 = vmatprep.subr.bf16.mxu0 0
      %1472 = vmatpush1.bf16.msra.mxu0 0
      %1473 = vmatprep.subr.bf16.mxu0 0
      %1474 = vmatpush1.bf16.msra.mxu0 0
      %1475 = vmatprep.mubr.bf16.mxu0 0
      %1476 = vmatmul.mubr.bf16.gmra.mrb[0].mxu0 %v1441
      %v1477 = vpop.f32.mrb[0].mxu0
      %v1478 = vadd.f32 %v1393, %v1477
      %v1479 = vpop.f32.mrb[0].mxu0
      %v1480 = vadd.f32 %v1397, %v1479
      %v1481 = vpop.f32.mrb[0].mxu0
      %v1482 = vadd.f32 %v1393, %v1481
      %v1483 = vpop.f32.mrb[0].mxu0
      %v1484 = vadd.f32 %v1397, %v1483
      %1485 = vdwg.mxu0
      %v1486 = vpack.c.bf16 %v1482, %v1478
      %1488 = vrot.lane.b32.xlu0 %v1486, 96
      %v1489 = vpop.permute.xlu0 %1488
      %vm1490 = vcmask 261120
      %v1492 = vsel %vm1490, %v1486, 0
      %v1495 = vsel %vm1490, %v1489, 0
      %1497 = vmatprep.subr.bf16.mxu0 0
      %1498 = vmatpush1.bf16.xpose.msra.mxu0 %v1495
      %1499 = vmatprep.subr.bf16.mxu0 0
      %1500 = vmatpush1.bf16.xpose.msra.mxu0 0
      %1501 = vmatprep.subr.bf16.mxu0 0
      %1502 = vmatpush1.bf16.xpose.msra.mxu0 0
      %1503 = vmatprep.subr.bf16.mxu0 0
      %1504 = vmatpush1.bf16.xpose.msra.mxu0 0
      %1505 = vmatprep.subr.bf16.mxu0 0
      %1506 = vmatpush1.bf16.xpose.msra.mxu0 0
      %1507 = vmatprep.subr.bf16.mxu0 0
      %1508 = vmatpush1.bf16.xpose.msra.mxu0 0
      %1509 = vmatprep.subr.bf16.mxu0 0
      %1510 = vmatpush1.bf16.xpose.msra.mxu0 0
      %1511 = vmatprep.subr.bf16.mxu0 0
      %1512 = vmatpush1.bf16.xpose.msra.mxu0 0
      %1513 = vmatprep.subr.bf16.mxu0 0
      %1514 = vmatpush1.bf16.xpose.msra.mxu0 0
      %1515 = vmatprep.subr.bf16.mxu0 0
      %1516 = vmatpush1.bf16.xpose.msra.mxu0 0
      %1517 = vmatprep.subr.bf16.mxu0 0
      %1518 = vmatpush1.bf16.xpose.msra.mxu0 0
      %1519 = vmatprep.subr.bf16.mxu0 0
      %1520 = vmatpush1.bf16.xpose.msra.mxu0 0
      %1521 = vmatprep.subr.bf16.mxu0 0
      %1522 = vmatpush1.bf16.xpose.msra.mxu0 0
      %1523 = vmatprep.subr.bf16.mxu0 0
      %1524 = vmatpush1.bf16.xpose.msra.mxu0 0
      %1525 = vmatprep.subr.bf16.mxu0 0
      %1526 = vmatpush1.bf16.xpose.msra.mxu0 0
      %1527 = vmatprep.subr.bf16.mxu0 0
      %1528 = vmatpush1.bf16.xpose.msra.mxu0 0
      %1529 = vmatprep.mubr.bf16.mxu0 0
      %1530 = vmatmul.mubr.bf16.gmra.mrb[0].mxu0 %v1492
      %v1531 = vpop.f32.mrb[0].mxu0
      %v1532 = vadd.f32 0.0, %v1531
      %v1533 = vpop.f32.mrb[0].mxu0
      %v1534 = vpop.f32.mrb[0].mxu0
      %v1535 = vadd.f32 0.0, %v1534
      %v1536 = vpop.f32.mrb[0].mxu0
      %1537 = vdwg.mxu0
      %v1538 = vmul.f32 %v1532, 0.17677669
      %v1539 = vmul.f32 %v1535, 0.17677669
      %vm1540 = vcmask 130048
      %v1541 = vsel %vm1540, %v1538, -inf
      %1542 = vmax.xlane.f32.xlu0 %v1541
      %v1543 = vpop.xlane.xlu0 %1542
      %v1544 = vsel %vm1540, %v1539, -inf
      %1545 = vmax.xlane.f32.xlu0 %v1544
      %v1546 = vpop.xlane.xlu0 %1545
      %v1547 = vsub.f32 %v1538, %v1543
      %v1548 = vsub.f32 %v1539, %v1546
      %v1549 = vmul.f32 %v1547, 1.442695
      %v1550 = vpow.pop %v1549
      %v1551 = vmul.f32 %v1548, 1.442695
      %v1552 = vpow.pop %v1551
      %v1553 = vsel %vm1540, %v1550, 0.0
      %1554 = vadd.xlane.f32.xlu0 %v1553
      %v1555 = vpop.xlane.xlu0 %1554
      %v1556 = vsel %vm1540, %v1552, 0.0
      %1557 = vadd.xlane.f32.xlu0 %v1556
      %v1558 = vpop.xlane.xlu0 %1557
      %v1559 = vrcp.pop %v1555
      %v1560 = vrcp.pop %v1558
      %v1561 = vmul.f32 %v1550, %v1559
      %v1562 = vmul.f32 %v1552, %v1560
      %v1563 = vpack.c.bf16 %v1562, %v1561
      %1564 = vrot.lane.b32.xlu0 %v1486, 64
      %v1565 = vpop.permute.xlu0 %1564
      %v1568 = vsel %vm1540, %v1563, 0
      %1570 = vmatprep.subr.bf16.mxu0 0
      %1571 = vmatpush1.bf16.msra.mxu0 %v1565
      %1572 = vmatprep.subr.bf16.mxu0 0
      %1573 = vmatpush1.bf16.msra.mxu0 0
      %1574 = vmatprep.subr.bf16.mxu0 0
      %1575 = vmatpush1.bf16.msra.mxu0 0
      %1576 = vmatprep.subr.bf16.mxu0 0
      %1577 = vmatpush1.bf16.msra.mxu0 0
      %1578 = vmatprep.subr.bf16.mxu0 0
      %1579 = vmatpush1.bf16.msra.mxu0 0
      %1580 = vmatprep.subr.bf16.mxu0 0
      %1581 = vmatpush1.bf16.msra.mxu0 0
      %1582 = vmatprep.subr.bf16.mxu0 0
      %1583 = vmatpush1.bf16.msra.mxu0 0
      %1584 = vmatprep.subr.bf16.mxu0 0
      %1585 = vmatpush1.bf16.msra.mxu0 0
      %1586 = vmatprep.subr.bf16.mxu0 0
      %1587 = vmatpush1.bf16.msra.mxu0 0
      %1588 = vmatprep.subr.bf16.mxu0 0
      %1589 = vmatpush1.bf16.msra.mxu0 0
      %1590 = vmatprep.subr.bf16.mxu0 0
      %1591 = vmatpush1.bf16.msra.mxu0 0
      %1592 = vmatprep.subr.bf16.mxu0 0
      %1593 = vmatpush1.bf16.msra.mxu0 0
      %1594 = vmatprep.subr.bf16.mxu0 0
      %1595 = vmatpush1.bf16.msra.mxu0 0
      %1596 = vmatprep.subr.bf16.mxu0 0
      %1597 = vmatpush1.bf16.msra.mxu0 0
      %1598 = vmatprep.subr.bf16.mxu0 0
      %1599 = vmatpush1.bf16.msra.mxu0 0
      %1600 = vmatprep.subr.bf16.mxu0 0
      %1601 = vmatpush1.bf16.msra.mxu0 0
      %1602 = vmatprep.mubr.bf16.mxu0 0
      %1603 = vmatmul.mubr.bf16.gmra.mrb[0].mxu0 %v1568
      %v1604 = vpop.f32.mrb[0].mxu0
      %v1605 = vadd.f32 0.0, %v1604
      %v1606 = vpop.f32.mrb[0].mxu0
      %v1607 = vpop.f32.mrb[0].mxu0
      %v1608 = vadd.f32 0.0, %v1607
      %v1609 = vpop.f32.mrb[0].mxu0
      %1610 = vdwg.mxu0
      %v1611 = vpack.c.bf16 %v1484, %v1480
      %1612 = vrot.lane.b32.xlu0 %v1486, 32
      %v1613 = vpop.permute.xlu0 %1612
      %v1615 = vsel %vm1490, %v1613, 0
      %v1618 = vsel %vm1490, %v1611, 0
      %1620 = vmatprep.subr.bf16.mxu0 0
      %1621 = vmatpush1.bf16.xpose.msra.mxu0 %v1618
      %1622 = vmatprep.subr.bf16.mxu0 0
      %1623 = vmatpush1.bf16.xpose.msra.mxu0 0
      %1624 = vmatprep.subr.bf16.mxu0 0
      %1625 = vmatpush1.bf16.xpose.msra.mxu0 0
      %1626 = vmatprep.subr.bf16.mxu0 0
      %1627 = vmatpush1.bf16.xpose.msra.mxu0 0
      %1628 = vmatprep.subr.bf16.mxu0 0
      %1629 = vmatpush1.bf16.xpose.msra.mxu0 0
      %1630 = vmatprep.subr.bf16.mxu0 0
      %1631 = vmatpush1.bf16.xpose.msra.mxu0 0
      %1632 = vmatprep.subr.bf16.mxu0 0
      %1633 = vmatpush1.bf16.xpose.msra.mxu0 0
      %1634 = vmatprep.subr.bf16.mxu0 0
      %1635 = vmatpush1.bf16.xpose.msra.mxu0 0
      %1636 = vmatprep.subr.bf16.mxu0 0
      %1637 = vmatpush1.bf16.xpose.msra.mxu0 0
      %1638 = vmatprep.subr.bf16.mxu0 0
      %1639 = vmatpush1.bf16.xpose.msra.mxu0 0
      %1640 = vmatprep.subr.bf16.mxu0 0
      %1641 = vmatpush1.bf16.xpose.msra.mxu0 0
      %1642 = vmatprep.subr.bf16.mxu0 0
      %1643 = vmatpush1.bf16.xpose.msra.mxu0 0
      %1644 = vmatprep.subr.bf16.mxu0 0
      %1645 = vmatpush1.bf16.xpose.msra.mxu0 0
      %1646 = vmatprep.subr.bf16.mxu0 0
      %1647 = vmatpush1.bf16.xpose.msra.mxu0 0
      %1648 = vmatprep.subr.bf16.mxu0 0
      %1649 = vmatpush1.bf16.xpose.msra.mxu0 0
      %1650 = vmatprep.subr.bf16.mxu0 0
      %1651 = vmatpush1.bf16.xpose.msra.mxu0 0
      %1652 = vmatprep.mubr.bf16.mxu0 0
      %1653 = vmatmul.mubr.bf16.gmra.mrb[0].mxu0 %v1615
      %v1654 = vpop.f32.mrb[0].mxu0
      %v1655 = vadd.f32 0.0, %v1654
      %v1656 = vpop.f32.mrb[0].mxu0
      %v1657 = vpop.f32.mrb[0].mxu0
      %v1658 = vadd.f32 0.0, %v1657
      %v1659 = vpop.f32.mrb[0].mxu0
      %1660 = vdwg.mxu0
      %v1661 = vmul.f32 %v1655, 0.17677669
      %v1662 = vmul.f32 %v1658, 0.17677669
      %v1663 = vsel %vm1540, %v1661, -inf
      %1664 = vmax.xlane.f32.xlu0 %v1663
      %v1665 = vpop.xlane.xlu0 %1664
      %v1666 = vsel %vm1540, %v1662, -inf
      %1667 = vmax.xlane.f32.xlu0 %v1666
      %v1668 = vpop.xlane.xlu0 %1667
      %v1669 = vsub.f32 %v1661, %v1665
      %v1670 = vsub.f32 %v1662, %v1668
      %v1671 = vmul.f32 %v1669, 1.442695
      %v1672 = vpow.pop %v1671
      %v1673 = vmul.f32 %v1670, 1.442695
      %v1674 = vpow.pop %v1673
      %v1675 = vsel %vm1540, %v1672, 0.0
      %1676 = vadd.xlane.f32.xlu0 %v1675
      %v1677 = vpop.xlane.xlu0 %1676
      %v1678 = vsel %vm1540, %v1674, 0.0
      %1679 = vadd.xlane.f32.xlu0 %v1678
      %v1680 = vpop.xlane.xlu0 %1679
      %v1681 = vrcp.pop %v1677
      %v1682 = vrcp.pop %v1680
      %v1683 = vmul.f32 %v1672, %v1681
      %v1684 = vmul.f32 %v1674, %v1682
      %v1685 = vpack.c.bf16 %v1684, %v1683
      %1687 = vrot.lane.b32.xlu0 %v1611, 96
      %v1688 = vpop.permute.xlu0 %1687
      %v1691 = vsel %vm1540, %v1685, 0
      %1693 = vmatprep.subr.bf16.mxu0 0
      %1694 = vmatpush1.bf16.msra.mxu0 %v1688
      %1695 = vmatprep.subr.bf16.mxu0 0
      %1696 = vmatpush1.bf16.msra.mxu0 0
      %1697 = vmatprep.subr.bf16.mxu0 0
      %1698 = vmatpush1.bf16.msra.mxu0 0
      %1699 = vmatprep.subr.bf16.mxu0 0
      %1700 = vmatpush1.bf16.msra.mxu0 0
      %1701 = vmatprep.subr.bf16.mxu0 0
      %1702 = vmatpush1.bf16.msra.mxu0 0
      %1703 = vmatprep.subr.bf16.mxu0 0
      %1704 = vmatpush1.bf16.msra.mxu0 0
      %1705 = vmatprep.subr.bf16.mxu0 0
      %1706 = vmatpush1.bf16.msra.mxu0 0
      %1707 = vmatprep.subr.bf16.mxu0 0
      %1708 = vmatpush1.bf16.msra.mxu0 0
      %1709 = vmatprep.subr.bf16.mxu0 0
      %1710 = vmatpush1.bf16.msra.mxu0 0
      %1711 = vmatprep.subr.bf16.mxu0 0
      %1712 = vmatpush1.bf16.msra.mxu0 0
      %1713 = vmatprep.subr.bf16.mxu0 0
      %1714 = vmatpush1.bf16.msra.mxu0 0
      %1715 = vmatprep.subr.bf16.mxu0 0
      %1716 = vmatpush1.bf16.msra.mxu0 0
      %1717 = vmatprep.subr.bf16.mxu0 0
      %1718 = vmatpush1.bf16.msra.mxu0 0
      %1719 = vmatprep.subr.bf16.mxu0 0
      %1720 = vmatpush1.bf16.msra.mxu0 0
      %1721 = vmatprep.subr.bf16.mxu0 0
      %1722 = vmatpush1.bf16.msra.mxu0 0
      %1723 = vmatprep.subr.bf16.mxu0 0
      %1724 = vmatpush1.bf16.msra.mxu0 0
      %1725 = vmatprep.mubr.bf16.mxu0 0
      %1726 = vmatmul.mubr.bf16.gmra.mrb[0].mxu0 %v1691
      %v1727 = vpop.f32.mrb[0].mxu0
      %v1728 = vadd.f32 0.0, %v1727
      %v1729 = vpop.f32.mrb[0].mxu0
      %v1730 = vpop.f32.mrb[0].mxu0
      %v1731 = vadd.f32 0.0, %v1730
      %v1732 = vpop.f32.mrb[0].mxu0
      %1733 = vdwg.mxu0
      %1736 = vrot.lane.b32.xlu0 %v1728, 32
      %v1737 = vpop.permute.xlu0 %1736
      %1738 = vrot.lane.b32.xlu0 %v1731, 32
      %v1739 = vpop.permute.xlu0 %1738
      %v1742 = vsel %vm1490, %v1605, %v1737
      %v1743 = vsel %vm1490, %v1608, %v1739
      %v1744 = vld [vmem:[%s17] sm:$0xf]
      %v1745 = vld [vmem:[%s17 + $0x4] sm:$0xf]
      %v1746 = vld [vmem:[%s17 + $0x8] sm:$0xf]
      %v1747 = vld [vmem:[%s17 + $0xc] sm:$0xf]
      %v1748 = vld [vmem:[%s17 + $0x10] sm:$0xf]
      %v1749 = vld [vmem:[%s17 + $0x14] sm:$0xf]
      %v1750 = vld [vmem:[%s17 + $0x18] sm:$0xf]
      %v1751 = vld [vmem:[%s17 + $0x1c] sm:$0xf]
      %v1752 = vpack.c.bf16 %v1743, %v1742
      %v1761 = vunpack.c.l.b16 %v1744
      %v1762 = vunpack.c.l.b16 %v1745
      %v1763 = vunpack.c.l.b16 %v1746
      %v1764 = vunpack.c.l.b16 %v1747
      %v1765 = vunpack.c.l.b16 %v1748
      %v1766 = vunpack.c.l.b16 %v1749
      %v1767 = vunpack.c.l.b16 %v1750
      %v1768 = vunpack.c.l.b16 %v1751
      %v1769 = vpack.c.b16 %v1762, %v1761
      %v1770 = vpack.c.b16 %v1764, %v1763
      %v1771 = vpack.c.b16 %v1766, %v1765
      %v1772 = vpack.c.b16 %v1768, %v1767
      %v1778 = vsel %vm1285, %v1752, 0
      %1780 = vmatprep.subr.bf16.mxu0 0
      %1781 = vmatpush1.bf16.msra.mxu0 %v1769
      %1782 = vmatprep.subr.bf16.mxu0 0
      %1783 = vmatpush1.bf16.msra.mxu0 %v1770
      %1784 = vmatprep.subr.bf16.mxu0 0
      %1785 = vmatpush1.bf16.msra.mxu0 %v1771
      %1786 = vmatprep.subr.bf16.mxu0 0
      %1787 = vmatpush1.bf16.msra.mxu0 %v1772
      %1788 = vmatprep.subr.bf16.mxu0 0
      %1789 = vmatpush1.bf16.msra.mxu0 0
      %1790 = vmatprep.subr.bf16.mxu0 0
      %1791 = vmatpush1.bf16.msra.mxu0 0
      %1792 = vmatprep.subr.bf16.mxu0 0
      %1793 = vmatpush1.bf16.msra.mxu0 0
      %1794 = vmatprep.subr.bf16.mxu0 0
      %1795 = vmatpush1.bf16.msra.mxu0 0
      %1796 = vmatprep.subr.bf16.mxu0 0
      %1797 = vmatpush1.bf16.msra.mxu0 0
      %1798 = vmatprep.subr.bf16.mxu0 0
      %1799 = vmatpush1.bf16.msra.mxu0 0
      %1800 = vmatprep.subr.bf16.mxu0 0
      %1801 = vmatpush1.bf16.msra.mxu0 0
      %1802 = vmatprep.subr.bf16.mxu0 0
      %1803 = vmatpush1.bf16.msra.mxu0 0
      %1804 = vmatprep.subr.bf16.mxu0 0
      %1805 = vmatpush1.bf16.msra.mxu0 0
      %1806 = vmatprep.subr.bf16.mxu0 0
      %1807 = vmatpush1.bf16.msra.mxu0 0
      %1808 = vmatprep.subr.bf16.mxu0 0
      %1809 = vmatpush1.bf16.msra.mxu0 0
      %1810 = vmatprep.subr.bf16.mxu0 0
      %1811 = vmatpush1.bf16.msra.mxu0 0
      %1812 = vmatprep.mubr.bf16.mxu0 0
      %1813 = vmatmul.mubr.bf16.gmra.mrb[0].mxu0 %v1778
      %v1814 = vpop.f32.mrb[0].mxu0
      %v1815 = vadd.f32 0.0, %v1814
      %v1816 = vpop.f32.mrb[0].mxu0
      %v1817 = vpop.f32.mrb[0].mxu0
      %v1818 = vadd.f32 0.0, %v1817
      %v1819 = vpop.f32.mrb[0].mxu0
      %1820 = vdwg.mxu0
      %v1821 = vadd.f32 %v1332, %v1815
      %v1822 = vadd.f32 %v1333, %v1818
      %v1823 = vld [vmem:[%s19] sm:$0x1]
      %v1825 = vlaneseq
      %v1826 = vshrl.u32 %v1825, 7
      %v1827 = vsub.s32 0, %v1826
      %v1828 = vrot.slane %v1823, %v1827
      %v1830 = vadd.f32 %v1821, %v1828
      %v1831 = vadd.f32 %v1822, %v1828
      %v1832 = vld [vmem:[%s21] sm:$0x1]
      %v1833 = vld [vmem:[%s23] sm:$0x1]
      %v1834 = vsel %vm1285, %v1830, 0.0
      %1835 = vadd.xlane.f32.xlu0 %v1834
      %v1836 = vpop.xlane.xlu0 %1835
      %v1837 = vsel %vm1285, %v1831, 0.0
      %1838 = vadd.xlane.f32.xlu0 %v1837
      %v1839 = vpop.xlane.xlu0 %1838
      %v1840 = vmul.f32 %v1836, %v1342
      %v1841 = vmul.f32 %v1839, %v1342
      %v1842 = vsub.f32 %v1830, %v1840
      %v1843 = vsub.f32 %v1831, %v1841
      %v1844 = vmul.f32 %v1842, %v1842
      %v1845 = vmul.f32 %v1843, %v1843
      %v1846 = vsel %vm1285, %v1844, 0.0
      %1847 = vadd.xlane.f32.xlu0 %v1846
      %v1848 = vpop.xlane.xlu0 %1847
      %v1849 = vsel %vm1285, %v1845, 0.0
      %1850 = vadd.xlane.f32.xlu0 %v1849
      %v1851 = vpop.xlane.xlu0 %1850
      %v1852 = vmul.f32 %v1848, %v1342
      %v1853 = vmul.f32 %v1851, %v1342
      %v1854 = vadd.f32 %v1852, 1e-05
      %v1855 = vadd.f32 %v1853, 1e-05
      %v1856 = vrsqrt.pop %v1854
      %v1857 = vrsqrt.pop %v1855
      %v1858 = vmul.f32 %v1842, %v1856
      %v1859 = vmul.f32 %v1843, %v1857
      %v1861 = vlaneseq
      %v1862 = vshrl.u32 %v1861, 7
      %v1863 = vsub.s32 0, %v1862
      %v1864 = vrot.slane %v1832, %v1863
      %v1866 = vmul.f32 %v1858, %v1864
      %v1867 = vmul.f32 %v1859, %v1864
      %v1869 = vlaneseq
      %v1870 = vshrl.u32 %v1869, 7
      %v1871 = vsub.s32 0, %v1870
      %v1872 = vrot.slane %v1833, %v1871
      %v1874 = vadd.f32 %v1866, %v1872
      %v1875 = vadd.f32 %v1867, %v1872
      %v1876 = vld [vmem:[%s25] sm:$0xff]
      %v1877 = vld [vmem:[%s25 + $0x8] sm:$0xff]
      %v1878 = vld [vmem:[%s25 + $0x10] sm:$0xff]
      %v1879 = vld [vmem:[%s25 + $0x18] sm:$0xff]
      %v1880 = vld [vmem:[%s25 + $0x20] sm:$0xff]
      %v1881 = vld [vmem:[%s25 + $0x28] sm:$0xff]
      %v1882 = vld [vmem:[%s25 + $0x30] sm:$0xff]
      %v1883 = vld [vmem:[%s25 + $0x38] sm:$0xff]
      %v1884 = vpack.c.bf16 %v1875, %v1874
      %v1885 = vld [vmem:[%s27] sm:$0x3]
      %v1887 = vlaneseq
      %v1888 = vshrl.u32 %v1887, 7
      %v1889 = vsub.s32 0, %v1888
      %v1890 = vrot.slane %v1885, %v1889
      %v1891 = vlaneseq
      %v1892 = vshrl.u32 %v1891, 7
      %v1893 = vsub.s32 1, %v1892
      %v1894 = vrot.slane %v1885, %v1893
      %v1905 = vunpack.c.l.b16 %v1876
      %v1906 = vunpack.c.h.b16 %v1876
      %v1907 = vunpack.c.l.b16 %v1877
      %v1908 = vunpack.c.h.b16 %v1877
      %v1909 = vunpack.c.l.b16 %v1878
      %v1910 = vunpack.c.h.b16 %v1878
      %v1911 = vunpack.c.l.b16 %v1879
      %v1912 = vunpack.c.h.b16 %v1879
      %v1913 = vunpack.c.l.b16 %v1880
      %v1914 = vunpack.c.h.b16 %v1880
      %v1915 = vunpack.c.l.b16 %v1881
      %v1916 = vunpack.c.h.b16 %v1881
      %v1917 = vunpack.c.l.b16 %v1882
      %v1918 = vunpack.c.h.b16 %v1882
      %v1919 = vunpack.c.l.b16 %v1883
      %v1920 = vunpack.c.h.b16 %v1883
      %v1921 = vpack.c.b16 %v1907, %v1905
      %v1922 = vpack.c.b16 %v1908, %v1906
      %v1923 = vpack.c.b16 %v1911, %v1909
      %v1924 = vpack.c.b16 %v1912, %v1910
      %v1925 = vpack.c.b16 %v1915, %v1913
      %v1926 = vpack.c.b16 %v1916, %v1914
      %v1927 = vpack.c.b16 %v1919, %v1917
      %v1928 = vpack.c.b16 %v1920, %v1918
      %v1938 = vsel %vm1285, %v1884, 0
      %1940 = vmatprep.subr.bf16.mxu0 %v1922
      %1941 = vmatpush1.bf16.msra.mxu0 %v1921
      %1942 = vmatprep.subr.bf16.mxu0 %v1924
      %1943 = vmatpush1.bf16.msra.mxu0 %v1923
      %1944 = vmatprep.subr.bf16.mxu0 %v1926
      %1945 = vmatpush1.bf16.msra.mxu0 %v1925
      %1946 = vmatprep.subr.bf16.mxu0 %v1928
      %1947 = vmatpush1.bf16.msra.mxu0 %v1927
      %1948 = vmatprep.subr.bf16.mxu0 0
      %1949 = vmatpush1.bf16.msra.mxu0 0
      %1950 = vmatprep.subr.bf16.mxu0 0
      %1951 = vmatpush1.bf16.msra.mxu0 0
      %1952 = vmatprep.subr.bf16.mxu0 0
      %1953 = vmatpush1.bf16.msra.mxu0 0
      %1954 = vmatprep.subr.bf16.mxu0 0
      %1955 = vmatpush1.bf16.msra.mxu0 0
      %1956 = vmatprep.subr.bf16.mxu0 0
      %1957 = vmatpush1.bf16.msra.mxu0 0
      %1958 = vmatprep.subr.bf16.mxu0 0
      %1959 = vmatpush1.bf16.msra.mxu0 0
      %1960 = vmatprep.subr.bf16.mxu0 0
      %1961 = vmatpush1.bf16.msra.mxu0 0
      %1962 = vmatprep.subr.bf16.mxu0 0
      %1963 = vmatpush1.bf16.msra.mxu0 0
      %1964 = vmatprep.subr.bf16.mxu0 0
      %1965 = vmatpush1.bf16.msra.mxu0 0
      %1966 = vmatprep.subr.bf16.mxu0 0
      %1967 = vmatpush1.bf16.msra.mxu0 0
      %1968 = vmatprep.subr.bf16.mxu0 0
      %1969 = vmatpush1.bf16.msra.mxu0 0
      %1970 = vmatprep.subr.bf16.mxu0 0
      %1971 = vmatpush1.bf16.msra.mxu0 0
      %1972 = vmatprep.mubr.bf16.mxu0 0
      %1973 = vmatmul.mubr.bf16.gmra.mrb[0].mxu0 %v1938
      %v1974 = vpop.f32.mrb[0].mxu0
      %v1975 = vadd.f32 %v1890, %v1974
      %v1976 = vpop.f32.mrb[0].mxu0
      %v1977 = vadd.f32 %v1894, %v1976
      %v1978 = vpop.f32.mrb[0].mxu0
      %v1979 = vadd.f32 %v1890, %v1978
      %v1980 = vpop.f32.mrb[0].mxu0
      %v1981 = vadd.f32 %v1894, %v1980
      %1982 = vdwg.mxu0
      %v1983 = vmul.f32 %v1975, 0.5
      %v1984 = vmul.f32 %v1977, 0.5
      %v1985 = vmul.f32 %v1979, 0.5
      %v1986 = vmul.f32 %v1981, 0.5
      %v1987 = vmul.f32 %v1975, 0.70710677
      %v1988 = vmul.f32 %v1977, 0.70710677
      %v1989 = vmul.f32 %v1979, 0.70710677
      %v1990 = vmul.f32 %v1981, 0.70710677
      %v1991 = verf.f32.pop %v1987
      %v1992 = verf.f32.pop %v1988
      %v1993 = verf.f32.pop %v1989
      %v1994 = verf.f32.pop %v1990
      %v1995 = vadd.f32 %v1991, 1.0
      %v1996 = vadd.f32 %v1992, 1.0
      %v1997 = vadd.f32 %v1993, 1.0
      %v1998 = vadd.f32 %v1994, 1.0
      %v1999 = vmul.f32 %v1983, %v1995
      %v2000 = vmul.f32 %v1984, %v1996
      %v2001 = vmul.f32 %v1985, %v1997
      %v2002 = vmul.f32 %v1986, %v1998
      %v2003 = vld [vmem:[%s29] sm:$0xf]
      %v2004 = vld [vmem:[%s29 + $0x4] sm:$0xf]
      %v2005 = vld [vmem:[%s29 + $0x8] sm:$0xf]
      %v2006 = vld [vmem:[%s29 + $0xc] sm:$0xf]
      %v2007 = vld [vmem:[%s29 + $0x10] sm:$0xf]
      %v2008 = vld [vmem:[%s29 + $0x14] sm:$0xf]
      %v2009 = vld [vmem:[%s29 + $0x18] sm:$0xf]
      %v2010 = vld [vmem:[%s29 + $0x1c] sm:$0xf]
      %v2011 = vld [vmem:[%s29 + $0x20] sm:$0xf]
      %v2012 = vld [vmem:[%s29 + $0x24] sm:$0xf]
      %v2013 = vld [vmem:[%s29 + $0x28] sm:$0xf]
      %v2014 = vld [vmem:[%s29 + $0x2c] sm:$0xf]
      %v2015 = vld [vmem:[%s29 + $0x30] sm:$0xf]
      %v2016 = vld [vmem:[%s29 + $0x34] sm:$0xf]
      %v2017 = vld [vmem:[%s29 + $0x38] sm:$0xf]
      %v2018 = vld [vmem:[%s29 + $0x3c] sm:$0xf]
      %v2019 = vld [vmem:[%s29 + $0x40] sm:$0xf]
      %v2020 = vld [vmem:[%s29 + $0x44] sm:$0xf]
      %v2021 = vld [vmem:[%s29 + $0x48] sm:$0xf]
      %v2022 = vld [vmem:[%s29 + $0x4c] sm:$0xf]
      %v2023 = vld [vmem:[%s29 + $0x50] sm:$0xf]
      %v2024 = vld [vmem:[%s29 + $0x54] sm:$0xf]
      %v2025 = vld [vmem:[%s29 + $0x58] sm:$0xf]
      %v2026 = vld [vmem:[%s29 + $0x5c] sm:$0xf]
      %v2027 = vld [vmem:[%s29 + $0x60] sm:$0xf]
      %v2028 = vld [vmem:[%s29 + $0x64] sm:$0xf]
      %v2029 = vld [vmem:[%s29 + $0x68] sm:$0xf]
      %v2030 = vld [vmem:[%s29 + $0x6c] sm:$0xf]
      %v2031 = vld [vmem:[%s29 + $0x70] sm:$0xf]
      %v2032 = vld [vmem:[%s29 + $0x74] sm:$0xf]
      %v2033 = vld [vmem:[%s29 + $0x78] sm:$0xf]
      %v2034 = vld [vmem:[%s29 + $0x7c] sm:$0xf]
      %v2035 = vpack.c.bf16 %v2001, %v1999
      %v2036 = vpack.c.bf16 %v2002, %v2000
      %v2069 = vunpack.c.l.b16 %v2003
      %v2070 = vunpack.c.l.b16 %v2004
      %v2071 = vunpack.c.l.b16 %v2005
      %v2072 = vunpack.c.l.b16 %v2006
      %v2073 = vunpack.c.l.b16 %v2007
      %v2074 = vunpack.c.l.b16 %v2008
      %v2075 = vunpack.c.l.b16 %v2009
      %v2076 = vunpack.c.l.b16 %v2010
      %v2077 = vunpack.c.l.b16 %v2011
      %v2078 = vunpack.c.l.b16 %v2012
      %v2079 = vunpack.c.l.b16 %v2013
      %v2080 = vunpack.c.l.b16 %v2014
      %v2081 = vunpack.c.l.b16 %v2015
      %v2082 = vunpack.c.l.b16 %v2016
      %v2083 = vunpack.c.l.b16 %v2017
      %v2084 = vunpack.c.l.b16 %v2018
      %v2085 = vunpack.c.l.b16 %v2019
      %v2086 = vunpack.c.l.b16 %v2020
      %v2087 = vunpack.c.l.b16 %v2021
      %v2088 = vunpack.c.l.b16 %v2022
      %v2089 = vunpack.c.l.b16 %v2023
      %v2090 = vunpack.c.l.b16 %v2024
      %v2091 = vunpack.c.l.b16 %v2025
      %v2092 = vunpack.c.l.b16 %v2026
      %v2093 = vunpack.c.l.b16 %v2027
      %v2094 = vunpack.c.l.b16 %v2028
      %v2095 = vunpack.c.l.b16 %v2029
      %v2096 = vunpack.c.l.b16 %v2030
      %v2097 = vunpack.c.l.b16 %v2031
      %v2098 = vunpack.c.l.b16 %v2032
      %v2099 = vunpack.c.l.b16 %v2033
      %v2100 = vunpack.c.l.b16 %v2034
      %v2101 = vpack.c.b16 %v2070, %v2069
      %v2102 = vpack.c.b16 %v2072, %v2071
      %v2103 = vpack.c.b16 %v2074, %v2073
      %v2104 = vpack.c.b16 %v2076, %v2075
      %v2105 = vpack.c.b16 %v2078, %v2077
      %v2106 = vpack.c.b16 %v2080, %v2079
      %v2107 = vpack.c.b16 %v2082, %v2081
      %v2108 = vpack.c.b16 %v2084, %v2083
      %v2109 = vpack.c.b16 %v2086, %v2085
      %v2110 = vpack.c.b16 %v2088, %v2087
      %v2111 = vpack.c.b16 %v2090, %v2089
      %v2112 = vpack.c.b16 %v2092, %v2091
      %v2113 = vpack.c.b16 %v2094, %v2093
      %v2114 = vpack.c.b16 %v2096, %v2095
      %v2115 = vpack.c.b16 %v2098, %v2097
      %v2116 = vpack.c.b16 %v2100, %v2099
      %2133 = vmatprep.subr.bf16.mxu0 0
      %2134 = vmatpush1.bf16.msra.mxu0 %v2101
      %2135 = vmatprep.subr.bf16.mxu0 0
      %2136 = vmatpush1.bf16.msra.mxu0 %v2102
      %2137 = vmatprep.subr.bf16.mxu0 0
      %2138 = vmatpush1.bf16.msra.mxu0 %v2103
      %2139 = vmatprep.subr.bf16.mxu0 0
      %2140 = vmatpush1.bf16.msra.mxu0 %v2104
      %2141 = vmatprep.subr.bf16.mxu0 0
      %2142 = vmatpush1.bf16.msra.mxu0 %v2105
      %2143 = vmatprep.subr.bf16.mxu0 0
      %2144 = vmatpush1.bf16.msra.mxu0 %v2106
      %2145 = vmatprep.subr.bf16.mxu0 0
      %2146 = vmatpush1.bf16.msra.mxu0 %v2107
      %2147 = vmatprep.subr.bf16.mxu0 0
      %2148 = vmatpush1.bf16.msra.mxu0 %v2108
      %2149 = vmatprep.subr.bf16.mxu0 0
      %2150 = vmatpush1.bf16.msra.mxu0 %v2109
      %2151 = vmatprep.subr.bf16.mxu0 0
      %2152 = vmatpush1.bf16.msra.mxu0 %v2110
      %2153 = vmatprep.subr.bf16.mxu0 0
      %2154 = vmatpush1.bf16.msra.mxu0 %v2111
      %2155 = vmatprep.subr.bf16.mxu0 0
      %2156 = vmatpush1.bf16.msra.mxu0 %v2112
      %2157 = vmatprep.subr.bf16.mxu0 0
      %2158 = vmatpush1.bf16.msra.mxu0 %v2113
      %2159 = vmatprep.subr.bf16.mxu0 0
      %2160 = vmatpush1.bf16.msra.mxu0 %v2114
      %2161 = vmatprep.subr.bf16.mxu0 0
      %2162 = vmatpush1.bf16.msra.mxu0 %v2115
      %2163 = vmatprep.subr.bf16.mxu0 0
      %2164 = vmatpush1.bf16.msra.mxu0 %v2116
      %2165 = vmatprep.mubr.bf16.mxu0 %v2036
      %2166 = vmatmul.mubr.bf16.gmra.mrb[0].mxu0 %v2035
      %v2167 = vpop.f32.mrb[0].mxu0
      %v2168 = vadd.f32 0.0, %v2167
      %v2169 = vpop.f32.mrb[0].mxu0
      %v2170 = vpop.f32.mrb[0].mxu0
      %v2171 = vadd.f32 0.0, %v2170
      %v2172 = vpop.f32.mrb[0].mxu0
      %2173 = vdwg.mxu0
      %v2174 = vadd.f32 %v1830, %v2168
      %v2175 = vadd.f32 %v1831, %v2171
      %v2176 = vld [vmem:[%s31] sm:$0x1]
      %v2178 = vlaneseq
      %v2179 = vshrl.u32 %v2178, 7
      %v2180 = vsub.s32 0, %v2179
      %v2181 = vrot.slane %v2176, %v2180
      %v2183 = vadd.f32 %v2174, %v2181
      %v2184 = vadd.f32 %v2175, %v2181
      %s2185 = scalar_lea.vmem %s9, 1
      %v2186 = vld [vmem:[%s2185] sm:$0x1]
      %s2187 = scalar_lea.vmem %s11, 1
      %v2188 = vld [vmem:[%s2187] sm:$0x1]
      %v2189 = vsel %vm1285, %v2183, 0.0
      %2190 = vadd.xlane.f32.xlu0 %v2189
      %v2191 = vpop.xlane.xlu0 %2190
      %v2192 = vsel %vm1285, %v2184, 0.0
      %2193 = vadd.xlane.f32.xlu0 %v2192
      %v2194 = vpop.xlane.xlu0 %2193
      %v2195 = vmul.f32 %v2191, %v1342
      %v2196 = vmul.f32 %v2194, %v1342
      %v2197 = vsub.f32 %v2183, %v2195
      %v2198 = vsub.f32 %v2184, %v2196
      %v2199 = vmul.f32 %v2197, %v2197
      %v2200 = vmul.f32 %v2198, %v2198
      %v2201 = vsel %vm1285, %v2199, 0.0
      %2202 = vadd.xlane.f32.xlu0 %v2201
      %v2203 = vpop.xlane.xlu0 %2202
      %v2204 = vsel %vm1285, %v2200, 0.0
      %2205 = vadd.xlane.f32.xlu0 %v2204
      %v2206 = vpop.xlane.xlu0 %2205
      %v2207 = vmul.f32 %v2203, %v1342
      %v2208 = vmul.f32 %v2206, %v1342
      %v2209 = vadd.f32 %v2207, 1e-05
      %v2210 = vadd.f32 %v2208, 1e-05
      %v2211 = vrsqrt.pop %v2209
      %v2212 = vrsqrt.pop %v2210
      %v2213 = vmul.f32 %v2197, %v2211
      %v2214 = vmul.f32 %v2198, %v2212
      %v2216 = vlaneseq
      %v2217 = vshrl.u32 %v2216, 7
      %v2218 = vsub.s32 0, %v2217
      %v2219 = vrot.slane %v2186, %v2218
      %v2221 = vmul.f32 %v2213, %v2219
      %v2222 = vmul.f32 %v2214, %v2219
      %v2224 = vlaneseq
      %v2225 = vshrl.u32 %v2224, 7
      %v2226 = vsub.s32 0, %v2225
      %v2227 = vrot.slane %v2188, %v2226
      %v2229 = vadd.f32 %v2221, %v2227
      %v2230 = vadd.f32 %v2222, %v2227
      %s2231 = scalar_lea.vmem %s13, 64
      %v2232 = vld [vmem:[%s2231] sm:$0xff]
      %v2233 = vld [vmem:[%s2231 + $0x8] sm:$0xff]
      %v2234 = vld [vmem:[%s2231 + $0x10] sm:$0xff]
      %v2235 = vld [vmem:[%s2231 + $0x18] sm:$0xff]
      %v2236 = vld [vmem:[%s2231 + $0x20] sm:$0xff]
      %v2237 = vld [vmem:[%s2231 + $0x28] sm:$0xff]
      %v2238 = vld [vmem:[%s2231 + $0x30] sm:$0xff]
      %v2239 = vld [vmem:[%s2231 + $0x38] sm:$0xff]
      %v2240 = vpack.c.bf16 %v2230, %v2229
      %s2241 = scalar_lea.vmem %s15, 2
      %v2242 = vld [vmem:[%s2241] sm:$0x3]
      %v2244 = vlaneseq
      %v2245 = vshrl.u32 %v2244, 7
      %v2246 = vsub.s32 0, %v2245
      %v2247 = vrot.slane %v2242, %v2246
      %v2248 = vlaneseq
      %v2249 = vshrl.u32 %v2248, 7
      %v2250 = vsub.s32 1, %v2249
      %v2251 = vrot.slane %v2242, %v2250
      %v2262 = vunpack.c.l.b16 %v2232
      %v2263 = vunpack.c.h.b16 %v2232
      %v2264 = vunpack.c.l.b16 %v2233
      %v2265 = vunpack.c.h.b16 %v2233
      %v2266 = vunpack.c.l.b16 %v2234
      %v2267 = vunpack.c.h.b16 %v2234
      %v2268 = vunpack.c.l.b16 %v2235
      %v2269 = vunpack.c.h.b16 %v2235
      %v2270 = vunpack.c.l.b16 %v2236
      %v2271 = vunpack.c.h.b16 %v2236
      %v2272 = vunpack.c.l.b16 %v2237
      %v2273 = vunpack.c.h.b16 %v2237
      %v2274 = vunpack.c.l.b16 %v2238
      %v2275 = vunpack.c.h.b16 %v2238
      %v2276 = vunpack.c.l.b16 %v2239
      %v2277 = vunpack.c.h.b16 %v2239
      %v2278 = vpack.c.b16 %v2264, %v2262
      %v2279 = vpack.c.b16 %v2265, %v2263
      %v2280 = vpack.c.b16 %v2268, %v2266
      %v2281 = vpack.c.b16 %v2269, %v2267
      %v2282 = vpack.c.b16 %v2272, %v2270
      %v2283 = vpack.c.b16 %v2273, %v2271
      %v2284 = vpack.c.b16 %v2276, %v2274
      %v2285 = vpack.c.b16 %v2277, %v2275
      %v2295 = vsel %vm1285, %v2240, 0
      %2297 = vmatprep.subr.bf16.mxu0 %v2279
      %2298 = vmatpush1.bf16.msra.mxu0 %v2278
      %2299 = vmatprep.subr.bf16.mxu0 %v2281
      %2300 = vmatpush1.bf16.msra.mxu0 %v2280
      %2301 = vmatprep.subr.bf16.mxu0 %v2283
      %2302 = vmatpush1.bf16.msra.mxu0 %v2282
      %2303 = vmatprep.subr.bf16.mxu0 %v2285
      %2304 = vmatpush1.bf16.msra.mxu0 %v2284
      %2305 = vmatprep.subr.bf16.mxu0 0
      %2306 = vmatpush1.bf16.msra.mxu0 0
      %2307 = vmatprep.subr.bf16.mxu0 0
      %2308 = vmatpush1.bf16.msra.mxu0 0
      %2309 = vmatprep.subr.bf16.mxu0 0
      %2310 = vmatpush1.bf16.msra.mxu0 0
      %2311 = vmatprep.subr.bf16.mxu0 0
      %2312 = vmatpush1.bf16.msra.mxu0 0
      %2313 = vmatprep.subr.bf16.mxu0 0
      %2314 = vmatpush1.bf16.msra.mxu0 0
      %2315 = vmatprep.subr.bf16.mxu0 0
      %2316 = vmatpush1.bf16.msra.mxu0 0
      %2317 = vmatprep.subr.bf16.mxu0 0
      %2318 = vmatpush1.bf16.msra.mxu0 0
      %2319 = vmatprep.subr.bf16.mxu0 0
      %2320 = vmatpush1.bf16.msra.mxu0 0
      %2321 = vmatprep.subr.bf16.mxu0 0
      %2322 = vmatpush1.bf16.msra.mxu0 0
      %2323 = vmatprep.subr.bf16.mxu0 0
      %2324 = vmatpush1.bf16.msra.mxu0 0
      %2325 = vmatprep.subr.bf16.mxu0 0
      %2326 = vmatpush1.bf16.msra.mxu0 0
      %2327 = vmatprep.subr.bf16.mxu0 0
      %2328 = vmatpush1.bf16.msra.mxu0 0
      %2329 = vmatprep.mubr.bf16.mxu0 0
      %2330 = vmatmul.mubr.bf16.gmra.mrb[0].mxu0 %v2295
      %v2331 = vpop.f32.mrb[0].mxu0
      %v2332 = vadd.f32 %v2247, %v2331
      %v2333 = vpop.f32.mrb[0].mxu0
      %v2334 = vadd.f32 %v2251, %v2333
      %v2335 = vpop.f32.mrb[0].mxu0
      %v2336 = vadd.f32 %v2247, %v2335
      %v2337 = vpop.f32.mrb[0].mxu0
      %v2338 = vadd.f32 %v2251, %v2337
      %2339 = vdwg.mxu0
      %v2340 = vpack.c.bf16 %v2336, %v2332
      %2342 = vrot.lane.b32.xlu0 %v2340, 96
      %v2343 = vpop.permute.xlu0 %2342
      %v2345 = vsel %vm1490, %v2340, 0
      %v2348 = vsel %vm1490, %v2343, 0
      %2350 = vmatprep.subr.bf16.mxu0 0
      %2351 = vmatpush1.bf16.xpose.msra.mxu0 %v2348
      %2352 = vmatprep.subr.bf16.mxu0 0
      %2353 = vmatpush1.bf16.xpose.msra.mxu0 0
      %2354 = vmatprep.subr.bf16.mxu0 0
      %2355 = vmatpush1.bf16.xpose.msra.mxu0 0
      %2356 = vmatprep.subr.bf16.mxu0 0
      %2357 = vmatpush1.bf16.xpose.msra.mxu0 0
      %2358 = vmatprep.subr.bf16.mxu0 0
      %2359 = vmatpush1.bf16.xpose.msra.mxu0 0
      %2360 = vmatprep.subr.bf16.mxu0 0
      %2361 = vmatpush1.bf16.xpose.msra.mxu0 0
      %2362 = vmatprep.subr.bf16.mxu0 0
      %2363 = vmatpush1.bf16.xpose.msra.mxu0 0
      %2364 = vmatprep.subr.bf16.mxu0 0
      %2365 = vmatpush1.bf16.xpose.msra.mxu0 0
      %2366 = vmatprep.subr.bf16.mxu0 0
      %2367 = vmatpush1.bf16.xpose.msra.mxu0 0
      %2368 = vmatprep.subr.bf16.mxu0 0
      %2369 = vmatpush1.bf16.xpose.msra.mxu0 0
      %2370 = vmatprep.subr.bf16.mxu0 0
      %2371 = vmatpush1.bf16.xpose.msra.mxu0 0
      %2372 = vmatprep.subr.bf16.mxu0 0
      %2373 = vmatpush1.bf16.xpose.msra.mxu0 0
      %2374 = vmatprep.subr.bf16.mxu0 0
      %2375 = vmatpush1.bf16.xpose.msra.mxu0 0
      %2376 = vmatprep.subr.bf16.mxu0 0
      %2377 = vmatpush1.bf16.xpose.msra.mxu0 0
      %2378 = vmatprep.subr.bf16.mxu0 0
      %2379 = vmatpush1.bf16.xpose.msra.mxu0 0
      %2380 = vmatprep.subr.bf16.mxu0 0
      %2381 = vmatpush1.bf16.xpose.msra.mxu0 0
      %2382 = vmatprep.mubr.bf16.mxu0 0
      %2383 = vmatmul.mubr.bf16.gmra.mrb[0].mxu0 %v2345
      %v2384 = vpop.f32.mrb[0].mxu0
      %v2385 = vadd.f32 0.0, %v2384
      %v2386 = vpop.f32.mrb[0].mxu0
      %v2387 = vpop.f32.mrb[0].mxu0
      %v2388 = vadd.f32 0.0, %v2387
      %v2389 = vpop.f32.mrb[0].mxu0
      %2390 = vdwg.mxu0
      %v2391 = vmul.f32 %v2385, 0.17677669
      %v2392 = vmul.f32 %v2388, 0.17677669
      %v2393 = vsel %vm1540, %v2391, -inf
      %2394 = vmax.xlane.f32.xlu0 %v2393
      %v2395 = vpop.xlane.xlu0 %2394
      %v2396 = vsel %vm1540, %v2392, -inf
      %2397 = vmax.xlane.f32.xlu0 %v2396
      %v2398 = vpop.xlane.xlu0 %2397
      %v2399 = vsub.f32 %v2391, %v2395
      %v2400 = vsub.f32 %v2392, %v2398
      %v2401 = vmul.f32 %v2399, 1.442695
      %v2402 = vpow.pop %v2401
      %v2403 = vmul.f32 %v2400, 1.442695
      %v2404 = vpow.pop %v2403
      %v2405 = vsel %vm1540, %v2402, 0.0
      %2406 = vadd.xlane.f32.xlu0 %v2405
      %v2407 = vpop.xlane.xlu0 %2406
      %v2408 = vsel %vm1540, %v2404, 0.0
      %2409 = vadd.xlane.f32.xlu0 %v2408
      %v2410 = vpop.xlane.xlu0 %2409
      %v2411 = vrcp.pop %v2407
      %v2412 = vrcp.pop %v2410
      %v2413 = vmul.f32 %v2402, %v2411
      %v2414 = vmul.f32 %v2404, %v2412
      %v2415 = vpack.c.bf16 %v2414, %v2413
      %2416 = vrot.lane.b32.xlu0 %v2340, 64
      %v2417 = vpop.permute.xlu0 %2416
      %v2420 = vsel %vm1540, %v2415, 0
      %2422 = vmatprep.subr.bf16.mxu0 0
      %2423 = vmatpush1.bf16.msra.mxu0 %v2417
      %2424 = vmatprep.subr.bf16.mxu0 0
      %2425 = vmatpush1.bf16.msra.mxu0 0
      %2426 = vmatprep.subr.bf16.mxu0 0
      %2427 = vmatpush1.bf16.msra.mxu0 0
      %2428 = vmatprep.subr.bf16.mxu0 0
      %2429 = vmatpush1.bf16.msra.mxu0 0
      %2430 = vmatprep.subr.bf16.mxu0 0
      %2431 = vmatpush1.bf16.msra.mxu0 0
      %2432 = vmatprep.subr.bf16.mxu0 0
      %2433 = vmatpush1.bf16.msra.mxu0 0
      %2434 = vmatprep.subr.bf16.mxu0 0
      %2435 = vmatpush1.bf16.msra.mxu0 0
      %2436 = vmatprep.subr.bf16.mxu0 0
      %2437 = vmatpush1.bf16.msra.mxu0 0
      %2438 = vmatprep.subr.bf16.mxu0 0
      %2439 = vmatpush1.bf16.msra.mxu0 0
      %2440 = vmatprep.subr.bf16.mxu0 0
      %2441 = vmatpush1.bf16.msra.mxu0 0
      %2442 = vmatprep.subr.bf16.mxu0 0
      %2443 = vmatpush1.bf16.msra.mxu0 0
      %2444 = vmatprep.subr.bf16.mxu0 0
      %2445 = vmatpush1.bf16.msra.mxu0 0
      %2446 = vmatprep.subr.bf16.mxu0 0
      %2447 = vmatpush1.bf16.msra.mxu0 0
      %2448 = vmatprep.subr.bf16.mxu0 0
      %2449 = vmatpush1.bf16.msra.mxu0 0
      %2450 = vmatprep.subr.bf16.mxu0 0
      %2451 = vmatpush1.bf16.msra.mxu0 0
      %2452 = vmatprep.subr.bf16.mxu0 0
      %2453 = vmatpush1.bf16.msra.mxu0 0
      %2454 = vmatprep.mubr.bf16.mxu0 0
      %2455 = vmatmul.mubr.bf16.gmra.mrb[0].mxu0 %v2420
      %v2456 = vpop.f32.mrb[0].mxu0
      %v2457 = vadd.f32 0.0, %v2456
      %v2458 = vpop.f32.mrb[0].mxu0
      %v2459 = vpop.f32.mrb[0].mxu0
      %v2460 = vadd.f32 0.0, %v2459
      %v2461 = vpop.f32.mrb[0].mxu0
      %2462 = vdwg.mxu0
      %v2463 = vpack.c.bf16 %v2338, %v2334
      %2464 = vrot.lane.b32.xlu0 %v2340, 32
      %v2465 = vpop.permute.xlu0 %2464
      %v2467 = vsel %vm1490, %v2465, 0
      %v2470 = vsel %vm1490, %v2463, 0
      %2472 = vmatprep.subr.bf16.mxu0 0
      %2473 = vmatpush1.bf16.xpose.msra.mxu0 %v2470
      %2474 = vmatprep.subr.bf16.mxu0 0
      %2475 = vmatpush1.bf16.xpose.msra.mxu0 0
      %2476 = vmatprep.subr.bf16.mxu0 0
      %2477 = vmatpush1.bf16.xpose.msra.mxu0 0
      %2478 = vmatprep.subr.bf16.mxu0 0
      %2479 = vmatpush1.bf16.xpose.msra.mxu0 0
      %2480 = vmatprep.subr.bf16.mxu0 0
      %2481 = vmatpush1.bf16.xpose.msra.mxu0 0
      %2482 = vmatprep.subr.bf16.mxu0 0
      %2483 = vmatpush1.bf16.xpose.msra.mxu0 0
      %2484 = vmatprep.subr.bf16.mxu0 0
      %2485 = vmatpush1.bf16.xpose.msra.mxu0 0
      %2486 = vmatprep.subr.bf16.mxu0 0
      %2487 = vmatpush1.bf16.xpose.msra.mxu0 0
      %2488 = vmatprep.subr.bf16.mxu0 0
      %2489 = vmatpush1.bf16.xpose.msra.mxu0 0
      %2490 = vmatprep.subr.bf16.mxu0 0
      %2491 = vmatpush1.bf16.xpose.msra.mxu0 0
      %2492 = vmatprep.subr.bf16.mxu0 0
      %2493 = vmatpush1.bf16.xpose.msra.mxu0 0
      %2494 = vmatprep.subr.bf16.mxu0 0
      %2495 = vmatpush1.bf16.xpose.msra.mxu0 0
      %2496 = vmatprep.subr.bf16.mxu0 0
      %2497 = vmatpush1.bf16.xpose.msra.mxu0 0
      %2498 = vmatprep.subr.bf16.mxu0 0
      %2499 = vmatpush1.bf16.xpose.msra.mxu0 0
      %2500 = vmatprep.subr.bf16.mxu0 0
      %2501 = vmatpush1.bf16.xpose.msra.mxu0 0
      %2502 = vmatprep.subr.bf16.mxu0 0
      %2503 = vmatpush1.bf16.xpose.msra.mxu0 0
      %2504 = vmatprep.mubr.bf16.mxu0 0
      %2505 = vmatmul.mubr.bf16.gmra.mrb[0].mxu0 %v2467
      %v2506 = vpop.f32.mrb[0].mxu0
      %v2507 = vadd.f32 0.0, %v2506
      %v2508 = vpop.f32.mrb[0].mxu0
      %v2509 = vpop.f32.mrb[0].mxu0
      %v2510 = vadd.f32 0.0, %v2509
      %v2511 = vpop.f32.mrb[0].mxu0
      %2512 = vdwg.mxu0
      %v2513 = vmul.f32 %v2507, 0.17677669
      %v2514 = vmul.f32 %v2510, 0.17677669
      %v2515 = vsel %vm1540, %v2513, -inf
      %2516 = vmax.xlane.f32.xlu0 %v2515
      %v2517 = vpop.xlane.xlu0 %2516
      %v2518 = vsel %vm1540, %v2514, -inf
      %2519 = vmax.xlane.f32.xlu0 %v2518
      %v2520 = vpop.xlane.xlu0 %2519
      %v2521 = vsub.f32 %v2513, %v2517
      %v2522 = vsub.f32 %v2514, %v2520
      %v2523 = vmul.f32 %v2521, 1.442695
      %v2524 = vpow.pop %v2523
      %v2525 = vmul.f32 %v2522, 1.442695
      %v2526 = vpow.pop %v2525
      %v2527 = vsel %vm1540, %v2524, 0.0
      %2528 = vadd.xlane.f32.xlu0 %v2527
      %v2529 = vpop.xlane.xlu0 %2528
      %v2530 = vsel %vm1540, %v2526, 0.0
      %2531 = vadd.xlane.f32.xlu0 %v2530
      %v2532 = vpop.xlane.xlu0 %2531
      %v2533 = vrcp.pop %v2529
      %v2534 = vrcp.pop %v2532
      %v2535 = vmul.f32 %v2524, %v2533
      %v2536 = vmul.f32 %v2526, %v2534
      %v2537 = vpack.c.bf16 %v2536, %v2535
      %2539 = vrot.lane.b32.xlu0 %v2463, 96
      %v2540 = vpop.permute.xlu0 %2539
      %v2543 = vsel %vm1540, %v2537, 0
      %2545 = vmatprep.subr.bf16.mxu0 0
      %2546 = vmatpush1.bf16.msra.mxu0 %v2540
      %2547 = vmatprep.subr.bf16.mxu0 0
      %2548 = vmatpush1.bf16.msra.mxu0 0
      %2549 = vmatprep.subr.bf16.mxu0 0
      %2550 = vmatpush1.bf16.msra.mxu0 0
      %2551 = vmatprep.subr.bf16.mxu0 0
      %2552 = vmatpush1.bf16.msra.mxu0 0
      %2553 = vmatprep.subr.bf16.mxu0 0
      %2554 = vmatpush1.bf16.msra.mxu0 0
      %2555 = vmatprep.subr.bf16.mxu0 0
      %2556 = vmatpush1.bf16.msra.mxu0 0
      %2557 = vmatprep.subr.bf16.mxu0 0
      %2558 = vmatpush1.bf16.msra.mxu0 0
      %2559 = vmatprep.subr.bf16.mxu0 0
      %2560 = vmatpush1.bf16.msra.mxu0 0
      %2561 = vmatprep.subr.bf16.mxu0 0
      %2562 = vmatpush1.bf16.msra.mxu0 0
      %2563 = vmatprep.subr.bf16.mxu0 0
      %2564 = vmatpush1.bf16.msra.mxu0 0
      %2565 = vmatprep.subr.bf16.mxu0 0
      %2566 = vmatpush1.bf16.msra.mxu0 0
      %2567 = vmatprep.subr.bf16.mxu0 0
      %2568 = vmatpush1.bf16.msra.mxu0 0
      %2569 = vmatprep.subr.bf16.mxu0 0
      %2570 = vmatpush1.bf16.msra.mxu0 0
      %2571 = vmatprep.subr.bf16.mxu0 0
      %2572 = vmatpush1.bf16.msra.mxu0 0
      %2573 = vmatprep.subr.bf16.mxu0 0
      %2574 = vmatpush1.bf16.msra.mxu0 0
      %2575 = vmatprep.subr.bf16.mxu0 0
      %2576 = vmatpush1.bf16.msra.mxu0 0
      %2577 = vmatprep.mubr.bf16.mxu0 0
      %2578 = vmatmul.mubr.bf16.gmra.mrb[0].mxu0 %v2543
      %v2579 = vpop.f32.mrb[0].mxu0
      %v2580 = vadd.f32 0.0, %v2579
      %v2581 = vpop.f32.mrb[0].mxu0
      %v2582 = vpop.f32.mrb[0].mxu0
      %v2583 = vadd.f32 0.0, %v2582
      %v2584 = vpop.f32.mrb[0].mxu0
      %2585 = vdwg.mxu0
      %2588 = vrot.lane.b32.xlu0 %v2580, 32
      %v2589 = vpop.permute.xlu0 %2588
      %2590 = vrot.lane.b32.xlu0 %v2583, 32
      %v2591 = vpop.permute.xlu0 %2590
      %v2594 = vsel %vm1490, %v2457, %v2589
      %v2595 = vsel %vm1490, %v2460, %v2591
      %s2596 = scalar_lea.vmem %s17, 32
      %v2597 = vld [vmem:[%s2596] sm:$0xf]
      %v2598 = vld [vmem:[%s2596 + $0x4] sm:$0xf]
      %v2599 = vld [vmem:[%s2596 + $0x8] sm:$0xf]
      %v2600 = vld [vmem:[%s2596 + $0xc] sm:$0xf]
      %v2601 = vld [vmem:[%s2596 + $0x10] sm:$0xf]
      %v2602 = vld [vmem:[%s2596 + $0x14] sm:$0xf]
      %v2603 = vld [vmem:[%s2596 + $0x18] sm:$0xf]
      %v2604 = vld [vmem:[%s2596 + $0x1c] sm:$0xf]
      %v2605 = vpack.c.bf16 %v2595, %v2594
      %v2614 = vunpack.c.l.b16 %v2597
      %v2615 = vunpack.c.l.b16 %v2598
      %v2616 = vunpack.c.l.b16 %v2599
      %v2617 = vunpack.c.l.b16 %v2600
      %v2618 = vunpack.c.l.b16 %v2601
      %v2619 = vunpack.c.l.b16 %v2602
      %v2620 = vunpack.c.l.b16 %v2603
      %v2621 = vunpack.c.l.b16 %v2604
      %v2622 = vpack.c.b16 %v2615, %v2614
      %v2623 = vpack.c.b16 %v2617, %v2616
      %v2624 = vpack.c.b16 %v2619, %v2618
      %v2625 = vpack.c.b16 %v2621, %v2620
      %v2631 = vsel %vm1285, %v2605, 0
      %2633 = vmatprep.subr.bf16.mxu0 0
      %2634 = vmatpush1.bf16.msra.mxu0 %v2622
      %2635 = vmatprep.subr.bf16.mxu0 0
      %2636 = vmatpush1.bf16.msra.mxu0 %v2623
      %2637 = vmatprep.subr.bf16.mxu0 0
      %2638 = vmatpush1.bf16.msra.mxu0 %v2624
      %2639 = vmatprep.subr.bf16.mxu0 0
      %2640 = vmatpush1.bf16.msra.mxu0 %v2625
      %2641 = vmatprep.subr.bf16.mxu0 0
      %2642 = vmatpush1.bf16.msra.mxu0 0
      %2643 = vmatprep.subr.bf16.mxu0 0
      %2644 = vmatpush1.bf16.msra.mxu0 0
      %2645 = vmatprep.subr.bf16.mxu0 0
      %2646 = vmatpush1.bf16.msra.mxu0 0
      %2647 = vmatprep.subr.bf16.mxu0 0
      %2648 = vmatpush1.bf16.msra.mxu0 0
      %2649 = vmatprep.subr.bf16.mxu0 0
      %2650 = vmatpush1.bf16.msra.mxu0 0
      %2651 = vmatprep.subr.bf16.mxu0 0
      %2652 = vmatpush1.bf16.msra.mxu0 0
      %2653 = vmatprep.subr.bf16.mxu0 0
      %2654 = vmatpush1.bf16.msra.mxu0 0
      %2655 = vmatprep.subr.bf16.mxu0 0
      %2656 = vmatpush1.bf16.msra.mxu0 0
      %2657 = vmatprep.subr.bf16.mxu0 0
      %2658 = vmatpush1.bf16.msra.mxu0 0
      %2659 = vmatprep.subr.bf16.mxu0 0
      %2660 = vmatpush1.bf16.msra.mxu0 0
      %2661 = vmatprep.subr.bf16.mxu0 0
      %2662 = vmatpush1.bf16.msra.mxu0 0
      %2663 = vmatprep.subr.bf16.mxu0 0
      %2664 = vmatpush1.bf16.msra.mxu0 0
      %2665 = vmatprep.mubr.bf16.mxu0 0
      %2666 = vmatmul.mubr.bf16.gmra.mrb[0].mxu0 %v2631
      %v2667 = vpop.f32.mrb[0].mxu0
      %v2668 = vadd.f32 0.0, %v2667
      %v2669 = vpop.f32.mrb[0].mxu0
      %v2670 = vpop.f32.mrb[0].mxu0
      %v2671 = vadd.f32 0.0, %v2670
      %v2672 = vpop.f32.mrb[0].mxu0
      %2673 = vdwg.mxu0
      %v2674 = vadd.f32 %v2183, %v2668
      %v2675 = vadd.f32 %v2184, %v2671
      %s2676 = scalar_lea.vmem %s19, 1
      %v2677 = vld [vmem:[%s2676] sm:$0x1]
      %v2679 = vlaneseq
      %v2680 = vshrl.u32 %v2679, 7
      %v2681 = vsub.s32 0, %v2680
      %v2682 = vrot.slane %v2677, %v2681
      %v2684 = vadd.f32 %v2674, %v2682
      %v2685 = vadd.f32 %v2675, %v2682
      %s2686 = scalar_lea.vmem %s21, 1
      %v2687 = vld [vmem:[%s2686] sm:$0x1]
      %s2688 = scalar_lea.vmem %s23, 1
      %v2689 = vld [vmem:[%s2688] sm:$0x1]
      %v2690 = vsel %vm1285, %v2684, 0.0
      %2691 = vadd.xlane.f32.xlu0 %v2690
      %v2692 = vpop.xlane.xlu0 %2691
      %v2693 = vsel %vm1285, %v2685, 0.0
      %2694 = vadd.xlane.f32.xlu0 %v2693
      %v2695 = vpop.xlane.xlu0 %2694
      %v2696 = vmul.f32 %v2692, %v1342
      %v2697 = vmul.f32 %v2695, %v1342
      %v2698 = vsub.f32 %v2684, %v2696
      %v2699 = vsub.f32 %v2685, %v2697
      %v2700 = vmul.f32 %v2698, %v2698
      %v2701 = vmul.f32 %v2699, %v2699
      %v2702 = vsel %vm1285, %v2700, 0.0
      %2703 = vadd.xlane.f32.xlu0 %v2702
      %v2704 = vpop.xlane.xlu0 %2703
      %v2705 = vsel %vm1285, %v2701, 0.0
      %2706 = vadd.xlane.f32.xlu0 %v2705
      %v2707 = vpop.xlane.xlu0 %2706
      %v2708 = vmul.f32 %v2704, %v1342
      %v2709 = vmul.f32 %v2707, %v1342
      %v2710 = vadd.f32 %v2708, 1e-05
      %v2711 = vadd.f32 %v2709, 1e-05
      %v2712 = vrsqrt.pop %v2710
      %v2713 = vrsqrt.pop %v2711
      %v2714 = vmul.f32 %v2698, %v2712
      %v2715 = vmul.f32 %v2699, %v2713
      %v2717 = vlaneseq
      %v2718 = vshrl.u32 %v2717, 7
      %v2719 = vsub.s32 0, %v2718
      %v2720 = vrot.slane %v2687, %v2719
      %v2722 = vmul.f32 %v2714, %v2720
      %v2723 = vmul.f32 %v2715, %v2720
      %v2725 = vlaneseq
      %v2726 = vshrl.u32 %v2725, 7
      %v2727 = vsub.s32 0, %v2726
      %v2728 = vrot.slane %v2689, %v2727
      %v2730 = vadd.f32 %v2722, %v2728
      %v2731 = vadd.f32 %v2723, %v2728
      %s2732 = scalar_lea.vmem %s25, 64
      %v2733 = vld [vmem:[%s2732] sm:$0xff]
      %v2734 = vld [vmem:[%s2732 + $0x8] sm:$0xff]
      %v2735 = vld [vmem:[%s2732 + $0x10] sm:$0xff]
      %v2736 = vld [vmem:[%s2732 + $0x18] sm:$0xff]
      %v2737 = vld [vmem:[%s2732 + $0x20] sm:$0xff]
      %v2738 = vld [vmem:[%s2732 + $0x28] sm:$0xff]
      %v2739 = vld [vmem:[%s2732 + $0x30] sm:$0xff]
      %v2740 = vld [vmem:[%s2732 + $0x38] sm:$0xff]
      %v2741 = vpack.c.bf16 %v2731, %v2730
      %s2742 = scalar_lea.vmem %s27, 2
      %v2743 = vld [vmem:[%s2742] sm:$0x3]
      %v2745 = vlaneseq
      %v2746 = vshrl.u32 %v2745, 7
      %v2747 = vsub.s32 0, %v2746
      %v2748 = vrot.slane %v2743, %v2747
      %v2749 = vlaneseq
      %v2750 = vshrl.u32 %v2749, 7
      %v2751 = vsub.s32 1, %v2750
      %v2752 = vrot.slane %v2743, %v2751
      %v2763 = vunpack.c.l.b16 %v2733
      %v2764 = vunpack.c.h.b16 %v2733
      %v2765 = vunpack.c.l.b16 %v2734
      %v2766 = vunpack.c.h.b16 %v2734
      %v2767 = vunpack.c.l.b16 %v2735
      %v2768 = vunpack.c.h.b16 %v2735
      %v2769 = vunpack.c.l.b16 %v2736
      %v2770 = vunpack.c.h.b16 %v2736
      %v2771 = vunpack.c.l.b16 %v2737
      %v2772 = vunpack.c.h.b16 %v2737
      %v2773 = vunpack.c.l.b16 %v2738
      %v2774 = vunpack.c.h.b16 %v2738
      %v2775 = vunpack.c.l.b16 %v2739
      %v2776 = vunpack.c.h.b16 %v2739
      %v2777 = vunpack.c.l.b16 %v2740
      %v2778 = vunpack.c.h.b16 %v2740
      %v2779 = vpack.c.b16 %v2765, %v2763
      %v2780 = vpack.c.b16 %v2766, %v2764
      %v2781 = vpack.c.b16 %v2769, %v2767
      %v2782 = vpack.c.b16 %v2770, %v2768
      %v2783 = vpack.c.b16 %v2773, %v2771
      %v2784 = vpack.c.b16 %v2774, %v2772
      %v2785 = vpack.c.b16 %v2777, %v2775
      %v2786 = vpack.c.b16 %v2778, %v2776
      %v2796 = vsel %vm1285, %v2741, 0
      %2798 = vmatprep.subr.bf16.mxu0 %v2780
      %2799 = vmatpush1.bf16.msra.mxu0 %v2779
      %2800 = vmatprep.subr.bf16.mxu0 %v2782
      %2801 = vmatpush1.bf16.msra.mxu0 %v2781
      %2802 = vmatprep.subr.bf16.mxu0 %v2784
      %2803 = vmatpush1.bf16.msra.mxu0 %v2783
      %2804 = vmatprep.subr.bf16.mxu0 %v2786
      %2805 = vmatpush1.bf16.msra.mxu0 %v2785
      %2806 = vmatprep.subr.bf16.mxu0 0
      %2807 = vmatpush1.bf16.msra.mxu0 0
      %2808 = vmatprep.subr.bf16.mxu0 0
      %2809 = vmatpush1.bf16.msra.mxu0 0
      %2810 = vmatprep.subr.bf16.mxu0 0
      %2811 = vmatpush1.bf16.msra.mxu0 0
      %2812 = vmatprep.subr.bf16.mxu0 0
      %2813 = vmatpush1.bf16.msra.mxu0 0
      %2814 = vmatprep.subr.bf16.mxu0 0
      %2815 = vmatpush1.bf16.msra.mxu0 0
      %2816 = vmatprep.subr.bf16.mxu0 0
      %2817 = vmatpush1.bf16.msra.mxu0 0
      %2818 = vmatprep.subr.bf16.mxu0 0
      %2819 = vmatpush1.bf16.msra.mxu0 0
      %2820 = vmatprep.subr.bf16.mxu0 0
      %2821 = vmatpush1.bf16.msra.mxu0 0
      %2822 = vmatprep.subr.bf16.mxu0 0
      %2823 = vmatpush1.bf16.msra.mxu0 0
      %2824 = vmatprep.subr.bf16.mxu0 0
      %2825 = vmatpush1.bf16.msra.mxu0 0
      %2826 = vmatprep.subr.bf16.mxu0 0
      %2827 = vmatpush1.bf16.msra.mxu0 0
      %2828 = vmatprep.subr.bf16.mxu0 0
      %2829 = vmatpush1.bf16.msra.mxu0 0
      %2830 = vmatprep.mubr.bf16.mxu0 0
      %2831 = vmatmul.mubr.bf16.gmra.mrb[0].mxu0 %v2796
      %v2832 = vpop.f32.mrb[0].mxu0
      %v2833 = vadd.f32 %v2748, %v2832
      %v2834 = vpop.f32.mrb[0].mxu0
      %v2835 = vadd.f32 %v2752, %v2834
      %v2836 = vpop.f32.mrb[0].mxu0
      %v2837 = vadd.f32 %v2748, %v2836
      %v2838 = vpop.f32.mrb[0].mxu0
      %v2839 = vadd.f32 %v2752, %v2838
      %2840 = vdwg.mxu0
      %v2841 = vmul.f32 %v2833, 0.5
      %v2842 = vmul.f32 %v2835, 0.5
      %v2843 = vmul.f32 %v2837, 0.5
      %v2844 = vmul.f32 %v2839, 0.5
      %v2845 = vmul.f32 %v2833, 0.70710677
      %v2846 = vmul.f32 %v2835, 0.70710677
      %v2847 = vmul.f32 %v2837, 0.70710677
      %v2848 = vmul.f32 %v2839, 0.70710677
      %v2849 = verf.f32.pop %v2845
      %v2850 = verf.f32.pop %v2846
      %v2851 = verf.f32.pop %v2847
      %v2852 = verf.f32.pop %v2848
      %v2853 = vadd.f32 %v2849, 1.0
      %v2854 = vadd.f32 %v2850, 1.0
      %v2855 = vadd.f32 %v2851, 1.0
      %v2856 = vadd.f32 %v2852, 1.0
      %v2857 = vmul.f32 %v2841, %v2853
      %v2858 = vmul.f32 %v2842, %v2854
      %v2859 = vmul.f32 %v2843, %v2855
      %v2860 = vmul.f32 %v2844, %v2856
      %s2861 = scalar_lea.vmem %s29, 128
      %v2862 = vld [vmem:[%s2861] sm:$0xf]
      %v2863 = vld [vmem:[%s2861 + $0x4] sm:$0xf]
      %v2864 = vld [vmem:[%s2861 + $0x8] sm:$0xf]
      %v2865 = vld [vmem:[%s2861 + $0xc] sm:$0xf]
      %v2866 = vld [vmem:[%s2861 + $0x10] sm:$0xf]
      %v2867 = vld [vmem:[%s2861 + $0x14] sm:$0xf]
      %v2868 = vld [vmem:[%s2861 + $0x18] sm:$0xf]
      %v2869 = vld [vmem:[%s2861 + $0x1c] sm:$0xf]
      %v2870 = vld [vmem:[%s2861 + $0x20] sm:$0xf]
      %v2871 = vld [vmem:[%s2861 + $0x24] sm:$0xf]
      %v2872 = vld [vmem:[%s2861 + $0x28] sm:$0xf]
      %v2873 = vld [vmem:[%s2861 + $0x2c] sm:$0xf]
      %v2874 = vld [vmem:[%s2861 + $0x30] sm:$0xf]
      %v2875 = vld [vmem:[%s2861 + $0x34] sm:$0xf]
      %v2876 = vld [vmem:[%s2861 + $0x38] sm:$0xf]
      %v2877 = vld [vmem:[%s2861 + $0x3c] sm:$0xf]
      %v2878 = vld [vmem:[%s2861 + $0x40] sm:$0xf]
      %v2879 = vld [vmem:[%s2861 + $0x44] sm:$0xf]
      %v2880 = vld [vmem:[%s2861 + $0x48] sm:$0xf]
      %v2881 = vld [vmem:[%s2861 + $0x4c] sm:$0xf]
      %v2882 = vld [vmem:[%s2861 + $0x50] sm:$0xf]
      %v2883 = vld [vmem:[%s2861 + $0x54] sm:$0xf]
      %v2884 = vld [vmem:[%s2861 + $0x58] sm:$0xf]
      %v2885 = vld [vmem:[%s2861 + $0x5c] sm:$0xf]
      %v2886 = vld [vmem:[%s2861 + $0x60] sm:$0xf]
      %v2887 = vld [vmem:[%s2861 + $0x64] sm:$0xf]
      %v2888 = vld [vmem:[%s2861 + $0x68] sm:$0xf]
      %v2889 = vld [vmem:[%s2861 + $0x6c] sm:$0xf]
      %v2890 = vld [vmem:[%s2861 + $0x70] sm:$0xf]
      %v2891 = vld [vmem:[%s2861 + $0x74] sm:$0xf]
      %v2892 = vld [vmem:[%s2861 + $0x78] sm:$0xf]
      %v2893 = vld [vmem:[%s2861 + $0x7c] sm:$0xf]
      %v2894 = vpack.c.bf16 %v2859, %v2857
      %v2895 = vpack.c.bf16 %v2860, %v2858
      %v2928 = vunpack.c.l.b16 %v2862
      %v2929 = vunpack.c.l.b16 %v2863
      %v2930 = vunpack.c.l.b16 %v2864
      %v2931 = vunpack.c.l.b16 %v2865
      %v2932 = vunpack.c.l.b16 %v2866
      %v2933 = vunpack.c.l.b16 %v2867
      %v2934 = vunpack.c.l.b16 %v2868
      %v2935 = vunpack.c.l.b16 %v2869
      %v2936 = vunpack.c.l.b16 %v2870
      %v2937 = vunpack.c.l.b16 %v2871
      %v2938 = vunpack.c.l.b16 %v2872
      %v2939 = vunpack.c.l.b16 %v2873
      %v2940 = vunpack.c.l.b16 %v2874
      %v2941 = vunpack.c.l.b16 %v2875
      %v2942 = vunpack.c.l.b16 %v2876
      %v2943 = vunpack.c.l.b16 %v2877
      %v2944 = vunpack.c.l.b16 %v2878
      %v2945 = vunpack.c.l.b16 %v2879
      %v2946 = vunpack.c.l.b16 %v2880
      %v2947 = vunpack.c.l.b16 %v2881
      %v2948 = vunpack.c.l.b16 %v2882
      %v2949 = vunpack.c.l.b16 %v2883
      %v2950 = vunpack.c.l.b16 %v2884
      %v2951 = vunpack.c.l.b16 %v2885
      %v2952 = vunpack.c.l.b16 %v2886
      %v2953 = vunpack.c.l.b16 %v2887
      %v2954 = vunpack.c.l.b16 %v2888
      %v2955 = vunpack.c.l.b16 %v2889
      %v2956 = vunpack.c.l.b16 %v2890
      %v2957 = vunpack.c.l.b16 %v2891
      %v2958 = vunpack.c.l.b16 %v2892
      %v2959 = vunpack.c.l.b16 %v2893
      %v2960 = vpack.c.b16 %v2929, %v2928
      %v2961 = vpack.c.b16 %v2931, %v2930
      %v2962 = vpack.c.b16 %v2933, %v2932
      %v2963 = vpack.c.b16 %v2935, %v2934
      %v2964 = vpack.c.b16 %v2937, %v2936
      %v2965 = vpack.c.b16 %v2939, %v2938
      %v2966 = vpack.c.b16 %v2941, %v2940
      %v2967 = vpack.c.b16 %v2943, %v2942
      %v2968 = vpack.c.b16 %v2945, %v2944
      %v2969 = vpack.c.b16 %v2947, %v2946
      %v2970 = vpack.c.b16 %v2949, %v2948
      %v2971 = vpack.c.b16 %v2951, %v2950
      %v2972 = vpack.c.b16 %v2953, %v2952
      %v2973 = vpack.c.b16 %v2955, %v2954
      %v2974 = vpack.c.b16 %v2957, %v2956
      %v2975 = vpack.c.b16 %v2959, %v2958
      %2992 = vmatprep.subr.bf16.mxu0 0
      %2993 = vmatpush1.bf16.msra.mxu0 %v2960
      %2994 = vmatprep.subr.bf16.mxu0 0
      %2995 = vmatpush1.bf16.msra.mxu0 %v2961
      %2996 = vmatprep.subr.bf16.mxu0 0
      %2997 = vmatpush1.bf16.msra.mxu0 %v2962
      %2998 = vmatprep.subr.bf16.mxu0 0
      %2999 = vmatpush1.bf16.msra.mxu0 %v2963
      %3000 = vmatprep.subr.bf16.mxu0 0
      %3001 = vmatpush1.bf16.msra.mxu0 %v2964
      %3002 = vmatprep.subr.bf16.mxu0 0
      %3003 = vmatpush1.bf16.msra.mxu0 %v2965
      %3004 = vmatprep.subr.bf16.mxu0 0
      %3005 = vmatpush1.bf16.msra.mxu0 %v2966
      %3006 = vmatprep.subr.bf16.mxu0 0
      %3007 = vmatpush1.bf16.msra.mxu0 %v2967
      %3008 = vmatprep.subr.bf16.mxu0 0
      %3009 = vmatpush1.bf16.msra.mxu0 %v2968
      %3010 = vmatprep.subr.bf16.mxu0 0
      %3011 = vmatpush1.bf16.msra.mxu0 %v2969
      %3012 = vmatprep.subr.bf16.mxu0 0
      %3013 = vmatpush1.bf16.msra.mxu0 %v2970
      %3014 = vmatprep.subr.bf16.mxu0 0
      %3015 = vmatpush1.bf16.msra.mxu0 %v2971
      %3016 = vmatprep.subr.bf16.mxu0 0
      %3017 = vmatpush1.bf16.msra.mxu0 %v2972
      %3018 = vmatprep.subr.bf16.mxu0 0
      %3019 = vmatpush1.bf16.msra.mxu0 %v2973
      %3020 = vmatprep.subr.bf16.mxu0 0
      %3021 = vmatpush1.bf16.msra.mxu0 %v2974
      %3022 = vmatprep.subr.bf16.mxu0 0
      %3023 = vmatpush1.bf16.msra.mxu0 %v2975
      %3024 = vmatprep.mubr.bf16.mxu0 %v2895
      %3025 = vmatmul.mubr.bf16.gmra.mrb[0].mxu0 %v2894
      %v3026 = vpop.f32.mrb[0].mxu0
      %v3027 = vadd.f32 0.0, %v3026
      %v3028 = vpop.f32.mrb[0].mxu0
      %v3029 = vpop.f32.mrb[0].mxu0
      %v3030 = vadd.f32 0.0, %v3029
      %v3031 = vpop.f32.mrb[0].mxu0
      %3032 = vdwg.mxu0
      %v3033 = vadd.f32 %v2684, %v3027
      %v3034 = vadd.f32 %v2685, %v3030
      %s3035 = scalar_lea.vmem %s31, 1
      %v3036 = vld [vmem:[%s3035] sm:$0x1]
      %v3038 = vlaneseq
      %v3039 = vshrl.u32 %v3038, 7
      %v3040 = vsub.s32 0, %v3039
      %v3041 = vrot.slane %v3036, %v3040
      %v3043 = vadd.f32 %v3033, %v3041
      %v3044 = vadd.f32 %v3034, %v3041
      %s3045 = scalar_lea.vmem %s9, 2
      %v3046 = vld [vmem:[%s3045] sm:$0x1]
      %s3047 = scalar_lea.vmem %s11, 2
      %v3048 = vld [vmem:[%s3047] sm:$0x1]
      %v3049 = vsel %vm1285, %v3043, 0.0
      %3050 = vadd.xlane.f32.xlu0 %v3049
      %v3051 = vpop.xlane.xlu0 %3050
      %v3052 = vsel %vm1285, %v3044, 0.0
      %3053 = vadd.xlane.f32.xlu0 %v3052
      %v3054 = vpop.xlane.xlu0 %3053
      %v3055 = vmul.f32 %v3051, %v1342
      %v3056 = vmul.f32 %v3054, %v1342
      %v3057 = vsub.f32 %v3043, %v3055
      %v3058 = vsub.f32 %v3044, %v3056
      %v3059 = vmul.f32 %v3057, %v3057
      %v3060 = vmul.f32 %v3058, %v3058
      %v3061 = vsel %vm1285, %v3059, 0.0
      %3062 = vadd.xlane.f32.xlu0 %v3061
      %v3063 = vpop.xlane.xlu0 %3062
      %v3064 = vsel %vm1285, %v3060, 0.0
      %3065 = vadd.xlane.f32.xlu0 %v3064
      %v3066 = vpop.xlane.xlu0 %3065
      %v3067 = vmul.f32 %v3063, %v1342
      %v3068 = vmul.f32 %v3066, %v1342
      %v3069 = vadd.f32 %v3067, 1e-05
      %v3070 = vadd.f32 %v3068, 1e-05
      %v3071 = vrsqrt.pop %v3069
      %v3072 = vrsqrt.pop %v3070
      %v3073 = vmul.f32 %v3057, %v3071
      %v3074 = vmul.f32 %v3058, %v3072
      %v3076 = vlaneseq
      %v3077 = vshrl.u32 %v3076, 7
      %v3078 = vsub.s32 0, %v3077
      %v3079 = vrot.slane %v3046, %v3078
      %v3081 = vmul.f32 %v3073, %v3079
      %v3082 = vmul.f32 %v3074, %v3079
      %v3084 = vlaneseq
      %v3085 = vshrl.u32 %v3084, 7
      %v3086 = vsub.s32 0, %v3085
      %v3087 = vrot.slane %v3048, %v3086
      %v3089 = vadd.f32 %v3081, %v3087
      %v3090 = vadd.f32 %v3082, %v3087
      %s3091 = scalar_lea.vmem %s13, 128
      %v3092 = vld [vmem:[%s3091] sm:$0xff]
      %v3093 = vld [vmem:[%s3091 + $0x8] sm:$0xff]
      %v3094 = vld [vmem:[%s3091 + $0x10] sm:$0xff]
      %v3095 = vld [vmem:[%s3091 + $0x18] sm:$0xff]
      %v3096 = vld [vmem:[%s3091 + $0x20] sm:$0xff]
      %v3097 = vld [vmem:[%s3091 + $0x28] sm:$0xff]
      %v3098 = vld [vmem:[%s3091 + $0x30] sm:$0xff]
      %v3099 = vld [vmem:[%s3091 + $0x38] sm:$0xff]
      %v3100 = vpack.c.bf16 %v3090, %v3089
      %s3101 = scalar_lea.vmem %s15, 4
      %v3102 = vld [vmem:[%s3101] sm:$0x3]
      %v3104 = vlaneseq
      %v3105 = vshrl.u32 %v3104, 7
      %v3106 = vsub.s32 0, %v3105
      %v3107 = vrot.slane %v3102, %v3106
      %v3108 = vlaneseq
      %v3109 = vshrl.u32 %v3108, 7
      %v3110 = vsub.s32 1, %v3109
      %v3111 = vrot.slane %v3102, %v3110
      %v3122 = vunpack.c.l.b16 %v3092
      %v3123 = vunpack.c.h.b16 %v3092
      %v3124 = vunpack.c.l.b16 %v3093
      %v3125 = vunpack.c.h.b16 %v3093
      %v3126 = vunpack.c.l.b16 %v3094
      %v3127 = vunpack.c.h.b16 %v3094
      %v3128 = vunpack.c.l.b16 %v3095
      %v3129 = vunpack.c.h.b16 %v3095
      %v3130 = vunpack.c.l.b16 %v3096
      %v3131 = vunpack.c.h.b16 %v3096
      %v3132 = vunpack.c.l.b16 %v3097
      %v3133 = vunpack.c.h.b16 %v3097
      %v3134 = vunpack.c.l.b16 %v3098
      %v3135 = vunpack.c.h.b16 %v3098
      %v3136 = vunpack.c.l.b16 %v3099
      %v3137 = vunpack.c.h.b16 %v3099
      %v3138 = vpack.c.b16 %v3124, %v3122
      %v3139 = vpack.c.b16 %v3125, %v3123
      %v3140 = vpack.c.b16 %v3128, %v3126
      %v3141 = vpack.c.b16 %v3129, %v3127
      %v3142 = vpack.c.b16 %v3132, %v3130
      %v3143 = vpack.c.b16 %v3133, %v3131
      %v3144 = vpack.c.b16 %v3136, %v3134
      %v3145 = vpack.c.b16 %v3137, %v3135
      %v3155 = vsel %vm1285, %v3100, 0
      %3157 = vmatprep.subr.bf16.mxu0 %v3139
      %3158 = vmatpush1.bf16.msra.mxu0 %v3138
      %3159 = vmatprep.subr.bf16.mxu0 %v3141
      %3160 = vmatpush1.bf16.msra.mxu0 %v3140
      %3161 = vmatprep.subr.bf16.mxu0 %v3143
      %3162 = vmatpush1.bf16.msra.mxu0 %v3142
      %3163 = vmatprep.subr.bf16.mxu0 %v3145
      %3164 = vmatpush1.bf16.msra.mxu0 %v3144
      %3165 = vmatprep.subr.bf16.mxu0 0
      %3166 = vmatpush1.bf16.msra.mxu0 0
      %3167 = vmatprep.subr.bf16.mxu0 0
      %3168 = vmatpush1.bf16.msra.mxu0 0
      %3169 = vmatprep.subr.bf16.mxu0 0
      %3170 = vmatpush1.bf16.msra.mxu0 0
      %3171 = vmatprep.subr.bf16.mxu0 0
      %3172 = vmatpush1.bf16.msra.mxu0 0
      %3173 = vmatprep.subr.bf16.mxu0 0
      %3174 = vmatpush1.bf16.msra.mxu0 0
      %3175 = vmatprep.subr.bf16.mxu0 0
      %3176 = vmatpush1.bf16.msra.mxu0 0
      %3177 = vmatprep.subr.bf16.mxu0 0
      %3178 = vmatpush1.bf16.msra.mxu0 0
      %3179 = vmatprep.subr.bf16.mxu0 0
      %3180 = vmatpush1.bf16.msra.mxu0 0
      %3181 = vmatprep.subr.bf16.mxu0 0
      %3182 = vmatpush1.bf16.msra.mxu0 0
      %3183 = vmatprep.subr.bf16.mxu0 0
      %3184 = vmatpush1.bf16.msra.mxu0 0
      %3185 = vmatprep.subr.bf16.mxu0 0
      %3186 = vmatpush1.bf16.msra.mxu0 0
      %3187 = vmatprep.subr.bf16.mxu0 0
      %3188 = vmatpush1.bf16.msra.mxu0 0
      %3189 = vmatprep.mubr.bf16.mxu0 0
      %3190 = vmatmul.mubr.bf16.gmra.mrb[0].mxu0 %v3155
      %v3191 = vpop.f32.mrb[0].mxu0
      %v3192 = vadd.f32 %v3107, %v3191
      %v3193 = vpop.f32.mrb[0].mxu0
      %v3194 = vadd.f32 %v3111, %v3193
      %v3195 = vpop.f32.mrb[0].mxu0
      %v3196 = vadd.f32 %v3107, %v3195
      %v3197 = vpop.f32.mrb[0].mxu0
      %v3198 = vadd.f32 %v3111, %v3197
      %3199 = vdwg.mxu0
      %v3200 = vpack.c.bf16 %v3196, %v3192
      %3202 = vrot.lane.b32.xlu0 %v3200, 96
      %v3203 = vpop.permute.xlu0 %3202
      %v3205 = vsel %vm1490, %v3200, 0
      %v3208 = vsel %vm1490, %v3203, 0
      %3210 = vmatprep.subr.bf16.mxu0 0
      %3211 = vmatpush1.bf16.xpose.msra.mxu0 %v3208
      %3212 = vmatprep.subr.bf16.mxu0 0
      %3213 = vmatpush1.bf16.xpose.msra.mxu0 0
      %3214 = vmatprep.subr.bf16.mxu0 0
      %3215 = vmatpush1.bf16.xpose.msra.mxu0 0
      %3216 = vmatprep.subr.bf16.mxu0 0
      %3217 = vmatpush1.bf16.xpose.msra.mxu0 0
      %3218 = vmatprep.subr.bf16.mxu0 0
      %3219 = vmatpush1.bf16.xpose.msra.mxu0 0
      %3220 = vmatprep.subr.bf16.mxu0 0
      %3221 = vmatpush1.bf16.xpose.msra.mxu0 0
      %3222 = vmatprep.subr.bf16.mxu0 0
      %3223 = vmatpush1.bf16.xpose.msra.mxu0 0
      %3224 = vmatprep.subr.bf16.mxu0 0
      %3225 = vmatpush1.bf16.xpose.msra.mxu0 0
      %3226 = vmatprep.subr.bf16.mxu0 0
      %3227 = vmatpush1.bf16.xpose.msra.mxu0 0
      %3228 = vmatprep.subr.bf16.mxu0 0
      %3229 = vmatpush1.bf16.xpose.msra.mxu0 0
      %3230 = vmatprep.subr.bf16.mxu0 0
      %3231 = vmatpush1.bf16.xpose.msra.mxu0 0
      %3232 = vmatprep.subr.bf16.mxu0 0
      %3233 = vmatpush1.bf16.xpose.msra.mxu0 0
      %3234 = vmatprep.subr.bf16.mxu0 0
      %3235 = vmatpush1.bf16.xpose.msra.mxu0 0
      %3236 = vmatprep.subr.bf16.mxu0 0
      %3237 = vmatpush1.bf16.xpose.msra.mxu0 0
      %3238 = vmatprep.subr.bf16.mxu0 0
      %3239 = vmatpush1.bf16.xpose.msra.mxu0 0
      %3240 = vmatprep.subr.bf16.mxu0 0
      %3241 = vmatpush1.bf16.xpose.msra.mxu0 0
      %3242 = vmatprep.mubr.bf16.mxu0 0
      %3243 = vmatmul.mubr.bf16.gmra.mrb[0].mxu0 %v3205
      %v3244 = vpop.f32.mrb[0].mxu0
      %v3245 = vadd.f32 0.0, %v3244
      %v3246 = vpop.f32.mrb[0].mxu0
      %v3247 = vpop.f32.mrb[0].mxu0
      %v3248 = vadd.f32 0.0, %v3247
      %v3249 = vpop.f32.mrb[0].mxu0
      %3250 = vdwg.mxu0
      %v3251 = vmul.f32 %v3245, 0.17677669
      %v3252 = vmul.f32 %v3248, 0.17677669
      %v3253 = vsel %vm1540, %v3251, -inf
      %3254 = vmax.xlane.f32.xlu0 %v3253
      %v3255 = vpop.xlane.xlu0 %3254
      %v3256 = vsel %vm1540, %v3252, -inf
      %3257 = vmax.xlane.f32.xlu0 %v3256
      %v3258 = vpop.xlane.xlu0 %3257
      %v3259 = vsub.f32 %v3251, %v3255
      %v3260 = vsub.f32 %v3252, %v3258
      %v3261 = vmul.f32 %v3259, 1.442695
      %v3262 = vpow.pop %v3261
      %v3263 = vmul.f32 %v3260, 1.442695
      %v3264 = vpow.pop %v3263
      %v3265 = vsel %vm1540, %v3262, 0.0
      %3266 = vadd.xlane.f32.xlu0 %v3265
      %v3267 = vpop.xlane.xlu0 %3266
      %v3268 = vsel %vm1540, %v3264, 0.0
      %3269 = vadd.xlane.f32.xlu0 %v3268
      %v3270 = vpop.xlane.xlu0 %3269
      %v3271 = vrcp.pop %v3267
      %v3272 = vrcp.pop %v3270
      %v3273 = vmul.f32 %v3262, %v3271
      %v3274 = vmul.f32 %v3264, %v3272
      %v3275 = vpack.c.bf16 %v3274, %v3273
      %3276 = vrot.lane.b32.xlu0 %v3200, 64
      %v3277 = vpop.permute.xlu0 %3276
      %v3280 = vsel %vm1540, %v3275, 0
      %3282 = vmatprep.subr.bf16.mxu0 0
      %3283 = vmatpush1.bf16.msra.mxu0 %v3277
      %3284 = vmatprep.subr.bf16.mxu0 0
      %3285 = vmatpush1.bf16.msra.mxu0 0
      %3286 = vmatprep.subr.bf16.mxu0 0
      %3287 = vmatpush1.bf16.msra.mxu0 0
      %3288 = vmatprep.subr.bf16.mxu0 0
      %3289 = vmatpush1.bf16.msra.mxu0 0
      %3290 = vmatprep.subr.bf16.mxu0 0
      %3291 = vmatpush1.bf16.msra.mxu0 0
      %3292 = vmatprep.subr.bf16.mxu0 0
      %3293 = vmatpush1.bf16.msra.mxu0 0
      %3294 = vmatprep.subr.bf16.mxu0 0
      %3295 = vmatpush1.bf16.msra.mxu0 0
      %3296 = vmatprep.subr.bf16.mxu0 0
      %3297 = vmatpush1.bf16.msra.mxu0 0
      %3298 = vmatprep.subr.bf16.mxu0 0
      %3299 = vmatpush1.bf16.msra.mxu0 0
      %3300 = vmatprep.subr.bf16.mxu0 0
      %3301 = vmatpush1.bf16.msra.mxu0 0
      %3302 = vmatprep.subr.bf16.mxu0 0
      %3303 = vmatpush1.bf16.msra.mxu0 0
      %3304 = vmatprep.subr.bf16.mxu0 0
      %3305 = vmatpush1.bf16.msra.mxu0 0
      %3306 = vmatprep.subr.bf16.mxu0 0
      %3307 = vmatpush1.bf16.msra.mxu0 0
      %3308 = vmatprep.subr.bf16.mxu0 0
      %3309 = vmatpush1.bf16.msra.mxu0 0
      %3310 = vmatprep.subr.bf16.mxu0 0
      %3311 = vmatpush1.bf16.msra.mxu0 0
      %3312 = vmatprep.subr.bf16.mxu0 0
      %3313 = vmatpush1.bf16.msra.mxu0 0
      %3314 = vmatprep.mubr.bf16.mxu0 0
      %3315 = vmatmul.mubr.bf16.gmra.mrb[0].mxu0 %v3280
      %v3316 = vpop.f32.mrb[0].mxu0
      %v3317 = vadd.f32 0.0, %v3316
      %v3318 = vpop.f32.mrb[0].mxu0
      %v3319 = vpop.f32.mrb[0].mxu0
      %v3320 = vadd.f32 0.0, %v3319
      %v3321 = vpop.f32.mrb[0].mxu0
      %3322 = vdwg.mxu0
      %v3323 = vpack.c.bf16 %v3198, %v3194
      %3324 = vrot.lane.b32.xlu0 %v3200, 32
      %v3325 = vpop.permute.xlu0 %3324
      %v3327 = vsel %vm1490, %v3325, 0
      %v3330 = vsel %vm1490, %v3323, 0
      %3332 = vmatprep.subr.bf16.mxu0 0
      %3333 = vmatpush1.bf16.xpose.msra.mxu0 %v3330
      %3334 = vmatprep.subr.bf16.mxu0 0
      %3335 = vmatpush1.bf16.xpose.msra.mxu0 0
      %3336 = vmatprep.subr.bf16.mxu0 0
      %3337 = vmatpush1.bf16.xpose.msra.mxu0 0
      %3338 = vmatprep.subr.bf16.mxu0 0
      %3339 = vmatpush1.bf16.xpose.msra.mxu0 0
      %3340 = vmatprep.subr.bf16.mxu0 0
      %3341 = vmatpush1.bf16.xpose.msra.mxu0 0
      %3342 = vmatprep.subr.bf16.mxu0 0
      %3343 = vmatpush1.bf16.xpose.msra.mxu0 0
      %3344 = vmatprep.subr.bf16.mxu0 0
      %3345 = vmatpush1.bf16.xpose.msra.mxu0 0
      %3346 = vmatprep.subr.bf16.mxu0 0
      %3347 = vmatpush1.bf16.xpose.msra.mxu0 0
      %3348 = vmatprep.subr.bf16.mxu0 0
      %3349 = vmatpush1.bf16.xpose.msra.mxu0 0
      %3350 = vmatprep.subr.bf16.mxu0 0
      %3351 = vmatpush1.bf16.xpose.msra.mxu0 0
      %3352 = vmatprep.subr.bf16.mxu0 0
      %3353 = vmatpush1.bf16.xpose.msra.mxu0 0
      %3354 = vmatprep.subr.bf16.mxu0 0
      %3355 = vmatpush1.bf16.xpose.msra.mxu0 0
      %3356 = vmatprep.subr.bf16.mxu0 0
      %3357 = vmatpush1.bf16.xpose.msra.mxu0 0
      %3358 = vmatprep.subr.bf16.mxu0 0
      %3359 = vmatpush1.bf16.xpose.msra.mxu0 0
      %3360 = vmatprep.subr.bf16.mxu0 0
      %3361 = vmatpush1.bf16.xpose.msra.mxu0 0
      %3362 = vmatprep.subr.bf16.mxu0 0
      %3363 = vmatpush1.bf16.xpose.msra.mxu0 0
      %3364 = vmatprep.mubr.bf16.mxu0 0
      %3365 = vmatmul.mubr.bf16.gmra.mrb[0].mxu0 %v3327
      %v3366 = vpop.f32.mrb[0].mxu0
      %v3367 = vadd.f32 0.0, %v3366
      %v3368 = vpop.f32.mrb[0].mxu0
      %v3369 = vpop.f32.mrb[0].mxu0
      %v3370 = vadd.f32 0.0, %v3369
      %v3371 = vpop.f32.mrb[0].mxu0
      %3372 = vdwg.mxu0
      %v3373 = vmul.f32 %v3367, 0.17677669
      %v3374 = vmul.f32 %v3370, 0.17677669
      %v3375 = vsel %vm1540, %v3373, -inf
      %3376 = vmax.xlane.f32.xlu0 %v3375
      %v3377 = vpop.xlane.xlu0 %3376
      %v3378 = vsel %vm1540, %v3374, -inf
      %3379 = vmax.xlane.f32.xlu0 %v3378
      %v3380 = vpop.xlane.xlu0 %3379
      %v3381 = vsub.f32 %v3373, %v3377
      %v3382 = vsub.f32 %v3374, %v3380
      %v3383 = vmul.f32 %v3381, 1.442695
      %v3384 = vpow.pop %v3383
      %v3385 = vmul.f32 %v3382, 1.442695
      %v3386 = vpow.pop %v3385
      %v3387 = vsel %vm1540, %v3384, 0.0
      %3388 = vadd.xlane.f32.xlu0 %v3387
      %v3389 = vpop.xlane.xlu0 %3388
      %v3390 = vsel %vm1540, %v3386, 0.0
      %3391 = vadd.xlane.f32.xlu0 %v3390
      %v3392 = vpop.xlane.xlu0 %3391
      %v3393 = vrcp.pop %v3389
      %v3394 = vrcp.pop %v3392
      %v3395 = vmul.f32 %v3384, %v3393
      %v3396 = vmul.f32 %v3386, %v3394
      %v3397 = vpack.c.bf16 %v3396, %v3395
      %3399 = vrot.lane.b32.xlu0 %v3323, 96
      %v3400 = vpop.permute.xlu0 %3399
      %v3403 = vsel %vm1540, %v3397, 0
      %3405 = vmatprep.subr.bf16.mxu0 0
      %3406 = vmatpush1.bf16.msra.mxu0 %v3400
      %3407 = vmatprep.subr.bf16.mxu0 0
      %3408 = vmatpush1.bf16.msra.mxu0 0
      %3409 = vmatprep.subr.bf16.mxu0 0
      %3410 = vmatpush1.bf16.msra.mxu0 0
      %3411 = vmatprep.subr.bf16.mxu0 0
      %3412 = vmatpush1.bf16.msra.mxu0 0
      %3413 = vmatprep.subr.bf16.mxu0 0
      %3414 = vmatpush1.bf16.msra.mxu0 0
      %3415 = vmatprep.subr.bf16.mxu0 0
      %3416 = vmatpush1.bf16.msra.mxu0 0
      %3417 = vmatprep.subr.bf16.mxu0 0
      %3418 = vmatpush1.bf16.msra.mxu0 0
      %3419 = vmatprep.subr.bf16.mxu0 0
      %3420 = vmatpush1.bf16.msra.mxu0 0
      %3421 = vmatprep.subr.bf16.mxu0 0
      %3422 = vmatpush1.bf16.msra.mxu0 0
      %3423 = vmatprep.subr.bf16.mxu0 0
      %3424 = vmatpush1.bf16.msra.mxu0 0
      %3425 = vmatprep.subr.bf16.mxu0 0
      %3426 = vmatpush1.bf16.msra.mxu0 0
      %3427 = vmatprep.subr.bf16.mxu0 0
      %3428 = vmatpush1.bf16.msra.mxu0 0
      %3429 = vmatprep.subr.bf16.mxu0 0
      %3430 = vmatpush1.bf16.msra.mxu0 0
      %3431 = vmatprep.subr.bf16.mxu0 0
      %3432 = vmatpush1.bf16.msra.mxu0 0
      %3433 = vmatprep.subr.bf16.mxu0 0
      %3434 = vmatpush1.bf16.msra.mxu0 0
      %3435 = vmatprep.subr.bf16.mxu0 0
      %3436 = vmatpush1.bf16.msra.mxu0 0
      %3437 = vmatprep.mubr.bf16.mxu0 0
      %3438 = vmatmul.mubr.bf16.gmra.mrb[0].mxu0 %v3403
      %v3439 = vpop.f32.mrb[0].mxu0
      %v3440 = vadd.f32 0.0, %v3439
      %v3441 = vpop.f32.mrb[0].mxu0
      %v3442 = vpop.f32.mrb[0].mxu0
      %v3443 = vadd.f32 0.0, %v3442
      %v3444 = vpop.f32.mrb[0].mxu0
      %3445 = vdwg.mxu0
      %3448 = vrot.lane.b32.xlu0 %v3440, 32
      %v3449 = vpop.permute.xlu0 %3448
      %3450 = vrot.lane.b32.xlu0 %v3443, 32
      %v3451 = vpop.permute.xlu0 %3450
      %v3454 = vsel %vm1490, %v3317, %v3449
      %v3455 = vsel %vm1490, %v3320, %v3451
      %s3456 = scalar_lea.vmem %s17, 64
      %v3457 = vld [vmem:[%s3456] sm:$0xf]
      %v3458 = vld [vmem:[%s3456 + $0x4] sm:$0xf]
      %v3459 = vld [vmem:[%s3456 + $0x8] sm:$0xf]
      %v3460 = vld [vmem:[%s3456 + $0xc] sm:$0xf]
      %v3461 = vld [vmem:[%s3456 + $0x10] sm:$0xf]
      %v3462 = vld [vmem:[%s3456 + $0x14] sm:$0xf]
      %v3463 = vld [vmem:[%s3456 + $0x18] sm:$0xf]
      %v3464 = vld [vmem:[%s3456 + $0x1c] sm:$0xf]
      %v3465 = vpack.c.bf16 %v3455, %v3454
      %v3474 = vunpack.c.l.b16 %v3457
      %v3475 = vunpack.c.l.b16 %v3458
      %v3476 = vunpack.c.l.b16 %v3459
      %v3477 = vunpack.c.l.b16 %v3460
      %v3478 = vunpack.c.l.b16 %v3461
      %v3479 = vunpack.c.l.b16 %v3462
      %v3480 = vunpack.c.l.b16 %v3463
      %v3481 = vunpack.c.l.b16 %v3464
      %v3482 = vpack.c.b16 %v3475, %v3474
      %v3483 = vpack.c.b16 %v3477, %v3476
      %v3484 = vpack.c.b16 %v3479, %v3478
      %v3485 = vpack.c.b16 %v3481, %v3480
      %v3491 = vsel %vm1285, %v3465, 0
      %3493 = vmatprep.subr.bf16.mxu0 0
      %3494 = vmatpush1.bf16.msra.mxu0 %v3482
      %3495 = vmatprep.subr.bf16.mxu0 0
      %3496 = vmatpush1.bf16.msra.mxu0 %v3483
      %3497 = vmatprep.subr.bf16.mxu0 0
      %3498 = vmatpush1.bf16.msra.mxu0 %v3484
      %3499 = vmatprep.subr.bf16.mxu0 0
      %3500 = vmatpush1.bf16.msra.mxu0 %v3485
      %3501 = vmatprep.subr.bf16.mxu0 0
      %3502 = vmatpush1.bf16.msra.mxu0 0
      %3503 = vmatprep.subr.bf16.mxu0 0
      %3504 = vmatpush1.bf16.msra.mxu0 0
      %3505 = vmatprep.subr.bf16.mxu0 0
      %3506 = vmatpush1.bf16.msra.mxu0 0
      %3507 = vmatprep.subr.bf16.mxu0 0
      %3508 = vmatpush1.bf16.msra.mxu0 0
      %3509 = vmatprep.subr.bf16.mxu0 0
      %3510 = vmatpush1.bf16.msra.mxu0 0
      %3511 = vmatprep.subr.bf16.mxu0 0
      %3512 = vmatpush1.bf16.msra.mxu0 0
      %3513 = vmatprep.subr.bf16.mxu0 0
      %3514 = vmatpush1.bf16.msra.mxu0 0
      %3515 = vmatprep.subr.bf16.mxu0 0
      %3516 = vmatpush1.bf16.msra.mxu0 0
      %3517 = vmatprep.subr.bf16.mxu0 0
      %3518 = vmatpush1.bf16.msra.mxu0 0
      %3519 = vmatprep.subr.bf16.mxu0 0
      %3520 = vmatpush1.bf16.msra.mxu0 0
      %3521 = vmatprep.subr.bf16.mxu0 0
      %3522 = vmatpush1.bf16.msra.mxu0 0
      %3523 = vmatprep.subr.bf16.mxu0 0
      %3524 = vmatpush1.bf16.msra.mxu0 0
      %3525 = vmatprep.mubr.bf16.mxu0 0
      %3526 = vmatmul.mubr.bf16.gmra.mrb[0].mxu0 %v3491
      %v3527 = vpop.f32.mrb[0].mxu0
      %v3528 = vadd.f32 0.0, %v3527
      %v3529 = vpop.f32.mrb[0].mxu0
      %v3530 = vpop.f32.mrb[0].mxu0
      %v3531 = vadd.f32 0.0, %v3530
      %v3532 = vpop.f32.mrb[0].mxu0
      %3533 = vdwg.mxu0
      %v3534 = vadd.f32 %v3043, %v3528
      %v3535 = vadd.f32 %v3044, %v3531
      %s3536 = scalar_lea.vmem %s19, 2
      %v3537 = vld [vmem:[%s3536] sm:$0x1]
      %v3539 = vlaneseq
      %v3540 = vshrl.u32 %v3539, 7
      %v3541 = vsub.s32 0, %v3540
      %v3542 = vrot.slane %v3537, %v3541
      %v3544 = vadd.f32 %v3534, %v3542
      %v3545 = vadd.f32 %v3535, %v3542
      %s3546 = scalar_lea.vmem %s21, 2
      %v3547 = vld [vmem:[%s3546] sm:$0x1]
      %s3548 = scalar_lea.vmem %s23, 2
      %v3549 = vld [vmem:[%s3548] sm:$0x1]
      %v3550 = vsel %vm1285, %v3544, 0.0
      %3551 = vadd.xlane.f32.xlu0 %v3550
      %v3552 = vpop.xlane.xlu0 %3551
      %v3553 = vsel %vm1285, %v3545, 0.0
      %3554 = vadd.xlane.f32.xlu0 %v3553
      %v3555 = vpop.xlane.xlu0 %3554
      %v3556 = vmul.f32 %v3552, %v1342
      %v3557 = vmul.f32 %v3555, %v1342
      %v3558 = vsub.f32 %v3544, %v3556
      %v3559 = vsub.f32 %v3545, %v3557
      %v3560 = vmul.f32 %v3558, %v3558
      %v3561 = vmul.f32 %v3559, %v3559
      %v3562 = vsel %vm1285, %v3560, 0.0
      %3563 = vadd.xlane.f32.xlu0 %v3562
      %v3564 = vpop.xlane.xlu0 %3563
      %v3565 = vsel %vm1285, %v3561, 0.0
      %3566 = vadd.xlane.f32.xlu0 %v3565
      %v3567 = vpop.xlane.xlu0 %3566
      %v3568 = vmul.f32 %v3564, %v1342
      %v3569 = vmul.f32 %v3567, %v1342
      %v3570 = vadd.f32 %v3568, 1e-05
      %v3571 = vadd.f32 %v3569, 1e-05
      %v3572 = vrsqrt.pop %v3570
      %v3573 = vrsqrt.pop %v3571
      %v3574 = vmul.f32 %v3558, %v3572
      %v3575 = vmul.f32 %v3559, %v3573
      %v3577 = vlaneseq
      %v3578 = vshrl.u32 %v3577, 7
      %v3579 = vsub.s32 0, %v3578
      %v3580 = vrot.slane %v3547, %v3579
      %v3582 = vmul.f32 %v3574, %v3580
      %v3583 = vmul.f32 %v3575, %v3580
      %v3585 = vlaneseq
      %v3586 = vshrl.u32 %v3585, 7
      %v3587 = vsub.s32 0, %v3586
      %v3588 = vrot.slane %v3549, %v3587
      %v3590 = vadd.f32 %v3582, %v3588
      %v3591 = vadd.f32 %v3583, %v3588
      %s3592 = scalar_lea.vmem %s25, 128
      %v3593 = vld [vmem:[%s3592] sm:$0xff]
      %v3594 = vld [vmem:[%s3592 + $0x8] sm:$0xff]
      %v3595 = vld [vmem:[%s3592 + $0x10] sm:$0xff]
      %v3596 = vld [vmem:[%s3592 + $0x18] sm:$0xff]
      %v3597 = vld [vmem:[%s3592 + $0x20] sm:$0xff]
      %v3598 = vld [vmem:[%s3592 + $0x28] sm:$0xff]
      %v3599 = vld [vmem:[%s3592 + $0x30] sm:$0xff]
      %v3600 = vld [vmem:[%s3592 + $0x38] sm:$0xff]
      %v3601 = vpack.c.bf16 %v3591, %v3590
      %s3602 = scalar_lea.vmem %s27, 4
      %v3603 = vld [vmem:[%s3602] sm:$0x3]
      %v3605 = vlaneseq
      %v3606 = vshrl.u32 %v3605, 7
      %v3607 = vsub.s32 0, %v3606
      %v3608 = vrot.slane %v3603, %v3607
      %v3609 = vlaneseq
      %v3610 = vshrl.u32 %v3609, 7
      %v3611 = vsub.s32 1, %v3610
      %v3612 = vrot.slane %v3603, %v3611
      %v3623 = vunpack.c.l.b16 %v3593
      %v3624 = vunpack.c.h.b16 %v3593
      %v3625 = vunpack.c.l.b16 %v3594
      %v3626 = vunpack.c.h.b16 %v3594
      %v3627 = vunpack.c.l.b16 %v3595
      %v3628 = vunpack.c.h.b16 %v3595
      %v3629 = vunpack.c.l.b16 %v3596
      %v3630 = vunpack.c.h.b16 %v3596
      %v3631 = vunpack.c.l.b16 %v3597
      %v3632 = vunpack.c.h.b16 %v3597
      %v3633 = vunpack.c.l.b16 %v3598
      %v3634 = vunpack.c.h.b16 %v3598
      %v3635 = vunpack.c.l.b16 %v3599
      %v3636 = vunpack.c.h.b16 %v3599
      %v3637 = vunpack.c.l.b16 %v3600
      %v3638 = vunpack.c.h.b16 %v3600
      %v3639 = vpack.c.b16 %v3625, %v3623
      %v3640 = vpack.c.b16 %v3626, %v3624
      %v3641 = vpack.c.b16 %v3629, %v3627
      %v3642 = vpack.c.b16 %v3630, %v3628
      %v3643 = vpack.c.b16 %v3633, %v3631
      %v3644 = vpack.c.b16 %v3634, %v3632
      %v3645 = vpack.c.b16 %v3637, %v3635
      %v3646 = vpack.c.b16 %v3638, %v3636
      %v3656 = vsel %vm1285, %v3601, 0
      %3658 = vmatprep.subr.bf16.mxu0 %v3640
      %3659 = vmatpush1.bf16.msra.mxu0 %v3639
      %3660 = vmatprep.subr.bf16.mxu0 %v3642
      %3661 = vmatpush1.bf16.msra.mxu0 %v3641
      %3662 = vmatprep.subr.bf16.mxu0 %v3644
      %3663 = vmatpush1.bf16.msra.mxu0 %v3643
      %3664 = vmatprep.subr.bf16.mxu0 %v3646
      %3665 = vmatpush1.bf16.msra.mxu0 %v3645
      %3666 = vmatprep.subr.bf16.mxu0 0
      %3667 = vmatpush1.bf16.msra.mxu0 0
      %3668 = vmatprep.subr.bf16.mxu0 0
      %3669 = vmatpush1.bf16.msra.mxu0 0
      %3670 = vmatprep.subr.bf16.mxu0 0
      %3671 = vmatpush1.bf16.msra.mxu0 0
      %3672 = vmatprep.subr.bf16.mxu0 0
      %3673 = vmatpush1.bf16.msra.mxu0 0
      %3674 = vmatprep.subr.bf16.mxu0 0
      %3675 = vmatpush1.bf16.msra.mxu0 0
      %3676 = vmatprep.subr.bf16.mxu0 0
      %3677 = vmatpush1.bf16.msra.mxu0 0
      %3678 = vmatprep.subr.bf16.mxu0 0
      %3679 = vmatpush1.bf16.msra.mxu0 0
      %3680 = vmatprep.subr.bf16.mxu0 0
      %3681 = vmatpush1.bf16.msra.mxu0 0
      %3682 = vmatprep.subr.bf16.mxu0 0
      %3683 = vmatpush1.bf16.msra.mxu0 0
      %3684 = vmatprep.subr.bf16.mxu0 0
      %3685 = vmatpush1.bf16.msra.mxu0 0
      %3686 = vmatprep.subr.bf16.mxu0 0
      %3687 = vmatpush1.bf16.msra.mxu0 0
      %3688 = vmatprep.subr.bf16.mxu0 0
      %3689 = vmatpush1.bf16.msra.mxu0 0
      %3690 = vmatprep.mubr.bf16.mxu0 0
      %3691 = vmatmul.mubr.bf16.gmra.mrb[0].mxu0 %v3656
      %v3692 = vpop.f32.mrb[0].mxu0
      %v3693 = vadd.f32 %v3608, %v3692
      %v3694 = vpop.f32.mrb[0].mxu0
      %v3695 = vadd.f32 %v3612, %v3694
      %v3696 = vpop.f32.mrb[0].mxu0
      %v3697 = vadd.f32 %v3608, %v3696
      %v3698 = vpop.f32.mrb[0].mxu0
      %v3699 = vadd.f32 %v3612, %v3698
      %3700 = vdwg.mxu0
      %v3701 = vmul.f32 %v3693, 0.5
      %v3702 = vmul.f32 %v3695, 0.5
      %v3703 = vmul.f32 %v3697, 0.5
      %v3704 = vmul.f32 %v3699, 0.5
      %v3705 = vmul.f32 %v3693, 0.70710677
      %v3706 = vmul.f32 %v3695, 0.70710677
      %v3707 = vmul.f32 %v3697, 0.70710677
      %v3708 = vmul.f32 %v3699, 0.70710677
      %v3709 = verf.f32.pop %v3705
      %v3710 = verf.f32.pop %v3706
      %v3711 = verf.f32.pop %v3707
      %v3712 = verf.f32.pop %v3708
      %v3713 = vadd.f32 %v3709, 1.0
      %v3714 = vadd.f32 %v3710, 1.0
      %v3715 = vadd.f32 %v3711, 1.0
      %v3716 = vadd.f32 %v3712, 1.0
      %v3717 = vmul.f32 %v3701, %v3713
      %v3718 = vmul.f32 %v3702, %v3714
      %v3719 = vmul.f32 %v3703, %v3715
      %v3720 = vmul.f32 %v3704, %v3716
      %s3721 = scalar_lea.vmem %s29, 256
      %v3722 = vld [vmem:[%s3721] sm:$0xf]
      %v3723 = vld [vmem:[%s3721 + $0x4] sm:$0xf]
      %v3724 = vld [vmem:[%s3721 + $0x8] sm:$0xf]
      %v3725 = vld [vmem:[%s3721 + $0xc] sm:$0xf]
      %v3726 = vld [vmem:[%s3721 + $0x10] sm:$0xf]
      %v3727 = vld [vmem:[%s3721 + $0x14] sm:$0xf]
      %v3728 = vld [vmem:[%s3721 + $0x18] sm:$0xf]
      %v3729 = vld [vmem:[%s3721 + $0x1c] sm:$0xf]
      %v3730 = vld [vmem:[%s3721 + $0x20] sm:$0xf]
      %v3731 = vld [vmem:[%s3721 + $0x24] sm:$0xf]
      %v3732 = vld [vmem:[%s3721 + $0x28] sm:$0xf]
      %v3733 = vld [vmem:[%s3721 + $0x2c] sm:$0xf]
      %v3734 = vld [vmem:[%s3721 + $0x30] sm:$0xf]
      %v3735 = vld [vmem:[%s3721 + $0x34] sm:$0xf]
      %v3736 = vld [vmem:[%s3721 + $0x38] sm:$0xf]
      %v3737 = vld [vmem:[%s3721 + $0x3c] sm:$0xf]
      %v3738 = vld [vmem:[%s3721 + $0x40] sm:$0xf]
      %v3739 = vld [vmem:[%s3721 + $0x44] sm:$0xf]
      %v3740 = vld [vmem:[%s3721 + $0x48] sm:$0xf]
      %v3741 = vld [vmem:[%s3721 + $0x4c] sm:$0xf]
      %v3742 = vld [vmem:[%s3721 + $0x50] sm:$0xf]
      %v3743 = vld [vmem:[%s3721 + $0x54] sm:$0xf]
      %v3744 = vld [vmem:[%s3721 + $0x58] sm:$0xf]
      %v3745 = vld [vmem:[%s3721 + $0x5c] sm:$0xf]
      %v3746 = vld [vmem:[%s3721 + $0x60] sm:$0xf]
      %v3747 = vld [vmem:[%s3721 + $0x64] sm:$0xf]
      %v3748 = vld [vmem:[%s3721 + $0x68] sm:$0xf]
      %v3749 = vld [vmem:[%s3721 + $0x6c] sm:$0xf]
      %v3750 = vld [vmem:[%s3721 + $0x70] sm:$0xf]
      %v3751 = vld [vmem:[%s3721 + $0x74] sm:$0xf]
      %v3752 = vld [vmem:[%s3721 + $0x78] sm:$0xf]
      %v3753 = vld [vmem:[%s3721 + $0x7c] sm:$0xf]
      %v3754 = vpack.c.bf16 %v3719, %v3717
      %v3755 = vpack.c.bf16 %v3720, %v3718
      %v3788 = vunpack.c.l.b16 %v3722
      %v3789 = vunpack.c.l.b16 %v3723
      %v3790 = vunpack.c.l.b16 %v3724
      %v3791 = vunpack.c.l.b16 %v3725
      %v3792 = vunpack.c.l.b16 %v3726
      %v3793 = vunpack.c.l.b16 %v3727
      %v3794 = vunpack.c.l.b16 %v3728
      %v3795 = vunpack.c.l.b16 %v3729
      %v3796 = vunpack.c.l.b16 %v3730
      %v3797 = vunpack.c.l.b16 %v3731
      %v3798 = vunpack.c.l.b16 %v3732
      %v3799 = vunpack.c.l.b16 %v3733
      %v3800 = vunpack.c.l.b16 %v3734
      %v3801 = vunpack.c.l.b16 %v3735
      %v3802 = vunpack.c.l.b16 %v3736
      %v3803 = vunpack.c.l.b16 %v3737
      %v3804 = vunpack.c.l.b16 %v3738
      %v3805 = vunpack.c.l.b16 %v3739
      %v3806 = vunpack.c.l.b16 %v3740
      %v3807 = vunpack.c.l.b16 %v3741
      %v3808 = vunpack.c.l.b16 %v3742
      %v3809 = vunpack.c.l.b16 %v3743
      %v3810 = vunpack.c.l.b16 %v3744
      %v3811 = vunpack.c.l.b16 %v3745
      %v3812 = vunpack.c.l.b16 %v3746
      %v3813 = vunpack.c.l.b16 %v3747
      %v3814 = vunpack.c.l.b16 %v3748
      %v3815 = vunpack.c.l.b16 %v3749
      %v3816 = vunpack.c.l.b16 %v3750
      %v3817 = vunpack.c.l.b16 %v3751
      %v3818 = vunpack.c.l.b16 %v3752
      %v3819 = vunpack.c.l.b16 %v3753
      %v3820 = vpack.c.b16 %v3789, %v3788
      %v3821 = vpack.c.b16 %v3791, %v3790
      %v3822 = vpack.c.b16 %v3793, %v3792
      %v3823 = vpack.c.b16 %v3795, %v3794
      %v3824 = vpack.c.b16 %v3797, %v3796
      %v3825 = vpack.c.b16 %v3799, %v3798
      %v3826 = vpack.c.b16 %v3801, %v3800
      %v3827 = vpack.c.b16 %v3803, %v3802
      %v3828 = vpack.c.b16 %v3805, %v3804
      %v3829 = vpack.c.b16 %v3807, %v3806
      %v3830 = vpack.c.b16 %v3809, %v3808
      %v3831 = vpack.c.b16 %v3811, %v3810
      %v3832 = vpack.c.b16 %v3813, %v3812
      %v3833 = vpack.c.b16 %v3815, %v3814
      %v3834 = vpack.c.b16 %v3817, %v3816
      %v3835 = vpack.c.b16 %v3819, %v3818
      %3852 = vmatprep.subr.bf16.mxu0 0
      %3853 = vmatpush1.bf16.msra.mxu0 %v3820
      %3854 = vmatprep.subr.bf16.mxu0 0
      %3855 = vmatpush1.bf16.msra.mxu0 %v3821
      %3856 = vmatprep.subr.bf16.mxu0 0
      %3857 = vmatpush1.bf16.msra.mxu0 %v3822
      %3858 = vmatprep.subr.bf16.mxu0 0
      %3859 = vmatpush1.bf16.msra.mxu0 %v3823
      %3860 = vmatprep.subr.bf16.mxu0 0
      %3861 = vmatpush1.bf16.msra.mxu0 %v3824
      %3862 = vmatprep.subr.bf16.mxu0 0
      %3863 = vmatpush1.bf16.msra.mxu0 %v3825
      %3864 = vmatprep.subr.bf16.mxu0 0
      %3865 = vmatpush1.bf16.msra.mxu0 %v3826
      %3866 = vmatprep.subr.bf16.mxu0 0
      %3867 = vmatpush1.bf16.msra.mxu0 %v3827
      %3868 = vmatprep.subr.bf16.mxu0 0
      %3869 = vmatpush1.bf16.msra.mxu0 %v3828
      %3870 = vmatprep.subr.bf16.mxu0 0
      %3871 = vmatpush1.bf16.msra.mxu0 %v3829
      %3872 = vmatprep.subr.bf16.mxu0 0
      %3873 = vmatpush1.bf16.msra.mxu0 %v3830
      %3874 = vmatprep.subr.bf16.mxu0 0
      %3875 = vmatpush1.bf16.msra.mxu0 %v3831
      %3876 = vmatprep.subr.bf16.mxu0 0
      %3877 = vmatpush1.bf16.msra.mxu0 %v3832
      %3878 = vmatprep.subr.bf16.mxu0 0
      %3879 = vmatpush1.bf16.msra.mxu0 %v3833
      %3880 = vmatprep.subr.bf16.mxu0 0
      %3881 = vmatpush1.bf16.msra.mxu0 %v3834
      %3882 = vmatprep.subr.bf16.mxu0 0
      %3883 = vmatpush1.bf16.msra.mxu0 %v3835
      %3884 = vmatprep.mubr.bf16.mxu0 %v3755
      %3885 = vmatmul.mubr.bf16.gmra.mrb[0].mxu0 %v3754
      %v3886 = vpop.f32.mrb[0].mxu0
      %v3887 = vadd.f32 0.0, %v3886
      %v3888 = vpop.f32.mrb[0].mxu0
      %v3889 = vpop.f32.mrb[0].mxu0
      %v3890 = vadd.f32 0.0, %v3889
      %v3891 = vpop.f32.mrb[0].mxu0
      %3892 = vdwg.mxu0
      %v3893 = vadd.f32 %v3544, %v3887
      %v3894 = vadd.f32 %v3545, %v3890
      %s3895 = scalar_lea.vmem %s31, 2
      %v3896 = vld [vmem:[%s3895] sm:$0x1]
      %v3898 = vlaneseq
      %v3899 = vshrl.u32 %v3898, 7
      %v3900 = vsub.s32 0, %v3899
      %v3901 = vrot.slane %v3896, %v3900
      %v3903 = vadd.f32 %v3893, %v3901
      %v3904 = vadd.f32 %v3894, %v3901
      %v3905 = vld [vmem:[%s33] sm:$0xff]
      %v3906 = vld [vmem:[%s33 + $0x8] sm:$0xff]
      %v3907 = vld [vmem:[%s33 + $0x10] sm:$0xff]
      %v3908 = vld [vmem:[%s33 + $0x18] sm:$0xff]
      %v3909 = vld [vmem:[%s33 + $0x20] sm:$0xff]
      %v3910 = vld [vmem:[%s33 + $0x28] sm:$0xff]
      %v3911 = vld [vmem:[%s33 + $0x30] sm:$0xff]
      %v3912 = vld [vmem:[%s33 + $0x38] sm:$0xff]
      %v3913 = vpack.c.bf16 %v3904, %v3903
      %v3922 = vunpack.c.l.b16 %v3905
      %v3923 = vunpack.c.h.b16 %v3905
      %v3924 = vunpack.c.l.b16 %v3906
      %v3925 = vunpack.c.h.b16 %v3906
      %v3926 = vunpack.c.l.b16 %v3907
      %v3927 = vunpack.c.h.b16 %v3907
      %v3928 = vunpack.c.l.b16 %v3908
      %v3929 = vunpack.c.h.b16 %v3908
      %v3930 = vunpack.c.l.b16 %v3909
      %v3931 = vunpack.c.h.b16 %v3909
      %v3932 = vunpack.c.l.b16 %v3910
      %v3933 = vunpack.c.h.b16 %v3910
      %v3934 = vunpack.c.l.b16 %v3911
      %v3935 = vunpack.c.h.b16 %v3911
      %v3936 = vunpack.c.l.b16 %v3912
      %v3937 = vunpack.c.h.b16 %v3912
      %v3938 = vpack.c.b16 %v3924, %v3922
      %v3939 = vpack.c.b16 %v3925, %v3923
      %v3940 = vpack.c.b16 %v3928, %v3926
      %v3941 = vpack.c.b16 %v3929, %v3927
      %v3942 = vpack.c.b16 %v3932, %v3930
      %v3943 = vpack.c.b16 %v3933, %v3931
      %v3944 = vpack.c.b16 %v3936, %v3934
      %v3945 = vpack.c.b16 %v3937, %v3935
      %v3955 = vsel %vm1285, %v3913, 0
      %3957 = vmatprep.subr.bf16.mxu0 %v3939
      %3958 = vmatpush1.bf16.msra.mxu0 %v3938
      %3959 = vmatprep.subr.bf16.mxu0 %v3941
      %3960 = vmatpush1.bf16.msra.mxu0 %v3940
      %3961 = vmatprep.subr.bf16.mxu0 %v3943
      %3962 = vmatpush1.bf16.msra.mxu0 %v3942
      %3963 = vmatprep.subr.bf16.mxu0 %v3945
      %3964 = vmatpush1.bf16.msra.mxu0 %v3944
      %3965 = vmatprep.subr.bf16.mxu0 0
      %3966 = vmatpush1.bf16.msra.mxu0 0
      %3967 = vmatprep.subr.bf16.mxu0 0
      %3968 = vmatpush1.bf16.msra.mxu0 0
      %3969 = vmatprep.subr.bf16.mxu0 0
      %3970 = vmatpush1.bf16.msra.mxu0 0
      %3971 = vmatprep.subr.bf16.mxu0 0
      %3972 = vmatpush1.bf16.msra.mxu0 0
      %3973 = vmatprep.subr.bf16.mxu0 0
      %3974 = vmatpush1.bf16.msra.mxu0 0
      %3975 = vmatprep.subr.bf16.mxu0 0
      %3976 = vmatpush1.bf16.msra.mxu0 0
      %3977 = vmatprep.subr.bf16.mxu0 0
      %3978 = vmatpush1.bf16.msra.mxu0 0
      %3979 = vmatprep.subr.bf16.mxu0 0
      %3980 = vmatpush1.bf16.msra.mxu0 0
      %3981 = vmatprep.subr.bf16.mxu0 0
      %3982 = vmatpush1.bf16.msra.mxu0 0
      %3983 = vmatprep.subr.bf16.mxu0 0
      %3984 = vmatpush1.bf16.msra.mxu0 0
      %3985 = vmatprep.subr.bf16.mxu0 0
      %3986 = vmatpush1.bf16.msra.mxu0 0
      %3987 = vmatprep.subr.bf16.mxu0 0
      %3988 = vmatpush1.bf16.msra.mxu0 0
      %3989 = vmatprep.mubr.bf16.mxu0 0
      %3990 = vmatmul.mubr.bf16.gmra.mrb[0].mxu0 %v3955
      %v3991 = vpop.f32.mrb[0].mxu0
      %v3992 = vadd.f32 0.0, %v3991
      %v3993 = vpop.f32.mrb[0].mxu0
      %v3994 = vadd.f32 0.0, %v3993
      %v3995 = vpop.f32.mrb[0].mxu0
      %v3996 = vadd.f32 0.0, %v3995
      %v3997 = vpop.f32.mrb[0].mxu0
      %v3998 = vadd.f32 0.0, %v3997
      %3999 = vdwg.mxu0
      %v4000 = vld [vmem:[%s35] sm:$0x3]
      %v4001 = vld [vmem:[%s37] sm:$0x3]
      %v4002 = vadd.f32 %v3992, %v3994
      %4003 = vadd.xlane.f32.xlu0 %v4002
      %v4004 = vpop.xlane.xlu0 %4003
      %v4005 = vadd.f32 %v3996, %v3998
      %4006 = vadd.xlane.f32.xlu0 %v4005
      %v4007 = vpop.xlane.xlu0 %4006
      %v4008 = vrcp.pop 256.0
      %v4009 = vmul.f32 %v4004, %v4008
      %v4010 = vmul.f32 %v4007, %v4008
      %v4011 = vsub.f32 %v3992, %v4009
      %v4012 = vsub.f32 %v3994, %v4009
      %v4013 = vsub.f32 %v3996, %v4010
      %v4014 = vsub.f32 %v3998, %v4010
      %v4015 = vmul.f32 %v4011, %v4011
      %v4016 = vmul.f32 %v4012, %v4012
      %v4017 = vmul.f32 %v4013, %v4013
      %v4018 = vmul.f32 %v4014, %v4014
      %v4019 = vadd.f32 %v4015, %v4016
      %4020 = vadd.xlane.f32.xlu0 %v4019
      %v4021 = vpop.xlane.xlu0 %4020
      %v4022 = vadd.f32 %v4017, %v4018
      %4023 = vadd.xlane.f32.xlu0 %v4022
      %v4024 = vpop.xlane.xlu0 %4023
      %v4025 = vmul.f32 %v4021, %v4008
      %v4026 = vmul.f32 %v4024, %v4008
      %v4027 = vadd.f32 %v4025, 1e-06
      %v4028 = vadd.f32 %v4026, 1e-06
      %v4029 = vrsqrt.pop %v4027
      %v4030 = vrsqrt.pop %v4028
      %v4031 = vmul.f32 %v4011, %v4029
      %v4032 = vmul.f32 %v4012, %v4029
      %v4033 = vmul.f32 %v4013, %v4030
      %v4034 = vmul.f32 %v4014, %v4030
      %v4036 = vlaneseq
      %v4037 = vshrl.u32 %v4036, 7
      %v4038 = vsub.s32 0, %v4037
      %v4039 = vrot.slane %v4000, %v4038
      %v4040 = vlaneseq
      %v4041 = vshrl.u32 %v4040, 7
      %v4042 = vsub.s32 1, %v4041
      %v4043 = vrot.slane %v4000, %v4042
      %v4046 = vmul.f32 %v4031, %v4039
      %v4047 = vmul.f32 %v4032, %v4043
      %v4048 = vmul.f32 %v4033, %v4039
      %v4049 = vmul.f32 %v4034, %v4043
      %v4051 = vlaneseq
      %v4052 = vshrl.u32 %v4051, 7
      %v4053 = vsub.s32 0, %v4052
      %v4054 = vrot.slane %v4001, %v4053
      %v4055 = vlaneseq
      %v4056 = vshrl.u32 %v4055, 7
      %v4057 = vsub.s32 1, %v4056
      %v4058 = vrot.slane %v4001, %v4057
      %v4061 = vadd.f32 %v4046, %v4054
      %v4062 = vadd.f32 %v4047, %v4058
      %v4063 = vadd.f32 %v4048, %v4054
      %v4064 = vadd.f32 %v4049, %v4058
      %v4065 = vld [vmem:[%s39] sm:$0xf]
      %v4066 = vld [vmem:[%s39 + $0x4] sm:$0xf]
      %v4067 = vld [vmem:[%s39 + $0x8] sm:$0xf]
      %v4068 = vld [vmem:[%s39 + $0xc] sm:$0xf]
      %v4069 = vld [vmem:[%s39 + $0x10] sm:$0xf]
      %v4070 = vld [vmem:[%s39 + $0x14] sm:$0xf]
      %v4071 = vld [vmem:[%s39 + $0x18] sm:$0xf]
      %v4072 = vld [vmem:[%s39 + $0x1c] sm:$0xf]
      %v4073 = vld [vmem:[%s39 + $0x20] sm:$0xf]
      %v4074 = vld [vmem:[%s39 + $0x24] sm:$0xf]
      %v4075 = vld [vmem:[%s39 + $0x28] sm:$0xf]
      %v4076 = vld [vmem:[%s39 + $0x2c] sm:$0xf]
      %v4077 = vld [vmem:[%s39 + $0x30] sm:$0xf]
      %v4078 = vld [vmem:[%s39 + $0x34] sm:$0xf]
      %v4079 = vld [vmem:[%s39 + $0x38] sm:$0xf]
      %v4080 = vld [vmem:[%s39 + $0x3c] sm:$0xf]
      %v4081 = vld [vmem:[%s39 + $0x40] sm:$0xf]
      %v4082 = vld [vmem:[%s39 + $0x44] sm:$0xf]
      %v4083 = vpack.c.bf16 %v4063, %v4061
      %v4084 = vpack.c.bf16 %v4064, %v4062
      %v4103 = vunpack.c.l.b16 %v4065
      %v4104 = vunpack.c.l.b16 %v4066
      %v4105 = vunpack.c.l.b16 %v4067
      %v4106 = vunpack.c.l.b16 %v4068
      %v4107 = vunpack.c.l.b16 %v4069
      %v4108 = vunpack.c.l.b16 %v4070
      %v4109 = vunpack.c.l.b16 %v4071
      %v4110 = vunpack.c.l.b16 %v4072
      %v4111 = vunpack.c.l.b16 %v4073
      %v4112 = vunpack.c.l.b16 %v4074
      %v4113 = vunpack.c.l.b16 %v4075
      %v4114 = vunpack.c.l.b16 %v4076
      %v4115 = vunpack.c.l.b16 %v4077
      %v4116 = vunpack.c.l.b16 %v4078
      %v4117 = vunpack.c.l.b16 %v4079
      %v4118 = vunpack.c.l.b16 %v4080
      %v4119 = vunpack.c.l.b16 %v4081
      %v4120 = vunpack.c.l.b16 %v4082
      %v4121 = vpack.c.b16 %v4104, %v4103
      %v4122 = vpack.c.b16 %v4106, %v4105
      %v4123 = vpack.c.b16 %v4108, %v4107
      %v4124 = vpack.c.b16 %v4110, %v4109
      %v4125 = vpack.c.b16 %v4112, %v4111
      %v4126 = vpack.c.b16 %v4114, %v4113
      %v4127 = vpack.c.b16 %v4116, %v4115
      %v4128 = vpack.c.b16 %v4118, %v4117
      %v4129 = vpack.c.b16 %v4120, %v4119
      %v4131 = vsel %vm1540, %v4121, 0
      %v4134 = vsel %vm1540, %v4122, 0
      %v4137 = vsel %vm1540, %v4123, 0
      %v4140 = vsel %vm1540, %v4124, 0
      %v4143 = vsel %vm1540, %v4125, 0
      %v4146 = vsel %vm1540, %v4126, 0
      %v4149 = vsel %vm1540, %v4127, 0
      %v4152 = vsel %vm1540, %v4128, 0
      %v4155 = vsel %vm1540, %v4129, 0
      %4157 = vmatprep.subr.bf16.mxu0 %v4084
      %4158 = vmatpush1.bf16.msra.mxu0 %v4083
      %4159 = vmatprep.subr.bf16.mxu0 0
      %4160 = vmatpush1.bf16.msra.mxu0 0
      %4161 = vmatprep.subr.bf16.mxu0 0
      %4162 = vmatpush1.bf16.msra.mxu0 0
      %4163 = vmatprep.subr.bf16.mxu0 0
      %4164 = vmatpush1.bf16.msra.mxu0 0
      %4165 = vmatprep.subr.bf16.mxu0 0
      %4166 = vmatpush1.bf16.msra.mxu0 0
      %4167 = vmatprep.subr.bf16.mxu0 0
      %4168 = vmatpush1.bf16.msra.mxu0 0
      %4169 = vmatprep.subr.bf16.mxu0 0
      %4170 = vmatpush1.bf16.msra.mxu0 0
      %4171 = vmatprep.subr.bf16.mxu0 0
      %4172 = vmatpush1.bf16.msra.mxu0 0
      %4173 = vmatprep.subr.bf16.mxu0 0
      %4174 = vmatpush1.bf16.msra.mxu0 0
      %4175 = vmatprep.subr.bf16.mxu0 0
      %4176 = vmatpush1.bf16.msra.mxu0 0
      %4177 = vmatprep.subr.bf16.mxu0 0
      %4178 = vmatpush1.bf16.msra.mxu0 0
      %4179 = vmatprep.subr.bf16.mxu0 0
      %4180 = vmatpush1.bf16.msra.mxu0 0
      %4181 = vmatprep.subr.bf16.mxu0 0
      %4182 = vmatpush1.bf16.msra.mxu0 0
      %4183 = vmatprep.subr.bf16.mxu0 0
      %4184 = vmatpush1.bf16.msra.mxu0 0
      %4185 = vmatprep.subr.bf16.mxu0 0
      %4186 = vmatpush1.bf16.msra.mxu0 0
      %4187 = vmatprep.subr.bf16.mxu0 0
      %4188 = vmatpush1.bf16.msra.mxu0 0
      %4189 = vmatprep.mubr.bf16.mxu0 0
      %4190 = vmatmul.mubr.bf16.gmra.mrb[0].mxu0 %v4131
      %v4191 = vpop.f32.mrb[0].mxu0
      %v4192 = vadd.f32 0.0, %v4191
      %v4193 = vpop.f32.mrb[0].mxu0
      %v4194 = vadd.f32 0.0, %v4193
      %v4195 = vpop.f32.mrb[0].mxu0
      %v4196 = vadd.f32 0.0, %v4195
      %v4197 = vpop.f32.mrb[0].mxu0
      %v4198 = vadd.f32 0.0, %v4197
      %4199 = vmatprep.mubr.bf16.mxu0 0
      %4200 = vmatmul.mubr.bf16.gmra.mrb[0].mxu0 %v4134
      %v4201 = vpop.f32.mrb[0].mxu0
      %v4202 = vadd.f32 0.0, %v4201
      %v4203 = vpop.f32.mrb[0].mxu0
      %v4204 = vadd.f32 0.0, %v4203
      %v4205 = vpop.f32.mrb[0].mxu0
      %v4206 = vadd.f32 0.0, %v4205
      %v4207 = vpop.f32.mrb[0].mxu0
      %v4208 = vadd.f32 0.0, %v4207
      %4209 = vmatprep.mubr.bf16.mxu0 0
      %4210 = vmatmul.mubr.bf16.gmra.mrb[0].mxu0 %v4137
      %v4211 = vpop.f32.mrb[0].mxu0
      %v4212 = vadd.f32 0.0, %v4211
      %v4213 = vpop.f32.mrb[0].mxu0
      %v4214 = vadd.f32 0.0, %v4213
      %v4215 = vpop.f32.mrb[0].mxu0
      %v4216 = vadd.f32 0.0, %v4215
      %v4217 = vpop.f32.mrb[0].mxu0
      %v4218 = vadd.f32 0.0, %v4217
      %4219 = vmatprep.mubr.bf16.mxu0 0
      %4220 = vmatmul.mubr.bf16.gmra.mrb[0].mxu0 %v4140
      %v4221 = vpop.f32.mrb[0].mxu0
      %v4222 = vadd.f32 0.0, %v4221
      %v4223 = vpop.f32.mrb[0].mxu0
      %v4224 = vadd.f32 0.0, %v4223
      %v4225 = vpop.f32.mrb[0].mxu0
      %v4226 = vadd.f32 0.0, %v4225
      %v4227 = vpop.f32.mrb[0].mxu0
      %v4228 = vadd.f32 0.0, %v4227
      %4229 = vmatprep.mubr.bf16.mxu0 0
      %4230 = vmatmul.mubr.bf16.gmra.mrb[0].mxu0 %v4143
      %v4231 = vpop.f32.mrb[0].mxu0
      %v4232 = vadd.f32 0.0, %v4231
      %v4233 = vpop.f32.mrb[0].mxu0
      %v4234 = vadd.f32 0.0, %v4233
      %v4235 = vpop.f32.mrb[0].mxu0
      %v4236 = vadd.f32 0.0, %v4235
      %v4237 = vpop.f32.mrb[0].mxu0
      %v4238 = vadd.f32 0.0, %v4237
      %4239 = vmatprep.mubr.bf16.mxu0 0
      %4240 = vmatmul.mubr.bf16.gmra.mrb[0].mxu0 %v4146
      %v4241 = vpop.f32.mrb[0].mxu0
      %v4242 = vadd.f32 0.0, %v4241
      %v4243 = vpop.f32.mrb[0].mxu0
      %v4244 = vadd.f32 0.0, %v4243
      %v4245 = vpop.f32.mrb[0].mxu0
      %v4246 = vadd.f32 0.0, %v4245
      %v4247 = vpop.f32.mrb[0].mxu0
      %v4248 = vadd.f32 0.0, %v4247
      %4249 = vmatprep.mubr.bf16.mxu0 0
      %4250 = vmatmul.mubr.bf16.gmra.mrb[0].mxu0 %v4149
      %v4251 = vpop.f32.mrb[0].mxu0
      %v4252 = vadd.f32 0.0, %v4251
      %v4253 = vpop.f32.mrb[0].mxu0
      %v4254 = vadd.f32 0.0, %v4253
      %v4255 = vpop.f32.mrb[0].mxu0
      %v4256 = vadd.f32 0.0, %v4255
      %v4257 = vpop.f32.mrb[0].mxu0
      %v4258 = vadd.f32 0.0, %v4257
      %4259 = vmatprep.mubr.bf16.mxu0 0
      %4260 = vmatmul.mubr.bf16.gmra.mrb[0].mxu0 %v4152
      %v4261 = vpop.f32.mrb[0].mxu0
      %v4262 = vadd.f32 0.0, %v4261
      %v4263 = vpop.f32.mrb[0].mxu0
      %v4264 = vadd.f32 0.0, %v4263
      %v4265 = vpop.f32.mrb[0].mxu0
      %v4266 = vadd.f32 0.0, %v4265
      %v4267 = vpop.f32.mrb[0].mxu0
      %v4268 = vadd.f32 0.0, %v4267
      %4269 = vmatprep.mubr.bf16.mxu0 0
      %4270 = vmatmul.mubr.bf16.gmra.mrb[0].mxu0 %v4155
      %v4271 = vpop.f32.mrb[0].mxu0
      %v4272 = vadd.f32 0.0, %v4271
      %v4273 = vpop.f32.mrb[0].mxu0
      %v4274 = vadd.f32 0.0, %v4273
      %v4275 = vpop.f32.mrb[0].mxu0
      %v4276 = vadd.f32 0.0, %v4275
      %v4277 = vpop.f32.mrb[0].mxu0
      %v4278 = vadd.f32 0.0, %v4277
      %4279 = vdwg.mxu0
      %v4280 = vld [vmem:[%s41] sm:$0xff]
      %v4281 = vld [vmem:[%s41 + $0x8] sm:$0xff]
      %v4282 = vld [vmem:[%s41 + $0x10] sm:$0xff]
      %v4283 = vld [vmem:[%s41 + $0x18] sm:$0xff]
      %v4284 = vld [vmem:[%s41 + $0x20] sm:$0xff]
      %v4285 = vld [vmem:[%s41 + $0x28] sm:$0xff]
      %v4286 = vld [vmem:[%s41 + $0x30] sm:$0xff]
      %v4287 = vld [vmem:[%s41 + $0x38] sm:$0xff]
      %v4288 = vld [vmem:[%s41 + $0x40] sm:$0xff]
      %v4289 = vld [vmem:[%s41 + $0x48] sm:$0xff]
      %v4290 = vld [vmem:[%s41 + $0x50] sm:$0xff]
      %v4291 = vld [vmem:[%s41 + $0x58] sm:$0xff]
      %v4292 = vld [vmem:[%s41 + $0x60] sm:$0xff]
      %v4293 = vld [vmem:[%s41 + $0x68] sm:$0xff]
      %v4294 = vld [vmem:[%s41 + $0x70] sm:$0xff]
      %v4295 = vld [vmem:[%s41 + $0x78] sm:$0xff]
      %v4296 = vld [vmem:[%s41 + $0x80] sm:$0xff]
      %v4297 = vld [vmem:[%s41 + $0x88] sm:$0xff]
      %v4298 = vld [vmem:[%s41 + $0x90] sm:$0xff]
      %v4299 = vld [vmem:[%s41 + $0x98] sm:$0xff]
      %v4300 = vld [vmem:[%s41 + $0xa0] sm:$0xff]
      %v4301 = vld [vmem:[%s41 + $0xa8] sm:$0xff]
      %v4302 = vld [vmem:[%s41 + $0xb0] sm:$0xff]
      %v4303 = vld [vmem:[%s41 + $0xb8] sm:$0xff]
      %v4304 = vld [vmem:[%s41 + $0xc0] sm:$0xff]
      %v4305 = vld [vmem:[%s41 + $0xc8] sm:$0xff]
      %v4306 = vld [vmem:[%s41 + $0xd0] sm:$0xff]
      %v4307 = vld [vmem:[%s41 + $0xd8] sm:$0xff]
      %v4308 = vld [vmem:[%s41 + $0xe0] sm:$0xff]
      %v4309 = vld [vmem:[%s41 + $0xe8] sm:$0xff]
      %v4310 = vld [vmem:[%s41 + $0xf0] sm:$0xff]
      %v4311 = vld [vmem:[%s41 + $0xf8] sm:$0xff]
      %v4312 = vld [vmem:[%s41 + $0x100] sm:$0xff]
      %v4313 = vld [vmem:[%s41 + $0x108] sm:$0xff]
      %v4314 = vld [vmem:[%s41 + $0x110] sm:$0xff]
      %v4315 = vld [vmem:[%s41 + $0x118] sm:$0xff]
      %v4316 = vld [vmem:[%s41 + $0x120] sm:$0xff]
      %v4317 = vld [vmem:[%s41 + $0x128] sm:$0xff]
      %v4318 = vld [vmem:[%s41 + $0x130] sm:$0xff]
      %v4319 = vld [vmem:[%s41 + $0x138] sm:$0xff]
      %v4320 = vld [vmem:[%s41 + $0x140] sm:$0xff]
      %v4321 = vld [vmem:[%s41 + $0x148] sm:$0xff]
      %v4322 = vld [vmem:[%s41 + $0x150] sm:$0xff]
      %v4323 = vld [vmem:[%s41 + $0x158] sm:$0xff]
      %v4324 = vld [vmem:[%s41 + $0x160] sm:$0xff]
      %v4325 = vld [vmem:[%s41 + $0x168] sm:$0xff]
      %v4326 = vld [vmem:[%s41 + $0x170] sm:$0xff]
      %v4327 = vld [vmem:[%s41 + $0x178] sm:$0xff]
      %v4328 = vld [vmem:[%s41 + $0x180] sm:$0xff]
      %v4329 = vld [vmem:[%s41 + $0x188] sm:$0xff]
      %v4330 = vld [vmem:[%s41 + $0x190] sm:$0xff]
      %v4331 = vld [vmem:[%s41 + $0x198] sm:$0xff]
      %v4332 = vld [vmem:[%s41 + $0x1a0] sm:$0xff]
      %v4333 = vld [vmem:[%s41 + $0x1a8] sm:$0xff]
      %v4334 = vld [vmem:[%s41 + $0x1b0] sm:$0xff]
      %v4335 = vld [vmem:[%s41 + $0x1b8] sm:$0xff]
      %v4336 = vld [vmem:[%s41 + $0x1c0] sm:$0xff]
      %v4337 = vld [vmem:[%s41 + $0x1c8] sm:$0xff]
      %v4338 = vld [vmem:[%s41 + $0x1d0] sm:$0xff]
      %v4339 = vld [vmem:[%s41 + $0x1d8] sm:$0xff]
      %v4340 = vld [vmem:[%s41 + $0x1e0] sm:$0xff]
      %v4341 = vld [vmem:[%s41 + $0x1e8] sm:$0xff]
      %v4342 = vld [vmem:[%s41 + $0x1f0] sm:$0xff]
      %v4343 = vld [vmem:[%s41 + $0x1f8] sm:$0xff]
      %v4344 = vld [vmem:[%s41 + $0x200] sm:$0xff]
      %v4345 = vld [vmem:[%s41 + $0x208] sm:$0xff]
      %v4346 = vld [vmem:[%s41 + $0x210] sm:$0xff]
      %v4347 = vld [vmem:[%s41 + $0x218] sm:$0xff]
      %v4348 = vld [vmem:[%s41 + $0x220] sm:$0xff]
      %v4349 = vld [vmem:[%s41 + $0x228] sm:$0xff]
      %v4350 = vld [vmem:[%s41 + $0x230] sm:$0xff]
      %v4351 = vld [vmem:[%s41 + $0x238] sm:$0xff]
      %v4352 = vld [vmem:[%s41 + $0x240] sm:$0xff]
      %v4353 = vld [vmem:[%s41 + $0x248] sm:$0xff]
      %v4354 = vld [vmem:[%s41 + $0x250] sm:$0xff]
      %v4355 = vld [vmem:[%s41 + $0x258] sm:$0xff]
      %v4356 = vld [vmem:[%s41 + $0x260] sm:$0xff]
      %v4357 = vld [vmem:[%s41 + $0x268] sm:$0xff]
      %v4358 = vld [vmem:[%s41 + $0x270] sm:$0xff]
      %v4359 = vld [vmem:[%s41 + $0x278] sm:$0xff]
      %v4360 = vld [vmem:[%s41 + $0x280] sm:$0xff]
      %v4361 = vld [vmem:[%s41 + $0x288] sm:$0xff]
      %v4362 = vld [vmem:[%s41 + $0x290] sm:$0xff]
      %v4363 = vld [vmem:[%s41 + $0x298] sm:$0xff]
      %v4364 = vld [vmem:[%s41 + $0x2a0] sm:$0xff]
      %v4365 = vld [vmem:[%s41 + $0x2a8] sm:$0xff]
      %v4366 = vld [vmem:[%s41 + $0x2b0] sm:$0xff]
      %v4367 = vld [vmem:[%s41 + $0x2b8] sm:$0xff]
      %v4368 = vld [vmem:[%s41 + $0x2c0] sm:$0xff]
      %v4369 = vld [vmem:[%s41 + $0x2c8] sm:$0xff]
      %v4370 = vld [vmem:[%s41 + $0x2d0] sm:$0xff]
      %v4371 = vld [vmem:[%s41 + $0x2d8] sm:$0xff]
      %v4372 = vld [vmem:[%s41 + $0x2e0] sm:$0xff]
      %v4373 = vld [vmem:[%s41 + $0x2e8] sm:$0xff]
      %v4374 = vld [vmem:[%s41 + $0x2f0] sm:$0xff]
      %v4375 = vld [vmem:[%s41 + $0x2f8] sm:$0xff]
      %v4376 = vld [vmem:[%s41 + $0x300] sm:$0xff]
      %v4377 = vld [vmem:[%s41 + $0x308] sm:$0xff]
      %v4378 = vld [vmem:[%s41 + $0x310] sm:$0xff]
      %v4379 = vld [vmem:[%s41 + $0x318] sm:$0xff]
      %v4380 = vld [vmem:[%s41 + $0x320] sm:$0xff]
      %v4381 = vld [vmem:[%s41 + $0x328] sm:$0xff]
      %v4382 = vld [vmem:[%s41 + $0x330] sm:$0xff]
      %v4383 = vld [vmem:[%s41 + $0x338] sm:$0xff]
      %v4384 = vld [vmem:[%s41 + $0x340] sm:$0xff]
      %v4385 = vld [vmem:[%s41 + $0x348] sm:$0xff]
      %v4386 = vld [vmem:[%s41 + $0x350] sm:$0xff]
      %v4387 = vld [vmem:[%s41 + $0x358] sm:$0xff]
      %v4388 = vld [vmem:[%s41 + $0x360] sm:$0xff]
      %v4389 = vld [vmem:[%s41 + $0x368] sm:$0xff]
      %v4390 = vld [vmem:[%s41 + $0x370] sm:$0xff]
      %v4391 = vld [vmem:[%s41 + $0x378] sm:$0xff]
      %v4392 = vld [vmem:[%s41 + $0x380] sm:$0xff]
      %v4393 = vld [vmem:[%s41 + $0x388] sm:$0xff]
      %v4394 = vld [vmem:[%s41 + $0x390] sm:$0xff]
      %v4395 = vld [vmem:[%s41 + $0x398] sm:$0xff]
      %v4396 = vld [vmem:[%s41 + $0x3a0] sm:$0xff]
      %v4397 = vld [vmem:[%s41 + $0x3a8] sm:$0xff]
      %v4398 = vld [vmem:[%s41 + $0x3b0] sm:$0xff]
      %v4399 = vld [vmem:[%s41 + $0x3b8] sm:$0xff]
      %v4400 = vld [vmem:[%s41 + $0x3c0] sm:$0xff]
      %v4401 = vld [vmem:[%s41 + $0x3c8] sm:$0xff]
      %v4402 = vld [vmem:[%s41 + $0x3d0] sm:$0xff]
      %v4403 = vld [vmem:[%s41 + $0x3d8] sm:$0xff]
      %v4404 = vld [vmem:[%s41 + $0x3e0] sm:$0xff]
      %v4405 = vld [vmem:[%s41 + $0x3e8] sm:$0xff]
      %v4406 = vld [vmem:[%s41 + $0x3f0] sm:$0xff]
      %v4407 = vld [vmem:[%s41 + $0x3f8] sm:$0xff]
      %v4408 = vld [vmem:[%s41 + $0x400] sm:$0xff]
      %v4409 = vld [vmem:[%s41 + $0x408] sm:$0xff]
      %v4410 = vld [vmem:[%s41 + $0x410] sm:$0xff]
      %v4411 = vld [vmem:[%s41 + $0x418] sm:$0xff]
      %v4412 = vld [vmem:[%s41 + $0x420] sm:$0xff]
      %v4413 = vld [vmem:[%s41 + $0x428] sm:$0xff]
      %v4414 = vld [vmem:[%s41 + $0x430] sm:$0xff]
      %v4415 = vld [vmem:[%s41 + $0x438] sm:$0xff]
      %v4416 = vld [vmem:[%s41 + $0x440] sm:$0xff]
      %v4417 = vld [vmem:[%s41 + $0x448] sm:$0xff]
      %v4418 = vld [vmem:[%s41 + $0x450] sm:$0xff]
      %v4419 = vld [vmem:[%s41 + $0x458] sm:$0xff]
      %v4420 = vld [vmem:[%s41 + $0x460] sm:$0xff]
      %v4421 = vld [vmem:[%s41 + $0x468] sm:$0xff]
      %v4422 = vld [vmem:[%s41 + $0x470] sm:$0xff]
      %v4423 = vld [vmem:[%s41 + $0x478] sm:$0xff]
      %v4424 = vld [vmem:[%s41 + $0x480] sm:$0xff]
      %v4425 = vld [vmem:[%s41 + $0x488] sm:$0xff]
      %v4426 = vld [vmem:[%s41 + $0x490] sm:$0xff]
      %v4427 = vld [vmem:[%s41 + $0x498] sm:$0xff]
      %v4428 = vld [vmem:[%s41 + $0x4a0] sm:$0xff]
      %v4429 = vld [vmem:[%s41 + $0x4a8] sm:$0xff]
      %v4430 = vld [vmem:[%s41 + $0x4b0] sm:$0xff]
      %v4431 = vld [vmem:[%s41 + $0x4b8] sm:$0xff]
      %v4432 = vld [vmem:[%s41 + $0x4c0] sm:$0xff]
      %v4433 = vld [vmem:[%s41 + $0x4c8] sm:$0xff]
      %v4434 = vld [vmem:[%s41 + $0x4d0] sm:$0xff]
      %v4435 = vld [vmem:[%s41 + $0x4d8] sm:$0xff]
      %v4436 = vld [vmem:[%s41 + $0x4e0] sm:$0xff]
      %v4437 = vld [vmem:[%s41 + $0x4e8] sm:$0xff]
      %v4438 = vld [vmem:[%s41 + $0x4f0] sm:$0xff]
      %v4439 = vld [vmem:[%s41 + $0x4f8] sm:$0xff]
      %v4440 = vld [vmem:[%s41 + $0x500] sm:$0xff]
      %v4441 = vld [vmem:[%s41 + $0x508] sm:$0xff]
      %v4442 = vld [vmem:[%s41 + $0x510] sm:$0xff]
      %v4443 = vld [vmem:[%s41 + $0x518] sm:$0xff]
      %v4444 = vld [vmem:[%s41 + $0x520] sm:$0xff]
      %v4445 = vld [vmem:[%s41 + $0x528] sm:$0xff]
      %v4446 = vld [vmem:[%s41 + $0x530] sm:$0xff]
      %v4447 = vld [vmem:[%s41 + $0x538] sm:$0xff]
      %v4448 = vld [vmem:[%s41 + $0x540] sm:$0xff]
      %v4449 = vld [vmem:[%s41 + $0x548] sm:$0xff]
      %v4450 = vld [vmem:[%s41 + $0x550] sm:$0xff]
      %v4451 = vld [vmem:[%s41 + $0x558] sm:$0xff]
      %v4452 = vld [vmem:[%s41 + $0x560] sm:$0xff]
      %v4453 = vld [vmem:[%s41 + $0x568] sm:$0xff]
      %v4454 = vld [vmem:[%s41 + $0x570] sm:$0xff]
      %v4455 = vld [vmem:[%s41 + $0x578] sm:$0xff]
      %v4456 = vld [vmem:[%s41 + $0x580] sm:$0xff]
      %v4457 = vld [vmem:[%s41 + $0x588] sm:$0xff]
      %v4458 = vld [vmem:[%s41 + $0x590] sm:$0xff]
      %v4459 = vld [vmem:[%s41 + $0x598] sm:$0xff]
      %v4460 = vld [vmem:[%s41 + $0x5a0] sm:$0xff]
      %v4461 = vld [vmem:[%s41 + $0x5a8] sm:$0xff]
      %v4462 = vld [vmem:[%s41 + $0x5b0] sm:$0xff]
      %v4463 = vld [vmem:[%s41 + $0x5b8] sm:$0xff]
      %v4464 = vld [vmem:[%s41 + $0x5c0] sm:$0xff]
      %v4465 = vld [vmem:[%s41 + $0x5c8] sm:$0xff]
      %v4466 = vld [vmem:[%s41 + $0x5d0] sm:$0xff]
      %v4467 = vld [vmem:[%s41 + $0x5d8] sm:$0xff]
      %v4468 = vld [vmem:[%s41 + $0x5e0] sm:$0xff]
      %v4469 = vld [vmem:[%s41 + $0x5e8] sm:$0xff]
      %v4470 = vld [vmem:[%s41 + $0x5f0] sm:$0xff]
      %v4471 = vld [vmem:[%s41 + $0x5f8] sm:$0xff]
      %v4472 = vld [vmem:[%s41 + $0x600] sm:$0xff]
      %v4473 = vld [vmem:[%s41 + $0x608] sm:$0xff]
      %v4474 = vld [vmem:[%s41 + $0x610] sm:$0xff]
      %v4475 = vld [vmem:[%s41 + $0x618] sm:$0xff]
      %v4476 = vld [vmem:[%s41 + $0x620] sm:$0xff]
      %v4477 = vld [vmem:[%s41 + $0x628] sm:$0xff]
      %v4478 = vld [vmem:[%s41 + $0x630] sm:$0xff]
      %v4479 = vld [vmem:[%s41 + $0x638] sm:$0xff]
      %v4480 = vld [vmem:[%s41 + $0x640] sm:$0xff]
      %v4481 = vld [vmem:[%s41 + $0x648] sm:$0xff]
      %v4482 = vld [vmem:[%s41 + $0x650] sm:$0xff]
      %v4483 = vld [vmem:[%s41 + $0x658] sm:$0xff]
      %v4484 = vld [vmem:[%s41 + $0x660] sm:$0xff]
      %v4485 = vld [vmem:[%s41 + $0x668] sm:$0xff]
      %v4486 = vld [vmem:[%s41 + $0x670] sm:$0xff]
      %v4487 = vld [vmem:[%s41 + $0x678] sm:$0xff]
      %v4488 = vld [vmem:[%s41 + $0x680] sm:$0xff]
      %v4489 = vld [vmem:[%s41 + $0x688] sm:$0xff]
      %v4490 = vld [vmem:[%s41 + $0x690] sm:$0xff]
      %v4491 = vld [vmem:[%s41 + $0x698] sm:$0xff]
      %v4492 = vld [vmem:[%s41 + $0x6a0] sm:$0xff]
      %v4493 = vld [vmem:[%s41 + $0x6a8] sm:$0xff]
      %v4494 = vld [vmem:[%s41 + $0x6b0] sm:$0xff]
      %v4495 = vld [vmem:[%s41 + $0x6b8] sm:$0xff]
      %v4496 = vld [vmem:[%s41 + $0x6c0] sm:$0xff]
      %v4497 = vld [vmem:[%s41 + $0x6c8] sm:$0xff]
      %v4498 = vld [vmem:[%s41 + $0x6d0] sm:$0xff]
      %v4499 = vld [vmem:[%s41 + $0x6d8] sm:$0xff]
      %v4500 = vld [vmem:[%s41 + $0x6e0] sm:$0xff]
      %v4501 = vld [vmem:[%s41 + $0x6e8] sm:$0xff]
      %v4502 = vld [vmem:[%s41 + $0x6f0] sm:$0xff]
      %v4503 = vld [vmem:[%s41 + $0x6f8] sm:$0xff]
      %v4504 = vld [vmem:[%s41 + $0x700] sm:$0xff]
      %v4505 = vld [vmem:[%s41 + $0x708] sm:$0xff]
      %v4506 = vld [vmem:[%s41 + $0x710] sm:$0xff]
      %v4507 = vld [vmem:[%s41 + $0x718] sm:$0xff]
      %v4508 = vld [vmem:[%s41 + $0x720] sm:$0xff]
      %v4509 = vld [vmem:[%s41 + $0x728] sm:$0xff]
      %v4510 = vld [vmem:[%s41 + $0x730] sm:$0xff]
      %v4511 = vld [vmem:[%s41 + $0x738] sm:$0xff]
      %v4512 = vld [vmem:[%s41 + $0x740] sm:$0xff]
      %v4513 = vld [vmem:[%s41 + $0x748] sm:$0xff]
      %v4514 = vld [vmem:[%s41 + $0x750] sm:$0xff]
      %v4515 = vld [vmem:[%s41 + $0x758] sm:$0xff]
      %v4516 = vld [vmem:[%s41 + $0x760] sm:$0xff]
      %v4517 = vld [vmem:[%s41 + $0x768] sm:$0xff]
      %v4518 = vld [vmem:[%s41 + $0x770] sm:$0xff]
      %v4519 = vld [vmem:[%s41 + $0x778] sm:$0xff]
      %v4520 = vld [vmem:[%s41 + $0x780] sm:$0xff]
      %v4521 = vld [vmem:[%s41 + $0x788] sm:$0xff]
      %v4522 = vld [vmem:[%s41 + $0x790] sm:$0xff]
      %v4523 = vld [vmem:[%s41 + $0x798] sm:$0xff]
      %v4524 = vld [vmem:[%s41 + $0x7a0] sm:$0xff]
      %v4525 = vld [vmem:[%s41 + $0x7a8] sm:$0xff]
      %v4526 = vld [vmem:[%s41 + $0x7b0] sm:$0xff]
      %v4527 = vld [vmem:[%s41 + $0x7b8] sm:$0xff]
      %v4528 = vld [vmem:[%s41 + $0x7c0] sm:$0xff]
      %v4529 = vld [vmem:[%s41 + $0x7c8] sm:$0xff]
      %v4530 = vld [vmem:[%s41 + $0x7d0] sm:$0xff]
      %v4531 = vld [vmem:[%s41 + $0x7d8] sm:$0xff]
      %v4532 = vld [vmem:[%s41 + $0x7e0] sm:$0xff]
      %v4533 = vld [vmem:[%s41 + $0x7e8] sm:$0xff]
      %v4534 = vld [vmem:[%s41 + $0x7f0] sm:$0xff]
      %v4535 = vld [vmem:[%s41 + $0x7f8] sm:$0xff]
      %v4536 = vld [vmem:[%s41 + $0x800] sm:$0xff]
      %v4537 = vld [vmem:[%s41 + $0x808] sm:$0xff]
      %v4538 = vld [vmem:[%s41 + $0x810] sm:$0xff]
      %v4539 = vld [vmem:[%s41 + $0x818] sm:$0xff]
      %v4540 = vld [vmem:[%s41 + $0x820] sm:$0xff]
      %v4541 = vld [vmem:[%s41 + $0x828] sm:$0xff]
      %v4542 = vld [vmem:[%s41 + $0x830] sm:$0xff]
      %v4543 = vld [vmem:[%s41 + $0x838] sm:$0xff]
      %v4544 = vld [vmem:[%s41 + $0x840] sm:$0xff]
      %v4545 = vld [vmem:[%s41 + $0x848] sm:$0xff]
      %v4546 = vld [vmem:[%s41 + $0x850] sm:$0xff]
      %v4547 = vld [vmem:[%s41 + $0x858] sm:$0xff]
      %v4548 = vld [vmem:[%s41 + $0x860] sm:$0xff]
      %v4549 = vld [vmem:[%s41 + $0x868] sm:$0xff]
      %v4550 = vld [vmem:[%s41 + $0x870] sm:$0xff]
      %v4551 = vld [vmem:[%s41 + $0x878] sm:$0xff]
      %v4552 = vld [vmem:[%s41 + $0x880] sm:$0xff]
      %v4553 = vld [vmem:[%s41 + $0x888] sm:$0xff]
      %v4554 = vld [vmem:[%s41 + $0x890] sm:$0xff]
      %v4555 = vld [vmem:[%s41 + $0x898] sm:$0xff]
      %v4556 = vld [vmem:[%s41 + $0x8a0] sm:$0xff]
      %v4557 = vld [vmem:[%s41 + $0x8a8] sm:$0xff]
      %v4558 = vld [vmem:[%s41 + $0x8b0] sm:$0xff]
      %v4559 = vld [vmem:[%s41 + $0x8b8] sm:$0xff]
      %v4560 = vld [vmem:[%s41 + $0x8c0] sm:$0xff]
      %v4561 = vld [vmem:[%s41 + $0x8c8] sm:$0xff]
      %v4562 = vld [vmem:[%s41 + $0x8d0] sm:$0xff]
      %v4563 = vld [vmem:[%s41 + $0x8d8] sm:$0xff]
      %v4564 = vld [vmem:[%s41 + $0x8e0] sm:$0xff]
      %v4565 = vld [vmem:[%s41 + $0x8e8] sm:$0xff]
      %v4566 = vld [vmem:[%s41 + $0x8f0] sm:$0xff]
      %v4567 = vld [vmem:[%s41 + $0x8f8] sm:$0xff]
      %v4568 = vpack.c.bf16 %v4196, %v4192
      %v4569 = vpack.c.bf16 %v4198, %v4194
      %v4570 = vpack.c.bf16 %v4206, %v4202
      %v4571 = vpack.c.bf16 %v4208, %v4204
      %v4572 = vpack.c.bf16 %v4216, %v4212
      %v4573 = vpack.c.bf16 %v4218, %v4214
      %v4574 = vpack.c.bf16 %v4226, %v4222
      %v4575 = vpack.c.bf16 %v4228, %v4224
      %v4576 = vpack.c.bf16 %v4236, %v4232
      %v4577 = vpack.c.bf16 %v4238, %v4234
      %v4578 = vpack.c.bf16 %v4246, %v4242
      %v4579 = vpack.c.bf16 %v4248, %v4244
      %v4580 = vpack.c.bf16 %v4256, %v4252
      %v4581 = vpack.c.bf16 %v4258, %v4254
      %v4582 = vpack.c.bf16 %v4266, %v4262
      %v4583 = vpack.c.bf16 %v4268, %v4264
      %v4584 = vpack.c.bf16 %v4276, %v4272
      %v4585 = vpack.c.bf16 %v4278, %v4274
      %v4874 = vunpack.c.l.b16 %v4280
      %v4875 = vunpack.c.h.b16 %v4280
      %v4876 = vunpack.c.l.b16 %v4281
      %v4877 = vunpack.c.h.b16 %v4281
      %v4878 = vunpack.c.l.b16 %v4282
      %v4879 = vunpack.c.h.b16 %v4282
      %v4880 = vunpack.c.l.b16 %v4283
      %v4881 = vunpack.c.h.b16 %v4283
      %v4882 = vunpack.c.l.b16 %v4284
      %v4883 = vunpack.c.h.b16 %v4284
      %v4884 = vunpack.c.l.b16 %v4285
      %v4885 = vunpack.c.h.b16 %v4285
      %v4886 = vunpack.c.l.b16 %v4286
      %v4887 = vunpack.c.h.b16 %v4286
      %v4888 = vunpack.c.l.b16 %v4287
      %v4889 = vunpack.c.h.b16 %v4287
      %v4890 = vunpack.c.l.b16 %v4288
      %v4891 = vunpack.c.h.b16 %v4288
      %v4892 = vunpack.c.l.b16 %v4289
      %v4893 = vunpack.c.h.b16 %v4289
      %v4894 = vunpack.c.l.b16 %v4290
      %v4895 = vunpack.c.h.b16 %v4290
      %v4896 = vunpack.c.l.b16 %v4291
      %v4897 = vunpack.c.h.b16 %v4291
      %v4898 = vunpack.c.l.b16 %v4292
      %v4899 = vunpack.c.h.b16 %v4292
      %v4900 = vunpack.c.l.b16 %v4293
      %v4901 = vunpack.c.h.b16 %v4293
      %v4902 = vunpack.c.l.b16 %v4294
      %v4903 = vunpack.c.h.b16 %v4294
      %v4904 = vunpack.c.l.b16 %v4295
      %v4905 = vunpack.c.h.b16 %v4295
      %v4906 = vunpack.c.l.b16 %v4296
      %v4907 = vunpack.c.h.b16 %v4296
      %v4908 = vunpack.c.l.b16 %v4297
      %v4909 = vunpack.c.h.b16 %v4297
      %v4910 = vunpack.c.l.b16 %v4298
      %v4911 = vunpack.c.h.b16 %v4298
      %v4912 = vunpack.c.l.b16 %v4299
      %v4913 = vunpack.c.h.b16 %v4299
      %v4914 = vunpack.c.l.b16 %v4300
      %v4915 = vunpack.c.h.b16 %v4300
      %v4916 = vunpack.c.l.b16 %v4301
      %v4917 = vunpack.c.h.b16 %v4301
      %v4918 = vunpack.c.l.b16 %v4302
      %v4919 = vunpack.c.h.b16 %v4302
      %v4920 = vunpack.c.l.b16 %v4303
      %v4921 = vunpack.c.h.b16 %v4303
      %v4922 = vunpack.c.l.b16 %v4304
      %v4923 = vunpack.c.h.b16 %v4304
      %v4924 = vunpack.c.l.b16 %v4305
      %v4925 = vunpack.c.h.b16 %v4305
      %v4926 = vunpack.c.l.b16 %v4306
      %v4927 = vunpack.c.h.b16 %v4306
      %v4928 = vunpack.c.l.b16 %v4307
      %v4929 = vunpack.c.h.b16 %v4307
      %v4930 = vunpack.c.l.b16 %v4308
      %v4931 = vunpack.c.h.b16 %v4308
      %v4932 = vunpack.c.l.b16 %v4309
      %v4933 = vunpack.c.h.b16 %v4309
      %v4934 = vunpack.c.l.b16 %v4310
      %v4935 = vunpack.c.h.b16 %v4310
      %v4936 = vunpack.c.l.b16 %v4311
      %v4937 = vunpack.c.h.b16 %v4311
      %v4938 = vunpack.c.l.b16 %v4312
      %v4939 = vunpack.c.h.b16 %v4312
      %v4940 = vunpack.c.l.b16 %v4313
      %v4941 = vunpack.c.h.b16 %v4313
      %v4942 = vunpack.c.l.b16 %v4314
      %v4943 = vunpack.c.h.b16 %v4314
      %v4944 = vunpack.c.l.b16 %v4315
      %v4945 = vunpack.c.h.b16 %v4315
      %v4946 = vunpack.c.l.b16 %v4316
      %v4947 = vunpack.c.h.b16 %v4316
      %v4948 = vunpack.c.l.b16 %v4317
      %v4949 = vunpack.c.h.b16 %v4317
      %v4950 = vunpack.c.l.b16 %v4318
      %v4951 = vunpack.c.h.b16 %v4318
      %v4952 = vunpack.c.l.b16 %v4319
      %v4953 = vunpack.c.h.b16 %v4319
      %v4954 = vunpack.c.l.b16 %v4320
      %v4955 = vunpack.c.h.b16 %v4320
      %v4956 = vunpack.c.l.b16 %v4321
      %v4957 = vunpack.c.h.b16 %v4321
      %v4958 = vunpack.c.l.b16 %v4322
      %v4959 = vunpack.c.h.b16 %v4322
      %v4960 = vunpack.c.l.b16 %v4323
      %v4961 = vunpack.c.h.b16 %v4323
      %v4962 = vunpack.c.l.b16 %v4324
      %v4963 = vunpack.c.h.b16 %v4324
      %v4964 = vunpack.c.l.b16 %v4325
      %v4965 = vunpack.c.h.b16 %v4325
      %v4966 = vunpack.c.l.b16 %v4326
      %v4967 = vunpack.c.h.b16 %v4326
      %v4968 = vunpack.c.l.b16 %v4327
      %v4969 = vunpack.c.h.b16 %v4327
      %v4970 = vunpack.c.l.b16 %v4328
      %v4971 = vunpack.c.h.b16 %v4328
      %v4972 = vunpack.c.l.b16 %v4329
      %v4973 = vunpack.c.h.b16 %v4329
      %v4974 = vunpack.c.l.b16 %v4330
      %v4975 = vunpack.c.h.b16 %v4330
      %v4976 = vunpack.c.l.b16 %v4331
      %v4977 = vunpack.c.h.b16 %v4331
      %v4978 = vunpack.c.l.b16 %v4332
      %v4979 = vunpack.c.h.b16 %v4332
      %v4980 = vunpack.c.l.b16 %v4333
      %v4981 = vunpack.c.h.b16 %v4333
      %v4982 = vunpack.c.l.b16 %v4334
      %v4983 = vunpack.c.h.b16 %v4334
      %v4984 = vunpack.c.l.b16 %v4335
      %v4985 = vunpack.c.h.b16 %v4335
      %v4986 = vunpack.c.l.b16 %v4336
      %v4987 = vunpack.c.h.b16 %v4336
      %v4988 = vunpack.c.l.b16 %v4337
      %v4989 = vunpack.c.h.b16 %v4337
      %v4990 = vunpack.c.l.b16 %v4338
      %v4991 = vunpack.c.h.b16 %v4338
      %v4992 = vunpack.c.l.b16 %v4339
      %v4993 = vunpack.c.h.b16 %v4339
      %v4994 = vunpack.c.l.b16 %v4340
      %v4995 = vunpack.c.h.b16 %v4340
      %v4996 = vunpack.c.l.b16 %v4341
      %v4997 = vunpack.c.h.b16 %v4341
      %v4998 = vunpack.c.l.b16 %v4342
      %v4999 = vunpack.c.h.b16 %v4342
      %v5000 = vunpack.c.l.b16 %v4343
      %v5001 = vunpack.c.h.b16 %v4343
      %v5002 = vunpack.c.l.b16 %v4344
      %v5003 = vunpack.c.h.b16 %v4344
      %v5004 = vunpack.c.l.b16 %v4345
      %v5005 = vunpack.c.h.b16 %v4345
      %v5006 = vunpack.c.l.b16 %v4346
      %v5007 = vunpack.c.h.b16 %v4346
      %v5008 = vunpack.c.l.b16 %v4347
      %v5009 = vunpack.c.h.b16 %v4347
      %v5010 = vunpack.c.l.b16 %v4348
      %v5011 = vunpack.c.h.b16 %v4348
      %v5012 = vunpack.c.l.b16 %v4349
      %v5013 = vunpack.c.h.b16 %v4349
      %v5014 = vunpack.c.l.b16 %v4350
      %v5015 = vunpack.c.h.b16 %v4350
      %v5016 = vunpack.c.l.b16 %v4351
      %v5017 = vunpack.c.h.b16 %v4351
      %v5018 = vunpack.c.l.b16 %v4352
      %v5019 = vunpack.c.h.b16 %v4352
      %v5020 = vunpack.c.l.b16 %v4353
      %v5021 = vunpack.c.h.b16 %v4353
      %v5022 = vunpack.c.l.b16 %v4354
      %v5023 = vunpack.c.h.b16 %v4354
      %v5024 = vunpack.c.l.b16 %v4355
      %v5025 = vunpack.c.h.b16 %v4355
      %v5026 = vunpack.c.l.b16 %v4356
      %v5027 = vunpack.c.h.b16 %v4356
      %v5028 = vunpack.c.l.b16 %v4357
      %v5029 = vunpack.c.h.b16 %v4357
      %v5030 = vunpack.c.l.b16 %v4358
      %v5031 = vunpack.c.h.b16 %v4358
      %v5032 = vunpack.c.l.b16 %v4359
      %v5033 = vunpack.c.h.b16 %v4359
      %v5034 = vunpack.c.l.b16 %v4360
      %v5035 = vunpack.c.h.b16 %v4360
      %v5036 = vunpack.c.l.b16 %v4361
      %v5037 = vunpack.c.h.b16 %v4361
      %v5038 = vunpack.c.l.b16 %v4362
      %v5039 = vunpack.c.h.b16 %v4362
      %v5040 = vunpack.c.l.b16 %v4363
      %v5041 = vunpack.c.h.b16 %v4363
      %v5042 = vunpack.c.l.b16 %v4364
      %v5043 = vunpack.c.h.b16 %v4364
      %v5044 = vunpack.c.l.b16 %v4365
      %v5045 = vunpack.c.h.b16 %v4365
      %v5046 = vunpack.c.l.b16 %v4366
      %v5047 = vunpack.c.h.b16 %v4366
      %v5048 = vunpack.c.l.b16 %v4367
      %v5049 = vunpack.c.h.b16 %v4367
      %v5050 = vunpack.c.l.b16 %v4368
      %v5051 = vunpack.c.h.b16 %v4368
      %v5052 = vunpack.c.l.b16 %v4369
      %v5053 = vunpack.c.h.b16 %v4369
      %v5054 = vunpack.c.l.b16 %v4370
      %v5055 = vunpack.c.h.b16 %v4370
      %v5056 = vunpack.c.l.b16 %v4371
      %v5057 = vunpack.c.h.b16 %v4371
      %v5058 = vunpack.c.l.b16 %v4372
      %v5059 = vunpack.c.h.b16 %v4372
      %v5060 = vunpack.c.l.b16 %v4373
      %v5061 = vunpack.c.h.b16 %v4373
      %v5062 = vunpack.c.l.b16 %v4374
      %v5063 = vunpack.c.h.b16 %v4374
      %v5064 = vunpack.c.l.b16 %v4375
      %v5065 = vunpack.c.h.b16 %v4375
      %v5066 = vunpack.c.l.b16 %v4376
      %v5067 = vunpack.c.h.b16 %v4376
      %v5068 = vunpack.c.l.b16 %v4377
      %v5069 = vunpack.c.h.b16 %v4377
      %v5070 = vunpack.c.l.b16 %v4378
      %v5071 = vunpack.c.h.b16 %v4378
      %v5072 = vunpack.c.l.b16 %v4379
      %v5073 = vunpack.c.h.b16 %v4379
      %v5074 = vunpack.c.l.b16 %v4380
      %v5075 = vunpack.c.h.b16 %v4380
      %v5076 = vunpack.c.l.b16 %v4381
      %v5077 = vunpack.c.h.b16 %v4381
      %v5078 = vunpack.c.l.b16 %v4382
      %v5079 = vunpack.c.h.b16 %v4382
      %v5080 = vunpack.c.l.b16 %v4383
      %v5081 = vunpack.c.h.b16 %v4383
      %v5082 = vunpack.c.l.b16 %v4384
      %v5083 = vunpack.c.h.b16 %v4384
      %v5084 = vunpack.c.l.b16 %v4385
      %v5085 = vunpack.c.h.b16 %v4385
      %v5086 = vunpack.c.l.b16 %v4386
      %v5087 = vunpack.c.h.b16 %v4386
      %v5088 = vunpack.c.l.b16 %v4387
      %v5089 = vunpack.c.h.b16 %v4387
      %v5090 = vunpack.c.l.b16 %v4388
      %v5091 = vunpack.c.h.b16 %v4388
      %v5092 = vunpack.c.l.b16 %v4389
      %v5093 = vunpack.c.h.b16 %v4389
      %v5094 = vunpack.c.l.b16 %v4390
      %v5095 = vunpack.c.h.b16 %v4390
      %v5096 = vunpack.c.l.b16 %v4391
      %v5097 = vunpack.c.h.b16 %v4391
      %v5098 = vunpack.c.l.b16 %v4392
      %v5099 = vunpack.c.h.b16 %v4392
      %v5100 = vunpack.c.l.b16 %v4393
      %v5101 = vunpack.c.h.b16 %v4393
      %v5102 = vunpack.c.l.b16 %v4394
      %v5103 = vunpack.c.h.b16 %v4394
      %v5104 = vunpack.c.l.b16 %v4395
      %v5105 = vunpack.c.h.b16 %v4395
      %v5106 = vunpack.c.l.b16 %v4396
      %v5107 = vunpack.c.h.b16 %v4396
      %v5108 = vunpack.c.l.b16 %v4397
      %v5109 = vunpack.c.h.b16 %v4397
      %v5110 = vunpack.c.l.b16 %v4398
      %v5111 = vunpack.c.h.b16 %v4398
      %v5112 = vunpack.c.l.b16 %v4399
      %v5113 = vunpack.c.h.b16 %v4399
      %v5114 = vunpack.c.l.b16 %v4400
      %v5115 = vunpack.c.h.b16 %v4400
      %v5116 = vunpack.c.l.b16 %v4401
      %v5117 = vunpack.c.h.b16 %v4401
      %v5118 = vunpack.c.l.b16 %v4402
      %v5119 = vunpack.c.h.b16 %v4402
      %v5120 = vunpack.c.l.b16 %v4403
      %v5121 = vunpack.c.h.b16 %v4403
      %v5122 = vunpack.c.l.b16 %v4404
      %v5123 = vunpack.c.h.b16 %v4404
      %v5124 = vunpack.c.l.b16 %v4405
      %v5125 = vunpack.c.h.b16 %v4405
      %v5126 = vunpack.c.l.b16 %v4406
      %v5127 = vunpack.c.h.b16 %v4406
      %v5128 = vunpack.c.l.b16 %v4407
      %v5129 = vunpack.c.h.b16 %v4407
      %v5130 = vunpack.c.l.b16 %v4408
      %v5131 = vunpack.c.h.b16 %v4408
      %v5132 = vunpack.c.l.b16 %v4409
      %v5133 = vunpack.c.h.b16 %v4409
      %v5134 = vunpack.c.l.b16 %v4410
      %v5135 = vunpack.c.h.b16 %v4410
      %v5136 = vunpack.c.l.b16 %v4411
      %v5137 = vunpack.c.h.b16 %v4411
      %v5138 = vunpack.c.l.b16 %v4412
      %v5139 = vunpack.c.h.b16 %v4412
      %v5140 = vunpack.c.l.b16 %v4413
      %v5141 = vunpack.c.h.b16 %v4413
      %v5142 = vunpack.c.l.b16 %v4414
      %v5143 = vunpack.c.h.b16 %v4414
      %v5144 = vunpack.c.l.b16 %v4415
      %v5145 = vunpack.c.h.b16 %v4415
      %v5146 = vunpack.c.l.b16 %v4416
      %v5147 = vunpack.c.h.b16 %v4416
      %v5148 = vunpack.c.l.b16 %v4417
      %v5149 = vunpack.c.h.b16 %v4417
      %v5150 = vunpack.c.l.b16 %v4418
      %v5151 = vunpack.c.h.b16 %v4418
      %v5152 = vunpack.c.l.b16 %v4419
      %v5153 = vunpack.c.h.b16 %v4419
      %v5154 = vunpack.c.l.b16 %v4420
      %v5155 = vunpack.c.h.b16 %v4420
      %v5156 = vunpack.c.l.b16 %v4421
      %v5157 = vunpack.c.h.b16 %v4421
      %v5158 = vunpack.c.l.b16 %v4422
      %v5159 = vunpack.c.h.b16 %v4422
      %v5160 = vunpack.c.l.b16 %v4423
      %v5161 = vunpack.c.h.b16 %v4423
      %v5162 = vunpack.c.l.b16 %v4424
      %v5163 = vunpack.c.h.b16 %v4424
      %v5164 = vunpack.c.l.b16 %v4425
      %v5165 = vunpack.c.h.b16 %v4425
      %v5166 = vunpack.c.l.b16 %v4426
      %v5167 = vunpack.c.h.b16 %v4426
      %v5168 = vunpack.c.l.b16 %v4427
      %v5169 = vunpack.c.h.b16 %v4427
      %v5170 = vunpack.c.l.b16 %v4428
      %v5171 = vunpack.c.h.b16 %v4428
      %v5172 = vunpack.c.l.b16 %v4429
      %v5173 = vunpack.c.h.b16 %v4429
      %v5174 = vunpack.c.l.b16 %v4430
      %v5175 = vunpack.c.h.b16 %v4430
      %v5176 = vunpack.c.l.b16 %v4431
      %v5177 = vunpack.c.h.b16 %v4431
      %v5178 = vunpack.c.l.b16 %v4432
      %v5179 = vunpack.c.h.b16 %v4432
      %v5180 = vunpack.c.l.b16 %v4433
      %v5181 = vunpack.c.h.b16 %v4433
      %v5182 = vunpack.c.l.b16 %v4434
      %v5183 = vunpack.c.h.b16 %v4434
      %v5184 = vunpack.c.l.b16 %v4435
      %v5185 = vunpack.c.h.b16 %v4435
      %v5186 = vunpack.c.l.b16 %v4436
      %v5187 = vunpack.c.h.b16 %v4436
      %v5188 = vunpack.c.l.b16 %v4437
      %v5189 = vunpack.c.h.b16 %v4437
      %v5190 = vunpack.c.l.b16 %v4438
      %v5191 = vunpack.c.h.b16 %v4438
      %v5192 = vunpack.c.l.b16 %v4439
      %v5193 = vunpack.c.h.b16 %v4439
      %v5194 = vunpack.c.l.b16 %v4440
      %v5195 = vunpack.c.h.b16 %v4440
      %v5196 = vunpack.c.l.b16 %v4441
      %v5197 = vunpack.c.h.b16 %v4441
      %v5198 = vunpack.c.l.b16 %v4442
      %v5199 = vunpack.c.h.b16 %v4442
      %v5200 = vunpack.c.l.b16 %v4443
      %v5201 = vunpack.c.h.b16 %v4443
      %v5202 = vunpack.c.l.b16 %v4444
      %v5203 = vunpack.c.h.b16 %v4444
      %v5204 = vunpack.c.l.b16 %v4445
      %v5205 = vunpack.c.h.b16 %v4445
      %v5206 = vunpack.c.l.b16 %v4446
      %v5207 = vunpack.c.h.b16 %v4446
      %v5208 = vunpack.c.l.b16 %v4447
      %v5209 = vunpack.c.h.b16 %v4447
      %v5210 = vunpack.c.l.b16 %v4448
      %v5211 = vunpack.c.h.b16 %v4448
      %v5212 = vunpack.c.l.b16 %v4449
      %v5213 = vunpack.c.h.b16 %v4449
      %v5214 = vunpack.c.l.b16 %v4450
      %v5215 = vunpack.c.h.b16 %v4450
      %v5216 = vunpack.c.l.b16 %v4451
      %v5217 = vunpack.c.h.b16 %v4451
      %v5218 = vunpack.c.l.b16 %v4452
      %v5219 = vunpack.c.h.b16 %v4452
      %v5220 = vunpack.c.l.b16 %v4453
      %v5221 = vunpack.c.h.b16 %v4453
      %v5222 = vunpack.c.l.b16 %v4454
      %v5223 = vunpack.c.h.b16 %v4454
      %v5224 = vunpack.c.l.b16 %v4455
      %v5225 = vunpack.c.h.b16 %v4455
      %v5226 = vunpack.c.l.b16 %v4456
      %v5227 = vunpack.c.h.b16 %v4456
      %v5228 = vunpack.c.l.b16 %v4457
      %v5229 = vunpack.c.h.b16 %v4457
      %v5230 = vunpack.c.l.b16 %v4458
      %v5231 = vunpack.c.h.b16 %v4458
      %v5232 = vunpack.c.l.b16 %v4459
      %v5233 = vunpack.c.h.b16 %v4459
      %v5234 = vunpack.c.l.b16 %v4460
      %v5235 = vunpack.c.h.b16 %v4460
      %v5236 = vunpack.c.l.b16 %v4461
      %v5237 = vunpack.c.h.b16 %v4461
      %v5238 = vunpack.c.l.b16 %v4462
      %v5239 = vunpack.c.h.b16 %v4462
      %v5240 = vunpack.c.l.b16 %v4463
      %v5241 = vunpack.c.h.b16 %v4463
      %v5242 = vunpack.c.l.b16 %v4464
      %v5243 = vunpack.c.h.b16 %v4464
      %v5244 = vunpack.c.l.b16 %v4465
      %v5245 = vunpack.c.h.b16 %v4465
      %v5246 = vunpack.c.l.b16 %v4466
      %v5247 = vunpack.c.h.b16 %v4466
      %v5248 = vunpack.c.l.b16 %v4467
      %v5249 = vunpack.c.h.b16 %v4467
      %v5250 = vunpack.c.l.b16 %v4468
      %v5251 = vunpack.c.h.b16 %v4468
      %v5252 = vunpack.c.l.b16 %v4469
      %v5253 = vunpack.c.h.b16 %v4469
      %v5254 = vunpack.c.l.b16 %v4470
      %v5255 = vunpack.c.h.b16 %v4470
      %v5256 = vunpack.c.l.b16 %v4471
      %v5257 = vunpack.c.h.b16 %v4471
      %v5258 = vunpack.c.l.b16 %v4472
      %v5259 = vunpack.c.h.b16 %v4472
      %v5260 = vunpack.c.l.b16 %v4473
      %v5261 = vunpack.c.h.b16 %v4473
      %v5262 = vunpack.c.l.b16 %v4474
      %v5263 = vunpack.c.h.b16 %v4474
      %v5264 = vunpack.c.l.b16 %v4475
      %v5265 = vunpack.c.h.b16 %v4475
      %v5266 = vunpack.c.l.b16 %v4476
      %v5267 = vunpack.c.h.b16 %v4476
      %v5268 = vunpack.c.l.b16 %v4477
      %v5269 = vunpack.c.h.b16 %v4477
      %v5270 = vunpack.c.l.b16 %v4478
      %v5271 = vunpack.c.h.b16 %v4478
      %v5272 = vunpack.c.l.b16 %v4479
      %v5273 = vunpack.c.h.b16 %v4479
      %v5274 = vunpack.c.l.b16 %v4480
      %v5275 = vunpack.c.h.b16 %v4480
      %v5276 = vunpack.c.l.b16 %v4481
      %v5277 = vunpack.c.h.b16 %v4481
      %v5278 = vunpack.c.l.b16 %v4482
      %v5279 = vunpack.c.h.b16 %v4482
      %v5280 = vunpack.c.l.b16 %v4483
      %v5281 = vunpack.c.h.b16 %v4483
      %v5282 = vunpack.c.l.b16 %v4484
      %v5283 = vunpack.c.h.b16 %v4484
      %v5284 = vunpack.c.l.b16 %v4485
      %v5285 = vunpack.c.h.b16 %v4485
      %v5286 = vunpack.c.l.b16 %v4486
      %v5287 = vunpack.c.h.b16 %v4486
      %v5288 = vunpack.c.l.b16 %v4487
      %v5289 = vunpack.c.h.b16 %v4487
      %v5290 = vunpack.c.l.b16 %v4488
      %v5291 = vunpack.c.h.b16 %v4488
      %v5292 = vunpack.c.l.b16 %v4489
      %v5293 = vunpack.c.h.b16 %v4489
      %v5294 = vunpack.c.l.b16 %v4490
      %v5295 = vunpack.c.h.b16 %v4490
      %v5296 = vunpack.c.l.b16 %v4491
      %v5297 = vunpack.c.h.b16 %v4491
      %v5298 = vunpack.c.l.b16 %v4492
      %v5299 = vunpack.c.h.b16 %v4492
      %v5300 = vunpack.c.l.b16 %v4493
      %v5301 = vunpack.c.h.b16 %v4493
      %v5302 = vunpack.c.l.b16 %v4494
      %v5303 = vunpack.c.h.b16 %v4494
      %v5304 = vunpack.c.l.b16 %v4495
      %v5305 = vunpack.c.h.b16 %v4495
      %v5306 = vunpack.c.l.b16 %v4496
      %v5307 = vunpack.c.h.b16 %v4496
      %v5308 = vunpack.c.l.b16 %v4497
      %v5309 = vunpack.c.h.b16 %v4497
      %v5310 = vunpack.c.l.b16 %v4498
      %v5311 = vunpack.c.h.b16 %v4498
      %v5312 = vunpack.c.l.b16 %v4499
      %v5313 = vunpack.c.h.b16 %v4499
      %v5314 = vunpack.c.l.b16 %v4500
      %v5315 = vunpack.c.h.b16 %v4500
      %v5316 = vunpack.c.l.b16 %v4501
      %v5317 = vunpack.c.h.b16 %v4501
      %v5318 = vunpack.c.l.b16 %v4502
      %v5319 = vunpack.c.h.b16 %v4502
      %v5320 = vunpack.c.l.b16 %v4503
      %v5321 = vunpack.c.h.b16 %v4503
      %v5322 = vunpack.c.l.b16 %v4504
      %v5323 = vunpack.c.h.b16 %v4504
      %v5324 = vunpack.c.l.b16 %v4505
      %v5325 = vunpack.c.h.b16 %v4505
      %v5326 = vunpack.c.l.b16 %v4506
      %v5327 = vunpack.c.h.b16 %v4506
      %v5328 = vunpack.c.l.b16 %v4507
      %v5329 = vunpack.c.h.b16 %v4507
      %v5330 = vunpack.c.l.b16 %v4508
      %v5331 = vunpack.c.h.b16 %v4508
      %v5332 = vunpack.c.l.b16 %v4509
      %v5333 = vunpack.c.h.b16 %v4509
      %v5334 = vunpack.c.l.b16 %v4510
      %v5335 = vunpack.c.h.b16 %v4510
      %v5336 = vunpack.c.l.b16 %v4511
      %v5337 = vunpack.c.h.b16 %v4511
      %v5338 = vunpack.c.l.b16 %v4512
      %v5339 = vunpack.c.h.b16 %v4512
      %v5340 = vunpack.c.l.b16 %v4513
      %v5341 = vunpack.c.h.b16 %v4513
      %v5342 = vunpack.c.l.b16 %v4514
      %v5343 = vunpack.c.h.b16 %v4514
      %v5344 = vunpack.c.l.b16 %v4515
      %v5345 = vunpack.c.h.b16 %v4515
      %v5346 = vunpack.c.l.b16 %v4516
      %v5347 = vunpack.c.h.b16 %v4516
      %v5348 = vunpack.c.l.b16 %v4517
      %v5349 = vunpack.c.h.b16 %v4517
      %v5350 = vunpack.c.l.b16 %v4518
      %v5351 = vunpack.c.h.b16 %v4518
      %v5352 = vunpack.c.l.b16 %v4519
      %v5353 = vunpack.c.h.b16 %v4519
      %v5354 = vunpack.c.l.b16 %v4520
      %v5355 = vunpack.c.h.b16 %v4520
      %v5356 = vunpack.c.l.b16 %v4521
      %v5357 = vunpack.c.h.b16 %v4521
      %v5358 = vunpack.c.l.b16 %v4522
      %v5359 = vunpack.c.h.b16 %v4522
      %v5360 = vunpack.c.l.b16 %v4523
      %v5361 = vunpack.c.h.b16 %v4523
      %v5362 = vunpack.c.l.b16 %v4524
      %v5363 = vunpack.c.h.b16 %v4524
      %v5364 = vunpack.c.l.b16 %v4525
      %v5365 = vunpack.c.h.b16 %v4525
      %v5366 = vunpack.c.l.b16 %v4526
      %v5367 = vunpack.c.h.b16 %v4526
      %v5368 = vunpack.c.l.b16 %v4527
      %v5369 = vunpack.c.h.b16 %v4527
      %v5370 = vunpack.c.l.b16 %v4528
      %v5371 = vunpack.c.h.b16 %v4528
      %v5372 = vunpack.c.l.b16 %v4529
      %v5373 = vunpack.c.h.b16 %v4529
      %v5374 = vunpack.c.l.b16 %v4530
      %v5375 = vunpack.c.h.b16 %v4530
      %v5376 = vunpack.c.l.b16 %v4531
      %v5377 = vunpack.c.h.b16 %v4531
      %v5378 = vunpack.c.l.b16 %v4532
      %v5379 = vunpack.c.h.b16 %v4532
      %v5380 = vunpack.c.l.b16 %v4533
      %v5381 = vunpack.c.h.b16 %v4533
      %v5382 = vunpack.c.l.b16 %v4534
      %v5383 = vunpack.c.h.b16 %v4534
      %v5384 = vunpack.c.l.b16 %v4535
      %v5385 = vunpack.c.h.b16 %v4535
      %v5386 = vunpack.c.l.b16 %v4536
      %v5387 = vunpack.c.h.b16 %v4536
      %v5388 = vunpack.c.l.b16 %v4537
      %v5389 = vunpack.c.h.b16 %v4537
      %v5390 = vunpack.c.l.b16 %v4538
      %v5391 = vunpack.c.h.b16 %v4538
      %v5392 = vunpack.c.l.b16 %v4539
      %v5393 = vunpack.c.h.b16 %v4539
      %v5394 = vunpack.c.l.b16 %v4540
      %v5395 = vunpack.c.h.b16 %v4540
      %v5396 = vunpack.c.l.b16 %v4541
      %v5397 = vunpack.c.h.b16 %v4541
      %v5398 = vunpack.c.l.b16 %v4542
      %v5399 = vunpack.c.h.b16 %v4542
      %v5400 = vunpack.c.l.b16 %v4543
      %v5401 = vunpack.c.h.b16 %v4543
      %v5402 = vunpack.c.l.b16 %v4544
      %v5403 = vunpack.c.h.b16 %v4544
      %v5404 = vunpack.c.l.b16 %v4545
      %v5405 = vunpack.c.h.b16 %v4545
      %v5406 = vunpack.c.l.b16 %v4546
      %v5407 = vunpack.c.h.b16 %v4546
      %v5408 = vunpack.c.l.b16 %v4547
      %v5409 = vunpack.c.h.b16 %v4547
      %v5410 = vunpack.c.l.b16 %v4548
      %v5411 = vunpack.c.h.b16 %v4548
      %v5412 = vunpack.c.l.b16 %v4549
      %v5413 = vunpack.c.h.b16 %v4549
      %v5414 = vunpack.c.l.b16 %v4550
      %v5415 = vunpack.c.h.b16 %v4550
      %v5416 = vunpack.c.l.b16 %v4551
      %v5417 = vunpack.c.h.b16 %v4551
      %v5418 = vunpack.c.l.b16 %v4552
      %v5419 = vunpack.c.h.b16 %v4552
      %v5420 = vunpack.c.l.b16 %v4553
      %v5421 = vunpack.c.h.b16 %v4553
      %v5422 = vunpack.c.l.b16 %v4554
      %v5423 = vunpack.c.h.b16 %v4554
      %v5424 = vunpack.c.l.b16 %v4555
      %v5425 = vunpack.c.h.b16 %v4555
      %v5426 = vunpack.c.l.b16 %v4556
      %v5427 = vunpack.c.h.b16 %v4556
      %v5428 = vunpack.c.l.b16 %v4557
      %v5429 = vunpack.c.h.b16 %v4557
      %v5430 = vunpack.c.l.b16 %v4558
      %v5431 = vunpack.c.h.b16 %v4558
      %v5432 = vunpack.c.l.b16 %v4559
      %v5433 = vunpack.c.h.b16 %v4559
      %v5434 = vunpack.c.l.b16 %v4560
      %v5435 = vunpack.c.h.b16 %v4560
      %v5436 = vunpack.c.l.b16 %v4561
      %v5437 = vunpack.c.h.b16 %v4561
      %v5438 = vunpack.c.l.b16 %v4562
      %v5439 = vunpack.c.h.b16 %v4562
      %v5440 = vunpack.c.l.b16 %v4563
      %v5441 = vunpack.c.h.b16 %v4563
      %v5442 = vunpack.c.l.b16 %v4564
      %v5443 = vunpack.c.h.b16 %v4564
      %v5444 = vunpack.c.l.b16 %v4565
      %v5445 = vunpack.c.h.b16 %v4565
      %v5446 = vunpack.c.l.b16 %v4566
      %v5447 = vunpack.c.h.b16 %v4566
      %v5448 = vunpack.c.l.b16 %v4567
      %v5449 = vunpack.c.h.b16 %v4567
      %v5450 = vpack.c.b16 %v4876, %v4874
      %v5451 = vpack.c.b16 %v4877, %v4875
      %v5452 = vpack.c.b16 %v4880, %v4878
      %v5453 = vpack.c.b16 %v4881, %v4879
      %v5454 = vpack.c.b16 %v4884, %v4882
      %v5455 = vpack.c.b16 %v4885, %v4883
      %v5456 = vpack.c.b16 %v4888, %v4886
      %v5457 = vpack.c.b16 %v4889, %v4887
      %v5458 = vpack.c.b16 %v4892, %v4890
      %v5459 = vpack.c.b16 %v4893, %v4891
      %v5460 = vpack.c.b16 %v4896, %v4894
      %v5461 = vpack.c.b16 %v4897, %v4895
      %v5462 = vpack.c.b16 %v4900, %v4898
      %v5463 = vpack.c.b16 %v4901, %v4899
      %v5464 = vpack.c.b16 %v4904, %v4902
      %v5465 = vpack.c.b16 %v4905, %v4903
      %v5466 = vpack.c.b16 %v4908, %v4906
      %v5467 = vpack.c.b16 %v4909, %v4907
      %v5468 = vpack.c.b16 %v4912, %v4910
      %v5469 = vpack.c.b16 %v4913, %v4911
      %v5470 = vpack.c.b16 %v4916, %v4914
      %v5471 = vpack.c.b16 %v4917, %v4915
      %v5472 = vpack.c.b16 %v4920, %v4918
      %v5473 = vpack.c.b16 %v4921, %v4919
      %v5474 = vpack.c.b16 %v4924, %v4922
      %v5475 = vpack.c.b16 %v4925, %v4923
      %v5476 = vpack.c.b16 %v4928, %v4926
      %v5477 = vpack.c.b16 %v4929, %v4927
      %v5478 = vpack.c.b16 %v4932, %v4930
      %v5479 = vpack.c.b16 %v4933, %v4931
      %v5480 = vpack.c.b16 %v4936, %v4934
      %v5481 = vpack.c.b16 %v4937, %v4935
      %v5482 = vpack.c.b16 %v4940, %v4938
      %v5483 = vpack.c.b16 %v4941, %v4939
      %v5484 = vpack.c.b16 %v4944, %v4942
      %v5485 = vpack.c.b16 %v4945, %v4943
      %v5486 = vpack.c.b16 %v4948, %v4946
      %v5487 = vpack.c.b16 %v4949, %v4947
      %v5488 = vpack.c.b16 %v4952, %v4950
      %v5489 = vpack.c.b16 %v4953, %v4951
      %v5490 = vpack.c.b16 %v4956, %v4954
      %v5491 = vpack.c.b16 %v4957, %v4955
      %v5492 = vpack.c.b16 %v4960, %v4958
      %v5493 = vpack.c.b16 %v4961, %v4959
      %v5494 = vpack.c.b16 %v4964, %v4962
      %v5495 = vpack.c.b16 %v4965, %v4963
      %v5496 = vpack.c.b16 %v4968, %v4966
      %v5497 = vpack.c.b16 %v4969, %v4967
      %v5498 = vpack.c.b16 %v4972, %v4970
      %v5499 = vpack.c.b16 %v4973, %v4971
      %v5500 = vpack.c.b16 %v4976, %v4974
      %v5501 = vpack.c.b16 %v4977, %v4975
      %v5502 = vpack.c.b16 %v4980, %v4978
      %v5503 = vpack.c.b16 %v4981, %v4979
      %v5504 = vpack.c.b16 %v4984, %v4982
      %v5505 = vpack.c.b16 %v4985, %v4983
      %v5506 = vpack.c.b16 %v4988, %v4986
      %v5507 = vpack.c.b16 %v4989, %v4987
      %v5508 = vpack.c.b16 %v4992, %v4990
      %v5509 = vpack.c.b16 %v4993, %v4991
      %v5510 = vpack.c.b16 %v4996, %v4994
      %v5511 = vpack.c.b16 %v4997, %v4995
      %v5512 = vpack.c.b16 %v5000, %v4998
      %v5513 = vpack.c.b16 %v5001, %v4999
      %v5514 = vpack.c.b16 %v5004, %v5002
      %v5515 = vpack.c.b16 %v5005, %v5003
      %v5516 = vpack.c.b16 %v5008, %v5006
      %v5517 = vpack.c.b16 %v5009, %v5007
      %v5518 = vpack.c.b16 %v5012, %v5010
      %v5519 = vpack.c.b16 %v5013, %v5011
      %v5520 = vpack.c.b16 %v5016, %v5014
      %v5521 = vpack.c.b16 %v5017, %v5015
      %v5522 = vpack.c.b16 %v5020, %v5018
      %v5523 = vpack.c.b16 %v5021, %v5019
      %v5524 = vpack.c.b16 %v5024, %v5022
      %v5525 = vpack.c.b16 %v5025, %v5023
      %v5526 = vpack.c.b16 %v5028, %v5026
      %v5527 = vpack.c.b16 %v5029, %v5027
      %v5528 = vpack.c.b16 %v5032, %v5030
      %v5529 = vpack.c.b16 %v5033, %v5031
      %v5530 = vpack.c.b16 %v5036, %v5034
      %v5531 = vpack.c.b16 %v5037, %v5035
      %v5532 = vpack.c.b16 %v5040, %v5038
      %v5533 = vpack.c.b16 %v5041, %v5039
      %v5534 = vpack.c.b16 %v5044, %v5042
      %v5535 = vpack.c.b16 %v5045, %v5043
      %v5536 = vpack.c.b16 %v5048, %v5046
      %v5537 = vpack.c.b16 %v5049, %v5047
      %v5538 = vpack.c.b16 %v5052, %v5050
      %v5539 = vpack.c.b16 %v5053, %v5051
      %v5540 = vpack.c.b16 %v5056, %v5054
      %v5541 = vpack.c.b16 %v5057, %v5055
      %v5542 = vpack.c.b16 %v5060, %v5058
      %v5543 = vpack.c.b16 %v5061, %v5059
      %v5544 = vpack.c.b16 %v5064, %v5062
      %v5545 = vpack.c.b16 %v5065, %v5063
      %v5546 = vpack.c.b16 %v5068, %v5066
      %v5547 = vpack.c.b16 %v5069, %v5067
      %v5548 = vpack.c.b16 %v5072, %v5070
      %v5549 = vpack.c.b16 %v5073, %v5071
      %v5550 = vpack.c.b16 %v5076, %v5074
      %v5551 = vpack.c.b16 %v5077, %v5075
      %v5552 = vpack.c.b16 %v5080, %v5078
      %v5553 = vpack.c.b16 %v5081, %v5079
      %v5554 = vpack.c.b16 %v5084, %v5082
      %v5555 = vpack.c.b16 %v5085, %v5083
      %v5556 = vpack.c.b16 %v5088, %v5086
      %v5557 = vpack.c.b16 %v5089, %v5087
      %v5558 = vpack.c.b16 %v5092, %v5090
      %v5559 = vpack.c.b16 %v5093, %v5091
      %v5560 = vpack.c.b16 %v5096, %v5094
      %v5561 = vpack.c.b16 %v5097, %v5095
      %v5562 = vpack.c.b16 %v5100, %v5098
      %v5563 = vpack.c.b16 %v5101, %v5099
      %v5564 = vpack.c.b16 %v5104, %v5102
      %v5565 = vpack.c.b16 %v5105, %v5103
      %v5566 = vpack.c.b16 %v5108, %v5106
      %v5567 = vpack.c.b16 %v5109, %v5107
      %v5568 = vpack.c.b16 %v5112, %v5110
      %v5569 = vpack.c.b16 %v5113, %v5111
      %v5570 = vpack.c.b16 %v5116, %v5114
      %v5571 = vpack.c.b16 %v5117, %v5115
      %v5572 = vpack.c.b16 %v5120, %v5118
      %v5573 = vpack.c.b16 %v5121, %v5119
      %v5574 = vpack.c.b16 %v5124, %v5122
      %v5575 = vpack.c.b16 %v5125, %v5123
      %v5576 = vpack.c.b16 %v5128, %v5126
      %v5577 = vpack.c.b16 %v5129, %v5127
      %v5578 = vpack.c.b16 %v5132, %v5130
      %v5579 = vpack.c.b16 %v5133, %v5131
      %v5580 = vpack.c.b16 %v5136, %v5134
      %v5581 = vpack.c.b16 %v5137, %v5135
      %v5582 = vpack.c.b16 %v5140, %v5138
      %v5583 = vpack.c.b16 %v5141, %v5139
      %v5584 = vpack.c.b16 %v5144, %v5142
      %v5585 = vpack.c.b16 %v5145, %v5143
      %v5586 = vpack.c.b16 %v5148, %v5146
      %v5587 = vpack.c.b16 %v5149, %v5147
      %v5588 = vpack.c.b16 %v5152, %v5150
      %v5589 = vpack.c.b16 %v5153, %v5151
      %v5590 = vpack.c.b16 %v5156, %v5154
      %v5591 = vpack.c.b16 %v5157, %v5155
      %v5592 = vpack.c.b16 %v5160, %v5158
      %v5593 = vpack.c.b16 %v5161, %v5159
      %v5594 = vpack.c.b16 %v5164, %v5162
      %v5595 = vpack.c.b16 %v5165, %v5163
      %v5596 = vpack.c.b16 %v5168, %v5166
      %v5597 = vpack.c.b16 %v5169, %v5167
      %v5598 = vpack.c.b16 %v5172, %v5170
      %v5599 = vpack.c.b16 %v5173, %v5171
      %v5600 = vpack.c.b16 %v5176, %v5174
      %v5601 = vpack.c.b16 %v5177, %v5175
      %v5602 = vpack.c.b16 %v5180, %v5178
      %v5603 = vpack.c.b16 %v5181, %v5179
      %v5604 = vpack.c.b16 %v5184, %v5182
      %v5605 = vpack.c.b16 %v5185, %v5183
      %v5606 = vpack.c.b16 %v5188, %v5186
      %v5607 = vpack.c.b16 %v5189, %v5187
      %v5608 = vpack.c.b16 %v5192, %v5190
      %v5609 = vpack.c.b16 %v5193, %v5191
      %v5610 = vpack.c.b16 %v5196, %v5194
      %v5611 = vpack.c.b16 %v5197, %v5195
      %v5612 = vpack.c.b16 %v5200, %v5198
      %v5613 = vpack.c.b16 %v5201, %v5199
      %v5614 = vpack.c.b16 %v5204, %v5202
      %v5615 = vpack.c.b16 %v5205, %v5203
      %v5616 = vpack.c.b16 %v5208, %v5206
      %v5617 = vpack.c.b16 %v5209, %v5207
      %v5618 = vpack.c.b16 %v5212, %v5210
      %v5619 = vpack.c.b16 %v5213, %v5211
      %v5620 = vpack.c.b16 %v5216, %v5214
      %v5621 = vpack.c.b16 %v5217, %v5215
      %v5622 = vpack.c.b16 %v5220, %v5218
      %v5623 = vpack.c.b16 %v5221, %v5219
      %v5624 = vpack.c.b16 %v5224, %v5222
      %v5625 = vpack.c.b16 %v5225, %v5223
      %v5626 = vpack.c.b16 %v5228, %v5226
      %v5627 = vpack.c.b16 %v5229, %v5227
      %v5628 = vpack.c.b16 %v5232, %v5230
      %v5629 = vpack.c.b16 %v5233, %v5231
      %v5630 = vpack.c.b16 %v5236, %v5234
      %v5631 = vpack.c.b16 %v5237, %v5235
      %v5632 = vpack.c.b16 %v5240, %v5238
      %v5633 = vpack.c.b16 %v5241, %v5239
      %v5634 = vpack.c.b16 %v5244, %v5242
      %v5635 = vpack.c.b16 %v5245, %v5243
      %v5636 = vpack.c.b16 %v5248, %v5246
      %v5637 = vpack.c.b16 %v5249, %v5247
      %v5638 = vpack.c.b16 %v5252, %v5250
      %v5639 = vpack.c.b16 %v5253, %v5251
      %v5640 = vpack.c.b16 %v5256, %v5254
      %v5641 = vpack.c.b16 %v5257, %v5255
      %v5642 = vpack.c.b16 %v5260, %v5258
      %v5643 = vpack.c.b16 %v5261, %v5259
      %v5644 = vpack.c.b16 %v5264, %v5262
      %v5645 = vpack.c.b16 %v5265, %v5263
      %v5646 = vpack.c.b16 %v5268, %v5266
      %v5647 = vpack.c.b16 %v5269, %v5267
      %v5648 = vpack.c.b16 %v5272, %v5270
      %v5649 = vpack.c.b16 %v5273, %v5271
      %v5650 = vpack.c.b16 %v5276, %v5274
      %v5651 = vpack.c.b16 %v5277, %v5275
      %v5652 = vpack.c.b16 %v5280, %v5278
      %v5653 = vpack.c.b16 %v5281, %v5279
      %v5654 = vpack.c.b16 %v5284, %v5282
      %v5655 = vpack.c.b16 %v5285, %v5283
      %v5656 = vpack.c.b16 %v5288, %v5286
      %v5657 = vpack.c.b16 %v5289, %v5287
      %v5658 = vpack.c.b16 %v5292, %v5290
      %v5659 = vpack.c.b16 %v5293, %v5291
      %v5660 = vpack.c.b16 %v5296, %v5294
      %v5661 = vpack.c.b16 %v5297, %v5295
      %v5662 = vpack.c.b16 %v5300, %v5298
      %v5663 = vpack.c.b16 %v5301, %v5299
      %v5664 = vpack.c.b16 %v5304, %v5302
      %v5665 = vpack.c.b16 %v5305, %v5303
      %v5666 = vpack.c.b16 %v5308, %v5306
      %v5667 = vpack.c.b16 %v5309, %v5307
      %v5668 = vpack.c.b16 %v5312, %v5310
      %v5669 = vpack.c.b16 %v5313, %v5311
      %v5670 = vpack.c.b16 %v5316, %v5314
      %v5671 = vpack.c.b16 %v5317, %v5315
      %v5672 = vpack.c.b16 %v5320, %v5318
      %v5673 = vpack.c.b16 %v5321, %v5319
      %v5674 = vpack.c.b16 %v5324, %v5322
      %v5675 = vpack.c.b16 %v5325, %v5323
      %v5676 = vpack.c.b16 %v5328, %v5326
      %v5677 = vpack.c.b16 %v5329, %v5327
      %v5678 = vpack.c.b16 %v5332, %v5330
      %v5679 = vpack.c.b16 %v5333, %v5331
      %v5680 = vpack.c.b16 %v5336, %v5334
      %v5681 = vpack.c.b16 %v5337, %v5335
      %v5682 = vpack.c.b16 %v5340, %v5338
      %v5683 = vpack.c.b16 %v5341, %v5339
      %v5684 = vpack.c.b16 %v5344, %v5342
      %v5685 = vpack.c.b16 %v5345, %v5343
      %v5686 = vpack.c.b16 %v5348, %v5346
      %v5687 = vpack.c.b16 %v5349, %v5347
      %v5688 = vpack.c.b16 %v5352, %v5350
      %v5689 = vpack.c.b16 %v5353, %v5351
      %v5690 = vpack.c.b16 %v5356, %v5354
      %v5691 = vpack.c.b16 %v5357, %v5355
      %v5692 = vpack.c.b16 %v5360, %v5358
      %v5693 = vpack.c.b16 %v5361, %v5359
      %v5694 = vpack.c.b16 %v5364, %v5362
      %v5695 = vpack.c.b16 %v5365, %v5363
      %v5696 = vpack.c.b16 %v5368, %v5366
      %v5697 = vpack.c.b16 %v5369, %v5367
      %v5698 = vpack.c.b16 %v5372, %v5370
      %v5699 = vpack.c.b16 %v5373, %v5371
      %v5700 = vpack.c.b16 %v5376, %v5374
      %v5701 = vpack.c.b16 %v5377, %v5375
      %v5702 = vpack.c.b16 %v5380, %v5378
      %v5703 = vpack.c.b16 %v5381, %v5379
      %v5704 = vpack.c.b16 %v5384, %v5382
      %v5705 = vpack.c.b16 %v5385, %v5383
      %v5706 = vpack.c.b16 %v5388, %v5386
      %v5707 = vpack.c.b16 %v5389, %v5387
      %v5708 = vpack.c.b16 %v5392, %v5390
      %v5709 = vpack.c.b16 %v5393, %v5391
      %v5710 = vpack.c.b16 %v5396, %v5394
      %v5711 = vpack.c.b16 %v5397, %v5395
      %v5712 = vpack.c.b16 %v5400, %v5398
      %v5713 = vpack.c.b16 %v5401, %v5399
      %v5714 = vpack.c.b16 %v5404, %v5402
      %v5715 = vpack.c.b16 %v5405, %v5403
      %v5716 = vpack.c.b16 %v5408, %v5406
      %v5717 = vpack.c.b16 %v5409, %v5407
      %v5718 = vpack.c.b16 %v5412, %v5410
      %v5719 = vpack.c.b16 %v5413, %v5411
      %v5720 = vpack.c.b16 %v5416, %v5414
      %v5721 = vpack.c.b16 %v5417, %v5415
      %v5722 = vpack.c.b16 %v5420, %v5418
      %v5723 = vpack.c.b16 %v5421, %v5419
      %v5724 = vpack.c.b16 %v5424, %v5422
      %v5725 = vpack.c.b16 %v5425, %v5423
      %v5726 = vpack.c.b16 %v5428, %v5426
      %v5727 = vpack.c.b16 %v5429, %v5427
      %v5728 = vpack.c.b16 %v5432, %v5430
      %v5729 = vpack.c.b16 %v5433, %v5431
      %v5730 = vpack.c.b16 %v5436, %v5434
      %v5731 = vpack.c.b16 %v5437, %v5435
      %v5732 = vpack.c.b16 %v5440, %v5438
      %v5733 = vpack.c.b16 %v5441, %v5439
      %v5734 = vpack.c.b16 %v5444, %v5442
      %v5735 = vpack.c.b16 %v5445, %v5443
      %v5736 = vpack.c.b16 %v5448, %v5446
      %v5737 = vpack.c.b16 %v5449, %v5447
      %6026 = vmatprep.subr.bf16.mxu0 %v5451
      %6027 = vmatpush1.bf16.msra.mxu0 %v5450
      %6028 = vmatprep.subr.bf16.mxu0 %v5453
      %6029 = vmatpush1.bf16.msra.mxu0 %v5452
      %6030 = vmatprep.subr.bf16.mxu0 %v5455
      %6031 = vmatpush1.bf16.msra.mxu0 %v5454
      %6032 = vmatprep.subr.bf16.mxu0 %v5457
      %6033 = vmatpush1.bf16.msra.mxu0 %v5456
      %6034 = vmatprep.subr.bf16.mxu0 %v5459
      %6035 = vmatpush1.bf16.msra.mxu0 %v5458
      %6036 = vmatprep.subr.bf16.mxu0 %v5461
      %6037 = vmatpush1.bf16.msra.mxu0 %v5460
      %6038 = vmatprep.subr.bf16.mxu0 %v5463
      %6039 = vmatpush1.bf16.msra.mxu0 %v5462
      %6040 = vmatprep.subr.bf16.mxu0 %v5465
      %6041 = vmatpush1.bf16.msra.mxu0 %v5464
      %6042 = vmatprep.subr.bf16.mxu0 %v5467
      %6043 = vmatpush1.bf16.msra.mxu0 %v5466
      %6044 = vmatprep.subr.bf16.mxu0 %v5469
      %6045 = vmatpush1.bf16.msra.mxu0 %v5468
      %6046 = vmatprep.subr.bf16.mxu0 %v5471
      %6047 = vmatpush1.bf16.msra.mxu0 %v5470
      %6048 = vmatprep.subr.bf16.mxu0 %v5473
      %6049 = vmatpush1.bf16.msra.mxu0 %v5472
      %6050 = vmatprep.subr.bf16.mxu0 %v5475
      %6051 = vmatpush1.bf16.msra.mxu0 %v5474
      %6052 = vmatprep.subr.bf16.mxu0 %v5477
      %6053 = vmatpush1.bf16.msra.mxu0 %v5476
      %6054 = vmatprep.subr.bf16.mxu0 %v5479
      %6055 = vmatpush1.bf16.msra.mxu0 %v5478
      %6056 = vmatprep.subr.bf16.mxu0 %v5481
      %6057 = vmatpush1.bf16.msra.mxu0 %v5480
      %6058 = vmatprep.mubr.bf16.mxu0 %v4569
      %6059 = vmatmul.mubr.bf16.gmra.mrb[0].mxu0 %v4568
      %v6060 = vpop.f32.mrb[0].mxu0
      %v6061 = vadd.f32 0.0, %v6060
      %v6062 = vpop.f32.mrb[0].mxu0
      %v6063 = vadd.f32 0.0, %v6062
      %v6064 = vpop.f32.mrb[0].mxu0
      %v6065 = vadd.f32 0.0, %v6064
      %v6066 = vpop.f32.mrb[0].mxu0
      %v6067 = vadd.f32 0.0, %v6066
      %6068 = vdwg.mxu0
      %6069 = vmatprep.subr.bf16.mxu0 %v5483
      %6070 = vmatpush1.bf16.msra.mxu0 %v5482
      %6071 = vmatprep.subr.bf16.mxu0 %v5485
      %6072 = vmatpush1.bf16.msra.mxu0 %v5484
      %6073 = vmatprep.subr.bf16.mxu0 %v5487
      %6074 = vmatpush1.bf16.msra.mxu0 %v5486
      %6075 = vmatprep.subr.bf16.mxu0 %v5489
      %6076 = vmatpush1.bf16.msra.mxu0 %v5488
      %6077 = vmatprep.subr.bf16.mxu0 %v5491
      %6078 = vmatpush1.bf16.msra.mxu0 %v5490
      %6079 = vmatprep.subr.bf16.mxu0 %v5493
      %6080 = vmatpush1.bf16.msra.mxu0 %v5492
      %6081 = vmatprep.subr.bf16.mxu0 %v5495
      %6082 = vmatpush1.bf16.msra.mxu0 %v5494
      %6083 = vmatprep.subr.bf16.mxu0 %v5497
      %6084 = vmatpush1.bf16.msra.mxu0 %v5496
      %6085 = vmatprep.subr.bf16.mxu0 %v5499
      %6086 = vmatpush1.bf16.msra.mxu0 %v5498
      %6087 = vmatprep.subr.bf16.mxu0 %v5501
      %6088 = vmatpush1.bf16.msra.mxu0 %v5500
      %6089 = vmatprep.subr.bf16.mxu0 %v5503
      %6090 = vmatpush1.bf16.msra.mxu0 %v5502
      %6091 = vmatprep.subr.bf16.mxu0 %v5505
      %6092 = vmatpush1.bf16.msra.mxu0 %v5504
      %6093 = vmatprep.subr.bf16.mxu0 %v5507
      %6094 = vmatpush1.bf16.msra.mxu0 %v5506
      %6095 = vmatprep.subr.bf16.mxu0 %v5509
      %6096 = vmatpush1.bf16.msra.mxu0 %v5508
      %6097 = vmatprep.subr.bf16.mxu0 %v5511
      %6098 = vmatpush1.bf16.msra.mxu0 %v5510
      %6099 = vmatprep.subr.bf16.mxu0 %v5513
      %6100 = vmatpush1.bf16.msra.mxu0 %v5512
      %6101 = vmatprep.mubr.bf16.mxu0 %v4571
      %6102 = vmatmul.mubr.bf16.gmra.mrb[0].mxu0 %v4570
      %v6103 = vpop.f32.mrb[0].mxu0
      %v6104 = vadd.f32 %v6061, %v6103
      %v6105 = vpop.f32.mrb[0].mxu0
      %v6106 = vadd.f32 %v6063, %v6105
      %v6107 = vpop.f32.mrb[0].mxu0
      %v6108 = vadd.f32 %v6065, %v6107
      %v6109 = vpop.f32.mrb[0].mxu0
      %v6110 = vadd.f32 %v6067, %v6109
      %6111 = vdwg.mxu0
      %6112 = vmatprep.subr.bf16.mxu0 %v5515
      %6113 = vmatpush1.bf16.msra.mxu0 %v5514
      %6114 = vmatprep.subr.bf16.mxu0 %v5517
      %6115 = vmatpush1.bf16.msra.mxu0 %v5516
      %6116 = vmatprep.subr.bf16.mxu0 %v5519
      %6117 = vmatpush1.bf16.msra.mxu0 %v5518
      %6118 = vmatprep.subr.bf16.mxu0 %v5521
      %6119 = vmatpush1.bf16.msra.mxu0 %v5520
      %6120 = vmatprep.subr.bf16.mxu0 %v5523
      %6121 = vmatpush1.bf16.msra.mxu0 %v5522
      %6122 = vmatprep.subr.bf16.mxu0 %v5525
      %6123 = vmatpush1.bf16.msra.mxu0 %v5524
      %6124 = vmatprep.subr.bf16.mxu0 %v5527
      %6125 = vmatpush1.bf16.msra.mxu0 %v5526
      %6126 = vmatprep.subr.bf16.mxu0 %v5529
      %6127 = vmatpush1.bf16.msra.mxu0 %v5528
      %6128 = vmatprep.subr.bf16.mxu0 %v5531
      %6129 = vmatpush1.bf16.msra.mxu0 %v5530
      %6130 = vmatprep.subr.bf16.mxu0 %v5533
      %6131 = vmatpush1.bf16.msra.mxu0 %v5532
      %6132 = vmatprep.subr.bf16.mxu0 %v5535
      %6133 = vmatpush1.bf16.msra.mxu0 %v5534
      %6134 = vmatprep.subr.bf16.mxu0 %v5537
      %6135 = vmatpush1.bf16.msra.mxu0 %v5536
      %6136 = vmatprep.subr.bf16.mxu0 %v5539
      %6137 = vmatpush1.bf16.msra.mxu0 %v5538
      %6138 = vmatprep.subr.bf16.mxu0 %v5541
      %6139 = vmatpush1.bf16.msra.mxu0 %v5540
      %6140 = vmatprep.subr.bf16.mxu0 %v5543
      %6141 = vmatpush1.bf16.msra.mxu0 %v5542
      %6142 = vmatprep.subr.bf16.mxu0 %v5545
      %6143 = vmatpush1.bf16.msra.mxu0 %v5544
      %6144 = vmatprep.mubr.bf16.mxu0 %v4573
      %6145 = vmatmul.mubr.bf16.gmra.mrb[0].mxu0 %v4572
      %v6146 = vpop.f32.mrb[0].mxu0
      %v6147 = vadd.f32 %v6104, %v6146
      %v6148 = vpop.f32.mrb[0].mxu0
      %v6149 = vadd.f32 %v6106, %v6148
      %v6150 = vpop.f32.mrb[0].mxu0
      %v6151 = vadd.f32 %v6108, %v6150
      %v6152 = vpop.f32.mrb[0].mxu0
      %v6153 = vadd.f32 %v6110, %v6152
      %6154 = vdwg.mxu0
      %6155 = vmatprep.subr.bf16.mxu0 %v5547
      %6156 = vmatpush1.bf16.msra.mxu0 %v5546
      %6157 = vmatprep.subr.bf16.mxu0 %v5549
      %6158 = vmatpush1.bf16.msra.mxu0 %v5548
      %6159 = vmatprep.subr.bf16.mxu0 %v5551
      %6160 = vmatpush1.bf16.msra.mxu0 %v5550
      %6161 = vmatprep.subr.bf16.mxu0 %v5553
      %6162 = vmatpush1.bf16.msra.mxu0 %v5552
      %6163 = vmatprep.subr.bf16.mxu0 %v5555
      %6164 = vmatpush1.bf16.msra.mxu0 %v5554
      %6165 = vmatprep.subr.bf16.mxu0 %v5557
      %6166 = vmatpush1.bf16.msra.mxu0 %v5556
      %6167 = vmatprep.subr.bf16.mxu0 %v5559
      %6168 = vmatpush1.bf16.msra.mxu0 %v5558
      %6169 = vmatprep.subr.bf16.mxu0 %v5561
      %6170 = vmatpush1.bf16.msra.mxu0 %v5560
      %6171 = vmatprep.subr.bf16.mxu0 %v5563
      %6172 = vmatpush1.bf16.msra.mxu0 %v5562
      %6173 = vmatprep.subr.bf16.mxu0 %v5565
      %6174 = vmatpush1.bf16.msra.mxu0 %v5564
      %6175 = vmatprep.subr.bf16.mxu0 %v5567
      %6176 = vmatpush1.bf16.msra.mxu0 %v5566
      %6177 = vmatprep.subr.bf16.mxu0 %v5569
      %6178 = vmatpush1.bf16.msra.mxu0 %v5568
      %6179 = vmatprep.subr.bf16.mxu0 %v5571
      %6180 = vmatpush1.bf16.msra.mxu0 %v5570
      %6181 = vmatprep.subr.bf16.mxu0 %v5573
      %6182 = vmatpush1.bf16.msra.mxu0 %v5572
      %6183 = vmatprep.subr.bf16.mxu0 %v5575
      %6184 = vmatpush1.bf16.msra.mxu0 %v5574
      %6185 = vmatprep.subr.bf16.mxu0 %v5577
      %6186 = vmatpush1.bf16.msra.mxu0 %v5576
      %6187 = vmatprep.mubr.bf16.mxu0 %v4575
      %6188 = vmatmul.mubr.bf16.gmra.mrb[0].mxu0 %v4574
      %v6189 = vpop.f32.mrb[0].mxu0
      %v6190 = vadd.f32 %v6147, %v6189
      %v6191 = vpop.f32.mrb[0].mxu0
      %v6192 = vadd.f32 %v6149, %v6191
      %v6193 = vpop.f32.mrb[0].mxu0
      %v6194 = vadd.f32 %v6151, %v6193
      %v6195 = vpop.f32.mrb[0].mxu0
      %v6196 = vadd.f32 %v6153, %v6195
      %6197 = vdwg.mxu0
      %6198 = vmatprep.subr.bf16.mxu0 %v5579
      %6199 = vmatpush1.bf16.msra.mxu0 %v5578
      %6200 = vmatprep.subr.bf16.mxu0 %v5581
      %6201 = vmatpush1.bf16.msra.mxu0 %v5580
      %6202 = vmatprep.subr.bf16.mxu0 %v5583
      %6203 = vmatpush1.bf16.msra.mxu0 %v5582
      %6204 = vmatprep.subr.bf16.mxu0 %v5585
      %6205 = vmatpush1.bf16.msra.mxu0 %v5584
      %6206 = vmatprep.subr.bf16.mxu0 %v5587
      %6207 = vmatpush1.bf16.msra.mxu0 %v5586
      %6208 = vmatprep.subr.bf16.mxu0 %v5589
      %6209 = vmatpush1.bf16.msra.mxu0 %v5588
      %6210 = vmatprep.subr.bf16.mxu0 %v5591
      %6211 = vmatpush1.bf16.msra.mxu0 %v5590
      %6212 = vmatprep.subr.bf16.mxu0 %v5593
      %6213 = vmatpush1.bf16.msra.mxu0 %v5592
      %6214 = vmatprep.subr.bf16.mxu0 %v5595
      %6215 = vmatpush1.bf16.msra.mxu0 %v5594
      %6216 = vmatprep.subr.bf16.mxu0 %v5597
      %6217 = vmatpush1.bf16.msra.mxu0 %v5596
      %6218 = vmatprep.subr.bf16.mxu0 %v5599
      %6219 = vmatpush1.bf16.msra.mxu0 %v5598
      %6220 = vmatprep.subr.bf16.mxu0 %v5601
      %6221 = vmatpush1.bf16.msra.mxu0 %v5600
      %6222 = vmatprep.subr.bf16.mxu0 %v5603
      %6223 = vmatpush1.bf16.msra.mxu0 %v5602
      %6224 = vmatprep.subr.bf16.mxu0 %v5605
      %6225 = vmatpush1.bf16.msra.mxu0 %v5604
      %6226 = vmatprep.subr.bf16.mxu0 %v5607
      %6227 = vmatpush1.bf16.msra.mxu0 %v5606
      %6228 = vmatprep.subr.bf16.mxu0 %v5609
      %6229 = vmatpush1.bf16.msra.mxu0 %v5608
      %6230 = vmatprep.mubr.bf16.mxu0 %v4577
      %6231 = vmatmul.mubr.bf16.gmra.mrb[0].mxu0 %v4576
      %v6232 = vpop.f32.mrb[0].mxu0
      %v6233 = vadd.f32 %v6190, %v6232
      %v6234 = vpop.f32.mrb[0].mxu0
      %v6235 = vadd.f32 %v6192, %v6234
      %v6236 = vpop.f32.mrb[0].mxu0
      %v6237 = vadd.f32 %v6194, %v6236
      %v6238 = vpop.f32.mrb[0].mxu0
      %v6239 = vadd.f32 %v6196, %v6238
      %6240 = vdwg.mxu0
      %6241 = vmatprep.subr.bf16.mxu0 %v5611
      %6242 = vmatpush1.bf16.msra.mxu0 %v5610
      %6243 = vmatprep.subr.bf16.mxu0 %v5613
      %6244 = vmatpush1.bf16.msra.mxu0 %v5612
      %6245 = vmatprep.subr.bf16.mxu0 %v5615
      %6246 = vmatpush1.bf16.msra.mxu0 %v5614
      %6247 = vmatprep.subr.bf16.mxu0 %v5617
      %6248 = vmatpush1.bf16.msra.mxu0 %v5616
      %6249 = vmatprep.subr.bf16.mxu0 %v5619
      %6250 = vmatpush1.bf16.msra.mxu0 %v5618
      %6251 = vmatprep.subr.bf16.mxu0 %v5621
      %6252 = vmatpush1.bf16.msra.mxu0 %v5620
      %6253 = vmatprep.subr.bf16.mxu0 %v5623
      %6254 = vmatpush1.bf16.msra.mxu0 %v5622
      %6255 = vmatprep.subr.bf16.mxu0 %v5625
      %6256 = vmatpush1.bf16.msra.mxu0 %v5624
      %6257 = vmatprep.subr.bf16.mxu0 %v5627
      %6258 = vmatpush1.bf16.msra.mxu0 %v5626
      %6259 = vmatprep.subr.bf16.mxu0 %v5629
      %6260 = vmatpush1.bf16.msra.mxu0 %v5628
      %6261 = vmatprep.subr.bf16.mxu0 %v5631
      %6262 = vmatpush1.bf16.msra.mxu0 %v5630
      %6263 = vmatprep.subr.bf16.mxu0 %v5633
      %6264 = vmatpush1.bf16.msra.mxu0 %v5632
      %6265 = vmatprep.subr.bf16.mxu0 %v5635
      %6266 = vmatpush1.bf16.msra.mxu0 %v5634
      %6267 = vmatprep.subr.bf16.mxu0 %v5637
      %6268 = vmatpush1.bf16.msra.mxu0 %v5636
      %6269 = vmatprep.subr.bf16.mxu0 %v5639
      %6270 = vmatpush1.bf16.msra.mxu0 %v5638
      %6271 = vmatprep.subr.bf16.mxu0 %v5641
      %6272 = vmatpush1.bf16.msra.mxu0 %v5640
      %6273 = vmatprep.mubr.bf16.mxu0 %v4579
      %6274 = vmatmul.mubr.bf16.gmra.mrb[0].mxu0 %v4578
      %v6275 = vpop.f32.mrb[0].mxu0
      %v6276 = vadd.f32 %v6233, %v6275
      %v6277 = vpop.f32.mrb[0].mxu0
      %v6278 = vadd.f32 %v6235, %v6277
      %v6279 = vpop.f32.mrb[0].mxu0
      %v6280 = vadd.f32 %v6237, %v6279
      %v6281 = vpop.f32.mrb[0].mxu0
      %v6282 = vadd.f32 %v6239, %v6281
      %6283 = vdwg.mxu0
      %6284 = vmatprep.subr.bf16.mxu0 %v5643
      %6285 = vmatpush1.bf16.msra.mxu0 %v5642
      %6286 = vmatprep.subr.bf16.mxu0 %v5645
      %6287 = vmatpush1.bf16.msra.mxu0 %v5644
      %6288 = vmatprep.subr.bf16.mxu0 %v5647
      %6289 = vmatpush1.bf16.msra.mxu0 %v5646
      %6290 = vmatprep.subr.bf16.mxu0 %v5649
      %6291 = vmatpush1.bf16.msra.mxu0 %v5648
      %6292 = vmatprep.subr.bf16.mxu0 %v5651
      %6293 = vmatpush1.bf16.msra.mxu0 %v5650
      %6294 = vmatprep.subr.bf16.mxu0 %v5653
      %6295 = vmatpush1.bf16.msra.mxu0 %v5652
      %6296 = vmatprep.subr.bf16.mxu0 %v5655
      %6297 = vmatpush1.bf16.msra.mxu0 %v5654
      %6298 = vmatprep.subr.bf16.mxu0 %v5657
      %6299 = vmatpush1.bf16.msra.mxu0 %v5656
      %6300 = vmatprep.subr.bf16.mxu0 %v5659
      %6301 = vmatpush1.bf16.msra.mxu0 %v5658
      %6302 = vmatprep.subr.bf16.mxu0 %v5661
      %6303 = vmatpush1.bf16.msra.mxu0 %v5660
      %6304 = vmatprep.subr.bf16.mxu0 %v5663
      %6305 = vmatpush1.bf16.msra.mxu0 %v5662
      %6306 = vmatprep.subr.bf16.mxu0 %v5665
      %6307 = vmatpush1.bf16.msra.mxu0 %v5664
      %6308 = vmatprep.subr.bf16.mxu0 %v5667
      %6309 = vmatpush1.bf16.msra.mxu0 %v5666
      %6310 = vmatprep.subr.bf16.mxu0 %v5669
      %6311 = vmatpush1.bf16.msra.mxu0 %v5668
      %6312 = vmatprep.subr.bf16.mxu0 %v5671
      %6313 = vmatpush1.bf16.msra.mxu0 %v5670
      %6314 = vmatprep.subr.bf16.mxu0 %v5673
      %6315 = vmatpush1.bf16.msra.mxu0 %v5672
      %6316 = vmatprep.mubr.bf16.mxu0 %v4581
      %6317 = vmatmul.mubr.bf16.gmra.mrb[0].mxu0 %v4580
      %v6318 = vpop.f32.mrb[0].mxu0
      %v6319 = vadd.f32 %v6276, %v6318
      %v6320 = vpop.f32.mrb[0].mxu0
      %v6321 = vadd.f32 %v6278, %v6320
      %v6322 = vpop.f32.mrb[0].mxu0
      %v6323 = vadd.f32 %v6280, %v6322
      %v6324 = vpop.f32.mrb[0].mxu0
      %v6325 = vadd.f32 %v6282, %v6324
      %6326 = vdwg.mxu0
      %6327 = vmatprep.subr.bf16.mxu0 %v5675
      %6328 = vmatpush1.bf16.msra.mxu0 %v5674
      %6329 = vmatprep.subr.bf16.mxu0 %v5677
      %6330 = vmatpush1.bf16.msra.mxu0 %v5676
      %6331 = vmatprep.subr.bf16.mxu0 %v5679
      %6332 = vmatpush1.bf16.msra.mxu0 %v5678
      %6333 = vmatprep.subr.bf16.mxu0 %v5681
      %6334 = vmatpush1.bf16.msra.mxu0 %v5680
      %6335 = vmatprep.subr.bf16.mxu0 %v5683
      %6336 = vmatpush1.bf16.msra.mxu0 %v5682
      %6337 = vmatprep.subr.bf16.mxu0 %v5685
      %6338 = vmatpush1.bf16.msra.mxu0 %v5684
      %6339 = vmatprep.subr.bf16.mxu0 %v5687
      %6340 = vmatpush1.bf16.msra.mxu0 %v5686
      %6341 = vmatprep.subr.bf16.mxu0 %v5689
      %6342 = vmatpush1.bf16.msra.mxu0 %v5688
      %6343 = vmatprep.subr.bf16.mxu0 %v5691
      %6344 = vmatpush1.bf16.msra.mxu0 %v5690
      %6345 = vmatprep.subr.bf16.mxu0 %v5693
      %6346 = vmatpush1.bf16.msra.mxu0 %v5692
      %6347 = vmatprep.subr.bf16.mxu0 %v5695
      %6348 = vmatpush1.bf16.msra.mxu0 %v5694
      %6349 = vmatprep.subr.bf16.mxu0 %v5697
      %6350 = vmatpush1.bf16.msra.mxu0 %v5696
      %6351 = vmatprep.subr.bf16.mxu0 %v5699
      %6352 = vmatpush1.bf16.msra.mxu0 %v5698
      %6353 = vmatprep.subr.bf16.mxu0 %v5701
      %6354 = vmatpush1.bf16.msra.mxu0 %v5700
      %6355 = vmatprep.subr.bf16.mxu0 %v5703
      %6356 = vmatpush1.bf16.msra.mxu0 %v5702
      %6357 = vmatprep.subr.bf16.mxu0 %v5705
      %6358 = vmatpush1.bf16.msra.mxu0 %v5704
      %6359 = vmatprep.mubr.bf16.mxu0 %v4583
      %6360 = vmatmul.mubr.bf16.gmra.mrb[0].mxu0 %v4582
      %v6361 = vpop.f32.mrb[0].mxu0
      %v6362 = vadd.f32 %v6319, %v6361
      %v6363 = vpop.f32.mrb[0].mxu0
      %v6364 = vadd.f32 %v6321, %v6363
      %v6365 = vpop.f32.mrb[0].mxu0
      %v6366 = vadd.f32 %v6323, %v6365
      %v6367 = vpop.f32.mrb[0].mxu0
      %v6368 = vadd.f32 %v6325, %v6367
      %6369 = vdwg.mxu0
      %6370 = vmatprep.subr.bf16.mxu0 %v5707
      %6371 = vmatpush1.bf16.msra.mxu0 %v5706
      %6372 = vmatprep.subr.bf16.mxu0 %v5709
      %6373 = vmatpush1.bf16.msra.mxu0 %v5708
      %6374 = vmatprep.subr.bf16.mxu0 %v5711
      %6375 = vmatpush1.bf16.msra.mxu0 %v5710
      %6376 = vmatprep.subr.bf16.mxu0 %v5713
      %6377 = vmatpush1.bf16.msra.mxu0 %v5712
      %6378 = vmatprep.subr.bf16.mxu0 %v5715
      %6379 = vmatpush1.bf16.msra.mxu0 %v5714
      %6380 = vmatprep.subr.bf16.mxu0 %v5717
      %6381 = vmatpush1.bf16.msra.mxu0 %v5716
      %6382 = vmatprep.subr.bf16.mxu0 %v5719
      %6383 = vmatpush1.bf16.msra.mxu0 %v5718
      %6384 = vmatprep.subr.bf16.mxu0 %v5721
      %6385 = vmatpush1.bf16.msra.mxu0 %v5720
      %6386 = vmatprep.subr.bf16.mxu0 %v5723
      %6387 = vmatpush1.bf16.msra.mxu0 %v5722
      %6388 = vmatprep.subr.bf16.mxu0 %v5725
      %6389 = vmatpush1.bf16.msra.mxu0 %v5724
      %6390 = vmatprep.subr.bf16.mxu0 %v5727
      %6391 = vmatpush1.bf16.msra.mxu0 %v5726
      %6392 = vmatprep.subr.bf16.mxu0 %v5729
      %6393 = vmatpush1.bf16.msra.mxu0 %v5728
      %6394 = vmatprep.subr.bf16.mxu0 %v5731
      %6395 = vmatpush1.bf16.msra.mxu0 %v5730
      %6396 = vmatprep.subr.bf16.mxu0 %v5733
      %6397 = vmatpush1.bf16.msra.mxu0 %v5732
      %6398 = vmatprep.subr.bf16.mxu0 %v5735
      %6399 = vmatpush1.bf16.msra.mxu0 %v5734
      %6400 = vmatprep.subr.bf16.mxu0 %v5737
      %6401 = vmatpush1.bf16.msra.mxu0 %v5736
      %6402 = vmatprep.mubr.bf16.mxu0 %v4585
      %6403 = vmatmul.mubr.bf16.gmra.mrb[0].mxu0 %v4584
      %v6404 = vpop.f32.mrb[0].mxu0
      %v6405 = vadd.f32 %v6362, %v6404
      %v6406 = vpop.f32.mrb[0].mxu0
      %v6407 = vadd.f32 %v6364, %v6406
      %v6408 = vpop.f32.mrb[0].mxu0
      %v6409 = vadd.f32 %v6366, %v6408
      %v6410 = vpop.f32.mrb[0].mxu0
      %v6411 = vadd.f32 %v6368, %v6410
      %6412 = vdwg.mxu0
      %v6413 = vld [vmem:[%s43] sm:$0x3]
      %v6414 = vld [vmem:[%s45] sm:$0x3]
      %v6415 = vadd.f32 %v6405, %v6407
      %6416 = vadd.xlane.f32.xlu0 %v6415
      %v6417 = vpop.xlane.xlu0 %6416
      %v6418 = vadd.f32 %v6409, %v6411
      %6419 = vadd.xlane.f32.xlu0 %v6418
      %v6420 = vpop.xlane.xlu0 %6419
      %v6421 = vmul.f32 %v6417, %v4008
      %v6422 = vmul.f32 %v6420, %v4008
      %v6423 = vsub.f32 %v6405, %v6421
      %v6424 = vsub.f32 %v6407, %v6421
      %v6425 = vsub.f32 %v6409, %v6422
      %v6426 = vsub.f32 %v6411, %v6422
      %v6427 = vmul.f32 %v6423, %v6423
      %v6428 = vmul.f32 %v6424, %v6424
      %v6429 = vmul.f32 %v6425, %v6425
      %v6430 = vmul.f32 %v6426, %v6426
      %v6431 = vadd.f32 %v6427, %v6428
      %6432 = vadd.xlane.f32.xlu0 %v6431
      %v6433 = vpop.xlane.xlu0 %6432
      %v6434 = vadd.f32 %v6429, %v6430
      %6435 = vadd.xlane.f32.xlu0 %v6434
      %v6436 = vpop.xlane.xlu0 %6435
      %v6437 = vmul.f32 %v6433, %v4008
      %v6438 = vmul.f32 %v6436, %v4008
      %v6439 = vadd.f32 %v6437, 1e-06
      %v6440 = vadd.f32 %v6438, 1e-06
      %v6441 = vrsqrt.pop %v6439
      %v6442 = vrsqrt.pop %v6440
      %v6443 = vmul.f32 %v6423, %v6441
      %v6444 = vmul.f32 %v6424, %v6441
      %v6445 = vmul.f32 %v6425, %v6442
      %v6446 = vmul.f32 %v6426, %v6442
      %v6448 = vlaneseq
      %v6449 = vshrl.u32 %v6448, 7
      %v6450 = vsub.s32 0, %v6449
      %v6451 = vrot.slane %v6413, %v6450
      %v6452 = vlaneseq
      %v6453 = vshrl.u32 %v6452, 7
      %v6454 = vsub.s32 1, %v6453
      %v6455 = vrot.slane %v6413, %v6454
      %v6458 = vmul.f32 %v6443, %v6451
      %v6459 = vmul.f32 %v6444, %v6455
      %v6460 = vmul.f32 %v6445, %v6451
      %v6461 = vmul.f32 %v6446, %v6455
      %v6463 = vlaneseq
      %v6464 = vshrl.u32 %v6463, 7
      %v6465 = vsub.s32 0, %v6464
      %v6466 = vrot.slane %v6414, %v6465
      %v6467 = vlaneseq
      %v6468 = vshrl.u32 %v6467, 7
      %v6469 = vsub.s32 1, %v6468
      %v6470 = vrot.slane %v6414, %v6469
      %v6473 = vadd.f32 %v6458, %v6466
      %v6474 = vadd.f32 %v6459, %v6470
      %v6475 = vadd.f32 %v6460, %v6466
      %v6476 = vadd.f32 %v6461, %v6470
      %v6477 = vld [vmem:[%s1157] sm:$0xff]
      %v6478 = vld [vmem:[%s1157 + $0x8] sm:$0xff]
      %v6479 = vld [vmem:[%s1157 + $0x10] sm:$0xff]
      %v6480 = vld [vmem:[%s1157 + $0x18] sm:$0xff]
      %v6481 = vld [vmem:[%s1157 + $0x20] sm:$0xff]
      %v6482 = vld [vmem:[%s1157 + $0x28] sm:$0xff]
      %v6483 = vld [vmem:[%s1157 + $0x30] sm:$0xff]
      %v6484 = vld [vmem:[%s1157 + $0x38] sm:$0xff]
      %v6485 = vld [vmem:[%s1157 + $0x40] sm:$0xff]
      %v6486 = vld [vmem:[%s1157 + $0x48] sm:$0xff]
      %v6487 = vld [vmem:[%s1157 + $0x50] sm:$0xff]
      %v6488 = vld [vmem:[%s1157 + $0x58] sm:$0xff]
      %v6489 = vld [vmem:[%s1157 + $0x60] sm:$0xff]
      %v6490 = vld [vmem:[%s1157 + $0x68] sm:$0xff]
      %v6491 = vld [vmem:[%s1157 + $0x70] sm:$0xff]
      %v6492 = vld [vmem:[%s1157 + $0x78] sm:$0xff]
      %v6493 = vld [vmem:[%s1157 + $0x80] sm:$0xff]
      %v6494 = vld [vmem:[%s1157 + $0x88] sm:$0xff]
      %v6495 = vld [vmem:[%s1157 + $0x90] sm:$0xff]
      %v6496 = vld [vmem:[%s1157 + $0x98] sm:$0xff]
      %v6497 = vld [vmem:[%s1157 + $0xa0] sm:$0xff]
      %v6498 = vld [vmem:[%s1157 + $0xa8] sm:$0xff]
      %v6499 = vld [vmem:[%s1157 + $0xb0] sm:$0xff]
      %v6500 = vld [vmem:[%s1157 + $0xb8] sm:$0xff]
      %v6501 = vld [vmem:[%s1157 + $0xc0] sm:$0xff]
      %v6502 = vld [vmem:[%s1157 + $0xc8] sm:$0xff]
      %v6503 = vld [vmem:[%s1157 + $0xd0] sm:$0xff]
      %v6504 = vld [vmem:[%s1157 + $0xd8] sm:$0xff]
      %v6505 = vld [vmem:[%s1157 + $0xe0] sm:$0xff]
      %v6506 = vld [vmem:[%s1157 + $0xe8] sm:$0xff]
      %v6507 = vld [vmem:[%s1157 + $0xf0] sm:$0xff]
      %v6508 = vld [vmem:[%s1157 + $0xf8] sm:$0xff]
      %v6509 = vld [vmem:[%s49] sm:$0xf]
      %v6510 = vld [vmem:[%s49 + $0x4] sm:$0xf]
      %v6511 = vld [vmem:[%s49 + $0x8] sm:$0xf]
      %v6512 = vld [vmem:[%s49 + $0xc] sm:$0xf]
      %v6513 = vld [vmem:[%s49 + $0x10] sm:$0xf]
      %v6514 = vld [vmem:[%s49 + $0x14] sm:$0xf]
      %v6515 = vld [vmem:[%s49 + $0x18] sm:$0xf]
      %v6516 = vld [vmem:[%s49 + $0x1c] sm:$0xf]
      %v6517 = vld [vmem:[%s49 + $0x20] sm:$0xf]
      %v6518 = vld [vmem:[%s49 + $0x24] sm:$0xf]
      %v6519 = vld [vmem:[%s49 + $0x28] sm:$0xf]
      %v6520 = vld [vmem:[%s49 + $0x2c] sm:$0xf]
      %v6521 = vld [vmem:[%s49 + $0x30] sm:$0xf]
      %v6522 = vld [vmem:[%s49 + $0x34] sm:$0xf]
      %v6523 = vld [vmem:[%s49 + $0x38] sm:$0xf]
      %v6524 = vld [vmem:[%s49 + $0x3c] sm:$0xf]
      %v6525 = vld [vmem:[%s49 + $0x40] sm:$0xf]
      %v6526 = vld [vmem:[%s49 + $0x44] sm:$0xf]
      %v6527 = vld [vmem:[%s49 + $0x48] sm:$0xf]
      %v6528 = vld [vmem:[%s49 + $0x4c] sm:$0xf]
      %v6529 = vld [vmem:[%s49 + $0x50] sm:$0xf]
      %v6530 = vld [vmem:[%s49 + $0x54] sm:$0xf]
      %v6531 = vld [vmem:[%s49 + $0x58] sm:$0xf]
      %v6532 = vld [vmem:[%s49 + $0x5c] sm:$0xf]
      %v6533 = vld [vmem:[%s49 + $0x60] sm:$0xf]
      %v6534 = vld [vmem:[%s49 + $0x64] sm:$0xf]
      %v6535 = vld [vmem:[%s49 + $0x68] sm:$0xf]
      %v6536 = vld [vmem:[%s49 + $0x6c] sm:$0xf]
      %v6537 = vld [vmem:[%s49 + $0x70] sm:$0xf]
      %v6538 = vld [vmem:[%s49 + $0x74] sm:$0xf]
      %v6539 = vld [vmem:[%s49 + $0x78] sm:$0xf]
      %v6540 = vld [vmem:[%s49 + $0x7c] sm:$0xf]
      %v6541 = vld [vmem:[%s49 + $0x80] sm:$0xf]
      %v6542 = vld [vmem:[%s49 + $0x84] sm:$0xf]
      %v6543 = vld [vmem:[%s49 + $0x88] sm:$0xf]
      %v6544 = vld [vmem:[%s49 + $0x8c] sm:$0xf]
      %v6545 = vld [vmem:[%s49 + $0x90] sm:$0xf]
      %v6546 = vld [vmem:[%s49 + $0x94] sm:$0xf]
      %v6547 = vld [vmem:[%s49 + $0x98] sm:$0xf]
      %v6548 = vld [vmem:[%s49 + $0x9c] sm:$0xf]
      %v6549 = vld [vmem:[%s49 + $0xa0] sm:$0xf]
      %v6550 = vld [vmem:[%s49 + $0xa4] sm:$0xf]
      %v6551 = vld [vmem:[%s49 + $0xa8] sm:$0xf]
      %v6552 = vld [vmem:[%s49 + $0xac] sm:$0xf]
      %v6553 = vld [vmem:[%s49 + $0xb0] sm:$0xf]
      %v6554 = vld [vmem:[%s49 + $0xb4] sm:$0xf]
      %v6555 = vld [vmem:[%s49 + $0xb8] sm:$0xf]
      %v6556 = vld [vmem:[%s49 + $0xbc] sm:$0xf]
      %v6557 = vld [vmem:[%s49 + $0xc0] sm:$0xf]
      %v6558 = vld [vmem:[%s49 + $0xc4] sm:$0xf]
      %v6559 = vld [vmem:[%s49 + $0xc8] sm:$0xf]
      %v6560 = vld [vmem:[%s49 + $0xcc] sm:$0xf]
      %v6561 = vld [vmem:[%s49 + $0xd0] sm:$0xf]
      %v6562 = vld [vmem:[%s49 + $0xd4] sm:$0xf]
      %v6563 = vld [vmem:[%s49 + $0xd8] sm:$0xf]
      %v6564 = vld [vmem:[%s49 + $0xdc] sm:$0xf]
      %v6565 = vld [vmem:[%s49 + $0xe0] sm:$0xf]
      %v6566 = vld [vmem:[%s49 + $0xe4] sm:$0xf]
      %v6567 = vld [vmem:[%s49 + $0xe8] sm:$0xf]
      %v6568 = vld [vmem:[%s49 + $0xec] sm:$0xf]
      %v6569 = vld [vmem:[%s49 + $0xf0] sm:$0xf]
      %v6570 = vld [vmem:[%s49 + $0xf4] sm:$0xf]
      %v6571 = vld [vmem:[%s49 + $0xf8] sm:$0xf]
      %v6572 = vld [vmem:[%s49 + $0xfc] sm:$0xf]
      %v6573 = vld [vmem:[%s49 + $0x100] sm:$0xf]
      %v6574 = vld [vmem:[%s49 + $0x104] sm:$0xf]
      %v6575 = vld [vmem:[%s49 + $0x108] sm:$0xf]
      %v6576 = vld [vmem:[%s49 + $0x10c] sm:$0xf]
      %v6577 = vld [vmem:[%s49 + $0x110] sm:$0xf]
      %v6578 = vld [vmem:[%s49 + $0x114] sm:$0xf]
      %v6579 = vld [vmem:[%s49 + $0x118] sm:$0xf]
      %v6580 = vld [vmem:[%s49 + $0x11c] sm:$0xf]
      %v6581 = vld [vmem:[%s49 + $0x120] sm:$0xf]
      %v6582 = vld [vmem:[%s49 + $0x124] sm:$0xf]
      %v6583 = vld [vmem:[%s49 + $0x128] sm:$0xf]
      %v6584 = vld [vmem:[%s49 + $0x12c] sm:$0xf]
      %v6585 = vld [vmem:[%s49 + $0x130] sm:$0xf]
      %v6586 = vld [vmem:[%s49 + $0x134] sm:$0xf]
      %v6587 = vld [vmem:[%s49 + $0x138] sm:$0xf]
      %v6588 = vld [vmem:[%s49 + $0x13c] sm:$0xf]
      %v6589 = vld [vmem:[%s49 + $0x140] sm:$0xf]
      %v6590 = vld [vmem:[%s49 + $0x144] sm:$0xf]
      %v6591 = vld [vmem:[%s49 + $0x148] sm:$0xf]
      %v6592 = vld [vmem:[%s49 + $0x14c] sm:$0xf]
      %v6593 = vld [vmem:[%s49 + $0x150] sm:$0xf]
      %v6594 = vld [vmem:[%s49 + $0x154] sm:$0xf]
      %v6595 = vld [vmem:[%s49 + $0x158] sm:$0xf]
      %v6596 = vld [vmem:[%s49 + $0x15c] sm:$0xf]
      %v6597 = vld [vmem:[%s49 + $0x160] sm:$0xf]
      %v6598 = vld [vmem:[%s49 + $0x164] sm:$0xf]
      %v6599 = vld [vmem:[%s49 + $0x168] sm:$0xf]
      %v6600 = vld [vmem:[%s49 + $0x16c] sm:$0xf]
      %v6601 = vld [vmem:[%s49 + $0x170] sm:$0xf]
      %v6602 = vld [vmem:[%s49 + $0x174] sm:$0xf]
      %v6603 = vld [vmem:[%s49 + $0x178] sm:$0xf]
      %v6604 = vld [vmem:[%s49 + $0x17c] sm:$0xf]
      %v6605 = vld [vmem:[%s49 + $0x180] sm:$0xf]
      %v6606 = vld [vmem:[%s49 + $0x184] sm:$0xf]
      %v6607 = vld [vmem:[%s49 + $0x188] sm:$0xf]
      %v6608 = vld [vmem:[%s49 + $0x18c] sm:$0xf]
      %v6609 = vld [vmem:[%s49 + $0x190] sm:$0xf]
      %v6610 = vld [vmem:[%s49 + $0x194] sm:$0xf]
      %v6611 = vld [vmem:[%s49 + $0x198] sm:$0xf]
      %v6612 = vld [vmem:[%s49 + $0x19c] sm:$0xf]
      %v6613 = vld [vmem:[%s49 + $0x1a0] sm:$0xf]
      %v6614 = vld [vmem:[%s49 + $0x1a4] sm:$0xf]
      %v6615 = vld [vmem:[%s49 + $0x1a8] sm:$0xf]
      %v6616 = vld [vmem:[%s49 + $0x1ac] sm:$0xf]
      %v6617 = vld [vmem:[%s49 + $0x1b0] sm:$0xf]
      %v6618 = vld [vmem:[%s49 + $0x1b4] sm:$0xf]
      %v6619 = vld [vmem:[%s49 + $0x1b8] sm:$0xf]
      %v6620 = vld [vmem:[%s49 + $0x1bc] sm:$0xf]
      %v6621 = vld [vmem:[%s49 + $0x1c0] sm:$0xf]
      %v6622 = vld [vmem:[%s49 + $0x1c4] sm:$0xf]
      %v6623 = vld [vmem:[%s49 + $0x1c8] sm:$0xf]
      %v6624 = vld [vmem:[%s49 + $0x1cc] sm:$0xf]
      %v6625 = vld [vmem:[%s49 + $0x1d0] sm:$0xf]
      %v6626 = vld [vmem:[%s49 + $0x1d4] sm:$0xf]
      %v6627 = vld [vmem:[%s49 + $0x1d8] sm:$0xf]
      %v6628 = vld [vmem:[%s49 + $0x1dc] sm:$0xf]
      %v6629 = vld [vmem:[%s49 + $0x1e0] sm:$0xf]
      %v6630 = vld [vmem:[%s49 + $0x1e4] sm:$0xf]
      %v6631 = vld [vmem:[%s49 + $0x1e8] sm:$0xf]
      %v6632 = vld [vmem:[%s49 + $0x1ec] sm:$0xf]
      %v6633 = vld [vmem:[%s49 + $0x1f0] sm:$0xf]
      %v6634 = vld [vmem:[%s49 + $0x1f4] sm:$0xf]
      %v6635 = vld [vmem:[%s49 + $0x1f8] sm:$0xf]
      %v6636 = vld [vmem:[%s49 + $0x1fc] sm:$0xf]
      %v6669 = vunpack.c.l.b16 %v6477
      %v6670 = vunpack.c.h.b16 %v6477
      %v6671 = vunpack.c.l.b16 %v6478
      %v6672 = vunpack.c.h.b16 %v6478
      %v6673 = vunpack.c.l.b16 %v6479
      %v6674 = vunpack.c.h.b16 %v6479
      %v6675 = vunpack.c.l.b16 %v6480
      %v6676 = vunpack.c.h.b16 %v6480
      %v6677 = vunpack.c.l.b16 %v6481
      %v6678 = vunpack.c.h.b16 %v6481
      %v6679 = vunpack.c.l.b16 %v6482
      %v6680 = vunpack.c.h.b16 %v6482
      %v6681 = vunpack.c.l.b16 %v6483
      %v6682 = vunpack.c.h.b16 %v6483
      %v6683 = vunpack.c.l.b16 %v6484
      %v6684 = vunpack.c.h.b16 %v6484
      %v6685 = vunpack.c.l.b16 %v6485
      %v6686 = vunpack.c.h.b16 %v6485
      %v6687 = vunpack.c.l.b16 %v6486
      %v6688 = vunpack.c.h.b16 %v6486
      %v6689 = vunpack.c.l.b16 %v6487
      %v6690 = vunpack.c.h.b16 %v6487
      %v6691 = vunpack.c.l.b16 %v6488
      %v6692 = vunpack.c.h.b16 %v6488
      %v6693 = vunpack.c.l.b16 %v6489
      %v6694 = vunpack.c.h.b16 %v6489
      %v6695 = vunpack.c.l.b16 %v6490
      %v6696 = vunpack.c.h.b16 %v6490
      %v6697 = vunpack.c.l.b16 %v6491
      %v6698 = vunpack.c.h.b16 %v6491
      %v6699 = vunpack.c.l.b16 %v6492
      %v6700 = vunpack.c.h.b16 %v6492
      %v6701 = vunpack.c.l.b16 %v6493
      %v6702 = vunpack.c.h.b16 %v6493
      %v6703 = vunpack.c.l.b16 %v6494
      %v6704 = vunpack.c.h.b16 %v6494
      %v6705 = vunpack.c.l.b16 %v6495
      %v6706 = vunpack.c.h.b16 %v6495
      %v6707 = vunpack.c.l.b16 %v6496
      %v6708 = vunpack.c.h.b16 %v6496
      %v6709 = vunpack.c.l.b16 %v6497
      %v6710 = vunpack.c.h.b16 %v6497
      %v6711 = vunpack.c.l.b16 %v6498
      %v6712 = vunpack.c.h.b16 %v6498
      %v6713 = vunpack.c.l.b16 %v6499
      %v6714 = vunpack.c.h.b16 %v6499
      %v6715 = vunpack.c.l.b16 %v6500
      %v6716 = vunpack.c.h.b16 %v6500
      %v6717 = vunpack.c.l.b16 %v6501
      %v6718 = vunpack.c.h.b16 %v6501
      %v6719 = vunpack.c.l.b16 %v6502
      %v6720 = vunpack.c.h.b16 %v6502
      %v6721 = vunpack.c.l.b16 %v6503
      %v6722 = vunpack.c.h.b16 %v6503
      %v6723 = vunpack.c.l.b16 %v6504
      %v6724 = vunpack.c.h.b16 %v6504
      %v6725 = vunpack.c.l.b16 %v6505
      %v6726 = vunpack.c.h.b16 %v6505
      %v6727 = vunpack.c.l.b16 %v6506
      %v6728 = vunpack.c.h.b16 %v6506
      %v6729 = vunpack.c.l.b16 %v6507
      %v6730 = vunpack.c.h.b16 %v6507
      %v6731 = vunpack.c.l.b16 %v6508
      %v6732 = vunpack.c.h.b16 %v6508
      %v6733 = vpack.c.b16 %v6677, %v6669
      %v6734 = vpack.c.b16 %v6678, %v6670
      %v6735 = vpack.c.b16 %v6679, %v6671
      %v6736 = vpack.c.b16 %v6680, %v6672
      %v6737 = vpack.c.b16 %v6681, %v6673
      %v6738 = vpack.c.b16 %v6682, %v6674
      %v6739 = vpack.c.b16 %v6683, %v6675
      %v6740 = vpack.c.b16 %v6684, %v6676
      %v6741 = vpack.c.b16 %v6693, %v6685
      %v6742 = vpack.c.b16 %v6694, %v6686
      %v6743 = vpack.c.b16 %v6695, %v6687
      %v6744 = vpack.c.b16 %v6696, %v6688
      %v6745 = vpack.c.b16 %v6697, %v6689
      %v6746 = vpack.c.b16 %v6698, %v6690
      %v6747 = vpack.c.b16 %v6699, %v6691
      %v6748 = vpack.c.b16 %v6700, %v6692
      %v6749 = vpack.c.b16 %v6709, %v6701
      %v6750 = vpack.c.b16 %v6710, %v6702
      %v6751 = vpack.c.b16 %v6711, %v6703
      %v6752 = vpack.c.b16 %v6712, %v6704
      %v6753 = vpack.c.b16 %v6713, %v6705
      %v6754 = vpack.c.b16 %v6714, %v6706
      %v6755 = vpack.c.b16 %v6715, %v6707
      %v6756 = vpack.c.b16 %v6716, %v6708
      %v6757 = vpack.c.b16 %v6725, %v6717
      %v6758 = vpack.c.b16 %v6726, %v6718
      %v6759 = vpack.c.b16 %v6727, %v6719
      %v6760 = vpack.c.b16 %v6728, %v6720
      %v6761 = vpack.c.b16 %v6729, %v6721
      %v6762 = vpack.c.b16 %v6730, %v6722
      %v6763 = vpack.c.b16 %v6731, %v6723
      %v6764 = vpack.c.b16 %v6732, %v6724
      %v6925 = vunpack.c.l.b16 %v6509
      %v6926 = vunpack.c.l.b16 %v6510
      %v6927 = vunpack.c.l.b16 %v6511
      %v6928 = vunpack.c.l.b16 %v6512
      %v6929 = vunpack.c.l.b16 %v6513
      %v6930 = vunpack.c.l.b16 %v6514
      %v6931 = vunpack.c.l.b16 %v6515
      %v6932 = vunpack.c.l.b16 %v6516
      %v6933 = vunpack.c.l.b16 %v6517
      %v6934 = vunpack.c.l.b16 %v6518
      %v6935 = vunpack.c.l.b16 %v6519
      %v6936 = vunpack.c.l.b16 %v6520
      %v6937 = vunpack.c.l.b16 %v6521
      %v6938 = vunpack.c.l.b16 %v6522
      %v6939 = vunpack.c.l.b16 %v6523
      %v6940 = vunpack.c.l.b16 %v6524
      %v6941 = vunpack.c.l.b16 %v6525
      %v6942 = vunpack.c.l.b16 %v6526
      %v6943 = vunpack.c.l.b16 %v6527
      %v6944 = vunpack.c.l.b16 %v6528
      %v6945 = vunpack.c.l.b16 %v6529
      %v6946 = vunpack.c.l.b16 %v6530
      %v6947 = vunpack.c.l.b16 %v6531
      %v6948 = vunpack.c.l.b16 %v6532
      %v6949 = vunpack.c.l.b16 %v6533
      %v6950 = vunpack.c.l.b16 %v6534
      %v6951 = vunpack.c.l.b16 %v6535
      %v6952 = vunpack.c.l.b16 %v6536
      %v6953 = vunpack.c.l.b16 %v6537
      %v6954 = vunpack.c.l.b16 %v6538
      %v6955 = vunpack.c.l.b16 %v6539
      %v6956 = vunpack.c.l.b16 %v6540
      %v6957 = vunpack.c.l.b16 %v6541
      %v6958 = vunpack.c.l.b16 %v6542
      %v6959 = vunpack.c.l.b16 %v6543
      %v6960 = vunpack.c.l.b16 %v6544
      %v6961 = vunpack.c.l.b16 %v6545
      %v6962 = vunpack.c.l.b16 %v6546
      %v6963 = vunpack.c.l.b16 %v6547
      %v6964 = vunpack.c.l.b16 %v6548
      %v6965 = vunpack.c.l.b16 %v6549
      %v6966 = vunpack.c.l.b16 %v6550
      %v6967 = vunpack.c.l.b16 %v6551
      %v6968 = vunpack.c.l.b16 %v6552
      %v6969 = vunpack.c.l.b16 %v6553
      %v6970 = vunpack.c.l.b16 %v6554
      %v6971 = vunpack.c.l.b16 %v6555
      %v6972 = vunpack.c.l.b16 %v6556
      %v6973 = vunpack.c.l.b16 %v6557
      %v6974 = vunpack.c.l.b16 %v6558
      %v6975 = vunpack.c.l.b16 %v6559
      %v6976 = vunpack.c.l.b16 %v6560
      %v6977 = vunpack.c.l.b16 %v6561
      %v6978 = vunpack.c.l.b16 %v6562
      %v6979 = vunpack.c.l.b16 %v6563
      %v6980 = vunpack.c.l.b16 %v6564
      %v6981 = vunpack.c.l.b16 %v6565
      %v6982 = vunpack.c.l.b16 %v6566
      %v6983 = vunpack.c.l.b16 %v6567
      %v6984 = vunpack.c.l.b16 %v6568
      %v6985 = vunpack.c.l.b16 %v6569
      %v6986 = vunpack.c.l.b16 %v6570
      %v6987 = vunpack.c.l.b16 %v6571
      %v6988 = vunpack.c.l.b16 %v6572
      %v6989 = vunpack.c.l.b16 %v6573
      %v6990 = vunpack.c.l.b16 %v6574
      %v6991 = vunpack.c.l.b16 %v6575
      %v6992 = vunpack.c.l.b16 %v6576
      %v6993 = vunpack.c.l.b16 %v6577
      %v6994 = vunpack.c.l.b16 %v6578
      %v6995 = vunpack.c.l.b16 %v6579
      %v6996 = vunpack.c.l.b16 %v6580
      %v6997 = vunpack.c.l.b16 %v6581
      %v6998 = vunpack.c.l.b16 %v6582
      %v6999 = vunpack.c.l.b16 %v6583
      %v7000 = vunpack.c.l.b16 %v6584
      %v7001 = vunpack.c.l.b16 %v6585
      %v7002 = vunpack.c.l.b16 %v6586
      %v7003 = vunpack.c.l.b16 %v6587
      %v7004 = vunpack.c.l.b16 %v6588
      %v7005 = vunpack.c.l.b16 %v6589
      %v7006 = vunpack.c.l.b16 %v6590
      %v7007 = vunpack.c.l.b16 %v6591
      %v7008 = vunpack.c.l.b16 %v6592
      %v7009 = vunpack.c.l.b16 %v6593
      %v7010 = vunpack.c.l.b16 %v6594
      %v7011 = vunpack.c.l.b16 %v6595
      %v7012 = vunpack.c.l.b16 %v6596
      %v7013 = vunpack.c.l.b16 %v6597
      %v7014 = vunpack.c.l.b16 %v6598
      %v7015 = vunpack.c.l.b16 %v6599
      %v7016 = vunpack.c.l.b16 %v6600
      %v7017 = vunpack.c.l.b16 %v6601
      %v7018 = vunpack.c.l.b16 %v6602
      %v7019 = vunpack.c.l.b16 %v6603
      %v7020 = vunpack.c.l.b16 %v6604
      %v7021 = vunpack.c.l.b16 %v6605
      %v7022 = vunpack.c.l.b16 %v6606
      %v7023 = vunpack.c.l.b16 %v6607
      %v7024 = vunpack.c.l.b16 %v6608
      %v7025 = vunpack.c.l.b16 %v6609
      %v7026 = vunpack.c.l.b16 %v6610
      %v7027 = vunpack.c.l.b16 %v6611
      %v7028 = vunpack.c.l.b16 %v6612
      %v7029 = vunpack.c.l.b16 %v6613
      %v7030 = vunpack.c.l.b16 %v6614
      %v7031 = vunpack.c.l.b16 %v6615
      %v7032 = vunpack.c.l.b16 %v6616
      %v7033 = vunpack.c.l.b16 %v6617
      %v7034 = vunpack.c.l.b16 %v6618
      %v7035 = vunpack.c.l.b16 %v6619
      %v7036 = vunpack.c.l.b16 %v6620
      %v7037 = vunpack.c.l.b16 %v6621
      %v7038 = vunpack.c.l.b16 %v6622
      %v7039 = vunpack.c.l.b16 %v6623
      %v7040 = vunpack.c.l.b16 %v6624
      %v7041 = vunpack.c.l.b16 %v6625
      %v7042 = vunpack.c.l.b16 %v6626
      %v7043 = vunpack.c.l.b16 %v6627
      %v7044 = vunpack.c.l.b16 %v6628
      %v7045 = vunpack.c.l.b16 %v6629
      %v7046 = vunpack.c.l.b16 %v6630
      %v7047 = vunpack.c.l.b16 %v6631
      %v7048 = vunpack.c.l.b16 %v6632
      %v7049 = vunpack.c.l.b16 %v6633
      %v7050 = vunpack.c.l.b16 %v6634
      %v7051 = vunpack.c.l.b16 %v6635
      %v7052 = vunpack.c.l.b16 %v6636
      %v7053 = vpack.c.b16 %v6926, %v6925
      %v7054 = vpack.c.b16 %v6928, %v6927
      %v7055 = vpack.c.b16 %v6930, %v6929
      %v7056 = vpack.c.b16 %v6932, %v6931
      %v7057 = vpack.c.b16 %v6934, %v6933
      %v7058 = vpack.c.b16 %v6936, %v6935
      %v7059 = vpack.c.b16 %v6938, %v6937
      %v7060 = vpack.c.b16 %v6940, %v6939
      %v7061 = vpack.c.b16 %v6942, %v6941
      %v7062 = vpack.c.b16 %v6944, %v6943
      %v7063 = vpack.c.b16 %v6946, %v6945
      %v7064 = vpack.c.b16 %v6948, %v6947
      %v7065 = vpack.c.b16 %v6950, %v6949
      %v7066 = vpack.c.b16 %v6952, %v6951
      %v7067 = vpack.c.b16 %v6954, %v6953
      %v7068 = vpack.c.b16 %v6956, %v6955
      %v7069 = vpack.c.b16 %v6958, %v6957
      %v7070 = vpack.c.b16 %v6960, %v6959
      %v7071 = vpack.c.b16 %v6962, %v6961
      %v7072 = vpack.c.b16 %v6964, %v6963
      %v7073 = vpack.c.b16 %v6966, %v6965
      %v7074 = vpack.c.b16 %v6968, %v6967
      %v7075 = vpack.c.b16 %v6970, %v6969
      %v7076 = vpack.c.b16 %v6972, %v6971
      %v7077 = vpack.c.b16 %v6974, %v6973
      %v7078 = vpack.c.b16 %v6976, %v6975
      %v7079 = vpack.c.b16 %v6978, %v6977
      %v7080 = vpack.c.b16 %v6980, %v6979
      %v7081 = vpack.c.b16 %v6982, %v6981
      %v7082 = vpack.c.b16 %v6984, %v6983
      %v7083 = vpack.c.b16 %v6986, %v6985
      %v7084 = vpack.c.b16 %v6988, %v6987
      %v7085 = vpack.c.b16 %v6990, %v6989
      %v7086 = vpack.c.b16 %v6992, %v6991
      %v7087 = vpack.c.b16 %v6994, %v6993
      %v7088 = vpack.c.b16 %v6996, %v6995
      %v7089 = vpack.c.b16 %v6998, %v6997
      %v7090 = vpack.c.b16 %v7000, %v6999
      %v7091 = vpack.c.b16 %v7002, %v7001
      %v7092 = vpack.c.b16 %v7004, %v7003
      %v7093 = vpack.c.b16 %v7006, %v7005
      %v7094 = vpack.c.b16 %v7008, %v7007
      %v7095 = vpack.c.b16 %v7010, %v7009
      %v7096 = vpack.c.b16 %v7012, %v7011
      %v7097 = vpack.c.b16 %v7014, %v7013
      %v7098 = vpack.c.b16 %v7016, %v7015
      %v7099 = vpack.c.b16 %v7018, %v7017
      %v7100 = vpack.c.b16 %v7020, %v7019
      %v7101 = vpack.c.b16 %v7022, %v7021
      %v7102 = vpack.c.b16 %v7024, %v7023
      %v7103 = vpack.c.b16 %v7026, %v7025
      %v7104 = vpack.c.b16 %v7028, %v7027
      %v7105 = vpack.c.b16 %v7030, %v7029
      %v7106 = vpack.c.b16 %v7032, %v7031
      %v7107 = vpack.c.b16 %v7034, %v7033
      %v7108 = vpack.c.b16 %v7036, %v7035
      %v7109 = vpack.c.b16 %v7038, %v7037
      %v7110 = vpack.c.b16 %v7040, %v7039
      %v7111 = vpack.c.b16 %v7042, %v7041
      %v7112 = vpack.c.b16 %v7044, %v7043
      %v7113 = vpack.c.b16 %v7046, %v7045
      %v7114 = vpack.c.b16 %v7048, %v7047
      %v7115 = vpack.c.b16 %v7050, %v7049
      %v7116 = vpack.c.b16 %v7052, %v7051
      %7181 = vmatprep.subr.bf16.mxu0 0
      %7182 = vmatpush1.bf16.msra.mxu0 %v7053
      %7183 = vmatprep.subr.bf16.mxu0 0
      %7184 = vmatpush1.bf16.msra.mxu0 %v7054
      %7185 = vmatprep.subr.bf16.mxu0 0
      %7186 = vmatpush1.bf16.msra.mxu0 %v7055
      %7187 = vmatprep.subr.bf16.mxu0 0
      %7188 = vmatpush1.bf16.msra.mxu0 %v7056
      %7189 = vmatprep.subr.bf16.mxu0 0
      %7190 = vmatpush1.bf16.msra.mxu0 %v7057
      %7191 = vmatprep.subr.bf16.mxu0 0
      %7192 = vmatpush1.bf16.msra.mxu0 %v7058
      %7193 = vmatprep.subr.bf16.mxu0 0
      %7194 = vmatpush1.bf16.msra.mxu0 %v7059
      %7195 = vmatprep.subr.bf16.mxu0 0
      %7196 = vmatpush1.bf16.msra.mxu0 %v7060
      %7197 = vmatprep.subr.bf16.mxu0 0
      %7198 = vmatpush1.bf16.msra.mxu0 %v7061
      %7199 = vmatprep.subr.bf16.mxu0 0
      %7200 = vmatpush1.bf16.msra.mxu0 %v7062
      %7201 = vmatprep.subr.bf16.mxu0 0
      %7202 = vmatpush1.bf16.msra.mxu0 %v7063
      %7203 = vmatprep.subr.bf16.mxu0 0
      %7204 = vmatpush1.bf16.msra.mxu0 %v7064
      %7205 = vmatprep.subr.bf16.mxu0 0
      %7206 = vmatpush1.bf16.msra.mxu0 %v7065
      %7207 = vmatprep.subr.bf16.mxu0 0
      %7208 = vmatpush1.bf16.msra.mxu0 %v7066
      %7209 = vmatprep.subr.bf16.mxu0 0
      %7210 = vmatpush1.bf16.msra.mxu0 %v7067
      %7211 = vmatprep.subr.bf16.mxu0 0
      %7212 = vmatpush1.bf16.msra.mxu0 %v7068
      %7213 = vmatprep.mubr.bf16.mxu0 %v6734
      %7214 = vmatmul.mubr.bf16.gmra.mrb[0].mxu0 %v6733
      %v7215 = vpop.f32.mrb[0].mxu0
      %v7216 = vadd.f32 0.0, %v7215
      %v7217 = vpop.f32.mrb[0].mxu0
      %v7218 = vpop.f32.mrb[0].mxu0
      %v7219 = vadd.f32 0.0, %v7218
      %v7220 = vpop.f32.mrb[0].mxu0
      %7221 = vmatprep.mubr.bf16.mxu0 %v6742
      %7222 = vmatmul.mubr.bf16.gmra.mrb[0].mxu0 %v6741
      %v7223 = vpop.f32.mrb[0].mxu0
      %v7224 = vadd.f32 0.0, %v7223
      %v7225 = vpop.f32.mrb[0].mxu0
      %v7226 = vpop.f32.mrb[0].mxu0
      %v7227 = vadd.f32 0.0, %v7226
      %v7228 = vpop.f32.mrb[0].mxu0
      %7229 = vmatprep.mubr.bf16.mxu0 %v6750
      %7230 = vmatmul.mubr.bf16.gmra.mrb[0].mxu0 %v6749
      %v7231 = vpop.f32.mrb[0].mxu0
      %v7232 = vadd.f32 0.0, %v7231
      %v7233 = vpop.f32.mrb[0].mxu0
      %v7234 = vpop.f32.mrb[0].mxu0
      %v7235 = vadd.f32 0.0, %v7234
      %v7236 = vpop.f32.mrb[0].mxu0
      %7237 = vmatprep.mubr.bf16.mxu0 %v6758
      %7238 = vmatmul.mubr.bf16.gmra.mrb[0].mxu0 %v6757
      %v7239 = vpop.f32.mrb[0].mxu0
      %v7240 = vadd.f32 0.0, %v7239
      %v7241 = vpop.f32.mrb[0].mxu0
      %v7242 = vpop.f32.mrb[0].mxu0
      %v7243 = vadd.f32 0.0, %v7242
      %v7244 = vpop.f32.mrb[0].mxu0
      %7245 = vdwg.mxu0
      %7246 = vmatprep.subr.bf16.mxu0 0
      %7247 = vmatpush1.bf16.msra.mxu0 %v7069
      %7248 = vmatprep.subr.bf16.mxu0 0
      %7249 = vmatpush1.bf16.msra.mxu0 %v7070
      %7250 = vmatprep.subr.bf16.mxu0 0
      %7251 = vmatpush1.bf16.msra.mxu0 %v7071
      %7252 = vmatprep.subr.bf16.mxu0 0
      %7253 = vmatpush1.bf16.msra.mxu0 %v7072
      %7254 = vmatprep.subr.bf16.mxu0 0
      %7255 = vmatpush1.bf16.msra.mxu0 %v7073
      %7256 = vmatprep.subr.bf16.mxu0 0
      %7257 = vmatpush1.bf16.msra.mxu0 %v7074
      %7258 = vmatprep.subr.bf16.mxu0 0
      %7259 = vmatpush1.bf16.msra.mxu0 %v7075
      %7260 = vmatprep.subr.bf16.mxu0 0
      %7261 = vmatpush1.bf16.msra.mxu0 %v7076
      %7262 = vmatprep.subr.bf16.mxu0 0
      %7263 = vmatpush1.bf16.msra.mxu0 %v7077
      %7264 = vmatprep.subr.bf16.mxu0 0
      %7265 = vmatpush1.bf16.msra.mxu0 %v7078
      %7266 = vmatprep.subr.bf16.mxu0 0
      %7267 = vmatpush1.bf16.msra.mxu0 %v7079
      %7268 = vmatprep.subr.bf16.mxu0 0
      %7269 = vmatpush1.bf16.msra.mxu0 %v7080
      %7270 = vmatprep.subr.bf16.mxu0 0
      %7271 = vmatpush1.bf16.msra.mxu0 %v7081
      %7272 = vmatprep.subr.bf16.mxu0 0
      %7273 = vmatpush1.bf16.msra.mxu0 %v7082
      %7274 = vmatprep.subr.bf16.mxu0 0
      %7275 = vmatpush1.bf16.msra.mxu0 %v7083
      %7276 = vmatprep.subr.bf16.mxu0 0
      %7277 = vmatpush1.bf16.msra.mxu0 %v7084
      %7278 = vmatprep.mubr.bf16.mxu0 %v6736
      %7279 = vmatmul.mubr.bf16.gmra.mrb[0].mxu0 %v6735
      %v7280 = vpop.f32.mrb[0].mxu0
      %v7281 = vadd.f32 %v7216, %v7280
      %v7282 = vpop.f32.mrb[0].mxu0
      %v7283 = vpop.f32.mrb[0].mxu0
      %v7284 = vadd.f32 %v7219, %v7283
      %v7285 = vpop.f32.mrb[0].mxu0
      %7286 = vmatprep.mubr.bf16.mxu0 %v6744
      %7287 = vmatmul.mubr.bf16.gmra.mrb[0].mxu0 %v6743
      %v7288 = vpop.f32.mrb[0].mxu0
      %v7289 = vadd.f32 %v7224, %v7288
      %v7290 = vpop.f32.mrb[0].mxu0
      %v7291 = vpop.f32.mrb[0].mxu0
      %v7292 = vadd.f32 %v7227, %v7291
      %v7293 = vpop.f32.mrb[0].mxu0
      %7294 = vmatprep.mubr.bf16.mxu0 %v6752
      %7295 = vmatmul.mubr.bf16.gmra.mrb[0].mxu0 %v6751
      %v7296 = vpop.f32.mrb[0].mxu0
      %v7297 = vadd.f32 %v7232, %v7296
      %v7298 = vpop.f32.mrb[0].mxu0
      %v7299 = vpop.f32.mrb[0].mxu0
      %v7300 = vadd.f32 %v7235, %v7299
      %v7301 = vpop.f32.mrb[0].mxu0
      %7302 = vmatprep.mubr.bf16.mxu0 %v6760
      %7303 = vmatmul.mubr.bf16.gmra.mrb[0].mxu0 %v6759
      %v7304 = vpop.f32.mrb[0].mxu0
      %v7305 = vadd.f32 %v7240, %v7304
      %v7306 = vpop.f32.mrb[0].mxu0
      %v7307 = vpop.f32.mrb[0].mxu0
      %v7308 = vadd.f32 %v7243, %v7307
      %v7309 = vpop.f32.mrb[0].mxu0
      %7310 = vdwg.mxu0
      %7311 = vmatprep.subr.bf16.mxu0 0
      %7312 = vmatpush1.bf16.msra.mxu0 %v7085
      %7313 = vmatprep.subr.bf16.mxu0 0
      %7314 = vmatpush1.bf16.msra.mxu0 %v7086
      %7315 = vmatprep.subr.bf16.mxu0 0
      %7316 = vmatpush1.bf16.msra.mxu0 %v7087
      %7317 = vmatprep.subr.bf16.mxu0 0
      %7318 = vmatpush1.bf16.msra.mxu0 %v7088
      %7319 = vmatprep.subr.bf16.mxu0 0
      %7320 = vmatpush1.bf16.msra.mxu0 %v7089
      %7321 = vmatprep.subr.bf16.mxu0 0
      %7322 = vmatpush1.bf16.msra.mxu0 %v7090
      %7323 = vmatprep.subr.bf16.mxu0 0
      %7324 = vmatpush1.bf16.msra.mxu0 %v7091
      %7325 = vmatprep.subr.bf16.mxu0 0
      %7326 = vmatpush1.bf16.msra.mxu0 %v7092
      %7327 = vmatprep.subr.bf16.mxu0 0
      %7328 = vmatpush1.bf16.msra.mxu0 %v7093
      %7329 = vmatprep.subr.bf16.mxu0 0
      %7330 = vmatpush1.bf16.msra.mxu0 %v7094
      %7331 = vmatprep.subr.bf16.mxu0 0
      %7332 = vmatpush1.bf16.msra.mxu0 %v7095
      %7333 = vmatprep.subr.bf16.mxu0 0
      %7334 = vmatpush1.bf16.msra.mxu0 %v7096
      %7335 = vmatprep.subr.bf16.mxu0 0
      %7336 = vmatpush1.bf16.msra.mxu0 %v7097
      %7337 = vmatprep.subr.bf16.mxu0 0
      %7338 = vmatpush1.bf16.msra.mxu0 %v7098
      %7339 = vmatprep.subr.bf16.mxu0 0
      %7340 = vmatpush1.bf16.msra.mxu0 %v7099
      %7341 = vmatprep.subr.bf16.mxu0 0
      %7342 = vmatpush1.bf16.msra.mxu0 %v7100
      %7343 = vmatprep.mubr.bf16.mxu0 %v6738
      %7344 = vmatmul.mubr.bf16.gmra.mrb[0].mxu0 %v6737
      %v7345 = vpop.f32.mrb[0].mxu0
      %v7346 = vadd.f32 %v7281, %v7345
      %v7347 = vpop.f32.mrb[0].mxu0
      %v7348 = vpop.f32.mrb[0].mxu0
      %v7349 = vadd.f32 %v7284, %v7348
      %v7350 = vpop.f32.mrb[0].mxu0
      %7351 = vmatprep.mubr.bf16.mxu0 %v6746
      %7352 = vmatmul.mubr.bf16.gmra.mrb[0].mxu0 %v6745
      %v7353 = vpop.f32.mrb[0].mxu0
      %v7354 = vadd.f32 %v7289, %v7353
      %v7355 = vpop.f32.mrb[0].mxu0
      %v7356 = vpop.f32.mrb[0].mxu0
      %v7357 = vadd.f32 %v7292, %v7356
      %v7358 = vpop.f32.mrb[0].mxu0
      %7359 = vmatprep.mubr.bf16.mxu0 %v6754
      %7360 = vmatmul.mubr.bf16.gmra.mrb[0].mxu0 %v6753
      %v7361 = vpop.f32.mrb[0].mxu0
      %v7362 = vadd.f32 %v7297, %v7361
      %v7363 = vpop.f32.mrb[0].mxu0
      %v7364 = vpop.f32.mrb[0].mxu0
      %v7365 = vadd.f32 %v7300, %v7364
      %v7366 = vpop.f32.mrb[0].mxu0
      %7367 = vmatprep.mubr.bf16.mxu0 %v6762
      %7368 = vmatmul.mubr.bf16.gmra.mrb[0].mxu0 %v6761
      %v7369 = vpop.f32.mrb[0].mxu0
      %v7370 = vadd.f32 %v7305, %v7369
      %v7371 = vpop.f32.mrb[0].mxu0
      %v7372 = vpop.f32.mrb[0].mxu0
      %v7373 = vadd.f32 %v7308, %v7372
      %v7374 = vpop.f32.mrb[0].mxu0
      %7375 = vdwg.mxu0
      %7376 = vmatprep.subr.bf16.mxu0 0
      %7377 = vmatpush1.bf16.msra.mxu0 %v7101
      %7378 = vmatprep.subr.bf16.mxu0 0
      %7379 = vmatpush1.bf16.msra.mxu0 %v7102
      %7380 = vmatprep.subr.bf16.mxu0 0
      %7381 = vmatpush1.bf16.msra.mxu0 %v7103
      %7382 = vmatprep.subr.bf16.mxu0 0
      %7383 = vmatpush1.bf16.msra.mxu0 %v7104
      %7384 = vmatprep.subr.bf16.mxu0 0
      %7385 = vmatpush1.bf16.msra.mxu0 %v7105
      %7386 = vmatprep.subr.bf16.mxu0 0
      %7387 = vmatpush1.bf16.msra.mxu0 %v7106
      %7388 = vmatprep.subr.bf16.mxu0 0
      %7389 = vmatpush1.bf16.msra.mxu0 %v7107
      %7390 = vmatprep.subr.bf16.mxu0 0
      %7391 = vmatpush1.bf16.msra.mxu0 %v7108
      %7392 = vmatprep.subr.bf16.mxu0 0
      %7393 = vmatpush1.bf16.msra.mxu0 %v7109
      %7394 = vmatprep.subr.bf16.mxu0 0
      %7395 = vmatpush1.bf16.msra.mxu0 %v7110
      %7396 = vmatprep.subr.bf16.mxu0 0
      %7397 = vmatpush1.bf16.msra.mxu0 %v7111
      %7398 = vmatprep.subr.bf16.mxu0 0
      %7399 = vmatpush1.bf16.msra.mxu0 %v7112
      %7400 = vmatprep.subr.bf16.mxu0 0
      %7401 = vmatpush1.bf16.msra.mxu0 %v7113
      %7402 = vmatprep.subr.bf16.mxu0 0
      %7403 = vmatpush1.bf16.msra.mxu0 %v7114
      %7404 = vmatprep.subr.bf16.mxu0 0
      %7405 = vmatpush1.bf16.msra.mxu0 %v7115
      %7406 = vmatprep.subr.bf16.mxu0 0
      %7407 = vmatpush1.bf16.msra.mxu0 %v7116
      %7408 = vmatprep.mubr.bf16.mxu0 %v6740
      %7409 = vmatmul.mubr.bf16.gmra.mrb[0].mxu0 %v6739
      %v7410 = vpop.f32.mrb[0].mxu0
      %v7411 = vadd.f32 %v7346, %v7410
      %v7412 = vpop.f32.mrb[0].mxu0
      %v7413 = vpop.f32.mrb[0].mxu0
      %v7414 = vadd.f32 %v7349, %v7413
      %v7415 = vpop.f32.mrb[0].mxu0
      %7416 = vmatprep.mubr.bf16.mxu0 %v6748
      %7417 = vmatmul.mubr.bf16.gmra.mrb[0].mxu0 %v6747
      %v7418 = vpop.f32.mrb[0].mxu0
      %v7419 = vadd.f32 %v7354, %v7418
      %v7420 = vpop.f32.mrb[0].mxu0
      %v7421 = vpop.f32.mrb[0].mxu0
      %v7422 = vadd.f32 %v7357, %v7421
      %v7423 = vpop.f32.mrb[0].mxu0
      %7424 = vmatprep.mubr.bf16.mxu0 %v6756
      %7425 = vmatmul.mubr.bf16.gmra.mrb[0].mxu0 %v6755
      %v7426 = vpop.f32.mrb[0].mxu0
      %v7427 = vadd.f32 %v7362, %v7426
      %v7428 = vpop.f32.mrb[0].mxu0
      %v7429 = vpop.f32.mrb[0].mxu0
      %v7430 = vadd.f32 %v7365, %v7429
      %v7431 = vpop.f32.mrb[0].mxu0
      %7432 = vmatprep.mubr.bf16.mxu0 %v6764
      %7433 = vmatmul.mubr.bf16.gmra.mrb[0].mxu0 %v6763
      %v7434 = vpop.f32.mrb[0].mxu0
      %v7435 = vadd.f32 %v7370, %v7434
      %v7436 = vpop.f32.mrb[0].mxu0
      %v7437 = vpop.f32.mrb[0].mxu0
      %v7438 = vadd.f32 %v7373, %v7437
      %v7439 = vpop.f32.mrb[0].mxu0
      %7440 = vdwg.mxu0
      %v7441 = vld [vmem:[%s51] sm:$0xf]
      %v7442 = vld [vmem:[%s51 + $0x4] sm:$0xf]
      %v7443 = vld [vmem:[%s51 + $0x8] sm:$0xf]
      %v7444 = vld [vmem:[%s51 + $0xc] sm:$0xf]
      %v7445 = vld [vmem:[%s51 + $0x10] sm:$0xf]
      %v7446 = vld [vmem:[%s51 + $0x14] sm:$0xf]
      %v7447 = vld [vmem:[%s51 + $0x18] sm:$0xf]
      %v7448 = vld [vmem:[%s51 + $0x1c] sm:$0xf]
      %v7449 = vld [vmem:[%s51 + $0x20] sm:$0xf]
      %v7450 = vld [vmem:[%s51 + $0x24] sm:$0xf]
      %v7451 = vld [vmem:[%s51 + $0x28] sm:$0xf]
      %v7452 = vld [vmem:[%s51 + $0x2c] sm:$0xf]
      %v7453 = vld [vmem:[%s51 + $0x30] sm:$0xf]
      %v7454 = vld [vmem:[%s51 + $0x34] sm:$0xf]
      %v7455 = vld [vmem:[%s51 + $0x38] sm:$0xf]
      %v7456 = vld [vmem:[%s51 + $0x3c] sm:$0xf]
      %v7457 = vld [vmem:[%s51 + $0x40] sm:$0xf]
      %v7458 = vld [vmem:[%s51 + $0x44] sm:$0xf]
      %v7459 = vpack.c.bf16 %v7414, %v7411
      %v7460 = vpack.c.bf16 %v7422, %v7419
      %v7461 = vpack.c.bf16 %v7430, %v7427
      %v7462 = vpack.c.bf16 %v7438, %v7435
      %v7481 = vunpack.c.l.b16 %v7441
      %v7482 = vunpack.c.l.b16 %v7442
      %v7483 = vunpack.c.l.b16 %v7443
      %v7484 = vunpack.c.l.b16 %v7444
      %v7485 = vunpack.c.l.b16 %v7445
      %v7486 = vunpack.c.l.b16 %v7446
      %v7487 = vunpack.c.l.b16 %v7447
      %v7488 = vunpack.c.l.b16 %v7448
      %v7489 = vunpack.c.l.b16 %v7449
      %v7490 = vunpack.c.l.b16 %v7450
      %v7491 = vunpack.c.l.b16 %v7451
      %v7492 = vunpack.c.l.b16 %v7452
      %v7493 = vunpack.c.l.b16 %v7453
      %v7494 = vunpack.c.l.b16 %v7454
      %v7495 = vunpack.c.l.b16 %v7455
      %v7496 = vunpack.c.l.b16 %v7456
      %v7497 = vunpack.c.l.b16 %v7457
      %v7498 = vunpack.c.l.b16 %v7458
      %v7499 = vpack.c.b16 %v7482, %v7481
      %v7500 = vpack.c.b16 %v7484, %v7483
      %v7501 = vpack.c.b16 %v7486, %v7485
      %v7502 = vpack.c.b16 %v7488, %v7487
      %v7503 = vpack.c.b16 %v7490, %v7489
      %v7504 = vpack.c.b16 %v7492, %v7491
      %v7505 = vpack.c.b16 %v7494, %v7493
      %v7506 = vpack.c.b16 %v7496, %v7495
      %v7507 = vpack.c.b16 %v7498, %v7497
      %v7509 = vsel %vm1285, %v7499, 0
      %v7512 = vsel %vm1285, %v7500, 0
      %v7515 = vsel %vm1285, %v7501, 0
      %v7518 = vsel %vm1285, %v7502, 0
      %v7521 = vsel %vm1285, %v7503, 0
      %v7524 = vsel %vm1285, %v7504, 0
      %v7527 = vsel %vm1285, %v7505, 0
      %v7530 = vsel %vm1285, %v7506, 0
      %v7533 = vsel %vm1285, %v7507, 0
      %7535 = vmatprep.subr.bf16.mxu0 0
      %7536 = vmatpush1.bf16.msra.mxu0 %v7459
      %7537 = vmatprep.subr.bf16.mxu0 0
      %7538 = vmatpush1.bf16.msra.mxu0 %v7460
      %7539 = vmatprep.subr.bf16.mxu0 0
      %7540 = vmatpush1.bf16.msra.mxu0 %v7461
      %7541 = vmatprep.subr.bf16.mxu0 0
      %7542 = vmatpush1.bf16.msra.mxu0 %v7462
      %7543 = vmatprep.subr.bf16.mxu0 0
      %7544 = vmatpush1.bf16.msra.mxu0 0
      %7545 = vmatprep.subr.bf16.mxu0 0
      %7546 = vmatpush1.bf16.msra.mxu0 0
      %7547 = vmatprep.subr.bf16.mxu0 0
      %7548 = vmatpush1.bf16.msra.mxu0 0
      %7549 = vmatprep.subr.bf16.mxu0 0
      %7550 = vmatpush1.bf16.msra.mxu0 0
      %7551 = vmatprep.subr.bf16.mxu0 0
      %7552 = vmatpush1.bf16.msra.mxu0 0
      %7553 = vmatprep.subr.bf16.mxu0 0
      %7554 = vmatpush1.bf16.msra.mxu0 0
      %7555 = vmatprep.subr.bf16.mxu0 0
      %7556 = vmatpush1.bf16.msra.mxu0 0
      %7557 = vmatprep.subr.bf16.mxu0 0
      %7558 = vmatpush1.bf16.msra.mxu0 0
      %7559 = vmatprep.subr.bf16.mxu0 0
      %7560 = vmatpush1.bf16.msra.mxu0 0
      %7561 = vmatprep.subr.bf16.mxu0 0
      %7562 = vmatpush1.bf16.msra.mxu0 0
      %7563 = vmatprep.subr.bf16.mxu0 0
      %7564 = vmatpush1.bf16.msra.mxu0 0
      %7565 = vmatprep.subr.bf16.mxu0 0
      %7566 = vmatpush1.bf16.msra.mxu0 0
      %7567 = vmatprep.mubr.bf16.mxu0 0
      %7568 = vmatmul.mubr.bf16.gmra.mrb[0].mxu0 %v7509
      %v7569 = vpop.f32.mrb[0].mxu0
      %v7570 = vadd.f32 0.0, %v7569
      %v7571 = vpop.f32.mrb[0].mxu0
      %v7572 = vpop.f32.mrb[0].mxu0
      %v7573 = vadd.f32 0.0, %v7572
      %v7574 = vpop.f32.mrb[0].mxu0
      %7575 = vmatprep.mubr.bf16.mxu0 0
      %7576 = vmatmul.mubr.bf16.gmra.mrb[0].mxu0 %v7512
      %v7577 = vpop.f32.mrb[0].mxu0
      %v7578 = vadd.f32 0.0, %v7577
      %v7579 = vpop.f32.mrb[0].mxu0
      %v7580 = vpop.f32.mrb[0].mxu0
      %v7581 = vadd.f32 0.0, %v7580
      %v7582 = vpop.f32.mrb[0].mxu0
      %7583 = vmatprep.mubr.bf16.mxu0 0
      %7584 = vmatmul.mubr.bf16.gmra.mrb[0].mxu0 %v7515
      %v7585 = vpop.f32.mrb[0].mxu0
      %v7586 = vadd.f32 0.0, %v7585
      %v7587 = vpop.f32.mrb[0].mxu0
      %v7588 = vpop.f32.mrb[0].mxu0
      %v7589 = vadd.f32 0.0, %v7588
      %v7590 = vpop.f32.mrb[0].mxu0
      %7591 = vmatprep.mubr.bf16.mxu0 0
      %7592 = vmatmul.mubr.bf16.gmra.mrb[0].mxu0 %v7518
      %v7593 = vpop.f32.mrb[0].mxu0
      %v7594 = vadd.f32 0.0, %v7593
      %v7595 = vpop.f32.mrb[0].mxu0
      %v7596 = vpop.f32.mrb[0].mxu0
      %v7597 = vadd.f32 0.0, %v7596
      %v7598 = vpop.f32.mrb[0].mxu0
      %7599 = vmatprep.mubr.bf16.mxu0 0
      %7600 = vmatmul.mubr.bf16.gmra.mrb[0].mxu0 %v7521
      %v7601 = vpop.f32.mrb[0].mxu0
      %v7602 = vadd.f32 0.0, %v7601
      %v7603 = vpop.f32.mrb[0].mxu0
      %v7604 = vpop.f32.mrb[0].mxu0
      %v7605 = vadd.f32 0.0, %v7604
      %v7606 = vpop.f32.mrb[0].mxu0
      %7607 = vmatprep.mubr.bf16.mxu0 0
      %7608 = vmatmul.mubr.bf16.gmra.mrb[0].mxu0 %v7524
      %v7609 = vpop.f32.mrb[0].mxu0
      %v7610 = vadd.f32 0.0, %v7609
      %v7611 = vpop.f32.mrb[0].mxu0
      %v7612 = vpop.f32.mrb[0].mxu0
      %v7613 = vadd.f32 0.0, %v7612
      %v7614 = vpop.f32.mrb[0].mxu0
      %7615 = vmatprep.mubr.bf16.mxu0 0
      %7616 = vmatmul.mubr.bf16.gmra.mrb[0].mxu0 %v7527
      %v7617 = vpop.f32.mrb[0].mxu0
      %v7618 = vadd.f32 0.0, %v7617
      %v7619 = vpop.f32.mrb[0].mxu0
      %v7620 = vpop.f32.mrb[0].mxu0
      %v7621 = vadd.f32 0.0, %v7620
      %v7622 = vpop.f32.mrb[0].mxu0
      %7623 = vmatprep.mubr.bf16.mxu0 0
      %7624 = vmatmul.mubr.bf16.gmra.mrb[0].mxu0 %v7530
      %v7625 = vpop.f32.mrb[0].mxu0
      %v7626 = vadd.f32 0.0, %v7625
      %v7627 = vpop.f32.mrb[0].mxu0
      %v7628 = vpop.f32.mrb[0].mxu0
      %v7629 = vadd.f32 0.0, %v7628
      %v7630 = vpop.f32.mrb[0].mxu0
      %7631 = vmatprep.mubr.bf16.mxu0 0
      %7632 = vmatmul.mubr.bf16.gmra.mrb[0].mxu0 %v7533
      %v7633 = vpop.f32.mrb[0].mxu0
      %v7634 = vadd.f32 0.0, %v7633
      %v7635 = vpop.f32.mrb[0].mxu0
      %v7636 = vpop.f32.mrb[0].mxu0
      %v7637 = vadd.f32 0.0, %v7636
      %v7638 = vpop.f32.mrb[0].mxu0
      %7639 = vdwg.mxu0
      %7642 = vrot.lane.b32.xlu0 %v7578, 12
      %v7643 = vpop.permute.xlu0 %7642
      %7644 = vrot.lane.b32.xlu0 %v7581, 12
      %v7645 = vpop.permute.xlu0 %7644
      %7650 = vrot.lane.b32.xlu0 %v7586, 24
      %v7651 = vpop.permute.xlu0 %7650
      %7652 = vrot.lane.b32.xlu0 %v7589, 24
      %v7653 = vpop.permute.xlu0 %7652
      %7658 = vrot.lane.b32.xlu0 %v7594, 36
      %v7659 = vpop.permute.xlu0 %7658
      %7660 = vrot.lane.b32.xlu0 %v7597, 36
      %v7661 = vpop.permute.xlu0 %7660
      %7666 = vrot.lane.b32.xlu0 %v7602, 48
      %v7667 = vpop.permute.xlu0 %7666
      %7668 = vrot.lane.b32.xlu0 %v7605, 48
      %v7669 = vpop.permute.xlu0 %7668
      %7674 = vrot.lane.b32.xlu0 %v7610, 60
      %v7675 = vpop.permute.xlu0 %7674
      %7676 = vrot.lane.b32.xlu0 %v7613, 60
      %v7677 = vpop.permute.xlu0 %7676
      %7682 = vrot.lane.b32.xlu0 %v7618, 72
      %v7683 = vpop.permute.xlu0 %7682
      %7684 = vrot.lane.b32.xlu0 %v7621, 72
      %v7685 = vpop.permute.xlu0 %7684
      %7690 = vrot.lane.b32.xlu0 %v7626, 84
      %v7691 = vpop.permute.xlu0 %7690
      %7692 = vrot.lane.b32.xlu0 %v7629, 84
      %v7693 = vpop.permute.xlu0 %7692
      %7698 = vrot.lane.b32.xlu0 %v7634, 96
      %v7699 = vpop.permute.xlu0 %7698
      %7700 = vrot.lane.b32.xlu0 %v7637, 96
      %v7701 = vpop.permute.xlu0 %7700
      %vm7704 = vcmask 97280
      %v7705 = vsel %vm7704, %v7570, %v7643
      %v7706 = vsel %vm7704, %v7573, %v7645
      %vm7707 = vcmask 195584
      %v7708 = vsel %vm7707, %v7705, %v7651
      %v7709 = vsel %vm7707, %v7706, %v7653
      %vm7710 = vcmask 293888
      %v7711 = vsel %vm7710, %v7708, %v7659
      %v7712 = vsel %vm7710, %v7709, %v7661
      %vm7713 = vcmask 392192
      %v7714 = vsel %vm7713, %v7711, %v7667
      %v7715 = vsel %vm7713, %v7712, %v7669
      %vm7716 = vcmask 490496
      %v7717 = vsel %vm7716, %v7714, %v7675
      %v7718 = vsel %vm7716, %v7715, %v7677
      %vm7719 = vcmask 588800
      %v7720 = vsel %vm7719, %v7717, %v7683
      %v7721 = vsel %vm7719, %v7718, %v7685
      %vm7722 = vcmask 687104
      %v7723 = vsel %vm7722, %v7720, %v7691
      %v7724 = vsel %vm7722, %v7721, %v7693
      %vm7725 = vcmask 785408
      %v7726 = vsel %vm7725, %v7723, %v7699
      %v7727 = vsel %vm7725, %v7724, %v7701
      %vm7728 = vcmask 883712
      %v7729 = vsel %vm7728, %v7726, 0.0
      %v7730 = vsel %vm7728, %v7727, 0.0
      %v7731 = vld [vmem:[%s53] sm:$0xff]
      %v7732 = vld [vmem:[%s53 + $0x8] sm:$0xff]
      %v7733 = vld [vmem:[%s53 + $0x10] sm:$0xff]
      %v7734 = vld [vmem:[%s53 + $0x18] sm:$0xff]
      %v7735 = vld [vmem:[%s53 + $0x20] sm:$0xff]
      %v7736 = vld [vmem:[%s53 + $0x28] sm:$0xff]
      %v7737 = vld [vmem:[%s53 + $0x30] sm:$0xff]
      %v7738 = vld [vmem:[%s53 + $0x38] sm:$0xff]
      %v7739 = vld [vmem:[%s53 + $0x40] sm:$0xff]
      %v7740 = vld [vmem:[%s53 + $0x48] sm:$0xff]
      %v7741 = vld [vmem:[%s53 + $0x50] sm:$0xff]
      %v7742 = vld [vmem:[%s53 + $0x58] sm:$0xff]
      %v7743 = vld [vmem:[%s53 + $0x60] sm:$0xff]
      %v7744 = vld [vmem:[%s53 + $0x68] sm:$0xff]
      %v7745 = vld [vmem:[%s53 + $0x70] sm:$0xff]
      %v7746 = vld [vmem:[%s53 + $0x78] sm:$0xff]
      %v7747 = vpack.c.bf16 %v7730, %v7729
      %v7764 = vunpack.c.l.b16 %v7731
      %v7765 = vunpack.c.h.b16 %v7731
      %v7766 = vunpack.c.l.b16 %v7732
      %v7767 = vunpack.c.h.b16 %v7732
      %v7768 = vunpack.c.l.b16 %v7733
      %v7769 = vunpack.c.h.b16 %v7733
      %v7770 = vunpack.c.l.b16 %v7734
      %v7771 = vunpack.c.h.b16 %v7734
      %v7772 = vunpack.c.l.b16 %v7735
      %v7773 = vunpack.c.h.b16 %v7735
      %v7774 = vunpack.c.l.b16 %v7736
      %v7775 = vunpack.c.h.b16 %v7736
      %v7776 = vunpack.c.l.b16 %v7737
      %v7777 = vunpack.c.h.b16 %v7737
      %v7778 = vunpack.c.l.b16 %v7738
      %v7779 = vunpack.c.h.b16 %v7738
      %v7780 = vunpack.c.l.b16 %v7739
      %v7781 = vunpack.c.h.b16 %v7739
      %v7782 = vunpack.c.l.b16 %v7740
      %v7783 = vunpack.c.h.b16 %v7740
      %v7784 = vunpack.c.l.b16 %v7741
      %v7785 = vunpack.c.h.b16 %v7741
      %v7786 = vunpack.c.l.b16 %v7742
      %v7787 = vunpack.c.h.b16 %v7742
      %v7788 = vunpack.c.l.b16 %v7743
      %v7789 = vunpack.c.h.b16 %v7743
      %v7790 = vunpack.c.l.b16 %v7744
      %v7791 = vunpack.c.h.b16 %v7744
      %v7792 = vunpack.c.l.b16 %v7745
      %v7793 = vunpack.c.h.b16 %v7745
      %v7794 = vunpack.c.l.b16 %v7746
      %v7795 = vunpack.c.h.b16 %v7746
      %v7796 = vpack.c.b16 %v7766, %v7764
      %v7797 = vpack.c.b16 %v7767, %v7765
      %v7798 = vpack.c.b16 %v7770, %v7768
      %v7799 = vpack.c.b16 %v7771, %v7769
      %v7800 = vpack.c.b16 %v7774, %v7772
      %v7801 = vpack.c.b16 %v7775, %v7773
      %v7802 = vpack.c.b16 %v7778, %v7776
      %v7803 = vpack.c.b16 %v7779, %v7777
      %v7804 = vpack.c.b16 %v7782, %v7780
      %v7805 = vpack.c.b16 %v7783, %v7781
      %v7806 = vpack.c.b16 %v7786, %v7784
      %v7807 = vpack.c.b16 %v7787, %v7785
      %v7808 = vpack.c.b16 %v7790, %v7788
      %v7809 = vpack.c.b16 %v7791, %v7789
      %v7810 = vpack.c.b16 %v7794, %v7792
      %v7811 = vpack.c.b16 %v7795, %v7793
      %7828 = vmatprep.subr.bf16.mxu0 %v7797
      %7829 = vmatpush1.bf16.msra.mxu0 %v7796
      %7830 = vmatprep.subr.bf16.mxu0 %v7799
      %7831 = vmatpush1.bf16.msra.mxu0 %v7798
      %7832 = vmatprep.subr.bf16.mxu0 %v7801
      %7833 = vmatpush1.bf16.msra.mxu0 %v7800
      %7834 = vmatprep.subr.bf16.mxu0 %v7803
      %7835 = vmatpush1.bf16.msra.mxu0 %v7802
      %7836 = vmatprep.subr.bf16.mxu0 %v7805
      %7837 = vmatpush1.bf16.msra.mxu0 %v7804
      %7838 = vmatprep.subr.bf16.mxu0 %v7807
      %7839 = vmatpush1.bf16.msra.mxu0 %v7806
      %7840 = vmatprep.subr.bf16.mxu0 %v7809
      %7841 = vmatpush1.bf16.msra.mxu0 %v7808
      %7842 = vmatprep.subr.bf16.mxu0 %v7811
      %7843 = vmatpush1.bf16.msra.mxu0 %v7810
      %7844 = vmatprep.subr.bf16.mxu0 0
      %7845 = vmatpush1.bf16.msra.mxu0 0
      %7846 = vmatprep.subr.bf16.mxu0 0
      %7847 = vmatpush1.bf16.msra.mxu0 0
      %7848 = vmatprep.subr.bf16.mxu0 0
      %7849 = vmatpush1.bf16.msra.mxu0 0
      %7850 = vmatprep.subr.bf16.mxu0 0
      %7851 = vmatpush1.bf16.msra.mxu0 0
      %7852 = vmatprep.subr.bf16.mxu0 0
      %7853 = vmatpush1.bf16.msra.mxu0 0
      %7854 = vmatprep.subr.bf16.mxu0 0
      %7855 = vmatpush1.bf16.msra.mxu0 0
      %7856 = vmatprep.subr.bf16.mxu0 0
      %7857 = vmatpush1.bf16.msra.mxu0 0
      %7858 = vmatprep.subr.bf16.mxu0 0
      %7859 = vmatpush1.bf16.msra.mxu0 0
      %7860 = vmatprep.mubr.bf16.mxu0 0
      %7861 = vmatmul.mubr.bf16.gmra.mrb[0].mxu0 %v7747
      %v7862 = vpop.f32.mrb[0].mxu0
      %v7863 = vadd.f32 0.0, %v7862
      %v7864 = vpop.f32.mrb[0].mxu0
      %v7865 = vadd.f32 0.0, %v7864
      %v7866 = vpop.f32.mrb[0].mxu0
      %v7867 = vadd.f32 0.0, %v7866
      %v7868 = vpop.f32.mrb[0].mxu0
      %v7869 = vadd.f32 0.0, %v7868
      %7870 = vdwg.mxu0
      %v7871 = vmul.f32 %v7863, 0.5
      %v7872 = vmul.f32 %v7865, 0.5
      %v7873 = vmul.f32 %v7867, 0.5
      %v7874 = vmul.f32 %v7869, 0.5
      %v7875 = vmul.f32 %v7863, 0.70710677
      %v7876 = vmul.f32 %v7865, 0.70710677
      %v7877 = vmul.f32 %v7867, 0.70710677
      %v7878 = vmul.f32 %v7869, 0.70710677
      %v7879 = verf.f32.pop %v7875
      %v7880 = verf.f32.pop %v7876
      %v7881 = verf.f32.pop %v7877
      %v7882 = verf.f32.pop %v7878
      %v7883 = vadd.f32 %v7879, 1.0
      %v7884 = vadd.f32 %v7880, 1.0
      %v7885 = vadd.f32 %v7881, 1.0
      %v7886 = vadd.f32 %v7882, 1.0
      %v7887 = vmul.f32 %v7871, %v7883
      %v7888 = vmul.f32 %v7872, %v7884
      %v7889 = vmul.f32 %v7873, %v7885
      %v7890 = vmul.f32 %v7874, %v7886
      %v7891 = vadd.f32 %v6473, %v7887
      %v7892 = vadd.f32 %v6474, %v7888
      %v7893 = vadd.f32 %v6475, %v7889
      %v7894 = vadd.f32 %v6476, %v7890
      %v7895 = vld [vmem:[%s55] sm:$0xff]
      %v7896 = vld [vmem:[%s55 + $0x8] sm:$0xff]
      %v7897 = vld [vmem:[%s55 + $0x10] sm:$0xff]
      %v7898 = vld [vmem:[%s55 + $0x18] sm:$0xff]
      %v7899 = vadd.f32 %v7891, %v7895
      %v7900 = vadd.f32 %v7892, %v7896
      %v7901 = vadd.f32 %v7893, %v7897
      %v7902 = vadd.f32 %v7894, %v7898
      %v7903 = vld [vmem:[%s57] sm:$0xff]
      %v7904 = vld [vmem:[%s57 + $0x8] sm:$0xff]
      %v7905 = vld [vmem:[%s57 + $0x10] sm:$0xff]
      %v7906 = vld [vmem:[%s57 + $0x18] sm:$0xff]
      %v7907 = vld [vmem:[%s57 + $0x20] sm:$0xff]
      %v7908 = vld [vmem:[%s57 + $0x28] sm:$0xff]
      %v7909 = vld [vmem:[%s57 + $0x30] sm:$0xff]
      %v7910 = vld [vmem:[%s57 + $0x38] sm:$0xff]
      %v7911 = vld [vmem:[%s57 + $0x40] sm:$0xff]
      %v7912 = vld [vmem:[%s57 + $0x48] sm:$0xff]
      %v7913 = vld [vmem:[%s57 + $0x50] sm:$0xff]
      %v7914 = vld [vmem:[%s57 + $0x58] sm:$0xff]
      %v7915 = vld [vmem:[%s57 + $0x60] sm:$0xff]
      %v7916 = vld [vmem:[%s57 + $0x68] sm:$0xff]
      %v7917 = vld [vmem:[%s57 + $0x70] sm:$0xff]
      %v7918 = vld [vmem:[%s57 + $0x78] sm:$0xff]
      %v7919 = vld [vmem:[%s57 + $0x80] sm:$0xff]
      %v7920 = vld [vmem:[%s57 + $0x88] sm:$0xff]
      %v7921 = vld [vmem:[%s57 + $0x90] sm:$0xff]
      %v7922 = vld [vmem:[%s57 + $0x98] sm:$0xff]
      %v7923 = vld [vmem:[%s57 + $0xa0] sm:$0xff]
      %v7924 = vld [vmem:[%s57 + $0xa8] sm:$0xff]
      %v7925 = vld [vmem:[%s57 + $0xb0] sm:$0xff]
      %v7926 = vld [vmem:[%s57 + $0xb8] sm:$0xff]
      %v7927 = vld [vmem:[%s57 + $0xc0] sm:$0xff]
      %v7928 = vld [vmem:[%s57 + $0xc8] sm:$0xff]
      %v7929 = vld [vmem:[%s57 + $0xd0] sm:$0xff]
      %v7930 = vld [vmem:[%s57 + $0xd8] sm:$0xff]
      %v7931 = vld [vmem:[%s57 + $0xe0] sm:$0xff]
      %v7932 = vld [vmem:[%s57 + $0xe8] sm:$0xff]
      %v7933 = vld [vmem:[%s57 + $0xf0] sm:$0xff]
      %v7934 = vld [vmem:[%s57 + $0xf8] sm:$0xff]
      %v7935 = vpack.c.bf16 %v7901, %v7899
      %v7936 = vpack.c.bf16 %v7902, %v7900
      %v7937 = vld [vmem:[%s59] sm:$0x3]
      %v7939 = vlaneseq
      %v7940 = vshrl.u32 %v7939, 7
      %v7941 = vsub.s32 0, %v7940
      %v7942 = vrot.slane %v7937, %v7941
      %v7943 = vlaneseq
      %v7944 = vshrl.u32 %v7943, 7
      %v7945 = vsub.s32 1, %v7944
      %v7946 = vrot.slane %v7937, %v7945
      %v7981 = vunpack.c.l.b16 %v7903
      %v7982 = vunpack.c.h.b16 %v7903
      %v7983 = vunpack.c.l.b16 %v7904
      %v7984 = vunpack.c.h.b16 %v7904
      %v7985 = vunpack.c.l.b16 %v7905
      %v7986 = vunpack.c.h.b16 %v7905
      %v7987 = vunpack.c.l.b16 %v7906
      %v7988 = vunpack.c.h.b16 %v7906
      %v7989 = vunpack.c.l.b16 %v7907
      %v7990 = vunpack.c.h.b16 %v7907
      %v7991 = vunpack.c.l.b16 %v7908
      %v7992 = vunpack.c.h.b16 %v7908
      %v7993 = vunpack.c.l.b16 %v7909
      %v7994 = vunpack.c.h.b16 %v7909
      %v7995 = vunpack.c.l.b16 %v7910
      %v7996 = vunpack.c.h.b16 %v7910
      %v7997 = vunpack.c.l.b16 %v7911
      %v7998 = vunpack.c.h.b16 %v7911
      %v7999 = vunpack.c.l.b16 %v7912
      %v8000 = vunpack.c.h.b16 %v7912
      %v8001 = vunpack.c.l.b16 %v7913
      %v8002 = vunpack.c.h.b16 %v7913
      %v8003 = vunpack.c.l.b16 %v7914
      %v8004 = vunpack.c.h.b16 %v7914
      %v8005 = vunpack.c.l.b16 %v7915
      %v8006 = vunpack.c.h.b16 %v7915
      %v8007 = vunpack.c.l.b16 %v7916
      %v8008 = vunpack.c.h.b16 %v7916
      %v8009 = vunpack.c.l.b16 %v7917
      %v8010 = vunpack.c.h.b16 %v7917
      %v8011 = vunpack.c.l.b16 %v7918
      %v8012 = vunpack.c.h.b16 %v7918
      %v8013 = vunpack.c.l.b16 %v7919
      %v8014 = vunpack.c.h.b16 %v7919
      %v8015 = vunpack.c.l.b16 %v7920
      %v8016 = vunpack.c.h.b16 %v7920
      %v8017 = vunpack.c.l.b16 %v7921
      %v8018 = vunpack.c.h.b16 %v7921
      %v8019 = vunpack.c.l.b16 %v7922
      %v8020 = vunpack.c.h.b16 %v7922
      %v8021 = vunpack.c.l.b16 %v7923
      %v8022 = vunpack.c.h.b16 %v7923
      %v8023 = vunpack.c.l.b16 %v7924
      %v8024 = vunpack.c.h.b16 %v7924
      %v8025 = vunpack.c.l.b16 %v7925
      %v8026 = vunpack.c.h.b16 %v7925
      %v8027 = vunpack.c.l.b16 %v7926
      %v8028 = vunpack.c.h.b16 %v7926
      %v8029 = vunpack.c.l.b16 %v7927
      %v8030 = vunpack.c.h.b16 %v7927
      %v8031 = vunpack.c.l.b16 %v7928
      %v8032 = vunpack.c.h.b16 %v7928
      %v8033 = vunpack.c.l.b16 %v7929
      %v8034 = vunpack.c.h.b16 %v7929
      %v8035 = vunpack.c.l.b16 %v7930
      %v8036 = vunpack.c.h.b16 %v7930
      %v8037 = vunpack.c.l.b16 %v7931
      %v8038 = vunpack.c.h.b16 %v7931
      %v8039 = vunpack.c.l.b16 %v7932
      %v8040 = vunpack.c.h.b16 %v7932
      %v8041 = vunpack.c.l.b16 %v7933
      %v8042 = vunpack.c.h.b16 %v7933
      %v8043 = vunpack.c.l.b16 %v7934
      %v8044 = vunpack.c.h.b16 %v7934
      %v8045 = vpack.c.b16 %v7983, %v7981
      %v8046 = vpack.c.b16 %v7984, %v7982
      %v8047 = vpack.c.b16 %v7987, %v7985
      %v8048 = vpack.c.b16 %v7988, %v7986
      %v8049 = vpack.c.b16 %v7991, %v7989
      %v8050 = vpack.c.b16 %v7992, %v7990
      %v8051 = vpack.c.b16 %v7995, %v7993
      %v8052 = vpack.c.b16 %v7996, %v7994
      %v8053 = vpack.c.b16 %v7999, %v7997
      %v8054 = vpack.c.b16 %v8000, %v7998
      %v8055 = vpack.c.b16 %v8003, %v8001
      %v8056 = vpack.c.b16 %v8004, %v8002
      %v8057 = vpack.c.b16 %v8007, %v8005
      %v8058 = vpack.c.b16 %v8008, %v8006
      %v8059 = vpack.c.b16 %v8011, %v8009
      %v8060 = vpack.c.b16 %v8012, %v8010
      %v8061 = vpack.c.b16 %v8015, %v8013
      %v8062 = vpack.c.b16 %v8016, %v8014
      %v8063 = vpack.c.b16 %v8019, %v8017
      %v8064 = vpack.c.b16 %v8020, %v8018
      %v8065 = vpack.c.b16 %v8023, %v8021
      %v8066 = vpack.c.b16 %v8024, %v8022
      %v8067 = vpack.c.b16 %v8027, %v8025
      %v8068 = vpack.c.b16 %v8028, %v8026
      %v8069 = vpack.c.b16 %v8031, %v8029
      %v8070 = vpack.c.b16 %v8032, %v8030
      %v8071 = vpack.c.b16 %v8035, %v8033
      %v8072 = vpack.c.b16 %v8036, %v8034
      %v8073 = vpack.c.b16 %v8039, %v8037
      %v8074 = vpack.c.b16 %v8040, %v8038
      %v8075 = vpack.c.b16 %v8043, %v8041
      %v8076 = vpack.c.b16 %v8044, %v8042
      %8109 = vmatprep.subr.bf16.mxu0 %v8046
      %8110 = vmatpush1.bf16.msra.mxu0 %v8045
      %8111 = vmatprep.subr.bf16.mxu0 %v8048
      %8112 = vmatpush1.bf16.msra.mxu0 %v8047
      %8113 = vmatprep.subr.bf16.mxu0 %v8050
      %8114 = vmatpush1.bf16.msra.mxu0 %v8049
      %8115 = vmatprep.subr.bf16.mxu0 %v8052
      %8116 = vmatpush1.bf16.msra.mxu0 %v8051
      %8117 = vmatprep.subr.bf16.mxu0 %v8054
      %8118 = vmatpush1.bf16.msra.mxu0 %v8053
      %8119 = vmatprep.subr.bf16.mxu0 %v8056
      %8120 = vmatpush1.bf16.msra.mxu0 %v8055
      %8121 = vmatprep.subr.bf16.mxu0 %v8058
      %8122 = vmatpush1.bf16.msra.mxu0 %v8057
      %8123 = vmatprep.subr.bf16.mxu0 %v8060
      %8124 = vmatpush1.bf16.msra.mxu0 %v8059
      %8125 = vmatprep.subr.bf16.mxu0 %v8062
      %8126 = vmatpush1.bf16.msra.mxu0 %v8061
      %8127 = vmatprep.subr.bf16.mxu0 %v8064
      %8128 = vmatpush1.bf16.msra.mxu0 %v8063
      %8129 = vmatprep.subr.bf16.mxu0 %v8066
      %8130 = vmatpush1.bf16.msra.mxu0 %v8065
      %8131 = vmatprep.subr.bf16.mxu0 %v8068
      %8132 = vmatpush1.bf16.msra.mxu0 %v8067
      %8133 = vmatprep.subr.bf16.mxu0 %v8070
      %8134 = vmatpush1.bf16.msra.mxu0 %v8069
      %8135 = vmatprep.subr.bf16.mxu0 %v8072
      %8136 = vmatpush1.bf16.msra.mxu0 %v8071
      %8137 = vmatprep.subr.bf16.mxu0 %v8074
      %8138 = vmatpush1.bf16.msra.mxu0 %v8073
      %8139 = vmatprep.subr.bf16.mxu0 %v8076
      %8140 = vmatpush1.bf16.msra.mxu0 %v8075
      %8141 = vmatprep.mubr.bf16.mxu0 %v7936
      %8142 = vmatmul.mubr.bf16.gmra.mrb[0].mxu0 %v7935
      %v8143 = vpop.f32.mrb[0].mxu0
      %v8144 = vadd.f32 %v7942, %v8143
      %v8145 = vpop.f32.mrb[0].mxu0
      %v8146 = vadd.f32 %v7946, %v8145
      %v8147 = vpop.f32.mrb[0].mxu0
      %v8148 = vadd.f32 %v7942, %v8147
      %v8149 = vpop.f32.mrb[0].mxu0
      %v8150 = vadd.f32 %v7946, %v8149
      %8151 = vdwg.mxu0
      %v8152 = vmul.f32 %v8144, 0.5
      %v8153 = vmul.f32 %v8146, 0.5
      %v8154 = vmul.f32 %v8148, 0.5
      %v8155 = vmul.f32 %v8150, 0.5
      %v8156 = vmul.f32 %v8144, 0.70710677
      %v8157 = vmul.f32 %v8146, 0.70710677
      %v8158 = vmul.f32 %v8148, 0.70710677
      %v8159 = vmul.f32 %v8150, 0.70710677
      %v8160 = verf.f32.pop %v8156
      %v8161 = verf.f32.pop %v8157
      %v8162 = verf.f32.pop %v8158
      %v8163 = verf.f32.pop %v8159
      %v8164 = vadd.f32 %v8160, 1.0
      %v8165 = vadd.f32 %v8161, 1.0
      %v8166 = vadd.f32 %v8162, 1.0
      %v8167 = vadd.f32 %v8163, 1.0
      %v8168 = vmul.f32 %v8152, %v8164
      %v8169 = vmul.f32 %v8153, %v8165
      %v8170 = vmul.f32 %v8154, %v8166
      %v8171 = vmul.f32 %v8155, %v8167
      %v8172 = vld [vmem:[%s61] sm:$0xff]
      %v8173 = vld [vmem:[%s61 + $0x8] sm:$0xff]
      %v8174 = vld [vmem:[%s61 + $0x10] sm:$0xff]
      %v8175 = vld [vmem:[%s61 + $0x18] sm:$0xff]
      %v8176 = vld [vmem:[%s61 + $0x20] sm:$0xff]
      %v8177 = vld [vmem:[%s61 + $0x28] sm:$0xff]
      %v8178 = vld [vmem:[%s61 + $0x30] sm:$0xff]
      %v8179 = vld [vmem:[%s61 + $0x38] sm:$0xff]
      %v8180 = vld [vmem:[%s61 + $0x40] sm:$0xff]
      %v8181 = vld [vmem:[%s61 + $0x48] sm:$0xff]
      %v8182 = vld [vmem:[%s61 + $0x50] sm:$0xff]
      %v8183 = vld [vmem:[%s61 + $0x58] sm:$0xff]
      %v8184 = vld [vmem:[%s61 + $0x60] sm:$0xff]
      %v8185 = vld [vmem:[%s61 + $0x68] sm:$0xff]
      %v8186 = vld [vmem:[%s61 + $0x70] sm:$0xff]
      %v8187 = vld [vmem:[%s61 + $0x78] sm:$0xff]
      %v8188 = vld [vmem:[%s61 + $0x80] sm:$0xff]
      %v8189 = vld [vmem:[%s61 + $0x88] sm:$0xff]
      %v8190 = vld [vmem:[%s61 + $0x90] sm:$0xff]
      %v8191 = vld [vmem:[%s61 + $0x98] sm:$0xff]
      %v8192 = vld [vmem:[%s61 + $0xa0] sm:$0xff]
      %v8193 = vld [vmem:[%s61 + $0xa8] sm:$0xff]
      %v8194 = vld [vmem:[%s61 + $0xb0] sm:$0xff]
      %v8195 = vld [vmem:[%s61 + $0xb8] sm:$0xff]
      %v8196 = vld [vmem:[%s61 + $0xc0] sm:$0xff]
      %v8197 = vld [vmem:[%s61 + $0xc8] sm:$0xff]
      %v8198 = vld [vmem:[%s61 + $0xd0] sm:$0xff]
      %v8199 = vld [vmem:[%s61 + $0xd8] sm:$0xff]
      %v8200 = vld [vmem:[%s61 + $0xe0] sm:$0xff]
      %v8201 = vld [vmem:[%s61 + $0xe8] sm:$0xff]
      %v8202 = vld [vmem:[%s61 + $0xf0] sm:$0xff]
      %v8203 = vld [vmem:[%s61 + $0xf8] sm:$0xff]
      %v8204 = vpack.c.bf16 %v8170, %v8168
      %v8205 = vpack.c.bf16 %v8171, %v8169
      %v8206 = vld [vmem:[%s63] sm:$0x3]
      %v8208 = vlaneseq
      %v8209 = vshrl.u32 %v8208, 7
      %v8210 = vsub.s32 0, %v8209
      %v8211 = vrot.slane %v8206, %v8210
      %v8212 = vlaneseq
      %v8213 = vshrl.u32 %v8212, 7
      %v8214 = vsub.s32 1, %v8213
      %v8215 = vrot.slane %v8206, %v8214
      %v8250 = vunpack.c.l.b16 %v8172
      %v8251 = vunpack.c.h.b16 %v8172
      %v8252 = vunpack.c.l.b16 %v8173
      %v8253 = vunpack.c.h.b16 %v8173
      %v8254 = vunpack.c.l.b16 %v8174
      %v8255 = vunpack.c.h.b16 %v8174
      %v8256 = vunpack.c.l.b16 %v8175
      %v8257 = vunpack.c.h.b16 %v8175
      %v8258 = vunpack.c.l.b16 %v8176
      %v8259 = vunpack.c.h.b16 %v8176
      %v8260 = vunpack.c.l.b16 %v8177
      %v8261 = vunpack.c.h.b16 %v8177
      %v8262 = vunpack.c.l.b16 %v8178
      %v8263 = vunpack.c.h.b16 %v8178
      %v8264 = vunpack.c.l.b16 %v8179
      %v8265 = vunpack.c.h.b16 %v8179
      %v8266 = vunpack.c.l.b16 %v8180
      %v8267 = vunpack.c.h.b16 %v8180
      %v8268 = vunpack.c.l.b16 %v8181
      %v8269 = vunpack.c.h.b16 %v8181
      %v8270 = vunpack.c.l.b16 %v8182
      %v8271 = vunpack.c.h.b16 %v8182
      %v8272 = vunpack.c.l.b16 %v8183
      %v8273 = vunpack.c.h.b16 %v8183
      %v8274 = vunpack.c.l.b16 %v8184
      %v8275 = vunpack.c.h.b16 %v8184
      %v8276 = vunpack.c.l.b16 %v8185
      %v8277 = vunpack.c.h.b16 %v8185
      %v8278 = vunpack.c.l.b16 %v8186
      %v8279 = vunpack.c.h.b16 %v8186
      %v8280 = vunpack.c.l.b16 %v8187
      %v8281 = vunpack.c.h.b16 %v8187
      %v8282 = vunpack.c.l.b16 %v8188
      %v8283 = vunpack.c.h.b16 %v8188
      %v8284 = vunpack.c.l.b16 %v8189
      %v8285 = vunpack.c.h.b16 %v8189
      %v8286 = vunpack.c.l.b16 %v8190
      %v8287 = vunpack.c.h.b16 %v8190
      %v8288 = vunpack.c.l.b16 %v8191
      %v8289 = vunpack.c.h.b16 %v8191
      %v8290 = vunpack.c.l.b16 %v8192
      %v8291 = vunpack.c.h.b16 %v8192
      %v8292 = vunpack.c.l.b16 %v8193
      %v8293 = vunpack.c.h.b16 %v8193
      %v8294 = vunpack.c.l.b16 %v8194
      %v8295 = vunpack.c.h.b16 %v8194
      %v8296 = vunpack.c.l.b16 %v8195
      %v8297 = vunpack.c.h.b16 %v8195
      %v8298 = vunpack.c.l.b16 %v8196
      %v8299 = vunpack.c.h.b16 %v8196
      %v8300 = vunpack.c.l.b16 %v8197
      %v8301 = vunpack.c.h.b16 %v8197
      %v8302 = vunpack.c.l.b16 %v8198
      %v8303 = vunpack.c.h.b16 %v8198
      %v8304 = vunpack.c.l.b16 %v8199
      %v8305 = vunpack.c.h.b16 %v8199
      %v8306 = vunpack.c.l.b16 %v8200
      %v8307 = vunpack.c.h.b16 %v8200
      %v8308 = vunpack.c.l.b16 %v8201
      %v8309 = vunpack.c.h.b16 %v8201
      %v8310 = vunpack.c.l.b16 %v8202
      %v8311 = vunpack.c.h.b16 %v8202
      %v8312 = vunpack.c.l.b16 %v8203
      %v8313 = vunpack.c.h.b16 %v8203
      %v8314 = vpack.c.b16 %v8252, %v8250
      %v8315 = vpack.c.b16 %v8253, %v8251
      %v8316 = vpack.c.b16 %v8256, %v8254
      %v8317 = vpack.c.b16 %v8257, %v8255
      %v8318 = vpack.c.b16 %v8260, %v8258
      %v8319 = vpack.c.b16 %v8261, %v8259
      %v8320 = vpack.c.b16 %v8264, %v8262
      %v8321 = vpack.c.b16 %v8265, %v8263
      %v8322 = vpack.c.b16 %v8268, %v8266
      %v8323 = vpack.c.b16 %v8269, %v8267
      %v8324 = vpack.c.b16 %v8272, %v8270
      %v8325 = vpack.c.b16 %v8273, %v8271
      %v8326 = vpack.c.b16 %v8276, %v8274
      %v8327 = vpack.c.b16 %v8277, %v8275
      %v8328 = vpack.c.b16 %v8280, %v8278
      %v8329 = vpack.c.b16 %v8281, %v8279
      %v8330 = vpack.c.b16 %v8284, %v8282
      %v8331 = vpack.c.b16 %v8285, %v8283
      %v8332 = vpack.c.b16 %v8288, %v8286
      %v8333 = vpack.c.b16 %v8289, %v8287
      %v8334 = vpack.c.b16 %v8292, %v8290
      %v8335 = vpack.c.b16 %v8293, %v8291
      %v8336 = vpack.c.b16 %v8296, %v8294
      %v8337 = vpack.c.b16 %v8297, %v8295
      %v8338 = vpack.c.b16 %v8300, %v8298
      %v8339 = vpack.c.b16 %v8301, %v8299
      %v8340 = vpack.c.b16 %v8304, %v8302
      %v8341 = vpack.c.b16 %v8305, %v8303
      %v8342 = vpack.c.b16 %v8308, %v8306
      %v8343 = vpack.c.b16 %v8309, %v8307
      %v8344 = vpack.c.b16 %v8312, %v8310
      %v8345 = vpack.c.b16 %v8313, %v8311
      %8378 = vmatprep.subr.bf16.mxu0 %v8315
      %8379 = vmatpush1.bf16.msra.mxu0 %v8314
      %8380 = vmatprep.subr.bf16.mxu0 %v8317
      %8381 = vmatpush1.bf16.msra.mxu0 %v8316
      %8382 = vmatprep.subr.bf16.mxu0 %v8319
      %8383 = vmatpush1.bf16.msra.mxu0 %v8318
      %8384 = vmatprep.subr.bf16.mxu0 %v8321
      %8385 = vmatpush1.bf16.msra.mxu0 %v8320
      %8386 = vmatprep.subr.bf16.mxu0 %v8323
      %8387 = vmatpush1.bf16.msra.mxu0 %v8322
      %8388 = vmatprep.subr.bf16.mxu0 %v8325
      %8389 = vmatpush1.bf16.msra.mxu0 %v8324
      %8390 = vmatprep.subr.bf16.mxu0 %v8327
      %8391 = vmatpush1.bf16.msra.mxu0 %v8326
      %8392 = vmatprep.subr.bf16.mxu0 %v8329
      %8393 = vmatpush1.bf16.msra.mxu0 %v8328
      %8394 = vmatprep.subr.bf16.mxu0 %v8331
      %8395 = vmatpush1.bf16.msra.mxu0 %v8330
      %8396 = vmatprep.subr.bf16.mxu0 %v8333
      %8397 = vmatpush1.bf16.msra.mxu0 %v8332
      %8398 = vmatprep.subr.bf16.mxu0 %v8335
      %8399 = vmatpush1.bf16.msra.mxu0 %v8334
      %8400 = vmatprep.subr.bf16.mxu0 %v8337
      %8401 = vmatpush1.bf16.msra.mxu0 %v8336
      %8402 = vmatprep.subr.bf16.mxu0 %v8339
      %8403 = vmatpush1.bf16.msra.mxu0 %v8338
      %8404 = vmatprep.subr.bf16.mxu0 %v8341
      %8405 = vmatpush1.bf16.msra.mxu0 %v8340
      %8406 = vmatprep.subr.bf16.mxu0 %v8343
      %8407 = vmatpush1.bf16.msra.mxu0 %v8342
      %8408 = vmatprep.subr.bf16.mxu0 %v8345
      %8409 = vmatpush1.bf16.msra.mxu0 %v8344
      %8410 = vmatprep.mubr.bf16.mxu0 %v8205
      %8411 = vmatmul.mubr.bf16.gmra.mrb[0].mxu0 %v8204
      %v8412 = vpop.f32.mrb[0].mxu0
      %v8413 = vadd.f32 %v8211, %v8412
      %v8414 = vpop.f32.mrb[0].mxu0
      %v8415 = vadd.f32 %v8215, %v8414
      %v8416 = vpop.f32.mrb[0].mxu0
      %v8417 = vadd.f32 %v8211, %v8416
      %v8418 = vpop.f32.mrb[0].mxu0
      %v8419 = vadd.f32 %v8215, %v8418
      %8420 = vdwg.mxu0
      %v8421 = vmul.f32 %v8413, 0.5
      %v8422 = vmul.f32 %v8415, 0.5
      %v8423 = vmul.f32 %v8417, 0.5
      %v8424 = vmul.f32 %v8419, 0.5
      %v8425 = vmul.f32 %v8413, 0.70710677
      %v8426 = vmul.f32 %v8415, 0.70710677
      %v8427 = vmul.f32 %v8417, 0.70710677
      %v8428 = vmul.f32 %v8419, 0.70710677
      %v8429 = verf.f32.pop %v8425
      %v8430 = verf.f32.pop %v8426
      %v8431 = verf.f32.pop %v8427
      %v8432 = verf.f32.pop %v8428
      %v8433 = vadd.f32 %v8429, 1.0
      %v8434 = vadd.f32 %v8430, 1.0
      %v8435 = vadd.f32 %v8431, 1.0
      %v8436 = vadd.f32 %v8432, 1.0
      %v8437 = vmul.f32 %v8421, %v8433
      %v8438 = vmul.f32 %v8422, %v8434
      %v8439 = vmul.f32 %v8423, %v8435
      %v8440 = vmul.f32 %v8424, %v8436
      %v8441 = vld [vmem:[%s65] sm:$0xf]
      %v8442 = vld [vmem:[%s65 + $0x4] sm:$0xf]
      %v8443 = vld [vmem:[%s65 + $0x8] sm:$0xf]
      %v8444 = vld [vmem:[%s65 + $0xc] sm:$0xf]
      %v8445 = vld [vmem:[%s65 + $0x10] sm:$0xf]
      %v8446 = vld [vmem:[%s65 + $0x14] sm:$0xf]
      %v8447 = vld [vmem:[%s65 + $0x18] sm:$0xf]
      %v8448 = vld [vmem:[%s65 + $0x1c] sm:$0xf]
      %v8449 = vld [vmem:[%s65 + $0x20] sm:$0xf]
      %v8450 = vld [vmem:[%s65 + $0x24] sm:$0xf]
      %v8451 = vld [vmem:[%s65 + $0x28] sm:$0xf]
      %v8452 = vld [vmem:[%s65 + $0x2c] sm:$0xf]
      %v8453 = vld [vmem:[%s65 + $0x30] sm:$0xf]
      %v8454 = vld [vmem:[%s65 + $0x34] sm:$0xf]
      %v8455 = vld [vmem:[%s65 + $0x38] sm:$0xf]
      %v8456 = vld [vmem:[%s65 + $0x3c] sm:$0xf]
      %v8457 = vld [vmem:[%s65 + $0x40] sm:$0xf]
      %v8458 = vld [vmem:[%s65 + $0x44] sm:$0xf]
      %v8459 = vld [vmem:[%s65 + $0x48] sm:$0xf]
      %v8460 = vld [vmem:[%s65 + $0x4c] sm:$0xf]
      %v8461 = vld [vmem:[%s65 + $0x50] sm:$0xf]
      %v8462 = vld [vmem:[%s65 + $0x54] sm:$0xf]
      %v8463 = vld [vmem:[%s65 + $0x58] sm:$0xf]
      %v8464 = vld [vmem:[%s65 + $0x5c] sm:$0xf]
      %v8465 = vld [vmem:[%s65 + $0x60] sm:$0xf]
      %v8466 = vld [vmem:[%s65 + $0x64] sm:$0xf]
      %v8467 = vld [vmem:[%s65 + $0x68] sm:$0xf]
      %v8468 = vld [vmem:[%s65 + $0x6c] sm:$0xf]
      %v8469 = vld [vmem:[%s65 + $0x70] sm:$0xf]
      %v8470 = vld [vmem:[%s65 + $0x74] sm:$0xf]
      %v8471 = vld [vmem:[%s65 + $0x78] sm:$0xf]
      %v8472 = vld [vmem:[%s65 + $0x7c] sm:$0xf]
      %v8473 = vpack.c.bf16 %v8439, %v8437
      %v8474 = vpack.c.bf16 %v8440, %v8438
      %v8475 = vld [vmem:[%s67] sm:$0x1]
      %v8477 = vlaneseq
      %v8478 = vshrl.u32 %v8477, 7
      %v8479 = vsub.s32 0, %v8478
      %v8480 = vrot.slane %v8475, %v8479
      %v8514 = vunpack.c.l.b16 %v8441
      %v8515 = vunpack.c.l.b16 %v8442
      %v8516 = vunpack.c.l.b16 %v8443
      %v8517 = vunpack.c.l.b16 %v8444
      %v8518 = vunpack.c.l.b16 %v8445
      %v8519 = vunpack.c.l.b16 %v8446
      %v8520 = vunpack.c.l.b16 %v8447
      %v8521 = vunpack.c.l.b16 %v8448
      %v8522 = vunpack.c.l.b16 %v8449
      %v8523 = vunpack.c.l.b16 %v8450
      %v8524 = vunpack.c.l.b16 %v8451
      %v8525 = vunpack.c.l.b16 %v8452
      %v8526 = vunpack.c.l.b16 %v8453
      %v8527 = vunpack.c.l.b16 %v8454
      %v8528 = vunpack.c.l.b16 %v8455
      %v8529 = vunpack.c.l.b16 %v8456
      %v8530 = vunpack.c.l.b16 %v8457
      %v8531 = vunpack.c.l.b16 %v8458
      %v8532 = vunpack.c.l.b16 %v8459
      %v8533 = vunpack.c.l.b16 %v8460
      %v8534 = vunpack.c.l.b16 %v8461
      %v8535 = vunpack.c.l.b16 %v8462
      %v8536 = vunpack.c.l.b16 %v8463
      %v8537 = vunpack.c.l.b16 %v8464
      %v8538 = vunpack.c.l.b16 %v8465
      %v8539 = vunpack.c.l.b16 %v8466
      %v8540 = vunpack.c.l.b16 %v8467
      %v8541 = vunpack.c.l.b16 %v8468
      %v8542 = vunpack.c.l.b16 %v8469
      %v8543 = vunpack.c.l.b16 %v8470
      %v8544 = vunpack.c.l.b16 %v8471
      %v8545 = vunpack.c.l.b16 %v8472
      %v8546 = vpack.c.b16 %v8515, %v8514
      %v8547 = vpack.c.b16 %v8517, %v8516
      %v8548 = vpack.c.b16 %v8519, %v8518
      %v8549 = vpack.c.b16 %v8521, %v8520
      %v8550 = vpack.c.b16 %v8523, %v8522
      %v8551 = vpack.c.b16 %v8525, %v8524
      %v8552 = vpack.c.b16 %v8527, %v8526
      %v8553 = vpack.c.b16 %v8529, %v8528
      %v8554 = vpack.c.b16 %v8531, %v8530
      %v8555 = vpack.c.b16 %v8533, %v8532
      %v8556 = vpack.c.b16 %v8535, %v8534
      %v8557 = vpack.c.b16 %v8537, %v8536
      %v8558 = vpack.c.b16 %v8539, %v8538
      %v8559 = vpack.c.b16 %v8541, %v8540
      %v8560 = vpack.c.b16 %v8543, %v8542
      %v8561 = vpack.c.b16 %v8545, %v8544
      %8578 = vmatprep.subr.bf16.mxu0 0
      %8579 = vmatpush1.bf16.msra.mxu0 %v8546
      %8580 = vmatprep.subr.bf16.mxu0 0
      %8581 = vmatpush1.bf16.msra.mxu0 %v8547
      %8582 = vmatprep.subr.bf16.mxu0 0
      %8583 = vmatpush1.bf16.msra.mxu0 %v8548
      %8584 = vmatprep.subr.bf16.mxu0 0
      %8585 = vmatpush1.bf16.msra.mxu0 %v8549
      %8586 = vmatprep.subr.bf16.mxu0 0
      %8587 = vmatpush1.bf16.msra.mxu0 %v8550
      %8588 = vmatprep.subr.bf16.mxu0 0
      %8589 = vmatpush1.bf16.msra.mxu0 %v8551
      %8590 = vmatprep.subr.bf16.mxu0 0
      %8591 = vmatpush1.bf16.msra.mxu0 %v8552
      %8592 = vmatprep.subr.bf16.mxu0 0
      %8593 = vmatpush1.bf16.msra.mxu0 %v8553
      %8594 = vmatprep.subr.bf16.mxu0 0
      %8595 = vmatpush1.bf16.msra.mxu0 %v8554
      %8596 = vmatprep.subr.bf16.mxu0 0
      %8597 = vmatpush1.bf16.msra.mxu0 %v8555
      %8598 = vmatprep.subr.bf16.mxu0 0
      %8599 = vmatpush1.bf16.msra.mxu0 %v8556
      %8600 = vmatprep.subr.bf16.mxu0 0
      %8601 = vmatpush1.bf16.msra.mxu0 %v8557
      %8602 = vmatprep.subr.bf16.mxu0 0
      %8603 = vmatpush1.bf16.msra.mxu0 %v8558
      %8604 = vmatprep.subr.bf16.mxu0 0
      %8605 = vmatpush1.bf16.msra.mxu0 %v8559
      %8606 = vmatprep.subr.bf16.mxu0 0
      %8607 = vmatpush1.bf16.msra.mxu0 %v8560
      %8608 = vmatprep.subr.bf16.mxu0 0
      %8609 = vmatpush1.bf16.msra.mxu0 %v8561
      %8610 = vmatprep.mubr.bf16.mxu0 %v8474
      %8611 = vmatmul.mubr.bf16.gmra.mrb[0].mxu0 %v8473
      %v8612 = vpop.f32.mrb[0].mxu0
      %v8613 = vadd.f32 %v8480, %v8612
      %v8614 = vpop.f32.mrb[0].mxu0
      %v8615 = vpop.f32.mrb[0].mxu0
      %v8616 = vadd.f32 %v8480, %v8615
      %v8617 = vpop.f32.mrb[0].mxu0
      %8618 = vdwg.mxu0
      %8619 = vst [vmem:[%s1163] sm:$0xff] %v8613
      %8620 = vst [vmem:[%s1163 + $0x8] sm:$0xff] %v8616
      %v8622 = vsel %vm1540, 1031814528, 0
      %8624 = vmatprep.subr.bf16.mxu0 %v8474
      %8625 = vmatpush1.bf16.msra.mxu0 %v8473
      %8626 = vmatprep.subr.bf16.mxu0 0
      %8627 = vmatpush1.bf16.msra.mxu0 0
      %8628 = vmatprep.subr.bf16.mxu0 0
      %8629 = vmatpush1.bf16.msra.mxu0 0
      %8630 = vmatprep.subr.bf16.mxu0 0
      %8631 = vmatpush1.bf16.msra.mxu0 0
      %8632 = vmatprep.subr.bf16.mxu0 0
      %8633 = vmatpush1.bf16.msra.mxu0 0
      %8634 = vmatprep.subr.bf16.mxu0 0
      %8635 = vmatpush1.bf16.msra.mxu0 0
      %8636 = vmatprep.subr.bf16.mxu0 0
      %8637 = vmatpush1.bf16.msra.mxu0 0
      %8638 = vmatprep.subr.bf16.mxu0 0
      %8639 = vmatpush1.bf16.msra.mxu0 0
      %8640 = vmatprep.subr.bf16.mxu0 0
      %8641 = vmatpush1.bf16.msra.mxu0 0
      %8642 = vmatprep.subr.bf16.mxu0 0
      %8643 = vmatpush1.bf16.msra.mxu0 0
      %8644 = vmatprep.subr.bf16.mxu0 0
      %8645 = vmatpush1.bf16.msra.mxu0 0
      %8646 = vmatprep.subr.bf16.mxu0 0
      %8647 = vmatpush1.bf16.msra.mxu0 0
      %8648 = vmatprep.subr.bf16.mxu0 0
      %8649 = vmatpush1.bf16.msra.mxu0 0
      %8650 = vmatprep.subr.bf16.mxu0 0
      %8651 = vmatpush1.bf16.msra.mxu0 0
      %8652 = vmatprep.subr.bf16.mxu0 0
      %8653 = vmatpush1.bf16.msra.mxu0 0
      %8654 = vmatprep.subr.bf16.mxu0 0
      %8655 = vmatpush1.bf16.msra.mxu0 0
      %8656 = vmatprep.mubr.bf16.mxu0 0
      %8657 = vmatmul.mubr.bf16.gmra.mrb[0].mxu0 %v8622
      %v8658 = vpop.f32.mrb[0].mxu0
      %v8659 = vadd.f32 0.0, %v8658
      %v8660 = vpop.f32.mrb[0].mxu0
      %v8661 = vadd.f32 0.0, %v8660
      %v8662 = vpop.f32.mrb[0].mxu0
      %v8663 = vpop.f32.mrb[0].mxu0
      %8664 = vdwg.mxu0
      %v8665 = vld [vmem:[%s69] sm:$0xf]
      %v8666 = vld [vmem:[%s69 + $0x4] sm:$0xf]
      %v8667 = vld [vmem:[%s69 + $0x8] sm:$0xf]
      %v8668 = vld [vmem:[%s69 + $0xc] sm:$0xf]
      %v8669 = vld [vmem:[%s69 + $0x10] sm:$0xf]
      %v8670 = vld [vmem:[%s69 + $0x14] sm:$0xf]
      %v8671 = vld [vmem:[%s69 + $0x18] sm:$0xf]
      %v8672 = vld [vmem:[%s69 + $0x1c] sm:$0xf]
      %v8673 = vld [vmem:[%s69 + $0x20] sm:$0xf]
      %v8674 = vld [vmem:[%s69 + $0x24] sm:$0xf]
      %v8675 = vld [vmem:[%s69 + $0x28] sm:$0xf]
      %v8676 = vld [vmem:[%s69 + $0x2c] sm:$0xf]
      %v8677 = vld [vmem:[%s69 + $0x30] sm:$0xf]
      %v8678 = vld [vmem:[%s69 + $0x34] sm:$0xf]
      %v8679 = vld [vmem:[%s69 + $0x38] sm:$0xf]
      %v8680 = vld [vmem:[%s69 + $0x3c] sm:$0xf]
      %v8681 = vld [vmem:[%s69 + $0x40] sm:$0xf]
      %v8682 = vld [vmem:[%s69 + $0x44] sm:$0xf]
      %v8683 = vld [vmem:[%s69 + $0x48] sm:$0xf]
      %v8684 = vld [vmem:[%s69 + $0x4c] sm:$0xf]
      %v8685 = vld [vmem:[%s69 + $0x50] sm:$0xf]
      %v8686 = vld [vmem:[%s69 + $0x54] sm:$0xf]
      %v8687 = vld [vmem:[%s69 + $0x58] sm:$0xf]
      %v8688 = vld [vmem:[%s69 + $0x5c] sm:$0xf]
      %v8689 = vld [vmem:[%s69 + $0x60] sm:$0xf]
      %v8690 = vld [vmem:[%s69 + $0x64] sm:$0xf]
      %v8691 = vld [vmem:[%s69 + $0x68] sm:$0xf]
      %v8692 = vld [vmem:[%s69 + $0x6c] sm:$0xf]
      %v8693 = vld [vmem:[%s69 + $0x70] sm:$0xf]
      %v8694 = vld [vmem:[%s69 + $0x74] sm:$0xf]
      %v8695 = vld [vmem:[%s69 + $0x78] sm:$0xf]
      %v8696 = vld [vmem:[%s69 + $0x7c] sm:$0xf]
      %v8697 = vpack.c.bf16 %v8659, %v8659
      %v8698 = vpack.c.bf16 %v8661, %v8661
      %v8699 = vld [vmem:[%s71] sm:$0x1]
      %v8732 = vunpack.c.l.b16 %v8665
      %v8733 = vunpack.c.l.b16 %v8666
      %v8734 = vunpack.c.l.b16 %v8667
      %v8735 = vunpack.c.l.b16 %v8668
      %v8736 = vunpack.c.l.b16 %v8669
      %v8737 = vunpack.c.l.b16 %v8670
      %v8738 = vunpack.c.l.b16 %v8671
      %v8739 = vunpack.c.l.b16 %v8672
      %v8740 = vunpack.c.l.b16 %v8673
      %v8741 = vunpack.c.l.b16 %v8674
      %v8742 = vunpack.c.l.b16 %v8675
      %v8743 = vunpack.c.l.b16 %v8676
      %v8744 = vunpack.c.l.b16 %v8677
      %v8745 = vunpack.c.l.b16 %v8678
      %v8746 = vunpack.c.l.b16 %v8679
      %v8747 = vunpack.c.l.b16 %v8680
      %v8748 = vunpack.c.l.b16 %v8681
      %v8749 = vunpack.c.l.b16 %v8682
      %v8750 = vunpack.c.l.b16 %v8683
      %v8751 = vunpack.c.l.b16 %v8684
      %v8752 = vunpack.c.l.b16 %v8685
      %v8753 = vunpack.c.l.b16 %v8686
      %v8754 = vunpack.c.l.b16 %v8687
      %v8755 = vunpack.c.l.b16 %v8688
      %v8756 = vunpack.c.l.b16 %v8689
      %v8757 = vunpack.c.l.b16 %v8690
      %v8758 = vunpack.c.l.b16 %v8691
      %v8759 = vunpack.c.l.b16 %v8692
      %v8760 = vunpack.c.l.b16 %v8693
      %v8761 = vunpack.c.l.b16 %v8694
      %v8762 = vunpack.c.l.b16 %v8695
      %v8763 = vunpack.c.l.b16 %v8696
      %v8764 = vpack.c.b16 %v8733, %v8732
      %v8765 = vpack.c.b16 %v8735, %v8734
      %v8766 = vpack.c.b16 %v8737, %v8736
      %v8767 = vpack.c.b16 %v8739, %v8738
      %v8768 = vpack.c.b16 %v8741, %v8740
      %v8769 = vpack.c.b16 %v8743, %v8742
      %v8770 = vpack.c.b16 %v8745, %v8744
      %v8771 = vpack.c.b16 %v8747, %v8746
      %v8772 = vpack.c.b16 %v8749, %v8748
      %v8773 = vpack.c.b16 %v8751, %v8750
      %v8774 = vpack.c.b16 %v8753, %v8752
      %v8775 = vpack.c.b16 %v8755, %v8754
      %v8776 = vpack.c.b16 %v8757, %v8756
      %v8777 = vpack.c.b16 %v8759, %v8758
      %v8778 = vpack.c.b16 %v8761, %v8760
      %v8779 = vpack.c.b16 %v8763, %v8762
      %8796 = vmatprep.subr.bf16.mxu0 0
      %8797 = vmatpush1.bf16.msra.mxu0 %v8764
      %8798 = vmatprep.subr.bf16.mxu0 0
      %8799 = vmatpush1.bf16.msra.mxu0 %v8765
      %8800 = vmatprep.subr.bf16.mxu0 0
      %8801 = vmatpush1.bf16.msra.mxu0 %v8766
      %8802 = vmatprep.subr.bf16.mxu0 0
      %8803 = vmatpush1.bf16.msra.mxu0 %v8767
      %8804 = vmatprep.subr.bf16.mxu0 0
      %8805 = vmatpush1.bf16.msra.mxu0 %v8768
      %8806 = vmatprep.subr.bf16.mxu0 0
      %8807 = vmatpush1.bf16.msra.mxu0 %v8769
      %8808 = vmatprep.subr.bf16.mxu0 0
      %8809 = vmatpush1.bf16.msra.mxu0 %v8770
      %8810 = vmatprep.subr.bf16.mxu0 0
      %8811 = vmatpush1.bf16.msra.mxu0 %v8771
      %8812 = vmatprep.subr.bf16.mxu0 0
      %8813 = vmatpush1.bf16.msra.mxu0 %v8772
      %8814 = vmatprep.subr.bf16.mxu0 0
      %8815 = vmatpush1.bf16.msra.mxu0 %v8773
      %8816 = vmatprep.subr.bf16.mxu0 0
      %8817 = vmatpush1.bf16.msra.mxu0 %v8774
      %8818 = vmatprep.subr.bf16.mxu0 0
      %8819 = vmatpush1.bf16.msra.mxu0 %v8775
      %8820 = vmatprep.subr.bf16.mxu0 0
      %8821 = vmatpush1.bf16.msra.mxu0 %v8776
      %8822 = vmatprep.subr.bf16.mxu0 0
      %8823 = vmatpush1.bf16.msra.mxu0 %v8777
      %8824 = vmatprep.subr.bf16.mxu0 0
      %8825 = vmatpush1.bf16.msra.mxu0 %v8778
      %8826 = vmatprep.subr.bf16.mxu0 0
      %8827 = vmatpush1.bf16.msra.mxu0 %v8779
      %8828 = vmatprep.mubr.bf16.mxu0 %v8698
      %8829 = vmatmul.mubr.bf16.gmra.mrb[0].mxu0 %v8697
      %v8830 = vpop.f32.mrb[0].mxu0
      %v8831 = vadd.f32 %v8699, %v8830
      %v8832 = vpop.f32.mrb[0].mxu0
      %v8833 = vpop.f32.mrb[0].mxu0
      %v8834 = vpop.f32.mrb[0].mxu0
      %8835 = vdwg.mxu0
      %v8836 = vlaneseq
      %v8837 = vshrl.u32 %v8836, 7
      %v8838 = vsub.s32 0, %v8837
      %v8839 = vrot.slane %v8831, %v8838
      %8840 = vst [vmem:[%s1168] sm:$0xff] %v8839
      %s8841 = smul.u32 2, %s87
      %p8842 = scmp.lt.s32.totalorder %s8841, 3
      %s8843 = scalar_select %p8842, %s8841, 3
      %s8844 = smul.addr %s8843, 8
      %s8845 = scalar_lea.vmem %s73, %s8844
      %p8846 = scmp.lt.s32.totalorder %s87, 1
      %s8847 = scalar_select %p8846, %s87, 1
      %s8848 = smul.addr %s8847, 8
      %s8849 = scalar_lea.vmem %s75, %s8848
      // Predicated region
      $region165: #{forward.1} parent=163 // pred_check
        %p8850 = pneg %p871
      $region166: #{forward.1} parent=163 // pred_check_branch
        %8852 = sbr.rel (%p8850) target = $region168
      $region167: #{forward.1} parent=163 // pred_region
        %s8853 = smul.u32 2, %s87
      $region168: #{forward.1} parent=163 // pred_fallthru
        _
      // Predicated region
      $region169: #{forward.1} parent=163 // pred_check
        %p8854 = pneg %p897
      $region170: #{forward.1} parent=163 // pred_check_branch
        %8856 = sbr.rel (%p8854) target = $region172
      $region171: #{forward.1} parent=163 // pred_region
        _
      $region172: #{forward.1} parent=163 // pred_fallthru
        _
    $region164: #{forward.1} parent=5 // pred_fallthru
      _
    %p8857 = scmp.le.s32.totalorder 2, %s82
    // Predicated region
    $region173: #{forward.1} parent=5 // pred_check
      %p8858 = pneg %p8857
    $region174: #{forward.1} parent=5 // pred_check_branch
      %8860 = sbr.rel (%p8858) target = $region176
    $region175: #{forward.1} parent=5 // pred_region
      %s8861 = ssub.s32 %s82, 2
      // Predicated region
      $region177: #{forward.1} parent=175 // pred_check
        %p8862 = pneg %p877
      $region178: #{forward.1} parent=175 // pred_check_branch
        %8864 = sbr.rel (%p8862) target = $region180
      $region179: #{forward.1} parent=175 // pred_region
        %s8865 = smul.u32 2, %s88
        %p8866 = scmp.lt.s32.totalorder %s8865, 3
        %s8867 = scalar_select %p8866, %s8865, 3
        %s8868 = smul.addr %s8867, 8
        %s8869 = scalar_lea.vmem %s73, %s8868
      $region180: #{forward.1} parent=175 // pred_fallthru
        _
      // Predicated region
      $region181: #{forward.1} parent=175 // pred_check
        %p8870 = pneg %p903
      $region182: #{forward.1} parent=175 // pred_check_branch
        %8872 = sbr.rel (%p8870) target = $region184
      $region183: #{forward.1} parent=175 // pred_region
        %p8873 = scmp.lt.s32.totalorder %s88, 1
        %s8874 = scalar_select %p8873, %s88, 1
        %s8875 = smul.addr %s8874, 8
        %s8876 = scalar_lea.vmem %s75, %s8875
      $region184: #{forward.1} parent=175 // pred_fallthru
        _
    $region176: #{forward.1} parent=5 // pred_fallthru
      _
  $region6: #{forward.1} parent=0 // loop_footer
    %s86 = sadd.s32 1, %s82
  $region7: #{forward.1} parent=0 // loop_footer_branch
    %81 = sbr.rel target = $region3
  $region8: #{forward.1} parent=0 // loop_exit
    _

</llo_original>
